<compile_context>
chip_gen: v7x
topology: tpu7x:2x2x1
jax: 0.10.0
libtpu: 0.0.40
codegen_flags: <defaults>
</compile_context>

<pallas_src>
import functools

import jax
import jax.numpy as jnp
import numpy as np
from jax import lax
from jax.experimental import pallas as pl
from jax.experimental.pallas import tpu as pltpu

_HIGHEST = jax.lax.Precision.HIGHEST


def _round_up(v: int, m: int) -> int:
    return (v + m - 1) // m * m


def _get_act(activation: str):
    if activation == "tanh":
        return jnp.tanh
    if activation == "relu":
        return lambda v: jnp.maximum(v, 0.0)
    raise ValueError(f"unsupported nonlinearity: {activation}")


def _make_rnn_kernel(activation: str):
    act = _get_act(activation)

    def kernel(x_ref, wih_ref, whh_ref, wout_ref, bh_ref, bout_ref, out_ref, xw_ref):
        # x_ref   : (T, Bt, Ip)  time-major input tile, zero-padded
        # wih_ref : (Ip, Hp)     W_ih^T
        # whh_ref : (Hp, Hp)     W_hh^T
        # wout_ref: (Hp, Op)     W_out^T
        # bh_ref  : (1, Hp)      b_ih + b_hh
        # bout_ref: (1, Op)      b_out
        # out_ref : (Bt, Op)
        # xw_ref  : (T*Bt, Hp)   VMEM scratch for the hoisted projection
        T, Bt, Ip = x_ref.shape
        Hp = whh_ref.shape[0]
        f32 = jnp.float32

        # 1) Time-parallel input projection, fused in-kernel: one big MXU matmul over
        #    all timesteps (T*Bt rows fill the systolic array far better than per-step
        #    Bt-row dots), bias folded in.  xw never touches HBM.
        x_flat = x_ref[...].reshape(T * Bt, Ip)
        xw_ref[...] = (
            jnp.dot(x_flat, wih_ref[...], precision=_HIGHEST,
                    preferred_element_type=f32)
            + bh_ref[...]
        )

        # 2) Serial recurrence: per step only xw[t] + h @ W_hh^T + activation.
        #    W_hh^T is hoisted into vregs once.
        # TODO(synk): pltpu.matmul_push_rhs/matmul_acc_lhs could pin W_hh^T in the MXU
        #             staging registers across the loop; with fp32 multi-pass precision
        #             required for the 1e-5 tolerance we keep the portable jnp.dot path.
        whh = whh_ref[...]

        def body(xw_t, h):
            return act(
                xw_t + jnp.dot(h, whh, precision=_HIGHEST,
                               preferred_element_type=f32)
            )

        h = jnp.zeros((Bt, Hp), f32)
        if T <= 16:
            # Tiny static trip count: full unroll (static slices, LLO visibility).
            for t in range(T):
                h = body(xw_ref[pl.ds(t * Bt, Bt), :], h)
        else:
            # Larger T: real loop bounds vreg live ranges; small unroll keeps
            # scheduling visibility.
            def step(t, h):
                row = pl.multiple_of(t * Bt, Bt)
                return body(xw_ref[pl.ds(row, Bt), :], h)

            h = lax.fori_loop(0, T, step, h, unroll=4)

        # 3) Fused Linear head; Op padded to 128 -> lane-dense unmasked store.
        out_ref[...] = (
            jnp.dot(h, wout_ref[...], precision=_HIGHEST,
                    preferred_element_type=f32)
            + bout_ref[...]
        ).astype(out_ref.dtype)

    return kernel


@functools.partial(jax.jit, static_argnames=("activation",))
def rnn_forward(x, w_ih, w_hh, b_ih, b_hh, w_out, b_out, *, activation="tanh"):
    """x: (B, T, I) batch_first.  Weights in PyTorch layout:
       w_ih (H, I), w_hh (H, H), b_ih (H,), b_hh (H,), w_out (O, H), b_out (O,).
       Returns (B, O) = Linear(hidden state at last timestep), zero initial hidden."""
    B, T, I = x.shape
    H = w_hh.shape[0]
    O = w_out.shape[0]
    f32 = jnp.float32

    Ip = _round_up(I, 128)    # lane tile
    Hp = _round_up(H, 128)
    Op = _round_up(O, 128)    # lane-dense output store

    # Fill MXU rows first (batch tiles up to 256 rows), then shard leftover batch
    # across a parallel grid axis (2 TensorCores on v7x).
    if B <= 256:
        Bp = _round_up(B, 8)
        Bt = Bp
    else:
        Bp = _round_up(B, 256)
        Bt = 256
    nbt = Bp // Bt

    # Time-major, tile-padded input: the only activation tensor crossing HBM.
    x_t = jnp.transpose(x.astype(f32), (1, 0, 2))
    x_t = jnp.pad(x_t, ((0, 0), (0, Bp - B), (0, Ip - I)))

    wih_t = jnp.pad(jnp.transpose(w_ih).astype(f32), ((0, Ip - I), (0, Hp - H)))
    whh_t = jnp.pad(jnp.transpose(w_hh).astype(f32), ((0, Hp - H), (0, Hp - H)))
    wout_t = jnp.pad(jnp.transpose(w_out).astype(f32), ((0, Hp - H), (0, Op - O)))
    bh = jnp.pad((b_ih + b_hh).astype(f32), (0, Hp - H)).reshape(1, Hp)
    bout = jnp.pad(b_out.astype(f32), (0, Op - O)).reshape(1, Op)

    # VMEM budget per grid point: double-buffered inputs/outputs + projection scratch.
    in_bytes = (T * Bt * Ip + Ip * Hp + Hp * Hp + Hp * Op + Hp + Op) * 4
    out_bytes = Bt * Op * 4
    scratch_bytes = T * Bt * Hp * 4
    vmem_need = 2 * (in_bytes + out_bytes) + scratch_bytes
    vmem_limit = int(min(max(2 * vmem_need, 32 * 1024 * 1024), 96 * 1024 * 1024))
    # TODO(synk): for very large T*B the VMEM-resident xw scratch should move to an
    #             HBM-resident buffer with a manual 2-deep double buffer (v7x: 64 MiB VMEM).

    flops = 2 * T * Bp * Ip * Hp + 2 * T * Bp * Hp * Hp + 2 * Bp * Hp * Op
    transcendentals = T * Bp * Hp if activation == "tanh" else 0
    bytes_accessed = int(
        (x_t.size + wih_t.size + whh_t.size + wout_t.size + bh.size + bout.size
         + Bp * Op) * 4
    )

    grid_spec = pltpu.PrefetchScalarGridSpec(
        num_scalar_prefetch=0,
        grid=(nbt,),
        in_specs=[
            pl.BlockSpec((T, Bt, Ip), lambda i: (0, i, 0)),   # x, batch-sharded
            pl.BlockSpec((Ip, Hp), lambda i: (0, 0)),         # W_ih^T
            pl.BlockSpec((Hp, Hp), lambda i: (0, 0)),         # W_hh^T
            pl.BlockSpec((Hp, Op), lambda i: (0, 0)),         # W_out^T
            pl.BlockSpec((1, Hp), lambda i: (0, 0)),          # b_ih + b_hh
            pl.BlockSpec((1, Op), lambda i: (0, 0)),          # b_out
        ],
        out_specs=pl.BlockSpec((Bt, Op), lambda i: (i, 0)),
        scratch_shapes=[pltpu.VMEM((T * Bt, Hp), f32)],
    )

    out_pad = pl.pallas_call(
        _make_rnn_kernel(activation),
        out_shape=jax.ShapeDtypeStruct((Bp, Op), f32),
        grid_spec=grid_spec,
        compiler_params=pltpu.CompilerParams(
            dimension_semantics=("parallel",),
            vmem_limit_bytes=vmem_limit,
        ),
        cost_estimate=pl.CostEstimate(
            flops=int(flops),
            transcendentals=int(transcendentals),
            bytes_accessed=bytes_accessed,
        ),
    )(x_t, wih_t, whh_t, wout_t, bh, bout)

    return out_pad[:B, :O]


def rnn_forward_ref(x, w_ih, w_hh, b_ih, b_hh, w_out, b_out, activation="tanh"):
    """Pure-JAX reference matching PyTorch nn.RNN(batch_first) + Linear (zero hidden)."""
    act = _get_act(activation)
    B, T, I = x.shape
    H = w_hh.shape[0]
    h0 = jnp.zeros((B, H), jnp.float32)

    def step(h, x_t):
        pre = (jnp.dot(x_t, w_ih.T, precision=_HIGHEST) + b_ih
               + jnp.dot(h, w_hh.T, precision=_HIGHEST) + b_hh)
        h_new = act(pre)
        return h_new, h_new

    h_last, _ = jax.lax.scan(step, h0, jnp.transpose(x, (1, 0, 2)))
    return jnp.dot(h_last, w_out.T, precision=_HIGHEST) + b_out


if __name__ == "__main__":
    # Small shapes consistent with the module's forward pass.
    batch, time_step, input_size, hidden_size, output_size = 2, 8, 16, 32, 8
    activation = "tanh"

    key = jax.random.PRNGKey(0)
    kx, k1, k2, k3, k4, k5, k6 = jax.random.split(key, 7)
    bound = 1.0 / np.sqrt(hidden_size)  # PyTorch default uniform init range

    x = jax.random.normal(kx, (batch, time_step, input_size), jnp.float32)
    w_ih = jax.random.uniform(k1, (hidden_size, input_size), jnp.float32, -bound, bound)
    w_hh = jax.random.uniform(k2, (hidden_size, hidden_size), jnp.float32, -bound, bound)
    b_ih = jax.random.uniform(k3, (hidden_size,), jnp.float32, -bound, bound)
    b_hh = jax.random.uniform(k4, (hidden_size,), jnp.float32, -bound, bound)
    w_out = jax.random.uniform(k5, (output_size, hidden_size), jnp.float32, -bound, bound)
    b_out = jax.random.uniform(k6, (output_size,), jnp.float32, -bound, bound)

    out = rnn_forward(x, w_ih, w_hh, b_ih, b_hh, w_out, b_out, activation=activation)
    out = jax.block_until_ready(out)

    ref = rnn_forward_ref(x, w_ih, w_hh, b_ih, b_hh, w_out, b_out, activation)
    np.testing.assert_allclose(np.asarray(out), np.asarray(ref), rtol=1e-5, atol=1e-5)

    print("KERNEL_OK")
</pallas_src>

<mosaic_0001>
module attributes {stable_mosaic.version = 11 : i64} {
  func.func @kernel(%arg0: i32, %arg1: memref<8x8x128xf32, #tpu.memory_space<vmem>>, %arg2: memref<128x128xf32, #tpu.memory_space<vmem>>, %arg3: memref<128x128xf32, #tpu.memory_space<vmem>>, %arg4: memref<128x128xf32, #tpu.memory_space<vmem>>, %arg5: memref<1x128xf32, #tpu.memory_space<vmem>>, %arg6: memref<1x128xf32, #tpu.memory_space<vmem>>, %arg7: memref<8x128xf32, #tpu.memory_space<vmem>>, %arg8: memref<64x128xf32, #tpu.memory_space<vmem>>) attributes {dimension_semantics = [#tpu.dimension_semantics<parallel>], iteration_bounds = array<i64: 1>, scalar_prefetch = 0 : i64, scratch_operands = 1 : i64, tpu.core_type = #tpu.core_type<tc>, window_params = [{transform_indices = @transform_0, window_bounds = array<i64: 8, 8, 128>}, {pipeline_mode = #tpu.pipeline_mode<synchronous>, transform_indices = @transform_1, window_bounds = array<i64: 128, 128>}, {pipeline_mode = #tpu.pipeline_mode<synchronous>, transform_indices = @transform_2, window_bounds = array<i64: 128, 128>}, {pipeline_mode = #tpu.pipeline_mode<synchronous>, transform_indices = @transform_3, window_bounds = array<i64: 128, 128>}, {pipeline_mode = #tpu.pipeline_mode<synchronous>, transform_indices = @transform_4, window_bounds = array<i64: 1, 128>}, {pipeline_mode = #tpu.pipeline_mode<synchronous>, transform_indices = @transform_5, window_bounds = array<i64: 1, 128>}, {transform_indices = @transform_6, window_bounds = array<i64: 8, 128>}]} {
    %c0 = arith.constant 0 : index
    %c0_0 = arith.constant 0 : index
    %c0_1 = arith.constant 0 : index
    %0 = vector.load %arg1[%c0, %c0_0, %c0_1] : memref<8x8x128xf32, #tpu.memory_space<vmem>>, vector<8x8x128xf32>
    %1 = vector.shape_cast %0 : vector<8x8x128xf32> to vector<64x128xf32>
    %c0_2 = arith.constant 0 : index
    %c0_3 = arith.constant 0 : index
    %2 = vector.load %arg2[%c0_2, %c0_3] : memref<128x128xf32, #tpu.memory_space<vmem>>, vector<128x128xf32>
    %cst = arith.constant dense<0.000000e+00> : vector<64x128xf32>
    %3 = tpu.matmul %1, %2, %cst {dimension_numbers = #tpu.dot_dimension_numbers<[1], [0], [0], [1], [0, 0, 1, 1], [], []>, precision = #tpu.contract_precision<fp32>} : vector<64x128xf32>, vector<128x128xf32>, vector<64x128xf32> -> vector<64x128xf32>
    %c0_4 = arith.constant 0 : index
    %c0_5 = arith.constant 0 : index
    %4 = vector.load %arg5[%c0_4, %c0_5] : memref<1x128xf32, #tpu.memory_space<vmem>>, vector<1x128xf32>
    %5 = vector.broadcast %4 : vector<1x128xf32> to vector<64x128xf32>
    %6 = arith.addf %3, %5 : vector<64x128xf32>
    %c0_6 = arith.constant 0 : index
    %c0_7 = arith.constant 0 : index
    %7 = vector.load %arg8[%c0_6, %c0_7] : memref<64x128xf32, #tpu.memory_space<vmem>>, vector<64x128xf32>
    tpu.vector_store %arg8[%c0_6, %c0_7], %6 {strides = array<i32>} : memref<64x128xf32, #tpu.memory_space<vmem>>, vector<64x128xf32>,
    %c0_8 = arith.constant 0 : index
    %c0_9 = arith.constant 0 : index
    %8 = vector.load %arg3[%c0_8, %c0_9] : memref<128x128xf32, #tpu.memory_space<vmem>>, vector<128x128xf32>
    %cst_10 = arith.constant 0.000000e+00 : f32
    %9 = vector.broadcast %cst_10 : f32 to vector<8x128xf32>
    %c0_11 = arith.constant 0 : index
    %c0_12 = arith.constant 0 : index
    %10 = vector.load %arg8[%c0_11, %c0_12] : memref<64x128xf32, #tpu.memory_space<vmem>>, vector<8x128xf32>
    %cst_13 = arith.constant dense<0.000000e+00> : vector<8x128xf32>
    %11 = tpu.matmul %9, %8, %cst_13 {dimension_numbers = #tpu.dot_dimension_numbers<[1], [0], [0], [1], [0, 0, 1, 1], [], []>, precision = #tpu.contract_precision<fp32>} : vector<8x128xf32>, vector<128x128xf32>, vector<8x128xf32> -> vector<8x128xf32>
    %12 = arith.addf %10, %11 : vector<8x128xf32>
    %13 = math.tanh %12 : vector<8x128xf32>
    %c8 = arith.constant 8 : index
    %c0_14 = arith.constant 0 : index
    %14 = vector.load %arg8[%c8, %c0_14] : memref<64x128xf32, #tpu.memory_space<vmem>>, vector<8x128xf32>
    %cst_15 = arith.constant dense<0.000000e+00> : vector<8x128xf32>
    %15 = tpu.matmul %13, %8, %cst_15 {dimension_numbers = #tpu.dot_dimension_numbers<[1], [0], [0], [1], [0, 0, 1, 1], [], []>, precision = #tpu.contract_precision<fp32>} : vector<8x128xf32>, vector<128x128xf32>, vector<8x128xf32> -> vector<8x128xf32>
    %16 = arith.addf %14, %15 : vector<8x128xf32>
    %17 = math.tanh %16 : vector<8x128xf32>
    %c16 = arith.constant 16 : index
    %c0_16 = arith.constant 0 : index
    %18 = vector.load %arg8[%c16, %c0_16] : memref<64x128xf32, #tpu.memory_space<vmem>>, vector<8x128xf32>
    %cst_17 = arith.constant dense<0.000000e+00> : vector<8x128xf32>
    %19 = tpu.matmul %17, %8, %cst_17 {dimension_numbers = #tpu.dot_dimension_numbers<[1], [0], [0], [1], [0, 0, 1, 1], [], []>, precision = #tpu.contract_precision<fp32>} : vector<8x128xf32>, vector<128x128xf32>, vector<8x128xf32> -> vector<8x128xf32>
    %20 = arith.addf %18, %19 : vector<8x128xf32>
    %21 = math.tanh %20 : vector<8x128xf32>
    %c24 = arith.constant 24 : index
    %c0_18 = arith.constant 0 : index
    %22 = vector.load %arg8[%c24, %c0_18] : memref<64x128xf32, #tpu.memory_space<vmem>>, vector<8x128xf32>
    %cst_19 = arith.constant dense<0.000000e+00> : vector<8x128xf32>
    %23 = tpu.matmul %21, %8, %cst_19 {dimension_numbers = #tpu.dot_dimension_numbers<[1], [0], [0], [1], [0, 0, 1, 1], [], []>, precision = #tpu.contract_precision<fp32>} : vector<8x128xf32>, vector<128x128xf32>, vector<8x128xf32> -> vector<8x128xf32>
    %24 = arith.addf %22, %23 : vector<8x128xf32>
    %25 = math.tanh %24 : vector<8x128xf32>
    %c32 = arith.constant 32 : index
    %c0_20 = arith.constant 0 : index
    %26 = vector.load %arg8[%c32, %c0_20] : memref<64x128xf32, #tpu.memory_space<vmem>>, vector<8x128xf32>
    %cst_21 = arith.constant dense<0.000000e+00> : vector<8x128xf32>
    %27 = tpu.matmul %25, %8, %cst_21 {dimension_numbers = #tpu.dot_dimension_numbers<[1], [0], [0], [1], [0, 0, 1, 1], [], []>, precision = #tpu.contract_precision<fp32>} : vector<8x128xf32>, vector<128x128xf32>, vector<8x128xf32> -> vector<8x128xf32>
    %28 = arith.addf %26, %27 : vector<8x128xf32>
    %29 = math.tanh %28 : vector<8x128xf32>
    %c40 = arith.constant 40 : index
    %c0_22 = arith.constant 0 : index
    %30 = vector.load %arg8[%c40, %c0_22] : memref<64x128xf32, #tpu.memory_space<vmem>>, vector<8x128xf32>
    %cst_23 = arith.constant dense<0.000000e+00> : vector<8x128xf32>
    %31 = tpu.matmul %29, %8, %cst_23 {dimension_numbers = #tpu.dot_dimension_numbers<[1], [0], [0], [1], [0, 0, 1, 1], [], []>, precision = #tpu.contract_precision<fp32>} : vector<8x128xf32>, vector<128x128xf32>, vector<8x128xf32> -> vector<8x128xf32>
    %32 = arith.addf %30, %31 : vector<8x128xf32>
    %33 = math.tanh %32 : vector<8x128xf32>
    %c48 = arith.constant 48 : index
    %c0_24 = arith.constant 0 : index
    %34 = vector.load %arg8[%c48, %c0_24] : memref<64x128xf32, #tpu.memory_space<vmem>>, vector<8x128xf32>
    %cst_25 = arith.constant dense<0.000000e+00> : vector<8x128xf32>
    %35 = tpu.matmul %33, %8, %cst_25 {dimension_numbers = #tpu.dot_dimension_numbers<[1], [0], [0], [1], [0, 0, 1, 1], [], []>, precision = #tpu.contract_precision<fp32>} : vector<8x128xf32>, vector<128x128xf32>, vector<8x128xf32> -> vector<8x128xf32>
    %36 = arith.addf %34, %35 : vector<8x128xf32>
    %37 = math.tanh %36 : vector<8x128xf32>
    %c56 = arith.constant 56 : index
    %c0_26 = arith.constant 0 : index
    %38 = vector.load %arg8[%c56, %c0_26] : memref<64x128xf32, #tpu.memory_space<vmem>>, vector<8x128xf32>
    %cst_27 = arith.constant dense<0.000000e+00> : vector<8x128xf32>
    %39 = tpu.matmul %37, %8, %cst_27 {dimension_numbers = #tpu.dot_dimension_numbers<[1], [0], [0], [1], [0, 0, 1, 1], [], []>, precision = #tpu.contract_precision<fp32>} : vector<8x128xf32>, vector<128x128xf32>, vector<8x128xf32> -> vector<8x128xf32>
    %40 = arith.addf %38, %39 : vector<8x128xf32>
    %41 = math.tanh %40 : vector<8x128xf32>
    %c0_28 = arith.constant 0 : index
    %c0_29 = arith.constant 0 : index
    %42 = vector.load %arg4[%c0_28, %c0_29] : memref<128x128xf32, #tpu.memory_space<vmem>>, vector<128x128xf32>
    %cst_30 = arith.constant dense<0.000000e+00> : vector<8x128xf32>
    %43 = tpu.matmul %41, %42, %cst_30 {dimension_numbers = #tpu.dot_dimension_numbers<[1], [0], [0], [1], [0, 0, 1, 1], [], []>, precision = #tpu.contract_precision<fp32>} : vector<8x128xf32>, vector<128x128xf32>, vector<8x128xf32> -> vector<8x128xf32>
    %c0_31 = arith.constant 0 : index
    %c0_32 = arith.constant 0 : index
    %44 = vector.load %arg6[%c0_31, %c0_32] : memref<1x128xf32, #tpu.memory_space<vmem>>, vector<1x128xf32>
    %45 = vector.broadcast %44 : vector<1x128xf32> to vector<8x128xf32>
    %46 = arith.addf %43, %45 : vector<8x128xf32>
    %c0_33 = arith.constant 0 : index
    %c0_34 = arith.constant 0 : index
    %47 = vector.load %arg7[%c0_33, %c0_34] : memref<8x128xf32, #tpu.memory_space<vmem>>, vector<8x128xf32>
    tpu.vector_store %arg7[%c0_33, %c0_34], %46 {strides = array<i32>} : memref<8x128xf32, #tpu.memory_space<vmem>>, vector<8x128xf32>,
    return
  }
  func.func @transform_0(%arg0: i32) -> (i32, i32, i32) {
    %c0_i32 = arith.constant 0 : i32
    %c0_i32_0 = arith.constant 0 : i32
    %c0_i32_1 = arith.constant 0 : i32
    return %c0_i32, %arg0, %c0_i32_0 : i32, i32, i32
  }
  func.func @transform_1(%arg0: i32) -> (i32, i32) {
    %c0_i32 = arith.constant 0 : i32
    %c0_i32_0 = arith.constant 0 : i32
    %c0_i32_1 = arith.constant 0 : i32
    return %c0_i32, %c0_i32_0 : i32, i32
  }
  func.func @transform_2(%arg0: i32) -> (i32, i32) {
    %c0_i32 = arith.constant 0 : i32
    %c0_i32_0 = arith.constant 0 : i32
    %c0_i32_1 = arith.constant 0 : i32
    return %c0_i32, %c0_i32_0 : i32, i32
  }
  func.func @transform_3(%arg0: i32) -> (i32, i32) {
    %c0_i32 = arith.constant 0 : i32
    %c0_i32_0 = arith.constant 0 : i32
    %c0_i32_1 = arith.constant 0 : i32
    return %c0_i32, %c0_i32_0 : i32, i32
  }
  func.func @transform_4(%arg0: i32) -> (i32, i32) {
    %c0_i32 = arith.constant 0 : i32
    %c0_i32_0 = arith.constant 0 : i32
    %c0_i32_1 = arith.constant 0 : i32
    return %c0_i32, %c0_i32_0 : i32, i32
  }
  func.func @transform_5(%arg0: i32) -> (i32, i32) {
    %c0_i32 = arith.constant 0 : i32
    %c0_i32_0 = arith.constant 0 : i32
    %c0_i32_1 = arith.constant 0 : i32
    return %c0_i32, %c0_i32_0 : i32, i32
  }
  func.func @transform_6(%arg0: i32) -> (i32, i32) {
    %c0_i32 = arith.constant 0 : i32
    %c0_i32_0 = arith.constant 0 : i32
    return %arg0, %c0_i32 : i32, i32
  }
}

</mosaic_0001>

<llo_original>
// kernel: rnn_forward.1
$region0: #{rnn_forward.1}
  #allocation0 [shape = 'u32[]', space=smem, size = 0x4, offset = 0x4, fixed_abs, tag = 'smem constant byte address 0x4 - core index']
  #allocation1 [shape = 'u32[144,128]{1,0:T(1,128)}', space=vmem, size = 0x12000, scoped, tag = 'internal scratch']
  #allocation2 [shape = 'f32[64,128]{1,0:T(8,128)}', space=vmem, size = 0x8000, scoped, tag = 'scratch operand']
  %s0 = inlined_call_operand.vmem [shape: f32[8,8,128], index: 0, kind: input, shape index: {}]
  %s1 = inlined_call_operand.vmem [shape: f32[128,128], index: 1, kind: input, shape index: {}]
  %s2 = inlined_call_operand.vmem [shape: f32[128,128], index: 2, kind: input, shape index: {}]
  %s3 = inlined_call_operand.vmem [shape: f32[128,128], index: 3, kind: input, shape index: {}]
  %s4 = inlined_call_operand.vmem [shape: f32[1,128], index: 4, kind: input, shape index: {}]
  %s5 = inlined_call_operand.vmem [shape: f32[1,128], index: 5, kind: input, shape index: {}]
  %s6 = inlined_call_operand.vmem [shape: f32[8,128], index: 6, kind: output, shape index: {}]
  %s7 = sld [smem:[#allocation0]]
  $region34: #{rnn_forward.1} parent=0
    _
  %s9 = ssub.s32 1, %s7
  %s10 = scalar_select 0, %s9, %s7
  // Predicated region
  $region2: #{rnn_forward.1} parent=0 // pred_check
    _
  $region3: #{rnn_forward.1} parent=0 // pred_check_branch
    %12 = sbr.rel (0) target = $region5
  $region4: #{rnn_forward.1} parent=0 // pred_region
    _
  $region5: #{rnn_forward.1} parent=0 // pred_fallthru
    _
  // Predicated region
  $region6: #{rnn_forward.1} parent=0 // pred_check
    _
  $region7: #{rnn_forward.1} parent=0 // pred_check_branch
    %14 = sbr.rel (0) target = $region9
  $region8: #{rnn_forward.1} parent=0 // pred_region
    _
  $region9: #{rnn_forward.1} parent=0 // pred_fallthru
    _
  // Predicated region
  $region10: #{rnn_forward.1} parent=0 // pred_check
    _
  $region11: #{rnn_forward.1} parent=0 // pred_check_branch
    %16 = sbr.rel (0) target = $region13
  $region12: #{rnn_forward.1} parent=0 // pred_region
    _
  $region13: #{rnn_forward.1} parent=0 // pred_fallthru
    _
  // Predicated region
  $region14: #{rnn_forward.1} parent=0 // pred_check
    _
  $region15: #{rnn_forward.1} parent=0 // pred_check_branch
    %18 = sbr.rel (0) target = $region17
  $region16: #{rnn_forward.1} parent=0 // pred_region
    _
  $region17: #{rnn_forward.1} parent=0 // pred_fallthru
    _
  // Predicated region
  $region18: #{rnn_forward.1} parent=0 // pred_check
    _
  $region19: #{rnn_forward.1} parent=0 // pred_check_branch
    %20 = sbr.rel (0) target = $region21
  $region20: #{rnn_forward.1} parent=0 // pred_region
    _
  $region21: #{rnn_forward.1} parent=0 // pred_fallthru
    _
  // Predicated region
  $region22: #{rnn_forward.1} parent=0 // pred_check
    _
  $region23: #{rnn_forward.1} parent=0 // pred_check_branch
    %22 = sbr.rel (0) target = $region25
  $region24: #{rnn_forward.1} parent=0 // pred_region
    _
  $region25: #{rnn_forward.1} parent=0 // pred_fallthru
    _
  %v23 = vld [vmem:[%s0] sm:$0xff]
  %v24 = vld [vmem:[%s0 + $0x8] sm:$0xff]
  %v25 = vld [vmem:[%s0 + $0x10] sm:$0xff]
  %v26 = vld [vmem:[%s0 + $0x18] sm:$0xff]
  %v27 = vld [vmem:[%s0 + $0x20] sm:$0xff]
  %v28 = vld [vmem:[%s0 + $0x28] sm:$0xff]
  %v29 = vld [vmem:[%s0 + $0x30] sm:$0xff]
  %v30 = vld [vmem:[%s0 + $0x38] sm:$0xff]
  %v31 = vld [vmem:[%s1] sm:$0xff]
  %v32 = vld [vmem:[%s1 + $0x8] sm:$0xff]
  %v33 = vld [vmem:[%s1 + $0x10] sm:$0xff]
  %v34 = vld [vmem:[%s1 + $0x18] sm:$0xff]
  %v35 = vld [vmem:[%s1 + $0x20] sm:$0xff]
  %v36 = vld [vmem:[%s1 + $0x28] sm:$0xff]
  %v37 = vld [vmem:[%s1 + $0x30] sm:$0xff]
  %v38 = vld [vmem:[%s1 + $0x38] sm:$0xff]
  %v39 = vld [vmem:[%s1 + $0x40] sm:$0xff]
  %v40 = vld [vmem:[%s1 + $0x48] sm:$0xff]
  %v41 = vld [vmem:[%s1 + $0x50] sm:$0xff]
  %v42 = vld [vmem:[%s1 + $0x58] sm:$0xff]
  %v43 = vld [vmem:[%s1 + $0x60] sm:$0xff]
  %v44 = vld [vmem:[%s1 + $0x68] sm:$0xff]
  %v45 = vld [vmem:[%s1 + $0x70] sm:$0xff]
  %v46 = vld [vmem:[%s1 + $0x78] sm:$0xff]
  %v47 = vld [vmem:[%s4] sm:$0x1]
  %v49 = vlaneseq
  %v50 = vshrl.u32 %v49, 7
  %v51 = vsub.s32 0, %v50
  %v52 = vrot.slane %v47, %v51
  %54 = vmatprep.subr.mxu0 0.0
  %v55 = vand.u32 %v31, 4294901760
  %56 = vmatpush1.msra.mxu0 %v55
  %57 = vmatprep.subr.mxu0 0.0
  %v58 = vand.u32 %v32, 4294901760
  %59 = vmatpush1.msra.mxu0 %v58
  %60 = vmatprep.subr.mxu0 0.0
  %v61 = vand.u32 %v33, 4294901760
  %62 = vmatpush1.msra.mxu0 %v61
  %63 = vmatprep.subr.mxu0 0.0
  %v64 = vand.u32 %v34, 4294901760
  %65 = vmatpush1.msra.mxu0 %v64
  %66 = vmatprep.subr.mxu0 0.0
  %v67 = vand.u32 %v35, 4294901760
  %68 = vmatpush1.msra.mxu0 %v67
  %69 = vmatprep.subr.mxu0 0.0
  %v70 = vand.u32 %v36, 4294901760
  %71 = vmatpush1.msra.mxu0 %v70
  %72 = vmatprep.subr.mxu0 0.0
  %v73 = vand.u32 %v37, 4294901760
  %74 = vmatpush1.msra.mxu0 %v73
  %75 = vmatprep.subr.mxu0 0.0
  %v76 = vand.u32 %v38, 4294901760
  %77 = vmatpush1.msra.mxu0 %v76
  %78 = vmatprep.subr.mxu0 0.0
  %v79 = vand.u32 %v39, 4294901760
  %80 = vmatpush1.msra.mxu0 %v79
  %81 = vmatprep.subr.mxu0 0.0
  %v82 = vand.u32 %v40, 4294901760
  %83 = vmatpush1.msra.mxu0 %v82
  %84 = vmatprep.subr.mxu0 0.0
  %v85 = vand.u32 %v41, 4294901760
  %86 = vmatpush1.msra.mxu0 %v85
  %87 = vmatprep.subr.mxu0 0.0
  %v88 = vand.u32 %v42, 4294901760
  %89 = vmatpush1.msra.mxu0 %v88
  %90 = vmatprep.subr.mxu0 0.0
  %v91 = vand.u32 %v43, 4294901760
  %92 = vmatpush1.msra.mxu0 %v91
  %93 = vmatprep.subr.mxu0 0.0
  %v94 = vand.u32 %v44, 4294901760
  %95 = vmatpush1.msra.mxu0 %v94
  %96 = vmatprep.subr.mxu0 0.0
  %v97 = vand.u32 %v45, 4294901760
  %98 = vmatpush1.msra.mxu0 %v97
  %99 = vmatprep.subr.mxu0 0.0
  %v100 = vand.u32 %v46, 4294901760
  %101 = vmatpush1.msra.mxu0 %v100
  %102 = vmatprep.subr.mxu0 0.0
  %103 = vmatpush1.msra.mxu0 0.0
  %104 = vmatprep.subr.mxu0 0.0
  %105 = vmatpush1.msra.mxu0 0.0
  %106 = vmatprep.subr.mxu0 0.0
  %107 = vmatpush1.msra.mxu0 0.0
  %108 = vmatprep.subr.mxu0 0.0
  %109 = vmatpush1.msra.mxu0 0.0
  %110 = vmatprep.subr.mxu0 0.0
  %111 = vmatpush1.msra.mxu0 0.0
  %112 = vmatprep.subr.mxu0 0.0
  %113 = vmatpush1.msra.mxu0 0.0
  %114 = vmatprep.subr.mxu0 0.0
  %115 = vmatpush1.msra.mxu0 0.0
  %116 = vmatprep.subr.mxu0 0.0
  %117 = vmatpush1.msra.mxu0 0.0
  %118 = vmatprep.subr.mxu0 0.0
  %119 = vmatpush1.msra.mxu0 0.0
  %120 = vmatprep.subr.mxu0 0.0
  %121 = vmatpush1.msra.mxu0 0.0
  %122 = vmatprep.subr.mxu0 0.0
  %123 = vmatpush1.msra.mxu0 0.0
  %124 = vmatprep.subr.mxu0 0.0
  %125 = vmatpush1.msra.mxu0 0.0
  %126 = vmatprep.subr.mxu0 0.0
  %127 = vmatpush1.msra.mxu0 0.0
  %128 = vmatprep.subr.mxu0 0.0
  %129 = vmatpush1.msra.mxu0 0.0
  %130 = vmatprep.subr.mxu0 0.0
  %131 = vmatpush1.msra.mxu0 0.0
  %132 = vmatprep.subr.mxu0 0.0
  %133 = vmatpush1.msra.mxu0 0.0
  %134 = vmatprep.mubr.f32.mxu0 0.0
  %v135 = vand.u32 %v23, 4294901760
  %v136 = vsub.f32 %v23, %v135
  %v137 = vand.u32 %v136, 4294901760
  %v138 = vsub.f32 %v136, %v137
  %v139 = vand.u32 %v138, 4294901760
  %140 = vmatmul.mubr.f32.gmra.mrb[0].mxu0 %v139
  %v141 = vpop.f32.mrb[0].mxu0
  %v142 = vadd.f32 %v52, %v141
  %v143 = vpop.f32.mrb[0].mxu0
  %144 = vmatprep.mubr.f32.mxu0 0.0
  %v145 = vand.u32 %v24, 4294901760
  %v146 = vsub.f32 %v24, %v145
  %v147 = vand.u32 %v146, 4294901760
  %v148 = vsub.f32 %v146, %v147
  %v149 = vand.u32 %v148, 4294901760
  %150 = vmatmul.mubr.f32.gmra.mrb[0].mxu0 %v149
  %v151 = vpop.f32.mrb[0].mxu0
  %v152 = vadd.f32 %v52, %v151
  %v153 = vpop.f32.mrb[0].mxu0
  %154 = vmatprep.mubr.f32.mxu0 0.0
  %v155 = vand.u32 %v25, 4294901760
  %v156 = vsub.f32 %v25, %v155
  %v157 = vand.u32 %v156, 4294901760
  %v158 = vsub.f32 %v156, %v157
  %v159 = vand.u32 %v158, 4294901760
  %160 = vmatmul.mubr.f32.gmra.mrb[0].mxu0 %v159
  %v161 = vpop.f32.mrb[0].mxu0
  %v162 = vadd.f32 %v52, %v161
  %v163 = vpop.f32.mrb[0].mxu0
  %164 = vmatprep.mubr.f32.mxu0 0.0
  %v165 = vand.u32 %v26, 4294901760
  %v166 = vsub.f32 %v26, %v165
  %v167 = vand.u32 %v166, 4294901760
  %v168 = vsub.f32 %v166, %v167
  %v169 = vand.u32 %v168, 4294901760
  %170 = vmatmul.mubr.f32.gmra.mrb[0].mxu0 %v169
  %v171 = vpop.f32.mrb[0].mxu0
  %v172 = vadd.f32 %v52, %v171
  %v173 = vpop.f32.mrb[0].mxu0
  %174 = vmatprep.mubr.f32.mxu0 0.0
  %v175 = vand.u32 %v27, 4294901760
  %v176 = vsub.f32 %v27, %v175
  %v177 = vand.u32 %v176, 4294901760
  %v178 = vsub.f32 %v176, %v177
  %v179 = vand.u32 %v178, 4294901760
  %180 = vmatmul.mubr.f32.gmra.mrb[0].mxu0 %v179
  %v181 = vpop.f32.mrb[0].mxu0
  %v182 = vadd.f32 %v52, %v181
  %v183 = vpop.f32.mrb[0].mxu0
  %184 = vmatprep.mubr.f32.mxu0 0.0
  %v185 = vand.u32 %v28, 4294901760
  %v186 = vsub.f32 %v28, %v185
  %v187 = vand.u32 %v186, 4294901760
  %v188 = vsub.f32 %v186, %v187
  %v189 = vand.u32 %v188, 4294901760
  %190 = vmatmul.mubr.f32.gmra.mrb[0].mxu0 %v189
  %v191 = vpop.f32.mrb[0].mxu0
  %v192 = vadd.f32 %v52, %v191
  %v193 = vpop.f32.mrb[0].mxu0
  %194 = vmatprep.mubr.f32.mxu0 0.0
  %v195 = vand.u32 %v29, 4294901760
  %v196 = vsub.f32 %v29, %v195
  %v197 = vand.u32 %v196, 4294901760
  %v198 = vsub.f32 %v196, %v197
  %v199 = vand.u32 %v198, 4294901760
  %200 = vmatmul.mubr.f32.gmra.mrb[0].mxu0 %v199
  %v201 = vpop.f32.mrb[0].mxu0
  %v202 = vadd.f32 %v52, %v201
  %v203 = vpop.f32.mrb[0].mxu0
  %204 = vmatprep.mubr.f32.mxu0 0.0
  %v205 = vand.u32 %v30, 4294901760
  %v206 = vsub.f32 %v30, %v205
  %v207 = vand.u32 %v206, 4294901760
  %v208 = vsub.f32 %v206, %v207
  %v209 = vand.u32 %v208, 4294901760
  %210 = vmatmul.mubr.f32.gmra.mrb[0].mxu0 %v209
  %v211 = vpop.f32.mrb[0].mxu0
  %v212 = vadd.f32 %v52, %v211
  %v213 = vpop.f32.mrb[0].mxu0
  %214 = vdwg.mxu0
  %215 = vmatprep.subr.mxu0 0.0
  %v216 = vand.u32 %v31, 4294901760
  %v217 = vsub.f32 %v31, %v216
  %v218 = vand.u32 %v217, 4294901760
  %v219 = vsub.f32 %v217, %v218
  %v220 = vand.u32 %v219, 4294901760
  %221 = vmatpush1.msra.mxu0 %v220
  %222 = vmatprep.subr.mxu0 0.0
  %v223 = vand.u32 %v32, 4294901760
  %v224 = vsub.f32 %v32, %v223
  %v225 = vand.u32 %v224, 4294901760
  %v226 = vsub.f32 %v224, %v225
  %v227 = vand.u32 %v226, 4294901760
  %228 = vmatpush1.msra.mxu0 %v227
  %229 = vmatprep.subr.mxu0 0.0
  %v230 = vand.u32 %v33, 4294901760
  %v231 = vsub.f32 %v33, %v230
  %v232 = vand.u32 %v231, 4294901760
  %v233 = vsub.f32 %v231, %v232
  %v234 = vand.u32 %v233, 4294901760
  %235 = vmatpush1.msra.mxu0 %v234
  %236 = vmatprep.subr.mxu0 0.0
  %v237 = vand.u32 %v34, 4294901760
  %v238 = vsub.f32 %v34, %v237
  %v239 = vand.u32 %v238, 4294901760
  %v240 = vsub.f32 %v238, %v239
  %v241 = vand.u32 %v240, 4294901760
  %242 = vmatpush1.msra.mxu0 %v241
  %243 = vmatprep.subr.mxu0 0.0
  %v244 = vand.u32 %v35, 4294901760
  %v245 = vsub.f32 %v35, %v244
  %v246 = vand.u32 %v245, 4294901760
  %v247 = vsub.f32 %v245, %v246
  %v248 = vand.u32 %v247, 4294901760
  %249 = vmatpush1.msra.mxu0 %v248
  %250 = vmatprep.subr.mxu0 0.0
  %v251 = vand.u32 %v36, 4294901760
  %v252 = vsub.f32 %v36, %v251
  %v253 = vand.u32 %v252, 4294901760
  %v254 = vsub.f32 %v252, %v253
  %v255 = vand.u32 %v254, 4294901760
  %256 = vmatpush1.msra.mxu0 %v255
  %257 = vmatprep.subr.mxu0 0.0
  %v258 = vand.u32 %v37, 4294901760
  %v259 = vsub.f32 %v37, %v258
  %v260 = vand.u32 %v259, 4294901760
  %v261 = vsub.f32 %v259, %v260
  %v262 = vand.u32 %v261, 4294901760
  %263 = vmatpush1.msra.mxu0 %v262
  %264 = vmatprep.subr.mxu0 0.0
  %v265 = vand.u32 %v38, 4294901760
  %v266 = vsub.f32 %v38, %v265
  %v267 = vand.u32 %v266, 4294901760
  %v268 = vsub.f32 %v266, %v267
  %v269 = vand.u32 %v268, 4294901760
  %270 = vmatpush1.msra.mxu0 %v269
  %271 = vmatprep.subr.mxu0 0.0
  %v272 = vand.u32 %v39, 4294901760
  %v273 = vsub.f32 %v39, %v272
  %v274 = vand.u32 %v273, 4294901760
  %v275 = vsub.f32 %v273, %v274
  %v276 = vand.u32 %v275, 4294901760
  %277 = vmatpush1.msra.mxu0 %v276
  %278 = vmatprep.subr.mxu0 0.0
  %v279 = vand.u32 %v40, 4294901760
  %v280 = vsub.f32 %v40, %v279
  %v281 = vand.u32 %v280, 4294901760
  %v282 = vsub.f32 %v280, %v281
  %v283 = vand.u32 %v282, 4294901760
  %284 = vmatpush1.msra.mxu0 %v283
  %285 = vmatprep.subr.mxu0 0.0
  %v286 = vand.u32 %v41, 4294901760
  %v287 = vsub.f32 %v41, %v286
  %v288 = vand.u32 %v287, 4294901760
  %v289 = vsub.f32 %v287, %v288
  %v290 = vand.u32 %v289, 4294901760
  %291 = vmatpush1.msra.mxu0 %v290
  %292 = vmatprep.subr.mxu0 0.0
  %v293 = vand.u32 %v42, 4294901760
  %v294 = vsub.f32 %v42, %v293
  %v295 = vand.u32 %v294, 4294901760
  %v296 = vsub.f32 %v294, %v295
  %v297 = vand.u32 %v296, 4294901760
  %298 = vmatpush1.msra.mxu0 %v297
  %299 = vmatprep.subr.mxu0 0.0
  %v300 = vand.u32 %v43, 4294901760
  %v301 = vsub.f32 %v43, %v300
  %v302 = vand.u32 %v301, 4294901760
  %v303 = vsub.f32 %v301, %v302
  %v304 = vand.u32 %v303, 4294901760
  %305 = vmatpush1.msra.mxu0 %v304
  %306 = vmatprep.subr.mxu0 0.0
  %v307 = vand.u32 %v44, 4294901760
  %v308 = vsub.f32 %v44, %v307
  %v309 = vand.u32 %v308, 4294901760
  %v310 = vsub.f32 %v308, %v309
  %v311 = vand.u32 %v310, 4294901760
  %312 = vmatpush1.msra.mxu0 %v311
  %313 = vmatprep.subr.mxu0 0.0
  %v314 = vand.u32 %v45, 4294901760
  %v315 = vsub.f32 %v45, %v314
  %v316 = vand.u32 %v315, 4294901760
  %v317 = vsub.f32 %v315, %v316
  %v318 = vand.u32 %v317, 4294901760
  %319 = vmatpush1.msra.mxu0 %v318
  %320 = vmatprep.subr.mxu0 0.0
  %v321 = vand.u32 %v46, 4294901760
  %v322 = vsub.f32 %v46, %v321
  %v323 = vand.u32 %v322, 4294901760
  %v324 = vsub.f32 %v322, %v323
  %v325 = vand.u32 %v324, 4294901760
  %326 = vmatpush1.msra.mxu0 %v325
  %327 = vmatprep.subr.mxu0 0.0
  %328 = vmatpush1.msra.mxu0 0.0
  %329 = vmatprep.subr.mxu0 0.0
  %330 = vmatpush1.msra.mxu0 0.0
  %331 = vmatprep.subr.mxu0 0.0
  %332 = vmatpush1.msra.mxu0 0.0
  %333 = vmatprep.subr.mxu0 0.0
  %334 = vmatpush1.msra.mxu0 0.0
  %335 = vmatprep.subr.mxu0 0.0
  %336 = vmatpush1.msra.mxu0 0.0
  %337 = vmatprep.subr.mxu0 0.0
  %338 = vmatpush1.msra.mxu0 0.0
  %339 = vmatprep.subr.mxu0 0.0
  %340 = vmatpush1.msra.mxu0 0.0
  %341 = vmatprep.subr.mxu0 0.0
  %342 = vmatpush1.msra.mxu0 0.0
  %343 = vmatprep.subr.mxu0 0.0
  %344 = vmatpush1.msra.mxu0 0.0
  %345 = vmatprep.subr.mxu0 0.0
  %346 = vmatpush1.msra.mxu0 0.0
  %347 = vmatprep.subr.mxu0 0.0
  %348 = vmatpush1.msra.mxu0 0.0
  %349 = vmatprep.subr.mxu0 0.0
  %350 = vmatpush1.msra.mxu0 0.0
  %351 = vmatprep.subr.mxu0 0.0
  %352 = vmatpush1.msra.mxu0 0.0
  %353 = vmatprep.subr.mxu0 0.0
  %354 = vmatpush1.msra.mxu0 0.0
  %355 = vmatprep.subr.mxu0 0.0
  %356 = vmatpush1.msra.mxu0 0.0
  %357 = vmatprep.subr.mxu0 0.0
  %358 = vmatpush1.msra.mxu0 0.0
  %359 = vmatprep.mubr.f32.mxu0 0.0
  %v360 = vand.u32 %v23, 4294901760
  %361 = vmatmul.mubr.f32.gmra.mrb[0].mxu0 %v360
  %v362 = vpop.f32.mrb[0].mxu0
  %v363 = vadd.f32 %v142, %v362
  %v364 = vpop.f32.mrb[0].mxu0
  %365 = vmatprep.mubr.f32.mxu0 0.0
  %v366 = vand.u32 %v24, 4294901760
  %367 = vmatmul.mubr.f32.gmra.mrb[0].mxu0 %v366
  %v368 = vpop.f32.mrb[0].mxu0
  %v369 = vadd.f32 %v152, %v368
  %v370 = vpop.f32.mrb[0].mxu0
  %371 = vmatprep.mubr.f32.mxu0 0.0
  %v372 = vand.u32 %v25, 4294901760
  %373 = vmatmul.mubr.f32.gmra.mrb[0].mxu0 %v372
  %v374 = vpop.f32.mrb[0].mxu0
  %v375 = vadd.f32 %v162, %v374
  %v376 = vpop.f32.mrb[0].mxu0
  %377 = vmatprep.mubr.f32.mxu0 0.0
  %v378 = vand.u32 %v26, 4294901760
  %379 = vmatmul.mubr.f32.gmra.mrb[0].mxu0 %v378
  %v380 = vpop.f32.mrb[0].mxu0
  %v381 = vadd.f32 %v172, %v380
  %v382 = vpop.f32.mrb[0].mxu0
  %383 = vmatprep.mubr.f32.mxu0 0.0
  %v384 = vand.u32 %v27, 4294901760
  %385 = vmatmul.mubr.f32.gmra.mrb[0].mxu0 %v384
  %v386 = vpop.f32.mrb[0].mxu0
  %v387 = vadd.f32 %v182, %v386
  %v388 = vpop.f32.mrb[0].mxu0
  %389 = vmatprep.mubr.f32.mxu0 0.0
  %v390 = vand.u32 %v28, 4294901760
  %391 = vmatmul.mubr.f32.gmra.mrb[0].mxu0 %v390
  %v392 = vpop.f32.mrb[0].mxu0
  %v393 = vadd.f32 %v192, %v392
  %v394 = vpop.f32.mrb[0].mxu0
  %395 = vmatprep.mubr.f32.mxu0 0.0
  %v396 = vand.u32 %v29, 4294901760
  %397 = vmatmul.mubr.f32.gmra.mrb[0].mxu0 %v396
  %v398 = vpop.f32.mrb[0].mxu0
  %v399 = vadd.f32 %v202, %v398
  %v400 = vpop.f32.mrb[0].mxu0
  %401 = vmatprep.mubr.f32.mxu0 0.0
  %v402 = vand.u32 %v30, 4294901760
  %403 = vmatmul.mubr.f32.gmra.mrb[0].mxu0 %v402
  %v404 = vpop.f32.mrb[0].mxu0
  %v405 = vadd.f32 %v212, %v404
  %v406 = vpop.f32.mrb[0].mxu0
  %407 = vdwg.mxu0
  %408 = vmatprep.subr.mxu0 0.0
  %v409 = vand.u32 %v31, 4294901760
  %v410 = vsub.f32 %v31, %v409
  %411 = vmatpush1.msra.mxu0 %v410
  %412 = vmatprep.subr.mxu0 0.0
  %v413 = vand.u32 %v32, 4294901760
  %v414 = vsub.f32 %v32, %v413
  %415 = vmatpush1.msra.mxu0 %v414
  %416 = vmatprep.subr.mxu0 0.0
  %v417 = vand.u32 %v33, 4294901760
  %v418 = vsub.f32 %v33, %v417
  %419 = vmatpush1.msra.mxu0 %v418
  %420 = vmatprep.subr.mxu0 0.0
  %v421 = vand.u32 %v34, 4294901760
  %v422 = vsub.f32 %v34, %v421
  %423 = vmatpush1.msra.mxu0 %v422
  %424 = vmatprep.subr.mxu0 0.0
  %v425 = vand.u32 %v35, 4294901760
  %v426 = vsub.f32 %v35, %v425
  %427 = vmatpush1.msra.mxu0 %v426
  %428 = vmatprep.subr.mxu0 0.0
  %v429 = vand.u32 %v36, 4294901760
  %v430 = vsub.f32 %v36, %v429
  %431 = vmatpush1.msra.mxu0 %v430
  %432 = vmatprep.subr.mxu0 0.0
  %v433 = vand.u32 %v37, 4294901760
  %v434 = vsub.f32 %v37, %v433
  %435 = vmatpush1.msra.mxu0 %v434
  %436 = vmatprep.subr.mxu0 0.0
  %v437 = vand.u32 %v38, 4294901760
  %v438 = vsub.f32 %v38, %v437
  %439 = vmatpush1.msra.mxu0 %v438
  %440 = vmatprep.subr.mxu0 0.0
  %v441 = vand.u32 %v39, 4294901760
  %v442 = vsub.f32 %v39, %v441
  %443 = vmatpush1.msra.mxu0 %v442
  %444 = vmatprep.subr.mxu0 0.0
  %v445 = vand.u32 %v40, 4294901760
  %v446 = vsub.f32 %v40, %v445
  %447 = vmatpush1.msra.mxu0 %v446
  %448 = vmatprep.subr.mxu0 0.0
  %v449 = vand.u32 %v41, 4294901760
  %v450 = vsub.f32 %v41, %v449
  %451 = vmatpush1.msra.mxu0 %v450
  %452 = vmatprep.subr.mxu0 0.0
  %v453 = vand.u32 %v42, 4294901760
  %v454 = vsub.f32 %v42, %v453
  %455 = vmatpush1.msra.mxu0 %v454
  %456 = vmatprep.subr.mxu0 0.0
  %v457 = vand.u32 %v43, 4294901760
  %v458 = vsub.f32 %v43, %v457
  %459 = vmatpush1.msra.mxu0 %v458
  %460 = vmatprep.subr.mxu0 0.0
  %v461 = vand.u32 %v44, 4294901760
  %v462 = vsub.f32 %v44, %v461
  %463 = vmatpush1.msra.mxu0 %v462
  %464 = vmatprep.subr.mxu0 0.0
  %v465 = vand.u32 %v45, 4294901760
  %v466 = vsub.f32 %v45, %v465
  %467 = vmatpush1.msra.mxu0 %v466
  %468 = vmatprep.subr.mxu0 0.0
  %v469 = vand.u32 %v46, 4294901760
  %v470 = vsub.f32 %v46, %v469
  %471 = vmatpush1.msra.mxu0 %v470
  %472 = vmatprep.subr.mxu0 0.0
  %473 = vmatpush1.msra.mxu0 0.0
  %474 = vmatprep.subr.mxu0 0.0
  %475 = vmatpush1.msra.mxu0 0.0
  %476 = vmatprep.subr.mxu0 0.0
  %477 = vmatpush1.msra.mxu0 0.0
  %478 = vmatprep.subr.mxu0 0.0
  %479 = vmatpush1.msra.mxu0 0.0
  %480 = vmatprep.subr.mxu0 0.0
  %481 = vmatpush1.msra.mxu0 0.0
  %482 = vmatprep.subr.mxu0 0.0
  %483 = vmatpush1.msra.mxu0 0.0
  %484 = vmatprep.subr.mxu0 0.0
  %485 = vmatpush1.msra.mxu0 0.0
  %486 = vmatprep.subr.mxu0 0.0
  %487 = vmatpush1.msra.mxu0 0.0
  %488 = vmatprep.subr.mxu0 0.0
  %489 = vmatpush1.msra.mxu0 0.0
  %490 = vmatprep.subr.mxu0 0.0
  %491 = vmatpush1.msra.mxu0 0.0
  %492 = vmatprep.subr.mxu0 0.0
  %493 = vmatpush1.msra.mxu0 0.0
  %494 = vmatprep.subr.mxu0 0.0
  %495 = vmatpush1.msra.mxu0 0.0
  %496 = vmatprep.subr.mxu0 0.0
  %497 = vmatpush1.msra.mxu0 0.0
  %498 = vmatprep.subr.mxu0 0.0
  %499 = vmatpush1.msra.mxu0 0.0
  %500 = vmatprep.subr.mxu0 0.0
  %501 = vmatpush1.msra.mxu0 0.0
  %502 = vmatprep.subr.mxu0 0.0
  %503 = vmatpush1.msra.mxu0 0.0
  %504 = vmatprep.mubr.f32.mxu0 0.0
  %v505 = vand.u32 %v23, 4294901760
  %v506 = vsub.f32 %v23, %v505
  %507 = vmatmul.mubr.f32.gmra.mrb[0].mxu0 %v506
  %v508 = vpop.f32.mrb[0].mxu0
  %v509 = vadd.f32 %v363, %v508
  %v510 = vpop.f32.mrb[0].mxu0
  %511 = vmatprep.mubr.f32.mxu0 0.0
  %v512 = vand.u32 %v24, 4294901760
  %v513 = vsub.f32 %v24, %v512
  %514 = vmatmul.mubr.f32.gmra.mrb[0].mxu0 %v513
  %v515 = vpop.f32.mrb[0].mxu0
  %v516 = vadd.f32 %v369, %v515
  %v517 = vpop.f32.mrb[0].mxu0
  %518 = vmatprep.mubr.f32.mxu0 0.0
  %v519 = vand.u32 %v25, 4294901760
  %v520 = vsub.f32 %v25, %v519
  %521 = vmatmul.mubr.f32.gmra.mrb[0].mxu0 %v520
  %v522 = vpop.f32.mrb[0].mxu0
  %v523 = vadd.f32 %v375, %v522
  %v524 = vpop.f32.mrb[0].mxu0
  %525 = vmatprep.mubr.f32.mxu0 0.0
  %v526 = vand.u32 %v26, 4294901760
  %v527 = vsub.f32 %v26, %v526
  %528 = vmatmul.mubr.f32.gmra.mrb[0].mxu0 %v527
  %v529 = vpop.f32.mrb[0].mxu0
  %v530 = vadd.f32 %v381, %v529
  %v531 = vpop.f32.mrb[0].mxu0
  %532 = vmatprep.mubr.f32.mxu0 0.0
  %v533 = vand.u32 %v27, 4294901760
  %v534 = vsub.f32 %v27, %v533
  %535 = vmatmul.mubr.f32.gmra.mrb[0].mxu0 %v534
  %v536 = vpop.f32.mrb[0].mxu0
  %v537 = vadd.f32 %v387, %v536
  %v538 = vpop.f32.mrb[0].mxu0
  %539 = vmatprep.mubr.f32.mxu0 0.0
  %v540 = vand.u32 %v28, 4294901760
  %v541 = vsub.f32 %v28, %v540
  %542 = vmatmul.mubr.f32.gmra.mrb[0].mxu0 %v541
  %v543 = vpop.f32.mrb[0].mxu0
  %v544 = vadd.f32 %v393, %v543
  %v545 = vpop.f32.mrb[0].mxu0
  %546 = vmatprep.mubr.f32.mxu0 0.0
  %v547 = vand.u32 %v29, 4294901760
  %v548 = vsub.f32 %v29, %v547
  %549 = vmatmul.mubr.f32.gmra.mrb[0].mxu0 %v548
  %v550 = vpop.f32.mrb[0].mxu0
  %v551 = vadd.f32 %v399, %v550
  %v552 = vpop.f32.mrb[0].mxu0
  %553 = vmatprep.mubr.f32.mxu0 0.0
  %v554 = vand.u32 %v30, 4294901760
  %v555 = vsub.f32 %v30, %v554
  %556 = vmatmul.mubr.f32.gmra.mrb[0].mxu0 %v555
  %v557 = vpop.f32.mrb[0].mxu0
  %v558 = vadd.f32 %v405, %v557
  %v559 = vpop.f32.mrb[0].mxu0
  %560 = vdwg.mxu0
  %561 = vmatprep.subr.mxu0 0.0
  %v562 = vand.u32 %v31, 4294901760
  %563 = vmatpush1.msra.mxu0 %v562
  %564 = vmatprep.subr.mxu0 0.0
  %v565 = vand.u32 %v32, 4294901760
  %566 = vmatpush1.msra.mxu0 %v565
  %567 = vmatprep.subr.mxu0 0.0
  %v568 = vand.u32 %v33, 4294901760
  %569 = vmatpush1.msra.mxu0 %v568
  %570 = vmatprep.subr.mxu0 0.0
  %v571 = vand.u32 %v34, 4294901760
  %572 = vmatpush1.msra.mxu0 %v571
  %573 = vmatprep.subr.mxu0 0.0
  %v574 = vand.u32 %v35, 4294901760
  %575 = vmatpush1.msra.mxu0 %v574
  %576 = vmatprep.subr.mxu0 0.0
  %v577 = vand.u32 %v36, 4294901760
  %578 = vmatpush1.msra.mxu0 %v577
  %579 = vmatprep.subr.mxu0 0.0
  %v580 = vand.u32 %v37, 4294901760
  %581 = vmatpush1.msra.mxu0 %v580
  %582 = vmatprep.subr.mxu0 0.0
  %v583 = vand.u32 %v38, 4294901760
  %584 = vmatpush1.msra.mxu0 %v583
  %585 = vmatprep.subr.mxu0 0.0
  %v586 = vand.u32 %v39, 4294901760
  %587 = vmatpush1.msra.mxu0 %v586
  %588 = vmatprep.subr.mxu0 0.0
  %v589 = vand.u32 %v40, 4294901760
  %590 = vmatpush1.msra.mxu0 %v589
  %591 = vmatprep.subr.mxu0 0.0
  %v592 = vand.u32 %v41, 4294901760
  %593 = vmatpush1.msra.mxu0 %v592
  %594 = vmatprep.subr.mxu0 0.0
  %v595 = vand.u32 %v42, 4294901760
  %596 = vmatpush1.msra.mxu0 %v595
  %597 = vmatprep.subr.mxu0 0.0
  %v598 = vand.u32 %v43, 4294901760
  %599 = vmatpush1.msra.mxu0 %v598
  %600 = vmatprep.subr.mxu0 0.0
  %v601 = vand.u32 %v44, 4294901760
  %602 = vmatpush1.msra.mxu0 %v601
  %603 = vmatprep.subr.mxu0 0.0
  %v604 = vand.u32 %v45, 4294901760
  %605 = vmatpush1.msra.mxu0 %v604
  %606 = vmatprep.subr.mxu0 0.0
  %v607 = vand.u32 %v46, 4294901760
  %608 = vmatpush1.msra.mxu0 %v607
  %609 = vmatprep.subr.mxu0 0.0
  %610 = vmatpush1.msra.mxu0 0.0
  %611 = vmatprep.subr.mxu0 0.0
  %612 = vmatpush1.msra.mxu0 0.0
  %613 = vmatprep.subr.mxu0 0.0
  %614 = vmatpush1.msra.mxu0 0.0
  %615 = vmatprep.subr.mxu0 0.0
  %616 = vmatpush1.msra.mxu0 0.0
  %617 = vmatprep.subr.mxu0 0.0
  %618 = vmatpush1.msra.mxu0 0.0
  %619 = vmatprep.subr.mxu0 0.0
  %620 = vmatpush1.msra.mxu0 0.0
  %621 = vmatprep.subr.mxu0 0.0
  %622 = vmatpush1.msra.mxu0 0.0
  %623 = vmatprep.subr.mxu0 0.0
  %624 = vmatpush1.msra.mxu0 0.0
  %625 = vmatprep.subr.mxu0 0.0
  %626 = vmatpush1.msra.mxu0 0.0
  %627 = vmatprep.subr.mxu0 0.0
  %628 = vmatpush1.msra.mxu0 0.0
  %629 = vmatprep.subr.mxu0 0.0
  %630 = vmatpush1.msra.mxu0 0.0
  %631 = vmatprep.subr.mxu0 0.0
  %632 = vmatpush1.msra.mxu0 0.0
  %633 = vmatprep.subr.mxu0 0.0
  %634 = vmatpush1.msra.mxu0 0.0
  %635 = vmatprep.subr.mxu0 0.0
  %636 = vmatpush1.msra.mxu0 0.0
  %637 = vmatprep.subr.mxu0 0.0
  %638 = vmatpush1.msra.mxu0 0.0
  %639 = vmatprep.subr.mxu0 0.0
  %640 = vmatpush1.msra.mxu0 0.0
  %641 = vmatprep.mubr.f32.mxu0 0.0
  %v642 = vand.u32 %v23, 4294901760
  %v643 = vsub.f32 %v23, %v642
  %v644 = vand.u32 %v643, 4294901760
  %645 = vmatmul.mubr.f32.gmra.mrb[0].mxu0 %v644
  %v646 = vpop.f32.mrb[0].mxu0
  %v647 = vadd.f32 %v509, %v646
  %v648 = vpop.f32.mrb[0].mxu0
  %649 = vmatprep.mubr.f32.mxu0 0.0
  %v650 = vand.u32 %v24, 4294901760
  %v651 = vsub.f32 %v24, %v650
  %v652 = vand.u32 %v651, 4294901760
  %653 = vmatmul.mubr.f32.gmra.mrb[0].mxu0 %v652
  %v654 = vpop.f32.mrb[0].mxu0
  %v655 = vadd.f32 %v516, %v654
  %v656 = vpop.f32.mrb[0].mxu0
  %657 = vmatprep.mubr.f32.mxu0 0.0
  %v658 = vand.u32 %v25, 4294901760
  %v659 = vsub.f32 %v25, %v658
  %v660 = vand.u32 %v659, 4294901760
  %661 = vmatmul.mubr.f32.gmra.mrb[0].mxu0 %v660
  %v662 = vpop.f32.mrb[0].mxu0
  %v663 = vadd.f32 %v523, %v662
  %v664 = vpop.f32.mrb[0].mxu0
  %665 = vmatprep.mubr.f32.mxu0 0.0
  %v666 = vand.u32 %v26, 4294901760
  %v667 = vsub.f32 %v26, %v666
  %v668 = vand.u32 %v667, 4294901760
  %669 = vmatmul.mubr.f32.gmra.mrb[0].mxu0 %v668
  %v670 = vpop.f32.mrb[0].mxu0
  %v671 = vadd.f32 %v530, %v670
  %v672 = vpop.f32.mrb[0].mxu0
  %673 = vmatprep.mubr.f32.mxu0 0.0
  %v674 = vand.u32 %v27, 4294901760
  %v675 = vsub.f32 %v27, %v674
  %v676 = vand.u32 %v675, 4294901760
  %677 = vmatmul.mubr.f32.gmra.mrb[0].mxu0 %v676
  %v678 = vpop.f32.mrb[0].mxu0
  %v679 = vadd.f32 %v537, %v678
  %v680 = vpop.f32.mrb[0].mxu0
  %681 = vmatprep.mubr.f32.mxu0 0.0
  %v682 = vand.u32 %v28, 4294901760
  %v683 = vsub.f32 %v28, %v682
  %v684 = vand.u32 %v683, 4294901760
  %685 = vmatmul.mubr.f32.gmra.mrb[0].mxu0 %v684
  %v686 = vpop.f32.mrb[0].mxu0
  %v687 = vadd.f32 %v544, %v686
  %v688 = vpop.f32.mrb[0].mxu0
  %689 = vmatprep.mubr.f32.mxu0 0.0
  %v690 = vand.u32 %v29, 4294901760
  %v691 = vsub.f32 %v29, %v690
  %v692 = vand.u32 %v691, 4294901760
  %693 = vmatmul.mubr.f32.gmra.mrb[0].mxu0 %v692
  %v694 = vpop.f32.mrb[0].mxu0
  %v695 = vadd.f32 %v551, %v694
  %v696 = vpop.f32.mrb[0].mxu0
  %697 = vmatprep.mubr.f32.mxu0 0.0
  %v698 = vand.u32 %v30, 4294901760
  %v699 = vsub.f32 %v30, %v698
  %v700 = vand.u32 %v699, 4294901760
  %701 = vmatmul.mubr.f32.gmra.mrb[0].mxu0 %v700
  %v702 = vpop.f32.mrb[0].mxu0
  %v703 = vadd.f32 %v558, %v702
  %v704 = vpop.f32.mrb[0].mxu0
  %705 = vdwg.mxu0
  %706 = vmatprep.subr.mxu0 0.0
  %v707 = vand.u32 %v31, 4294901760
  %v708 = vsub.f32 %v31, %v707
  %v709 = vand.u32 %v708, 4294901760
  %710 = vmatpush1.msra.mxu0 %v709
  %711 = vmatprep.subr.mxu0 0.0
  %v712 = vand.u32 %v32, 4294901760
  %v713 = vsub.f32 %v32, %v712
  %v714 = vand.u32 %v713, 4294901760
  %715 = vmatpush1.msra.mxu0 %v714
  %716 = vmatprep.subr.mxu0 0.0
  %v717 = vand.u32 %v33, 4294901760
  %v718 = vsub.f32 %v33, %v717
  %v719 = vand.u32 %v718, 4294901760
  %720 = vmatpush1.msra.mxu0 %v719
  %721 = vmatprep.subr.mxu0 0.0
  %v722 = vand.u32 %v34, 4294901760
  %v723 = vsub.f32 %v34, %v722
  %v724 = vand.u32 %v723, 4294901760
  %725 = vmatpush1.msra.mxu0 %v724
  %726 = vmatprep.subr.mxu0 0.0
  %v727 = vand.u32 %v35, 4294901760
  %v728 = vsub.f32 %v35, %v727
  %v729 = vand.u32 %v728, 4294901760
  %730 = vmatpush1.msra.mxu0 %v729
  %731 = vmatprep.subr.mxu0 0.0
  %v732 = vand.u32 %v36, 4294901760
  %v733 = vsub.f32 %v36, %v732
  %v734 = vand.u32 %v733, 4294901760
  %735 = vmatpush1.msra.mxu0 %v734
  %736 = vmatprep.subr.mxu0 0.0
  %v737 = vand.u32 %v37, 4294901760
  %v738 = vsub.f32 %v37, %v737
  %v739 = vand.u32 %v738, 4294901760
  %740 = vmatpush1.msra.mxu0 %v739
  %741 = vmatprep.subr.mxu0 0.0
  %v742 = vand.u32 %v38, 4294901760
  %v743 = vsub.f32 %v38, %v742
  %v744 = vand.u32 %v743, 4294901760
  %745 = vmatpush1.msra.mxu0 %v744
  %746 = vmatprep.subr.mxu0 0.0
  %v747 = vand.u32 %v39, 4294901760
  %v748 = vsub.f32 %v39, %v747
  %v749 = vand.u32 %v748, 4294901760
  %750 = vmatpush1.msra.mxu0 %v749
  %751 = vmatprep.subr.mxu0 0.0
  %v752 = vand.u32 %v40, 4294901760
  %v753 = vsub.f32 %v40, %v752
  %v754 = vand.u32 %v753, 4294901760
  %755 = vmatpush1.msra.mxu0 %v754
  %756 = vmatprep.subr.mxu0 0.0
  %v757 = vand.u32 %v41, 4294901760
  %v758 = vsub.f32 %v41, %v757
  %v759 = vand.u32 %v758, 4294901760
  %760 = vmatpush1.msra.mxu0 %v759
  %761 = vmatprep.subr.mxu0 0.0
  %v762 = vand.u32 %v42, 4294901760
  %v763 = vsub.f32 %v42, %v762
  %v764 = vand.u32 %v763, 4294901760
  %765 = vmatpush1.msra.mxu0 %v764
  %766 = vmatprep.subr.mxu0 0.0
  %v767 = vand.u32 %v43, 4294901760
  %v768 = vsub.f32 %v43, %v767
  %v769 = vand.u32 %v768, 4294901760
  %770 = vmatpush1.msra.mxu0 %v769
  %771 = vmatprep.subr.mxu0 0.0
  %v772 = vand.u32 %v44, 4294901760
  %v773 = vsub.f32 %v44, %v772
  %v774 = vand.u32 %v773, 4294901760
  %775 = vmatpush1.msra.mxu0 %v774
  %776 = vmatprep.subr.mxu0 0.0
  %v777 = vand.u32 %v45, 4294901760
  %v778 = vsub.f32 %v45, %v777
  %v779 = vand.u32 %v778, 4294901760
  %780 = vmatpush1.msra.mxu0 %v779
  %781 = vmatprep.subr.mxu0 0.0
  %v782 = vand.u32 %v46, 4294901760
  %v783 = vsub.f32 %v46, %v782
  %v784 = vand.u32 %v783, 4294901760
  %785 = vmatpush1.msra.mxu0 %v784
  %786 = vmatprep.subr.mxu0 0.0
  %787 = vmatpush1.msra.mxu0 0.0
  %788 = vmatprep.subr.mxu0 0.0
  %789 = vmatpush1.msra.mxu0 0.0
  %790 = vmatprep.subr.mxu0 0.0
  %791 = vmatpush1.msra.mxu0 0.0
  %792 = vmatprep.subr.mxu0 0.0
  %793 = vmatpush1.msra.mxu0 0.0
  %794 = vmatprep.subr.mxu0 0.0
  %795 = vmatpush1.msra.mxu0 0.0
  %796 = vmatprep.subr.mxu0 0.0
  %797 = vmatpush1.msra.mxu0 0.0
  %798 = vmatprep.subr.mxu0 0.0
  %799 = vmatpush1.msra.mxu0 0.0
  %800 = vmatprep.subr.mxu0 0.0
  %801 = vmatpush1.msra.mxu0 0.0
  %802 = vmatprep.subr.mxu0 0.0
  %803 = vmatpush1.msra.mxu0 0.0
  %804 = vmatprep.subr.mxu0 0.0
  %805 = vmatpush1.msra.mxu0 0.0
  %806 = vmatprep.subr.mxu0 0.0
  %807 = vmatpush1.msra.mxu0 0.0
  %808 = vmatprep.subr.mxu0 0.0
  %809 = vmatpush1.msra.mxu0 0.0
  %810 = vmatprep.subr.mxu0 0.0
  %811 = vmatpush1.msra.mxu0 0.0
  %812 = vmatprep.subr.mxu0 0.0
  %813 = vmatpush1.msra.mxu0 0.0
  %814 = vmatprep.subr.mxu0 0.0
  %815 = vmatpush1.msra.mxu0 0.0
  %816 = vmatprep.subr.mxu0 0.0
  %817 = vmatpush1.msra.mxu0 0.0
  %818 = vmatprep.mubr.f32.mxu0 0.0
  %v819 = vand.u32 %v23, 4294901760
  %820 = vmatmul.mubr.f32.gmra.mrb[0].mxu0 %v819
  %v821 = vpop.f32.mrb[0].mxu0
  %v822 = vadd.f32 %v647, %v821
  %v823 = vpop.f32.mrb[0].mxu0
  %824 = vmatprep.mubr.f32.mxu0 0.0
  %v825 = vand.u32 %v24, 4294901760
  %826 = vmatmul.mubr.f32.gmra.mrb[0].mxu0 %v825
  %v827 = vpop.f32.mrb[0].mxu0
  %v828 = vadd.f32 %v655, %v827
  %v829 = vpop.f32.mrb[0].mxu0
  %830 = vmatprep.mubr.f32.mxu0 0.0
  %v831 = vand.u32 %v25, 4294901760
  %832 = vmatmul.mubr.f32.gmra.mrb[0].mxu0 %v831
  %v833 = vpop.f32.mrb[0].mxu0
  %v834 = vadd.f32 %v663, %v833
  %v835 = vpop.f32.mrb[0].mxu0
  %836 = vmatprep.mubr.f32.mxu0 0.0
  %v837 = vand.u32 %v26, 4294901760
  %838 = vmatmul.mubr.f32.gmra.mrb[0].mxu0 %v837
  %v839 = vpop.f32.mrb[0].mxu0
  %v840 = vadd.f32 %v671, %v839
  %v841 = vpop.f32.mrb[0].mxu0
  %842 = vmatprep.mubr.f32.mxu0 0.0
  %v843 = vand.u32 %v27, 4294901760
  %844 = vmatmul.mubr.f32.gmra.mrb[0].mxu0 %v843
  %v845 = vpop.f32.mrb[0].mxu0
  %v846 = vadd.f32 %v679, %v845
  %v847 = vpop.f32.mrb[0].mxu0
  %848 = vmatprep.mubr.f32.mxu0 0.0
  %v849 = vand.u32 %v28, 4294901760
  %850 = vmatmul.mubr.f32.gmra.mrb[0].mxu0 %v849
  %v851 = vpop.f32.mrb[0].mxu0
  %v852 = vadd.f32 %v687, %v851
  %v853 = vpop.f32.mrb[0].mxu0
  %854 = vmatprep.mubr.f32.mxu0 0.0
  %v855 = vand.u32 %v29, 4294901760
  %856 = vmatmul.mubr.f32.gmra.mrb[0].mxu0 %v855
  %v857 = vpop.f32.mrb[0].mxu0
  %v858 = vadd.f32 %v695, %v857
  %v859 = vpop.f32.mrb[0].mxu0
  %860 = vmatprep.mubr.f32.mxu0 0.0
  %v861 = vand.u32 %v30, 4294901760
  %862 = vmatmul.mubr.f32.gmra.mrb[0].mxu0 %v861
  %v863 = vpop.f32.mrb[0].mxu0
  %v864 = vadd.f32 %v703, %v863
  %v865 = vpop.f32.mrb[0].mxu0
  %866 = vdwg.mxu0
  %867 = vmatprep.subr.mxu0 0.0
  %v868 = vand.u32 %v31, 4294901760
  %869 = vmatpush1.msra.mxu0 %v868
  %870 = vmatprep.subr.mxu0 0.0
  %v871 = vand.u32 %v32, 4294901760
  %872 = vmatpush1.msra.mxu0 %v871
  %873 = vmatprep.subr.mxu0 0.0
  %v874 = vand.u32 %v33, 4294901760
  %875 = vmatpush1.msra.mxu0 %v874
  %876 = vmatprep.subr.mxu0 0.0
  %v877 = vand.u32 %v34, 4294901760
  %878 = vmatpush1.msra.mxu0 %v877
  %879 = vmatprep.subr.mxu0 0.0
  %v880 = vand.u32 %v35, 4294901760
  %881 = vmatpush1.msra.mxu0 %v880
  %882 = vmatprep.subr.mxu0 0.0
  %v883 = vand.u32 %v36, 4294901760
  %884 = vmatpush1.msra.mxu0 %v883
  %885 = vmatprep.subr.mxu0 0.0
  %v886 = vand.u32 %v37, 4294901760
  %887 = vmatpush1.msra.mxu0 %v886
  %888 = vmatprep.subr.mxu0 0.0
  %v889 = vand.u32 %v38, 4294901760
  %890 = vmatpush1.msra.mxu0 %v889
  %891 = vmatprep.subr.mxu0 0.0
  %v892 = vand.u32 %v39, 4294901760
  %893 = vmatpush1.msra.mxu0 %v892
  %894 = vmatprep.subr.mxu0 0.0
  %v895 = vand.u32 %v40, 4294901760
  %896 = vmatpush1.msra.mxu0 %v895
  %897 = vmatprep.subr.mxu0 0.0
  %v898 = vand.u32 %v41, 4294901760
  %899 = vmatpush1.msra.mxu0 %v898
  %900 = vmatprep.subr.mxu0 0.0
  %v901 = vand.u32 %v42, 4294901760
  %902 = vmatpush1.msra.mxu0 %v901
  %903 = vmatprep.subr.mxu0 0.0
  %v904 = vand.u32 %v43, 4294901760
  %905 = vmatpush1.msra.mxu0 %v904
  %906 = vmatprep.subr.mxu0 0.0
  %v907 = vand.u32 %v44, 4294901760
  %908 = vmatpush1.msra.mxu0 %v907
  %909 = vmatprep.subr.mxu0 0.0
  %v910 = vand.u32 %v45, 4294901760
  %911 = vmatpush1.msra.mxu0 %v910
  %912 = vmatprep.subr.mxu0 0.0
  %v913 = vand.u32 %v46, 4294901760
  %914 = vmatpush1.msra.mxu0 %v913
  %915 = vmatprep.subr.mxu0 0.0
  %916 = vmatpush1.msra.mxu0 0.0
  %917 = vmatprep.subr.mxu0 0.0
  %918 = vmatpush1.msra.mxu0 0.0
  %919 = vmatprep.subr.mxu0 0.0
  %920 = vmatpush1.msra.mxu0 0.0
  %921 = vmatprep.subr.mxu0 0.0
  %922 = vmatpush1.msra.mxu0 0.0
  %923 = vmatprep.subr.mxu0 0.0
  %924 = vmatpush1.msra.mxu0 0.0
  %925 = vmatprep.subr.mxu0 0.0
  %926 = vmatpush1.msra.mxu0 0.0
  %927 = vmatprep.subr.mxu0 0.0
  %928 = vmatpush1.msra.mxu0 0.0
  %929 = vmatprep.subr.mxu0 0.0
  %930 = vmatpush1.msra.mxu0 0.0
  %931 = vmatprep.subr.mxu0 0.0
  %932 = vmatpush1.msra.mxu0 0.0
  %933 = vmatprep.subr.mxu0 0.0
  %934 = vmatpush1.msra.mxu0 0.0
  %935 = vmatprep.subr.mxu0 0.0
  %936 = vmatpush1.msra.mxu0 0.0
  %937 = vmatprep.subr.mxu0 0.0
  %938 = vmatpush1.msra.mxu0 0.0
  %939 = vmatprep.subr.mxu0 0.0
  %940 = vmatpush1.msra.mxu0 0.0
  %941 = vmatprep.subr.mxu0 0.0
  %942 = vmatpush1.msra.mxu0 0.0
  %943 = vmatprep.subr.mxu0 0.0
  %944 = vmatpush1.msra.mxu0 0.0
  %945 = vmatprep.subr.mxu0 0.0
  %946 = vmatpush1.msra.mxu0 0.0
  %947 = vmatprep.mubr.f32.mxu0 0.0
  %v948 = vand.u32 %v23, 4294901760
  %949 = vmatmul.mubr.f32.gmra.mrb[0].mxu0 %v948
  %v950 = vpop.f32.mrb[0].mxu0
  %v951 = vadd.f32 %v822, %v950
  %v952 = vpop.f32.mrb[0].mxu0
  %953 = vmatprep.mubr.f32.mxu0 0.0
  %v954 = vand.u32 %v24, 4294901760
  %955 = vmatmul.mubr.f32.gmra.mrb[0].mxu0 %v954
  %v956 = vpop.f32.mrb[0].mxu0
  %v957 = vadd.f32 %v828, %v956
  %v958 = vpop.f32.mrb[0].mxu0
  %959 = vmatprep.mubr.f32.mxu0 0.0
  %v960 = vand.u32 %v25, 4294901760
  %961 = vmatmul.mubr.f32.gmra.mrb[0].mxu0 %v960
  %v962 = vpop.f32.mrb[0].mxu0
  %v963 = vadd.f32 %v834, %v962
  %v964 = vpop.f32.mrb[0].mxu0
  %965 = vmatprep.mubr.f32.mxu0 0.0
  %v966 = vand.u32 %v26, 4294901760
  %967 = vmatmul.mubr.f32.gmra.mrb[0].mxu0 %v966
  %v968 = vpop.f32.mrb[0].mxu0
  %v969 = vadd.f32 %v840, %v968
  %v970 = vpop.f32.mrb[0].mxu0
  %971 = vmatprep.mubr.f32.mxu0 0.0
  %v972 = vand.u32 %v27, 4294901760
  %973 = vmatmul.mubr.f32.gmra.mrb[0].mxu0 %v972
  %v974 = vpop.f32.mrb[0].mxu0
  %v975 = vadd.f32 %v846, %v974
  %v976 = vpop.f32.mrb[0].mxu0
  %977 = vmatprep.mubr.f32.mxu0 0.0
  %v978 = vand.u32 %v28, 4294901760
  %979 = vmatmul.mubr.f32.gmra.mrb[0].mxu0 %v978
  %v980 = vpop.f32.mrb[0].mxu0
  %v981 = vadd.f32 %v852, %v980
  %v982 = vpop.f32.mrb[0].mxu0
  %983 = vmatprep.mubr.f32.mxu0 0.0
  %v984 = vand.u32 %v29, 4294901760
  %985 = vmatmul.mubr.f32.gmra.mrb[0].mxu0 %v984
  %v986 = vpop.f32.mrb[0].mxu0
  %v987 = vadd.f32 %v858, %v986
  %v988 = vpop.f32.mrb[0].mxu0
  %989 = vmatprep.mubr.f32.mxu0 0.0
  %v990 = vand.u32 %v30, 4294901760
  %991 = vmatmul.mubr.f32.gmra.mrb[0].mxu0 %v990
  %v992 = vpop.f32.mrb[0].mxu0
  %v993 = vadd.f32 %v864, %v992
  %v994 = vpop.f32.mrb[0].mxu0
  %995 = vdwg.mxu0
  %996 = vst [vmem:[#allocation2] sm:$0xff] %v951
  %997 = vst [vmem:[#allocation2 + $0x8] sm:$0xff] %v957
  %998 = vst [vmem:[#allocation2 + $0x10] sm:$0xff] %v963
  %999 = vst [vmem:[#allocation2 + $0x18] sm:$0xff] %v969
  %1000 = vst [vmem:[#allocation2 + $0x20] sm:$0xff] %v975
  %1001 = vst [vmem:[#allocation2 + $0x28] sm:$0xff] %v981
  %1002 = vst [vmem:[#allocation2 + $0x30] sm:$0xff] %v987
  %1003 = vst [vmem:[#allocation2 + $0x38] sm:$0xff] %v993
  %v1004 = vld [vmem:[%s2] sm:$0xff]
  %v1005 = vld [vmem:[%s2 + $0x8] sm:$0xff]
  %v1006 = vld [vmem:[%s2 + $0x10] sm:$0xff]
  %v1007 = vld [vmem:[%s2 + $0x18] sm:$0xff]
  %v1008 = vld [vmem:[%s2 + $0x20] sm:$0xff]
  %v1009 = vld [vmem:[%s2 + $0x28] sm:$0xff]
  %v1010 = vld [vmem:[%s2 + $0x30] sm:$0xff]
  %v1011 = vld [vmem:[%s2 + $0x38] sm:$0xff]
  %v1012 = vld [vmem:[%s2 + $0x40] sm:$0xff]
  %v1013 = vld [vmem:[%s2 + $0x48] sm:$0xff]
  %v1014 = vld [vmem:[%s2 + $0x50] sm:$0xff]
  %v1015 = vld [vmem:[%s2 + $0x58] sm:$0xff]
  %v1016 = vld [vmem:[%s2 + $0x60] sm:$0xff]
  %v1017 = vld [vmem:[%s2 + $0x68] sm:$0xff]
  %v1018 = vld [vmem:[%s2 + $0x70] sm:$0xff]
  %v1019 = vld [vmem:[%s2 + $0x78] sm:$0xff]
  %v1020 = vld [vmem:[#allocation2] sm:$0xff]
  %1021 = vmatprep.subr.mxu0 0.0
  %v1022 = vand.u32 %v1004, 4294901760
  %1023 = vmatpush1.msra.mxu0 %v1022
  %1024 = vmatprep.subr.mxu0 0.0
  %v1025 = vand.u32 %v1005, 4294901760
  %1026 = vmatpush1.msra.mxu0 %v1025
  %1027 = vmatprep.subr.mxu0 0.0
  %v1028 = vand.u32 %v1006, 4294901760
  %1029 = vmatpush1.msra.mxu0 %v1028
  %1030 = vmatprep.subr.mxu0 0.0
  %v1031 = vand.u32 %v1007, 4294901760
  %1032 = vmatpush1.msra.mxu0 %v1031
  %1033 = vmatprep.subr.mxu0 0.0
  %v1034 = vand.u32 %v1008, 4294901760
  %1035 = vmatpush1.msra.mxu0 %v1034
  %1036 = vmatprep.subr.mxu0 0.0
  %v1037 = vand.u32 %v1009, 4294901760
  %1038 = vmatpush1.msra.mxu0 %v1037
  %1039 = vmatprep.subr.mxu0 0.0
  %v1040 = vand.u32 %v1010, 4294901760
  %1041 = vmatpush1.msra.mxu0 %v1040
  %1042 = vmatprep.subr.mxu0 0.0
  %v1043 = vand.u32 %v1011, 4294901760
  %1044 = vmatpush1.msra.mxu0 %v1043
  %1045 = vmatprep.subr.mxu0 0.0
  %v1046 = vand.u32 %v1012, 4294901760
  %1047 = vmatpush1.msra.mxu0 %v1046
  %1048 = vmatprep.subr.mxu0 0.0
  %v1049 = vand.u32 %v1013, 4294901760
  %1050 = vmatpush1.msra.mxu0 %v1049
  %1051 = vmatprep.subr.mxu0 0.0
  %v1052 = vand.u32 %v1014, 4294901760
  %1053 = vmatpush1.msra.mxu0 %v1052
  %1054 = vmatprep.subr.mxu0 0.0
  %v1055 = vand.u32 %v1015, 4294901760
  %1056 = vmatpush1.msra.mxu0 %v1055
  %1057 = vmatprep.subr.mxu0 0.0
  %v1058 = vand.u32 %v1016, 4294901760
  %1059 = vmatpush1.msra.mxu0 %v1058
  %1060 = vmatprep.subr.mxu0 0.0
  %v1061 = vand.u32 %v1017, 4294901760
  %1062 = vmatpush1.msra.mxu0 %v1061
  %1063 = vmatprep.subr.mxu0 0.0
  %v1064 = vand.u32 %v1018, 4294901760
  %1065 = vmatpush1.msra.mxu0 %v1064
  %1066 = vmatprep.subr.mxu0 0.0
  %v1067 = vand.u32 %v1019, 4294901760
  %1068 = vmatpush1.msra.mxu0 %v1067
  %1069 = vmatprep.subr.mxu0 0.0
  %1070 = vmatpush1.msra.mxu0 0.0
  %1071 = vmatprep.subr.mxu0 0.0
  %1072 = vmatpush1.msra.mxu0 0.0
  %1073 = vmatprep.subr.mxu0 0.0
  %1074 = vmatpush1.msra.mxu0 0.0
  %1075 = vmatprep.subr.mxu0 0.0
  %1076 = vmatpush1.msra.mxu0 0.0
  %1077 = vmatprep.subr.mxu0 0.0
  %1078 = vmatpush1.msra.mxu0 0.0
  %1079 = vmatprep.subr.mxu0 0.0
  %1080 = vmatpush1.msra.mxu0 0.0
  %1081 = vmatprep.subr.mxu0 0.0
  %1082 = vmatpush1.msra.mxu0 0.0
  %1083 = vmatprep.subr.mxu0 0.0
  %1084 = vmatpush1.msra.mxu0 0.0
  %1085 = vmatprep.subr.mxu0 0.0
  %1086 = vmatpush1.msra.mxu0 0.0
  %1087 = vmatprep.subr.mxu0 0.0
  %1088 = vmatpush1.msra.mxu0 0.0
  %1089 = vmatprep.subr.mxu0 0.0
  %1090 = vmatpush1.msra.mxu0 0.0
  %1091 = vmatprep.subr.mxu0 0.0
  %1092 = vmatpush1.msra.mxu0 0.0
  %1093 = vmatprep.subr.mxu0 0.0
  %1094 = vmatpush1.msra.mxu0 0.0
  %1095 = vmatprep.subr.mxu0 0.0
  %1096 = vmatpush1.msra.mxu0 0.0
  %1097 = vmatprep.subr.mxu0 0.0
  %1098 = vmatpush1.msra.mxu0 0.0
  %1099 = vmatprep.subr.mxu0 0.0
  %1100 = vmatpush1.msra.mxu0 0.0
  %1101 = vmatprep.mubr.f32.mxu0 0.0
  %1102 = vmatmul.mubr.f32.gmra.mrb[0].mxu0 0.0
  %v1103 = vpop.f32.mrb[0].mxu0
  %v1104 = vadd.f32 0.0, %v1103
  %v1105 = vpop.f32.mrb[0].mxu0
  %1106 = vdwg.mxu0
  %1107 = vmatprep.subr.mxu0 0.0
  %v1108 = vand.u32 %v1004, 4294901760
  %v1109 = vsub.f32 %v1004, %v1108
  %v1110 = vand.u32 %v1109, 4294901760
  %v1111 = vsub.f32 %v1109, %v1110
  %v1112 = vand.u32 %v1111, 4294901760
  %1113 = vmatpush1.msra.mxu0 %v1112
  %1114 = vmatprep.subr.mxu0 0.0
  %v1115 = vand.u32 %v1005, 4294901760
  %v1116 = vsub.f32 %v1005, %v1115
  %v1117 = vand.u32 %v1116, 4294901760
  %v1118 = vsub.f32 %v1116, %v1117
  %v1119 = vand.u32 %v1118, 4294901760
  %1120 = vmatpush1.msra.mxu0 %v1119
  %1121 = vmatprep.subr.mxu0 0.0
  %v1122 = vand.u32 %v1006, 4294901760
  %v1123 = vsub.f32 %v1006, %v1122
  %v1124 = vand.u32 %v1123, 4294901760
  %v1125 = vsub.f32 %v1123, %v1124
  %v1126 = vand.u32 %v1125, 4294901760
  %1127 = vmatpush1.msra.mxu0 %v1126
  %1128 = vmatprep.subr.mxu0 0.0
  %v1129 = vand.u32 %v1007, 4294901760
  %v1130 = vsub.f32 %v1007, %v1129
  %v1131 = vand.u32 %v1130, 4294901760
  %v1132 = vsub.f32 %v1130, %v1131
  %v1133 = vand.u32 %v1132, 4294901760
  %1134 = vmatpush1.msra.mxu0 %v1133
  %1135 = vmatprep.subr.mxu0 0.0
  %v1136 = vand.u32 %v1008, 4294901760
  %v1137 = vsub.f32 %v1008, %v1136
  %v1138 = vand.u32 %v1137, 4294901760
  %v1139 = vsub.f32 %v1137, %v1138
  %v1140 = vand.u32 %v1139, 4294901760
  %1141 = vmatpush1.msra.mxu0 %v1140
  %1142 = vmatprep.subr.mxu0 0.0
  %v1143 = vand.u32 %v1009, 4294901760
  %v1144 = vsub.f32 %v1009, %v1143
  %v1145 = vand.u32 %v1144, 4294901760
  %v1146 = vsub.f32 %v1144, %v1145
  %v1147 = vand.u32 %v1146, 4294901760
  %1148 = vmatpush1.msra.mxu0 %v1147
  %1149 = vmatprep.subr.mxu0 0.0
  %v1150 = vand.u32 %v1010, 4294901760
  %v1151 = vsub.f32 %v1010, %v1150
  %v1152 = vand.u32 %v1151, 4294901760
  %v1153 = vsub.f32 %v1151, %v1152
  %v1154 = vand.u32 %v1153, 4294901760
  %1155 = vmatpush1.msra.mxu0 %v1154
  %1156 = vmatprep.subr.mxu0 0.0
  %v1157 = vand.u32 %v1011, 4294901760
  %v1158 = vsub.f32 %v1011, %v1157
  %v1159 = vand.u32 %v1158, 4294901760
  %v1160 = vsub.f32 %v1158, %v1159
  %v1161 = vand.u32 %v1160, 4294901760
  %1162 = vmatpush1.msra.mxu0 %v1161
  %1163 = vmatprep.subr.mxu0 0.0
  %v1164 = vand.u32 %v1012, 4294901760
  %v1165 = vsub.f32 %v1012, %v1164
  %v1166 = vand.u32 %v1165, 4294901760
  %v1167 = vsub.f32 %v1165, %v1166
  %v1168 = vand.u32 %v1167, 4294901760
  %1169 = vmatpush1.msra.mxu0 %v1168
  %1170 = vmatprep.subr.mxu0 0.0
  %v1171 = vand.u32 %v1013, 4294901760
  %v1172 = vsub.f32 %v1013, %v1171
  %v1173 = vand.u32 %v1172, 4294901760
  %v1174 = vsub.f32 %v1172, %v1173
  %v1175 = vand.u32 %v1174, 4294901760
  %1176 = vmatpush1.msra.mxu0 %v1175
  %1177 = vmatprep.subr.mxu0 0.0
  %v1178 = vand.u32 %v1014, 4294901760
  %v1179 = vsub.f32 %v1014, %v1178
  %v1180 = vand.u32 %v1179, 4294901760
  %v1181 = vsub.f32 %v1179, %v1180
  %v1182 = vand.u32 %v1181, 4294901760
  %1183 = vmatpush1.msra.mxu0 %v1182
  %1184 = vmatprep.subr.mxu0 0.0
  %v1185 = vand.u32 %v1015, 4294901760
  %v1186 = vsub.f32 %v1015, %v1185
  %v1187 = vand.u32 %v1186, 4294901760
  %v1188 = vsub.f32 %v1186, %v1187
  %v1189 = vand.u32 %v1188, 4294901760
  %1190 = vmatpush1.msra.mxu0 %v1189
  %1191 = vmatprep.subr.mxu0 0.0
  %v1192 = vand.u32 %v1016, 4294901760
  %v1193 = vsub.f32 %v1016, %v1192
  %v1194 = vand.u32 %v1193, 4294901760
  %v1195 = vsub.f32 %v1193, %v1194
  %v1196 = vand.u32 %v1195, 4294901760
  %1197 = vmatpush1.msra.mxu0 %v1196
  %1198 = vmatprep.subr.mxu0 0.0
  %v1199 = vand.u32 %v1017, 4294901760
  %v1200 = vsub.f32 %v1017, %v1199
  %v1201 = vand.u32 %v1200, 4294901760
  %v1202 = vsub.f32 %v1200, %v1201
  %v1203 = vand.u32 %v1202, 4294901760
  %1204 = vmatpush1.msra.mxu0 %v1203
  %1205 = vmatprep.subr.mxu0 0.0
  %v1206 = vand.u32 %v1018, 4294901760
  %v1207 = vsub.f32 %v1018, %v1206
  %v1208 = vand.u32 %v1207, 4294901760
  %v1209 = vsub.f32 %v1207, %v1208
  %v1210 = vand.u32 %v1209, 4294901760
  %1211 = vmatpush1.msra.mxu0 %v1210
  %1212 = vmatprep.subr.mxu0 0.0
  %v1213 = vand.u32 %v1019, 4294901760
  %v1214 = vsub.f32 %v1019, %v1213
  %v1215 = vand.u32 %v1214, 4294901760
  %v1216 = vsub.f32 %v1214, %v1215
  %v1217 = vand.u32 %v1216, 4294901760
  %1218 = vmatpush1.msra.mxu0 %v1217
  %1219 = vmatprep.subr.mxu0 0.0
  %1220 = vmatpush1.msra.mxu0 0.0
  %1221 = vmatprep.subr.mxu0 0.0
  %1222 = vmatpush1.msra.mxu0 0.0
  %1223 = vmatprep.subr.mxu0 0.0
  %1224 = vmatpush1.msra.mxu0 0.0
  %1225 = vmatprep.subr.mxu0 0.0
  %1226 = vmatpush1.msra.mxu0 0.0
  %1227 = vmatprep.subr.mxu0 0.0
  %1228 = vmatpush1.msra.mxu0 0.0
  %1229 = vmatprep.subr.mxu0 0.0
  %1230 = vmatpush1.msra.mxu0 0.0
  %1231 = vmatprep.subr.mxu0 0.0
  %1232 = vmatpush1.msra.mxu0 0.0
  %1233 = vmatprep.subr.mxu0 0.0
  %1234 = vmatpush1.msra.mxu0 0.0
  %1235 = vmatprep.subr.mxu0 0.0
  %1236 = vmatpush1.msra.mxu0 0.0
  %1237 = vmatprep.subr.mxu0 0.0
  %1238 = vmatpush1.msra.mxu0 0.0
  %1239 = vmatprep.subr.mxu0 0.0
  %1240 = vmatpush1.msra.mxu0 0.0
  %1241 = vmatprep.subr.mxu0 0.0
  %1242 = vmatpush1.msra.mxu0 0.0
  %1243 = vmatprep.subr.mxu0 0.0
  %1244 = vmatpush1.msra.mxu0 0.0
  %1245 = vmatprep.subr.mxu0 0.0
  %1246 = vmatpush1.msra.mxu0 0.0
  %1247 = vmatprep.subr.mxu0 0.0
  %1248 = vmatpush1.msra.mxu0 0.0
  %1249 = vmatprep.subr.mxu0 0.0
  %1250 = vmatpush1.msra.mxu0 0.0
  %1251 = vmatprep.mubr.f32.mxu0 0.0
  %1252 = vmatmul.mubr.f32.gmra.mrb[0].mxu0 0.0
  %v1253 = vpop.f32.mrb[0].mxu0
  %v1254 = vadd.f32 %v1104, %v1253
  %v1255 = vpop.f32.mrb[0].mxu0
  %1256 = vdwg.mxu0
  %1257 = vmatprep.subr.mxu0 0.0
  %v1258 = vand.u32 %v1004, 4294901760
  %v1259 = vsub.f32 %v1004, %v1258
  %1260 = vmatpush1.msra.mxu0 %v1259
  %1261 = vmatprep.subr.mxu0 0.0
  %v1262 = vand.u32 %v1005, 4294901760
  %v1263 = vsub.f32 %v1005, %v1262
  %1264 = vmatpush1.msra.mxu0 %v1263
  %1265 = vmatprep.subr.mxu0 0.0
  %v1266 = vand.u32 %v1006, 4294901760
  %v1267 = vsub.f32 %v1006, %v1266
  %1268 = vmatpush1.msra.mxu0 %v1267
  %1269 = vmatprep.subr.mxu0 0.0
  %v1270 = vand.u32 %v1007, 4294901760
  %v1271 = vsub.f32 %v1007, %v1270
  %1272 = vmatpush1.msra.mxu0 %v1271
  %1273 = vmatprep.subr.mxu0 0.0
  %v1274 = vand.u32 %v1008, 4294901760
  %v1275 = vsub.f32 %v1008, %v1274
  %1276 = vmatpush1.msra.mxu0 %v1275
  %1277 = vmatprep.subr.mxu0 0.0
  %v1278 = vand.u32 %v1009, 4294901760
  %v1279 = vsub.f32 %v1009, %v1278
  %1280 = vmatpush1.msra.mxu0 %v1279
  %1281 = vmatprep.subr.mxu0 0.0
  %v1282 = vand.u32 %v1010, 4294901760
  %v1283 = vsub.f32 %v1010, %v1282
  %1284 = vmatpush1.msra.mxu0 %v1283
  %1285 = vmatprep.subr.mxu0 0.0
  %v1286 = vand.u32 %v1011, 4294901760
  %v1287 = vsub.f32 %v1011, %v1286
  %1288 = vmatpush1.msra.mxu0 %v1287
  %1289 = vmatprep.subr.mxu0 0.0
  %v1290 = vand.u32 %v1012, 4294901760
  %v1291 = vsub.f32 %v1012, %v1290
  %1292 = vmatpush1.msra.mxu0 %v1291
  %1293 = vmatprep.subr.mxu0 0.0
  %v1294 = vand.u32 %v1013, 4294901760
  %v1295 = vsub.f32 %v1013, %v1294
  %1296 = vmatpush1.msra.mxu0 %v1295
  %1297 = vmatprep.subr.mxu0 0.0
  %v1298 = vand.u32 %v1014, 4294901760
  %v1299 = vsub.f32 %v1014, %v1298
  %1300 = vmatpush1.msra.mxu0 %v1299
  %1301 = vmatprep.subr.mxu0 0.0
  %v1302 = vand.u32 %v1015, 4294901760
  %v1303 = vsub.f32 %v1015, %v1302
  %1304 = vmatpush1.msra.mxu0 %v1303
  %1305 = vmatprep.subr.mxu0 0.0
  %v1306 = vand.u32 %v1016, 4294901760
  %v1307 = vsub.f32 %v1016, %v1306
  %1308 = vmatpush1.msra.mxu0 %v1307
  %1309 = vmatprep.subr.mxu0 0.0
  %v1310 = vand.u32 %v1017, 4294901760
  %v1311 = vsub.f32 %v1017, %v1310
  %1312 = vmatpush1.msra.mxu0 %v1311
  %1313 = vmatprep.subr.mxu0 0.0
  %v1314 = vand.u32 %v1018, 4294901760
  %v1315 = vsub.f32 %v1018, %v1314
  %1316 = vmatpush1.msra.mxu0 %v1315
  %1317 = vmatprep.subr.mxu0 0.0
  %v1318 = vand.u32 %v1019, 4294901760
  %v1319 = vsub.f32 %v1019, %v1318
  %1320 = vmatpush1.msra.mxu0 %v1319
  %1321 = vmatprep.subr.mxu0 0.0
  %1322 = vmatpush1.msra.mxu0 0.0
  %1323 = vmatprep.subr.mxu0 0.0
  %1324 = vmatpush1.msra.mxu0 0.0
  %1325 = vmatprep.subr.mxu0 0.0
  %1326 = vmatpush1.msra.mxu0 0.0
  %1327 = vmatprep.subr.mxu0 0.0
  %1328 = vmatpush1.msra.mxu0 0.0
  %1329 = vmatprep.subr.mxu0 0.0
  %1330 = vmatpush1.msra.mxu0 0.0
  %1331 = vmatprep.subr.mxu0 0.0
  %1332 = vmatpush1.msra.mxu0 0.0
  %1333 = vmatprep.subr.mxu0 0.0
  %1334 = vmatpush1.msra.mxu0 0.0
  %1335 = vmatprep.subr.mxu0 0.0
  %1336 = vmatpush1.msra.mxu0 0.0
  %1337 = vmatprep.subr.mxu0 0.0
  %1338 = vmatpush1.msra.mxu0 0.0
  %1339 = vmatprep.subr.mxu0 0.0
  %1340 = vmatpush1.msra.mxu0 0.0
  %1341 = vmatprep.subr.mxu0 0.0
  %1342 = vmatpush1.msra.mxu0 0.0
  %1343 = vmatprep.subr.mxu0 0.0
  %1344 = vmatpush1.msra.mxu0 0.0
  %1345 = vmatprep.subr.mxu0 0.0
  %1346 = vmatpush1.msra.mxu0 0.0
  %1347 = vmatprep.subr.mxu0 0.0
  %1348 = vmatpush1.msra.mxu0 0.0
  %1349 = vmatprep.subr.mxu0 0.0
  %1350 = vmatpush1.msra.mxu0 0.0
  %1351 = vmatprep.subr.mxu0 0.0
  %1352 = vmatpush1.msra.mxu0 0.0
  %1353 = vmatprep.mubr.f32.mxu0 0.0
  %1354 = vmatmul.mubr.f32.gmra.mrb[0].mxu0 0.0
  %v1355 = vpop.f32.mrb[0].mxu0
  %v1356 = vadd.f32 %v1254, %v1355
  %v1357 = vpop.f32.mrb[0].mxu0
  %1358 = vdwg.mxu0
  %1359 = vmatprep.subr.mxu0 0.0
  %v1360 = vand.u32 %v1004, 4294901760
  %1361 = vmatpush1.msra.mxu0 %v1360
  %1362 = vmatprep.subr.mxu0 0.0
  %v1363 = vand.u32 %v1005, 4294901760
  %1364 = vmatpush1.msra.mxu0 %v1363
  %1365 = vmatprep.subr.mxu0 0.0
  %v1366 = vand.u32 %v1006, 4294901760
  %1367 = vmatpush1.msra.mxu0 %v1366
  %1368 = vmatprep.subr.mxu0 0.0
  %v1369 = vand.u32 %v1007, 4294901760
  %1370 = vmatpush1.msra.mxu0 %v1369
  %1371 = vmatprep.subr.mxu0 0.0
  %v1372 = vand.u32 %v1008, 4294901760
  %1373 = vmatpush1.msra.mxu0 %v1372
  %1374 = vmatprep.subr.mxu0 0.0
  %v1375 = vand.u32 %v1009, 4294901760
  %1376 = vmatpush1.msra.mxu0 %v1375
  %1377 = vmatprep.subr.mxu0 0.0
  %v1378 = vand.u32 %v1010, 4294901760
  %1379 = vmatpush1.msra.mxu0 %v1378
  %1380 = vmatprep.subr.mxu0 0.0
  %v1381 = vand.u32 %v1011, 4294901760
  %1382 = vmatpush1.msra.mxu0 %v1381
  %1383 = vmatprep.subr.mxu0 0.0
  %v1384 = vand.u32 %v1012, 4294901760
  %1385 = vmatpush1.msra.mxu0 %v1384
  %1386 = vmatprep.subr.mxu0 0.0
  %v1387 = vand.u32 %v1013, 4294901760
  %1388 = vmatpush1.msra.mxu0 %v1387
  %1389 = vmatprep.subr.mxu0 0.0
  %v1390 = vand.u32 %v1014, 4294901760
  %1391 = vmatpush1.msra.mxu0 %v1390
  %1392 = vmatprep.subr.mxu0 0.0
  %v1393 = vand.u32 %v1015, 4294901760
  %1394 = vmatpush1.msra.mxu0 %v1393
  %1395 = vmatprep.subr.mxu0 0.0
  %v1396 = vand.u32 %v1016, 4294901760
  %1397 = vmatpush1.msra.mxu0 %v1396
  %1398 = vmatprep.subr.mxu0 0.0
  %v1399 = vand.u32 %v1017, 4294901760
  %1400 = vmatpush1.msra.mxu0 %v1399
  %1401 = vmatprep.subr.mxu0 0.0
  %v1402 = vand.u32 %v1018, 4294901760
  %1403 = vmatpush1.msra.mxu0 %v1402
  %1404 = vmatprep.subr.mxu0 0.0
  %v1405 = vand.u32 %v1019, 4294901760
  %1406 = vmatpush1.msra.mxu0 %v1405
  %1407 = vmatprep.subr.mxu0 0.0
  %1408 = vmatpush1.msra.mxu0 0.0
  %1409 = vmatprep.subr.mxu0 0.0
  %1410 = vmatpush1.msra.mxu0 0.0
  %1411 = vmatprep.subr.mxu0 0.0
  %1412 = vmatpush1.msra.mxu0 0.0
  %1413 = vmatprep.subr.mxu0 0.0
  %1414 = vmatpush1.msra.mxu0 0.0
  %1415 = vmatprep.subr.mxu0 0.0
  %1416 = vmatpush1.msra.mxu0 0.0
  %1417 = vmatprep.subr.mxu0 0.0
  %1418 = vmatpush1.msra.mxu0 0.0
  %1419 = vmatprep.subr.mxu0 0.0
  %1420 = vmatpush1.msra.mxu0 0.0
  %1421 = vmatprep.subr.mxu0 0.0
  %1422 = vmatpush1.msra.mxu0 0.0
  %1423 = vmatprep.subr.mxu0 0.0
  %1424 = vmatpush1.msra.mxu0 0.0
  %1425 = vmatprep.subr.mxu0 0.0
  %1426 = vmatpush1.msra.mxu0 0.0
  %1427 = vmatprep.subr.mxu0 0.0
  %1428 = vmatpush1.msra.mxu0 0.0
  %1429 = vmatprep.subr.mxu0 0.0
  %1430 = vmatpush1.msra.mxu0 0.0
  %1431 = vmatprep.subr.mxu0 0.0
  %1432 = vmatpush1.msra.mxu0 0.0
  %1433 = vmatprep.subr.mxu0 0.0
  %1434 = vmatpush1.msra.mxu0 0.0
  %1435 = vmatprep.subr.mxu0 0.0
  %1436 = vmatpush1.msra.mxu0 0.0
  %1437 = vmatprep.subr.mxu0 0.0
  %1438 = vmatpush1.msra.mxu0 0.0
  %1439 = vmatprep.mubr.f32.mxu0 0.0
  %1440 = vmatmul.mubr.f32.gmra.mrb[0].mxu0 0.0
  %v1441 = vpop.f32.mrb[0].mxu0
  %v1442 = vadd.f32 %v1356, %v1441
  %v1443 = vpop.f32.mrb[0].mxu0
  %1444 = vdwg.mxu0
  %1445 = vmatprep.subr.mxu0 0.0
  %v1446 = vand.u32 %v1004, 4294901760
  %v1447 = vsub.f32 %v1004, %v1446
  %v1448 = vand.u32 %v1447, 4294901760
  %1449 = vmatpush1.msra.mxu0 %v1448
  %1450 = vmatprep.subr.mxu0 0.0
  %v1451 = vand.u32 %v1005, 4294901760
  %v1452 = vsub.f32 %v1005, %v1451
  %v1453 = vand.u32 %v1452, 4294901760
  %1454 = vmatpush1.msra.mxu0 %v1453
  %1455 = vmatprep.subr.mxu0 0.0
  %v1456 = vand.u32 %v1006, 4294901760
  %v1457 = vsub.f32 %v1006, %v1456
  %v1458 = vand.u32 %v1457, 4294901760
  %1459 = vmatpush1.msra.mxu0 %v1458
  %1460 = vmatprep.subr.mxu0 0.0
  %v1461 = vand.u32 %v1007, 4294901760
  %v1462 = vsub.f32 %v1007, %v1461
  %v1463 = vand.u32 %v1462, 4294901760
  %1464 = vmatpush1.msra.mxu0 %v1463
  %1465 = vmatprep.subr.mxu0 0.0
  %v1466 = vand.u32 %v1008, 4294901760
  %v1467 = vsub.f32 %v1008, %v1466
  %v1468 = vand.u32 %v1467, 4294901760
  %1469 = vmatpush1.msra.mxu0 %v1468
  %1470 = vmatprep.subr.mxu0 0.0
  %v1471 = vand.u32 %v1009, 4294901760
  %v1472 = vsub.f32 %v1009, %v1471
  %v1473 = vand.u32 %v1472, 4294901760
  %1474 = vmatpush1.msra.mxu0 %v1473
  %1475 = vmatprep.subr.mxu0 0.0
  %v1476 = vand.u32 %v1010, 4294901760
  %v1477 = vsub.f32 %v1010, %v1476
  %v1478 = vand.u32 %v1477, 4294901760
  %1479 = vmatpush1.msra.mxu0 %v1478
  %1480 = vmatprep.subr.mxu0 0.0
  %v1481 = vand.u32 %v1011, 4294901760
  %v1482 = vsub.f32 %v1011, %v1481
  %v1483 = vand.u32 %v1482, 4294901760
  %1484 = vmatpush1.msra.mxu0 %v1483
  %1485 = vmatprep.subr.mxu0 0.0
  %v1486 = vand.u32 %v1012, 4294901760
  %v1487 = vsub.f32 %v1012, %v1486
  %v1488 = vand.u32 %v1487, 4294901760
  %1489 = vmatpush1.msra.mxu0 %v1488
  %1490 = vmatprep.subr.mxu0 0.0
  %v1491 = vand.u32 %v1013, 4294901760
  %v1492 = vsub.f32 %v1013, %v1491
  %v1493 = vand.u32 %v1492, 4294901760
  %1494 = vmatpush1.msra.mxu0 %v1493
  %1495 = vmatprep.subr.mxu0 0.0
  %v1496 = vand.u32 %v1014, 4294901760
  %v1497 = vsub.f32 %v1014, %v1496
  %v1498 = vand.u32 %v1497, 4294901760
  %1499 = vmatpush1.msra.mxu0 %v1498
  %1500 = vmatprep.subr.mxu0 0.0
  %v1501 = vand.u32 %v1015, 4294901760
  %v1502 = vsub.f32 %v1015, %v1501
  %v1503 = vand.u32 %v1502, 4294901760
  %1504 = vmatpush1.msra.mxu0 %v1503
  %1505 = vmatprep.subr.mxu0 0.0
  %v1506 = vand.u32 %v1016, 4294901760
  %v1507 = vsub.f32 %v1016, %v1506
  %v1508 = vand.u32 %v1507, 4294901760
  %1509 = vmatpush1.msra.mxu0 %v1508
  %1510 = vmatprep.subr.mxu0 0.0
  %v1511 = vand.u32 %v1017, 4294901760
  %v1512 = vsub.f32 %v1017, %v1511
  %v1513 = vand.u32 %v1512, 4294901760
  %1514 = vmatpush1.msra.mxu0 %v1513
  %1515 = vmatprep.subr.mxu0 0.0
  %v1516 = vand.u32 %v1018, 4294901760
  %v1517 = vsub.f32 %v1018, %v1516
  %v1518 = vand.u32 %v1517, 4294901760
  %1519 = vmatpush1.msra.mxu0 %v1518
  %1520 = vmatprep.subr.mxu0 0.0
  %v1521 = vand.u32 %v1019, 4294901760
  %v1522 = vsub.f32 %v1019, %v1521
  %v1523 = vand.u32 %v1522, 4294901760
  %1524 = vmatpush1.msra.mxu0 %v1523
  %1525 = vmatprep.subr.mxu0 0.0
  %1526 = vmatpush1.msra.mxu0 0.0
  %1527 = vmatprep.subr.mxu0 0.0
  %1528 = vmatpush1.msra.mxu0 0.0
  %1529 = vmatprep.subr.mxu0 0.0
  %1530 = vmatpush1.msra.mxu0 0.0
  %1531 = vmatprep.subr.mxu0 0.0
  %1532 = vmatpush1.msra.mxu0 0.0
  %1533 = vmatprep.subr.mxu0 0.0
  %1534 = vmatpush1.msra.mxu0 0.0
  %1535 = vmatprep.subr.mxu0 0.0
  %1536 = vmatpush1.msra.mxu0 0.0
  %1537 = vmatprep.subr.mxu0 0.0
  %1538 = vmatpush1.msra.mxu0 0.0
  %1539 = vmatprep.subr.mxu0 0.0
  %1540 = vmatpush1.msra.mxu0 0.0
  %1541 = vmatprep.subr.mxu0 0.0
  %1542 = vmatpush1.msra.mxu0 0.0
  %1543 = vmatprep.subr.mxu0 0.0
  %1544 = vmatpush1.msra.mxu0 0.0
  %1545 = vmatprep.subr.mxu0 0.0
  %1546 = vmatpush1.msra.mxu0 0.0
  %1547 = vmatprep.subr.mxu0 0.0
  %1548 = vmatpush1.msra.mxu0 0.0
  %1549 = vmatprep.subr.mxu0 0.0
  %1550 = vmatpush1.msra.mxu0 0.0
  %1551 = vmatprep.subr.mxu0 0.0
  %1552 = vmatpush1.msra.mxu0 0.0
  %1553 = vmatprep.subr.mxu0 0.0
  %1554 = vmatpush1.msra.mxu0 0.0
  %1555 = vmatprep.subr.mxu0 0.0
  %1556 = vmatpush1.msra.mxu0 0.0
  %1557 = vmatprep.mubr.f32.mxu0 0.0
  %1558 = vmatmul.mubr.f32.gmra.mrb[0].mxu0 0.0
  %v1559 = vpop.f32.mrb[0].mxu0
  %v1560 = vadd.f32 %v1442, %v1559
  %v1561 = vpop.f32.mrb[0].mxu0
  %1562 = vdwg.mxu0
  %1563 = vmatprep.subr.mxu0 0.0
  %v1564 = vand.u32 %v1004, 4294901760
  %1565 = vmatpush1.msra.mxu0 %v1564
  %1566 = vmatprep.subr.mxu0 0.0
  %v1567 = vand.u32 %v1005, 4294901760
  %1568 = vmatpush1.msra.mxu0 %v1567
  %1569 = vmatprep.subr.mxu0 0.0
  %v1570 = vand.u32 %v1006, 4294901760
  %1571 = vmatpush1.msra.mxu0 %v1570
  %1572 = vmatprep.subr.mxu0 0.0
  %v1573 = vand.u32 %v1007, 4294901760
  %1574 = vmatpush1.msra.mxu0 %v1573
  %1575 = vmatprep.subr.mxu0 0.0
  %v1576 = vand.u32 %v1008, 4294901760
  %1577 = vmatpush1.msra.mxu0 %v1576
  %1578 = vmatprep.subr.mxu0 0.0
  %v1579 = vand.u32 %v1009, 4294901760
  %1580 = vmatpush1.msra.mxu0 %v1579
  %1581 = vmatprep.subr.mxu0 0.0
  %v1582 = vand.u32 %v1010, 4294901760
  %1583 = vmatpush1.msra.mxu0 %v1582
  %1584 = vmatprep.subr.mxu0 0.0
  %v1585 = vand.u32 %v1011, 4294901760
  %1586 = vmatpush1.msra.mxu0 %v1585
  %1587 = vmatprep.subr.mxu0 0.0
  %v1588 = vand.u32 %v1012, 4294901760
  %1589 = vmatpush1.msra.mxu0 %v1588
  %1590 = vmatprep.subr.mxu0 0.0
  %v1591 = vand.u32 %v1013, 4294901760
  %1592 = vmatpush1.msra.mxu0 %v1591
  %1593 = vmatprep.subr.mxu0 0.0
  %v1594 = vand.u32 %v1014, 4294901760
  %1595 = vmatpush1.msra.mxu0 %v1594
  %1596 = vmatprep.subr.mxu0 0.0
  %v1597 = vand.u32 %v1015, 4294901760
  %1598 = vmatpush1.msra.mxu0 %v1597
  %1599 = vmatprep.subr.mxu0 0.0
  %v1600 = vand.u32 %v1016, 4294901760
  %1601 = vmatpush1.msra.mxu0 %v1600
  %1602 = vmatprep.subr.mxu0 0.0
  %v1603 = vand.u32 %v1017, 4294901760
  %1604 = vmatpush1.msra.mxu0 %v1603
  %1605 = vmatprep.subr.mxu0 0.0
  %v1606 = vand.u32 %v1018, 4294901760
  %1607 = vmatpush1.msra.mxu0 %v1606
  %1608 = vmatprep.subr.mxu0 0.0
  %v1609 = vand.u32 %v1019, 4294901760
  %1610 = vmatpush1.msra.mxu0 %v1609
  %1611 = vmatprep.subr.mxu0 0.0
  %1612 = vmatpush1.msra.mxu0 0.0
  %1613 = vmatprep.subr.mxu0 0.0
  %1614 = vmatpush1.msra.mxu0 0.0
  %1615 = vmatprep.subr.mxu0 0.0
  %1616 = vmatpush1.msra.mxu0 0.0
  %1617 = vmatprep.subr.mxu0 0.0
  %1618 = vmatpush1.msra.mxu0 0.0
  %1619 = vmatprep.subr.mxu0 0.0
  %1620 = vmatpush1.msra.mxu0 0.0
  %1621 = vmatprep.subr.mxu0 0.0
  %1622 = vmatpush1.msra.mxu0 0.0
  %1623 = vmatprep.subr.mxu0 0.0
  %1624 = vmatpush1.msra.mxu0 0.0
  %1625 = vmatprep.subr.mxu0 0.0
  %1626 = vmatpush1.msra.mxu0 0.0
  %1627 = vmatprep.subr.mxu0 0.0
  %1628 = vmatpush1.msra.mxu0 0.0
  %1629 = vmatprep.subr.mxu0 0.0
  %1630 = vmatpush1.msra.mxu0 0.0
  %1631 = vmatprep.subr.mxu0 0.0
  %1632 = vmatpush1.msra.mxu0 0.0
  %1633 = vmatprep.subr.mxu0 0.0
  %1634 = vmatpush1.msra.mxu0 0.0
  %1635 = vmatprep.subr.mxu0 0.0
  %1636 = vmatpush1.msra.mxu0 0.0
  %1637 = vmatprep.subr.mxu0 0.0
  %1638 = vmatpush1.msra.mxu0 0.0
  %1639 = vmatprep.subr.mxu0 0.0
  %1640 = vmatpush1.msra.mxu0 0.0
  %1641 = vmatprep.subr.mxu0 0.0
  %1642 = vmatpush1.msra.mxu0 0.0
  %1643 = vmatprep.mubr.f32.mxu0 0.0
  %1644 = vmatmul.mubr.f32.gmra.mrb[0].mxu0 0.0
  %v1645 = vpop.f32.mrb[0].mxu0
  %v1646 = vadd.f32 %v1560, %v1645
  %v1647 = vpop.f32.mrb[0].mxu0
  %1648 = vdwg.mxu0
  %v1649 = vadd.f32 %v1020, %v1646
  %v1650 = vtanh.pop %v1649
  %v1651 = vld [vmem:[#allocation2 + $0x8] sm:$0xff]
  %1652 = vmatprep.subr.mxu0 0.0
  %v1653 = vand.u32 %v1004, 4294901760
  %1654 = vmatpush1.msra.mxu0 %v1653
  %1655 = vmatprep.subr.mxu0 0.0
  %v1656 = vand.u32 %v1005, 4294901760
  %1657 = vmatpush1.msra.mxu0 %v1656
  %1658 = vmatprep.subr.mxu0 0.0
  %v1659 = vand.u32 %v1006, 4294901760
  %1660 = vmatpush1.msra.mxu0 %v1659
  %1661 = vmatprep.subr.mxu0 0.0
  %v1662 = vand.u32 %v1007, 4294901760
  %1663 = vmatpush1.msra.mxu0 %v1662
  %1664 = vmatprep.subr.mxu0 0.0
  %v1665 = vand.u32 %v1008, 4294901760
  %1666 = vmatpush1.msra.mxu0 %v1665
  %1667 = vmatprep.subr.mxu0 0.0
  %v1668 = vand.u32 %v1009, 4294901760
  %1669 = vmatpush1.msra.mxu0 %v1668
  %1670 = vmatprep.subr.mxu0 0.0
  %v1671 = vand.u32 %v1010, 4294901760
  %1672 = vmatpush1.msra.mxu0 %v1671
  %1673 = vmatprep.subr.mxu0 0.0
  %v1674 = vand.u32 %v1011, 4294901760
  %1675 = vmatpush1.msra.mxu0 %v1674
  %1676 = vmatprep.subr.mxu0 0.0
  %v1677 = vand.u32 %v1012, 4294901760
  %1678 = vmatpush1.msra.mxu0 %v1677
  %1679 = vmatprep.subr.mxu0 0.0
  %v1680 = vand.u32 %v1013, 4294901760
  %1681 = vmatpush1.msra.mxu0 %v1680
  %1682 = vmatprep.subr.mxu0 0.0
  %v1683 = vand.u32 %v1014, 4294901760
  %1684 = vmatpush1.msra.mxu0 %v1683
  %1685 = vmatprep.subr.mxu0 0.0
  %v1686 = vand.u32 %v1015, 4294901760
  %1687 = vmatpush1.msra.mxu0 %v1686
  %1688 = vmatprep.subr.mxu0 0.0
  %v1689 = vand.u32 %v1016, 4294901760
  %1690 = vmatpush1.msra.mxu0 %v1689
  %1691 = vmatprep.subr.mxu0 0.0
  %v1692 = vand.u32 %v1017, 4294901760
  %1693 = vmatpush1.msra.mxu0 %v1692
  %1694 = vmatprep.subr.mxu0 0.0
  %v1695 = vand.u32 %v1018, 4294901760
  %1696 = vmatpush1.msra.mxu0 %v1695
  %1697 = vmatprep.subr.mxu0 0.0
  %v1698 = vand.u32 %v1019, 4294901760
  %1699 = vmatpush1.msra.mxu0 %v1698
  %1700 = vmatprep.subr.mxu0 0.0
  %1701 = vmatpush1.msra.mxu0 0.0
  %1702 = vmatprep.subr.mxu0 0.0
  %1703 = vmatpush1.msra.mxu0 0.0
  %1704 = vmatprep.subr.mxu0 0.0
  %1705 = vmatpush1.msra.mxu0 0.0
  %1706 = vmatprep.subr.mxu0 0.0
  %1707 = vmatpush1.msra.mxu0 0.0
  %1708 = vmatprep.subr.mxu0 0.0
  %1709 = vmatpush1.msra.mxu0 0.0
  %1710 = vmatprep.subr.mxu0 0.0
  %1711 = vmatpush1.msra.mxu0 0.0
  %1712 = vmatprep.subr.mxu0 0.0
  %1713 = vmatpush1.msra.mxu0 0.0
  %1714 = vmatprep.subr.mxu0 0.0
  %1715 = vmatpush1.msra.mxu0 0.0
  %1716 = vmatprep.subr.mxu0 0.0
  %1717 = vmatpush1.msra.mxu0 0.0
  %1718 = vmatprep.subr.mxu0 0.0
  %1719 = vmatpush1.msra.mxu0 0.0
  %1720 = vmatprep.subr.mxu0 0.0
  %1721 = vmatpush1.msra.mxu0 0.0
  %1722 = vmatprep.subr.mxu0 0.0
  %1723 = vmatpush1.msra.mxu0 0.0
  %1724 = vmatprep.subr.mxu0 0.0
  %1725 = vmatpush1.msra.mxu0 0.0
  %1726 = vmatprep.subr.mxu0 0.0
  %1727 = vmatpush1.msra.mxu0 0.0
  %1728 = vmatprep.subr.mxu0 0.0
  %1729 = vmatpush1.msra.mxu0 0.0
  %1730 = vmatprep.subr.mxu0 0.0
  %1731 = vmatpush1.msra.mxu0 0.0
  %1732 = vmatprep.mubr.f32.mxu0 0.0
  %v1733 = vand.u32 %v1650, 4294901760
  %v1734 = vsub.f32 %v1650, %v1733
  %v1735 = vand.u32 %v1734, 4294901760
  %v1736 = vsub.f32 %v1734, %v1735
  %v1737 = vand.u32 %v1736, 4294901760
  %1738 = vmatmul.mubr.f32.gmra.mrb[0].mxu0 %v1737
  %v1739 = vpop.f32.mrb[0].mxu0
  %v1740 = vadd.f32 0.0, %v1739
  %v1741 = vpop.f32.mrb[0].mxu0
  %1742 = vdwg.mxu0
  %1743 = vmatprep.subr.mxu0 0.0
  %v1744 = vand.u32 %v1004, 4294901760
  %v1745 = vsub.f32 %v1004, %v1744
  %v1746 = vand.u32 %v1745, 4294901760
  %v1747 = vsub.f32 %v1745, %v1746
  %v1748 = vand.u32 %v1747, 4294901760
  %1749 = vmatpush1.msra.mxu0 %v1748
  %1750 = vmatprep.subr.mxu0 0.0
  %v1751 = vand.u32 %v1005, 4294901760
  %v1752 = vsub.f32 %v1005, %v1751
  %v1753 = vand.u32 %v1752, 4294901760
  %v1754 = vsub.f32 %v1752, %v1753
  %v1755 = vand.u32 %v1754, 4294901760
  %1756 = vmatpush1.msra.mxu0 %v1755
  %1757 = vmatprep.subr.mxu0 0.0
  %v1758 = vand.u32 %v1006, 4294901760
  %v1759 = vsub.f32 %v1006, %v1758
  %v1760 = vand.u32 %v1759, 4294901760
  %v1761 = vsub.f32 %v1759, %v1760
  %v1762 = vand.u32 %v1761, 4294901760
  %1763 = vmatpush1.msra.mxu0 %v1762
  %1764 = vmatprep.subr.mxu0 0.0
  %v1765 = vand.u32 %v1007, 4294901760
  %v1766 = vsub.f32 %v1007, %v1765
  %v1767 = vand.u32 %v1766, 4294901760
  %v1768 = vsub.f32 %v1766, %v1767
  %v1769 = vand.u32 %v1768, 4294901760
  %1770 = vmatpush1.msra.mxu0 %v1769
  %1771 = vmatprep.subr.mxu0 0.0
  %v1772 = vand.u32 %v1008, 4294901760
  %v1773 = vsub.f32 %v1008, %v1772
  %v1774 = vand.u32 %v1773, 4294901760
  %v1775 = vsub.f32 %v1773, %v1774
  %v1776 = vand.u32 %v1775, 4294901760
  %1777 = vmatpush1.msra.mxu0 %v1776
  %1778 = vmatprep.subr.mxu0 0.0
  %v1779 = vand.u32 %v1009, 4294901760
  %v1780 = vsub.f32 %v1009, %v1779
  %v1781 = vand.u32 %v1780, 4294901760
  %v1782 = vsub.f32 %v1780, %v1781
  %v1783 = vand.u32 %v1782, 4294901760
  %1784 = vmatpush1.msra.mxu0 %v1783
  %1785 = vmatprep.subr.mxu0 0.0
  %v1786 = vand.u32 %v1010, 4294901760
  %v1787 = vsub.f32 %v1010, %v1786
  %v1788 = vand.u32 %v1787, 4294901760
  %v1789 = vsub.f32 %v1787, %v1788
  %v1790 = vand.u32 %v1789, 4294901760
  %1791 = vmatpush1.msra.mxu0 %v1790
  %1792 = vmatprep.subr.mxu0 0.0
  %v1793 = vand.u32 %v1011, 4294901760
  %v1794 = vsub.f32 %v1011, %v1793
  %v1795 = vand.u32 %v1794, 4294901760
  %v1796 = vsub.f32 %v1794, %v1795
  %v1797 = vand.u32 %v1796, 4294901760
  %1798 = vmatpush1.msra.mxu0 %v1797
  %1799 = vmatprep.subr.mxu0 0.0
  %v1800 = vand.u32 %v1012, 4294901760
  %v1801 = vsub.f32 %v1012, %v1800
  %v1802 = vand.u32 %v1801, 4294901760
  %v1803 = vsub.f32 %v1801, %v1802
  %v1804 = vand.u32 %v1803, 4294901760
  %1805 = vmatpush1.msra.mxu0 %v1804
  %1806 = vmatprep.subr.mxu0 0.0
  %v1807 = vand.u32 %v1013, 4294901760
  %v1808 = vsub.f32 %v1013, %v1807
  %v1809 = vand.u32 %v1808, 4294901760
  %v1810 = vsub.f32 %v1808, %v1809
  %v1811 = vand.u32 %v1810, 4294901760
  %1812 = vmatpush1.msra.mxu0 %v1811
  %1813 = vmatprep.subr.mxu0 0.0
  %v1814 = vand.u32 %v1014, 4294901760
  %v1815 = vsub.f32 %v1014, %v1814
  %v1816 = vand.u32 %v1815, 4294901760
  %v1817 = vsub.f32 %v1815, %v1816
  %v1818 = vand.u32 %v1817, 4294901760
  %1819 = vmatpush1.msra.mxu0 %v1818
  %1820 = vmatprep.subr.mxu0 0.0
  %v1821 = vand.u32 %v1015, 4294901760
  %v1822 = vsub.f32 %v1015, %v1821
  %v1823 = vand.u32 %v1822, 4294901760
  %v1824 = vsub.f32 %v1822, %v1823
  %v1825 = vand.u32 %v1824, 4294901760
  %1826 = vmatpush1.msra.mxu0 %v1825
  %1827 = vmatprep.subr.mxu0 0.0
  %v1828 = vand.u32 %v1016, 4294901760
  %v1829 = vsub.f32 %v1016, %v1828
  %v1830 = vand.u32 %v1829, 4294901760
  %v1831 = vsub.f32 %v1829, %v1830
  %v1832 = vand.u32 %v1831, 4294901760
  %1833 = vmatpush1.msra.mxu0 %v1832
  %1834 = vmatprep.subr.mxu0 0.0
  %v1835 = vand.u32 %v1017, 4294901760
  %v1836 = vsub.f32 %v1017, %v1835
  %v1837 = vand.u32 %v1836, 4294901760
  %v1838 = vsub.f32 %v1836, %v1837
  %v1839 = vand.u32 %v1838, 4294901760
  %1840 = vmatpush1.msra.mxu0 %v1839
  %1841 = vmatprep.subr.mxu0 0.0
  %v1842 = vand.u32 %v1018, 4294901760
  %v1843 = vsub.f32 %v1018, %v1842
  %v1844 = vand.u32 %v1843, 4294901760
  %v1845 = vsub.f32 %v1843, %v1844
  %v1846 = vand.u32 %v1845, 4294901760
  %1847 = vmatpush1.msra.mxu0 %v1846
  %1848 = vmatprep.subr.mxu0 0.0
  %v1849 = vand.u32 %v1019, 4294901760
  %v1850 = vsub.f32 %v1019, %v1849
  %v1851 = vand.u32 %v1850, 4294901760
  %v1852 = vsub.f32 %v1850, %v1851
  %v1853 = vand.u32 %v1852, 4294901760
  %1854 = vmatpush1.msra.mxu0 %v1853
  %1855 = vmatprep.subr.mxu0 0.0
  %1856 = vmatpush1.msra.mxu0 0.0
  %1857 = vmatprep.subr.mxu0 0.0
  %1858 = vmatpush1.msra.mxu0 0.0
  %1859 = vmatprep.subr.mxu0 0.0
  %1860 = vmatpush1.msra.mxu0 0.0
  %1861 = vmatprep.subr.mxu0 0.0
  %1862 = vmatpush1.msra.mxu0 0.0
  %1863 = vmatprep.subr.mxu0 0.0
  %1864 = vmatpush1.msra.mxu0 0.0
  %1865 = vmatprep.subr.mxu0 0.0
  %1866 = vmatpush1.msra.mxu0 0.0
  %1867 = vmatprep.subr.mxu0 0.0
  %1868 = vmatpush1.msra.mxu0 0.0
  %1869 = vmatprep.subr.mxu0 0.0
  %1870 = vmatpush1.msra.mxu0 0.0
  %1871 = vmatprep.subr.mxu0 0.0
  %1872 = vmatpush1.msra.mxu0 0.0
  %1873 = vmatprep.subr.mxu0 0.0
  %1874 = vmatpush1.msra.mxu0 0.0
  %1875 = vmatprep.subr.mxu0 0.0
  %1876 = vmatpush1.msra.mxu0 0.0
  %1877 = vmatprep.subr.mxu0 0.0
  %1878 = vmatpush1.msra.mxu0 0.0
  %1879 = vmatprep.subr.mxu0 0.0
  %1880 = vmatpush1.msra.mxu0 0.0
  %1881 = vmatprep.subr.mxu0 0.0
  %1882 = vmatpush1.msra.mxu0 0.0
  %1883 = vmatprep.subr.mxu0 0.0
  %1884 = vmatpush1.msra.mxu0 0.0
  %1885 = vmatprep.subr.mxu0 0.0
  %1886 = vmatpush1.msra.mxu0 0.0
  %1887 = vmatprep.mubr.f32.mxu0 0.0
  %v1888 = vand.u32 %v1650, 4294901760
  %1889 = vmatmul.mubr.f32.gmra.mrb[0].mxu0 %v1888
  %v1890 = vpop.f32.mrb[0].mxu0
  %v1891 = vadd.f32 %v1740, %v1890
  %v1892 = vpop.f32.mrb[0].mxu0
  %1893 = vdwg.mxu0
  %1894 = vmatprep.subr.mxu0 0.0
  %v1895 = vand.u32 %v1004, 4294901760
  %v1896 = vsub.f32 %v1004, %v1895
  %1897 = vmatpush1.msra.mxu0 %v1896
  %1898 = vmatprep.subr.mxu0 0.0
  %v1899 = vand.u32 %v1005, 4294901760
  %v1900 = vsub.f32 %v1005, %v1899
  %1901 = vmatpush1.msra.mxu0 %v1900
  %1902 = vmatprep.subr.mxu0 0.0
  %v1903 = vand.u32 %v1006, 4294901760
  %v1904 = vsub.f32 %v1006, %v1903
  %1905 = vmatpush1.msra.mxu0 %v1904
  %1906 = vmatprep.subr.mxu0 0.0
  %v1907 = vand.u32 %v1007, 4294901760
  %v1908 = vsub.f32 %v1007, %v1907
  %1909 = vmatpush1.msra.mxu0 %v1908
  %1910 = vmatprep.subr.mxu0 0.0
  %v1911 = vand.u32 %v1008, 4294901760
  %v1912 = vsub.f32 %v1008, %v1911
  %1913 = vmatpush1.msra.mxu0 %v1912
  %1914 = vmatprep.subr.mxu0 0.0
  %v1915 = vand.u32 %v1009, 4294901760
  %v1916 = vsub.f32 %v1009, %v1915
  %1917 = vmatpush1.msra.mxu0 %v1916
  %1918 = vmatprep.subr.mxu0 0.0
  %v1919 = vand.u32 %v1010, 4294901760
  %v1920 = vsub.f32 %v1010, %v1919
  %1921 = vmatpush1.msra.mxu0 %v1920
  %1922 = vmatprep.subr.mxu0 0.0
  %v1923 = vand.u32 %v1011, 4294901760
  %v1924 = vsub.f32 %v1011, %v1923
  %1925 = vmatpush1.msra.mxu0 %v1924
  %1926 = vmatprep.subr.mxu0 0.0
  %v1927 = vand.u32 %v1012, 4294901760
  %v1928 = vsub.f32 %v1012, %v1927
  %1929 = vmatpush1.msra.mxu0 %v1928
  %1930 = vmatprep.subr.mxu0 0.0
  %v1931 = vand.u32 %v1013, 4294901760
  %v1932 = vsub.f32 %v1013, %v1931
  %1933 = vmatpush1.msra.mxu0 %v1932
  %1934 = vmatprep.subr.mxu0 0.0
  %v1935 = vand.u32 %v1014, 4294901760
  %v1936 = vsub.f32 %v1014, %v1935
  %1937 = vmatpush1.msra.mxu0 %v1936
  %1938 = vmatprep.subr.mxu0 0.0
  %v1939 = vand.u32 %v1015, 4294901760
  %v1940 = vsub.f32 %v1015, %v1939
  %1941 = vmatpush1.msra.mxu0 %v1940
  %1942 = vmatprep.subr.mxu0 0.0
  %v1943 = vand.u32 %v1016, 4294901760
  %v1944 = vsub.f32 %v1016, %v1943
  %1945 = vmatpush1.msra.mxu0 %v1944
  %1946 = vmatprep.subr.mxu0 0.0
  %v1947 = vand.u32 %v1017, 4294901760
  %v1948 = vsub.f32 %v1017, %v1947
  %1949 = vmatpush1.msra.mxu0 %v1948
  %1950 = vmatprep.subr.mxu0 0.0
  %v1951 = vand.u32 %v1018, 4294901760
  %v1952 = vsub.f32 %v1018, %v1951
  %1953 = vmatpush1.msra.mxu0 %v1952
  %1954 = vmatprep.subr.mxu0 0.0
  %v1955 = vand.u32 %v1019, 4294901760
  %v1956 = vsub.f32 %v1019, %v1955
  %1957 = vmatpush1.msra.mxu0 %v1956
  %1958 = vmatprep.subr.mxu0 0.0
  %1959 = vmatpush1.msra.mxu0 0.0
  %1960 = vmatprep.subr.mxu0 0.0
  %1961 = vmatpush1.msra.mxu0 0.0
  %1962 = vmatprep.subr.mxu0 0.0
  %1963 = vmatpush1.msra.mxu0 0.0
  %1964 = vmatprep.subr.mxu0 0.0
  %1965 = vmatpush1.msra.mxu0 0.0
  %1966 = vmatprep.subr.mxu0 0.0
  %1967 = vmatpush1.msra.mxu0 0.0
  %1968 = vmatprep.subr.mxu0 0.0
  %1969 = vmatpush1.msra.mxu0 0.0
  %1970 = vmatprep.subr.mxu0 0.0
  %1971 = vmatpush1.msra.mxu0 0.0
  %1972 = vmatprep.subr.mxu0 0.0
  %1973 = vmatpush1.msra.mxu0 0.0
  %1974 = vmatprep.subr.mxu0 0.0
  %1975 = vmatpush1.msra.mxu0 0.0
  %1976 = vmatprep.subr.mxu0 0.0
  %1977 = vmatpush1.msra.mxu0 0.0
  %1978 = vmatprep.subr.mxu0 0.0
  %1979 = vmatpush1.msra.mxu0 0.0
  %1980 = vmatprep.subr.mxu0 0.0
  %1981 = vmatpush1.msra.mxu0 0.0
  %1982 = vmatprep.subr.mxu0 0.0
  %1983 = vmatpush1.msra.mxu0 0.0
  %1984 = vmatprep.subr.mxu0 0.0
  %1985 = vmatpush1.msra.mxu0 0.0
  %1986 = vmatprep.subr.mxu0 0.0
  %1987 = vmatpush1.msra.mxu0 0.0
  %1988 = vmatprep.subr.mxu0 0.0
  %1989 = vmatpush1.msra.mxu0 0.0
  %1990 = vmatprep.mubr.f32.mxu0 0.0
  %v1991 = vand.u32 %v1650, 4294901760
  %v1992 = vsub.f32 %v1650, %v1991
  %1993 = vmatmul.mubr.f32.gmra.mrb[0].mxu0 %v1992
  %v1994 = vpop.f32.mrb[0].mxu0
  %v1995 = vadd.f32 %v1891, %v1994
  %v1996 = vpop.f32.mrb[0].mxu0
  %1997 = vdwg.mxu0
  %1998 = vmatprep.subr.mxu0 0.0
  %v1999 = vand.u32 %v1004, 4294901760
  %2000 = vmatpush1.msra.mxu0 %v1999
  %2001 = vmatprep.subr.mxu0 0.0
  %v2002 = vand.u32 %v1005, 4294901760
  %2003 = vmatpush1.msra.mxu0 %v2002
  %2004 = vmatprep.subr.mxu0 0.0
  %v2005 = vand.u32 %v1006, 4294901760
  %2006 = vmatpush1.msra.mxu0 %v2005
  %2007 = vmatprep.subr.mxu0 0.0
  %v2008 = vand.u32 %v1007, 4294901760
  %2009 = vmatpush1.msra.mxu0 %v2008
  %2010 = vmatprep.subr.mxu0 0.0
  %v2011 = vand.u32 %v1008, 4294901760
  %2012 = vmatpush1.msra.mxu0 %v2011
  %2013 = vmatprep.subr.mxu0 0.0
  %v2014 = vand.u32 %v1009, 4294901760
  %2015 = vmatpush1.msra.mxu0 %v2014
  %2016 = vmatprep.subr.mxu0 0.0
  %v2017 = vand.u32 %v1010, 4294901760
  %2018 = vmatpush1.msra.mxu0 %v2017
  %2019 = vmatprep.subr.mxu0 0.0
  %v2020 = vand.u32 %v1011, 4294901760
  %2021 = vmatpush1.msra.mxu0 %v2020
  %2022 = vmatprep.subr.mxu0 0.0
  %v2023 = vand.u32 %v1012, 4294901760
  %2024 = vmatpush1.msra.mxu0 %v2023
  %2025 = vmatprep.subr.mxu0 0.0
  %v2026 = vand.u32 %v1013, 4294901760
  %2027 = vmatpush1.msra.mxu0 %v2026
  %2028 = vmatprep.subr.mxu0 0.0
  %v2029 = vand.u32 %v1014, 4294901760
  %2030 = vmatpush1.msra.mxu0 %v2029
  %2031 = vmatprep.subr.mxu0 0.0
  %v2032 = vand.u32 %v1015, 4294901760
  %2033 = vmatpush1.msra.mxu0 %v2032
  %2034 = vmatprep.subr.mxu0 0.0
  %v2035 = vand.u32 %v1016, 4294901760
  %2036 = vmatpush1.msra.mxu0 %v2035
  %2037 = vmatprep.subr.mxu0 0.0
  %v2038 = vand.u32 %v1017, 4294901760
  %2039 = vmatpush1.msra.mxu0 %v2038
  %2040 = vmatprep.subr.mxu0 0.0
  %v2041 = vand.u32 %v1018, 4294901760
  %2042 = vmatpush1.msra.mxu0 %v2041
  %2043 = vmatprep.subr.mxu0 0.0
  %v2044 = vand.u32 %v1019, 4294901760
  %2045 = vmatpush1.msra.mxu0 %v2044
  %2046 = vmatprep.subr.mxu0 0.0
  %2047 = vmatpush1.msra.mxu0 0.0
  %2048 = vmatprep.subr.mxu0 0.0
  %2049 = vmatpush1.msra.mxu0 0.0
  %2050 = vmatprep.subr.mxu0 0.0
  %2051 = vmatpush1.msra.mxu0 0.0
  %2052 = vmatprep.subr.mxu0 0.0
  %2053 = vmatpush1.msra.mxu0 0.0
  %2054 = vmatprep.subr.mxu0 0.0
  %2055 = vmatpush1.msra.mxu0 0.0
  %2056 = vmatprep.subr.mxu0 0.0
  %2057 = vmatpush1.msra.mxu0 0.0
  %2058 = vmatprep.subr.mxu0 0.0
  %2059 = vmatpush1.msra.mxu0 0.0
  %2060 = vmatprep.subr.mxu0 0.0
  %2061 = vmatpush1.msra.mxu0 0.0
  %2062 = vmatprep.subr.mxu0 0.0
  %2063 = vmatpush1.msra.mxu0 0.0
  %2064 = vmatprep.subr.mxu0 0.0
  %2065 = vmatpush1.msra.mxu0 0.0
  %2066 = vmatprep.subr.mxu0 0.0
  %2067 = vmatpush1.msra.mxu0 0.0
  %2068 = vmatprep.subr.mxu0 0.0
  %2069 = vmatpush1.msra.mxu0 0.0
  %2070 = vmatprep.subr.mxu0 0.0
  %2071 = vmatpush1.msra.mxu0 0.0
  %2072 = vmatprep.subr.mxu0 0.0
  %2073 = vmatpush1.msra.mxu0 0.0
  %2074 = vmatprep.subr.mxu0 0.0
  %2075 = vmatpush1.msra.mxu0 0.0
  %2076 = vmatprep.subr.mxu0 0.0
  %2077 = vmatpush1.msra.mxu0 0.0
  %2078 = vmatprep.mubr.f32.mxu0 0.0
  %v2079 = vand.u32 %v1650, 4294901760
  %v2080 = vsub.f32 %v1650, %v2079
  %v2081 = vand.u32 %v2080, 4294901760
  %2082 = vmatmul.mubr.f32.gmra.mrb[0].mxu0 %v2081
  %v2083 = vpop.f32.mrb[0].mxu0
  %v2084 = vadd.f32 %v1995, %v2083
  %v2085 = vpop.f32.mrb[0].mxu0
  %2086 = vdwg.mxu0
  %2087 = vmatprep.subr.mxu0 0.0
  %v2088 = vand.u32 %v1004, 4294901760
  %v2089 = vsub.f32 %v1004, %v2088
  %v2090 = vand.u32 %v2089, 4294901760
  %2091 = vmatpush1.msra.mxu0 %v2090
  %2092 = vmatprep.subr.mxu0 0.0
  %v2093 = vand.u32 %v1005, 4294901760
  %v2094 = vsub.f32 %v1005, %v2093
  %v2095 = vand.u32 %v2094, 4294901760
  %2096 = vmatpush1.msra.mxu0 %v2095
  %2097 = vmatprep.subr.mxu0 0.0
  %v2098 = vand.u32 %v1006, 4294901760
  %v2099 = vsub.f32 %v1006, %v2098
  %v2100 = vand.u32 %v2099, 4294901760
  %2101 = vmatpush1.msra.mxu0 %v2100
  %2102 = vmatprep.subr.mxu0 0.0
  %v2103 = vand.u32 %v1007, 4294901760
  %v2104 = vsub.f32 %v1007, %v2103
  %v2105 = vand.u32 %v2104, 4294901760
  %2106 = vmatpush1.msra.mxu0 %v2105
  %2107 = vmatprep.subr.mxu0 0.0
  %v2108 = vand.u32 %v1008, 4294901760
  %v2109 = vsub.f32 %v1008, %v2108
  %v2110 = vand.u32 %v2109, 4294901760
  %2111 = vmatpush1.msra.mxu0 %v2110
  %2112 = vmatprep.subr.mxu0 0.0
  %v2113 = vand.u32 %v1009, 4294901760
  %v2114 = vsub.f32 %v1009, %v2113
  %v2115 = vand.u32 %v2114, 4294901760
  %2116 = vmatpush1.msra.mxu0 %v2115
  %2117 = vmatprep.subr.mxu0 0.0
  %v2118 = vand.u32 %v1010, 4294901760
  %v2119 = vsub.f32 %v1010, %v2118
  %v2120 = vand.u32 %v2119, 4294901760
  %2121 = vmatpush1.msra.mxu0 %v2120
  %2122 = vmatprep.subr.mxu0 0.0
  %v2123 = vand.u32 %v1011, 4294901760
  %v2124 = vsub.f32 %v1011, %v2123
  %v2125 = vand.u32 %v2124, 4294901760
  %2126 = vmatpush1.msra.mxu0 %v2125
  %2127 = vmatprep.subr.mxu0 0.0
  %v2128 = vand.u32 %v1012, 4294901760
  %v2129 = vsub.f32 %v1012, %v2128
  %v2130 = vand.u32 %v2129, 4294901760
  %2131 = vmatpush1.msra.mxu0 %v2130
  %2132 = vmatprep.subr.mxu0 0.0
  %v2133 = vand.u32 %v1013, 4294901760
  %v2134 = vsub.f32 %v1013, %v2133
  %v2135 = vand.u32 %v2134, 4294901760
  %2136 = vmatpush1.msra.mxu0 %v2135
  %2137 = vmatprep.subr.mxu0 0.0
  %v2138 = vand.u32 %v1014, 4294901760
  %v2139 = vsub.f32 %v1014, %v2138
  %v2140 = vand.u32 %v2139, 4294901760
  %2141 = vmatpush1.msra.mxu0 %v2140
  %2142 = vmatprep.subr.mxu0 0.0
  %v2143 = vand.u32 %v1015, 4294901760
  %v2144 = vsub.f32 %v1015, %v2143
  %v2145 = vand.u32 %v2144, 4294901760
  %2146 = vmatpush1.msra.mxu0 %v2145
  %2147 = vmatprep.subr.mxu0 0.0
  %v2148 = vand.u32 %v1016, 4294901760
  %v2149 = vsub.f32 %v1016, %v2148
  %v2150 = vand.u32 %v2149, 4294901760
  %2151 = vmatpush1.msra.mxu0 %v2150
  %2152 = vmatprep.subr.mxu0 0.0
  %v2153 = vand.u32 %v1017, 4294901760
  %v2154 = vsub.f32 %v1017, %v2153
  %v2155 = vand.u32 %v2154, 4294901760
  %2156 = vmatpush1.msra.mxu0 %v2155
  %2157 = vmatprep.subr.mxu0 0.0
  %v2158 = vand.u32 %v1018, 4294901760
  %v2159 = vsub.f32 %v1018, %v2158
  %v2160 = vand.u32 %v2159, 4294901760
  %2161 = vmatpush1.msra.mxu0 %v2160
  %2162 = vmatprep.subr.mxu0 0.0
  %v2163 = vand.u32 %v1019, 4294901760
  %v2164 = vsub.f32 %v1019, %v2163
  %v2165 = vand.u32 %v2164, 4294901760
  %2166 = vmatpush1.msra.mxu0 %v2165
  %2167 = vmatprep.subr.mxu0 0.0
  %2168 = vmatpush1.msra.mxu0 0.0
  %2169 = vmatprep.subr.mxu0 0.0
  %2170 = vmatpush1.msra.mxu0 0.0
  %2171 = vmatprep.subr.mxu0 0.0
  %2172 = vmatpush1.msra.mxu0 0.0
  %2173 = vmatprep.subr.mxu0 0.0
  %2174 = vmatpush1.msra.mxu0 0.0
  %2175 = vmatprep.subr.mxu0 0.0
  %2176 = vmatpush1.msra.mxu0 0.0
  %2177 = vmatprep.subr.mxu0 0.0
  %2178 = vmatpush1.msra.mxu0 0.0
  %2179 = vmatprep.subr.mxu0 0.0
  %2180 = vmatpush1.msra.mxu0 0.0
  %2181 = vmatprep.subr.mxu0 0.0
  %2182 = vmatpush1.msra.mxu0 0.0
  %2183 = vmatprep.subr.mxu0 0.0
  %2184 = vmatpush1.msra.mxu0 0.0
  %2185 = vmatprep.subr.mxu0 0.0
  %2186 = vmatpush1.msra.mxu0 0.0
  %2187 = vmatprep.subr.mxu0 0.0
  %2188 = vmatpush1.msra.mxu0 0.0
  %2189 = vmatprep.subr.mxu0 0.0
  %2190 = vmatpush1.msra.mxu0 0.0
  %2191 = vmatprep.subr.mxu0 0.0
  %2192 = vmatpush1.msra.mxu0 0.0
  %2193 = vmatprep.subr.mxu0 0.0
  %2194 = vmatpush1.msra.mxu0 0.0
  %2195 = vmatprep.subr.mxu0 0.0
  %2196 = vmatpush1.msra.mxu0 0.0
  %2197 = vmatprep.subr.mxu0 0.0
  %2198 = vmatpush1.msra.mxu0 0.0
  %2199 = vmatprep.mubr.f32.mxu0 0.0
  %v2200 = vand.u32 %v1650, 4294901760
  %2201 = vmatmul.mubr.f32.gmra.mrb[0].mxu0 %v2200
  %v2202 = vpop.f32.mrb[0].mxu0
  %v2203 = vadd.f32 %v2084, %v2202
  %v2204 = vpop.f32.mrb[0].mxu0
  %2205 = vdwg.mxu0
  %2206 = vmatprep.subr.mxu0 0.0
  %v2207 = vand.u32 %v1004, 4294901760
  %2208 = vmatpush1.msra.mxu0 %v2207
  %2209 = vmatprep.subr.mxu0 0.0
  %v2210 = vand.u32 %v1005, 4294901760
  %2211 = vmatpush1.msra.mxu0 %v2210
  %2212 = vmatprep.subr.mxu0 0.0
  %v2213 = vand.u32 %v1006, 4294901760
  %2214 = vmatpush1.msra.mxu0 %v2213
  %2215 = vmatprep.subr.mxu0 0.0
  %v2216 = vand.u32 %v1007, 4294901760
  %2217 = vmatpush1.msra.mxu0 %v2216
  %2218 = vmatprep.subr.mxu0 0.0
  %v2219 = vand.u32 %v1008, 4294901760
  %2220 = vmatpush1.msra.mxu0 %v2219
  %2221 = vmatprep.subr.mxu0 0.0
  %v2222 = vand.u32 %v1009, 4294901760
  %2223 = vmatpush1.msra.mxu0 %v2222
  %2224 = vmatprep.subr.mxu0 0.0
  %v2225 = vand.u32 %v1010, 4294901760
  %2226 = vmatpush1.msra.mxu0 %v2225
  %2227 = vmatprep.subr.mxu0 0.0
  %v2228 = vand.u32 %v1011, 4294901760
  %2229 = vmatpush1.msra.mxu0 %v2228
  %2230 = vmatprep.subr.mxu0 0.0
  %v2231 = vand.u32 %v1012, 4294901760
  %2232 = vmatpush1.msra.mxu0 %v2231
  %2233 = vmatprep.subr.mxu0 0.0
  %v2234 = vand.u32 %v1013, 4294901760
  %2235 = vmatpush1.msra.mxu0 %v2234
  %2236 = vmatprep.subr.mxu0 0.0
  %v2237 = vand.u32 %v1014, 4294901760
  %2238 = vmatpush1.msra.mxu0 %v2237
  %2239 = vmatprep.subr.mxu0 0.0
  %v2240 = vand.u32 %v1015, 4294901760
  %2241 = vmatpush1.msra.mxu0 %v2240
  %2242 = vmatprep.subr.mxu0 0.0
  %v2243 = vand.u32 %v1016, 4294901760
  %2244 = vmatpush1.msra.mxu0 %v2243
  %2245 = vmatprep.subr.mxu0 0.0
  %v2246 = vand.u32 %v1017, 4294901760
  %2247 = vmatpush1.msra.mxu0 %v2246
  %2248 = vmatprep.subr.mxu0 0.0
  %v2249 = vand.u32 %v1018, 4294901760
  %2250 = vmatpush1.msra.mxu0 %v2249
  %2251 = vmatprep.subr.mxu0 0.0
  %v2252 = vand.u32 %v1019, 4294901760
  %2253 = vmatpush1.msra.mxu0 %v2252
  %2254 = vmatprep.subr.mxu0 0.0
  %2255 = vmatpush1.msra.mxu0 0.0
  %2256 = vmatprep.subr.mxu0 0.0
  %2257 = vmatpush1.msra.mxu0 0.0
  %2258 = vmatprep.subr.mxu0 0.0
  %2259 = vmatpush1.msra.mxu0 0.0
  %2260 = vmatprep.subr.mxu0 0.0
  %2261 = vmatpush1.msra.mxu0 0.0
  %2262 = vmatprep.subr.mxu0 0.0
  %2263 = vmatpush1.msra.mxu0 0.0
  %2264 = vmatprep.subr.mxu0 0.0
  %2265 = vmatpush1.msra.mxu0 0.0
  %2266 = vmatprep.subr.mxu0 0.0
  %2267 = vmatpush1.msra.mxu0 0.0
  %2268 = vmatprep.subr.mxu0 0.0
  %2269 = vmatpush1.msra.mxu0 0.0
  %2270 = vmatprep.subr.mxu0 0.0
  %2271 = vmatpush1.msra.mxu0 0.0
  %2272 = vmatprep.subr.mxu0 0.0
  %2273 = vmatpush1.msra.mxu0 0.0
  %2274 = vmatprep.subr.mxu0 0.0
  %2275 = vmatpush1.msra.mxu0 0.0
  %2276 = vmatprep.subr.mxu0 0.0
  %2277 = vmatpush1.msra.mxu0 0.0
  %2278 = vmatprep.subr.mxu0 0.0
  %2279 = vmatpush1.msra.mxu0 0.0
  %2280 = vmatprep.subr.mxu0 0.0
  %2281 = vmatpush1.msra.mxu0 0.0
  %2282 = vmatprep.subr.mxu0 0.0
  %2283 = vmatpush1.msra.mxu0 0.0
  %2284 = vmatprep.subr.mxu0 0.0
  %2285 = vmatpush1.msra.mxu0 0.0
  %2286 = vmatprep.mubr.f32.mxu0 0.0
  %v2287 = vand.u32 %v1650, 4294901760
  %2288 = vmatmul.mubr.f32.gmra.mrb[0].mxu0 %v2287
  %v2289 = vpop.f32.mrb[0].mxu0
  %v2290 = vadd.f32 %v2203, %v2289
  %v2291 = vpop.f32.mrb[0].mxu0
  %2292 = vdwg.mxu0
  %v2293 = vadd.f32 %v1651, %v2290
  %v2294 = vtanh.pop %v2293
  %v2295 = vld [vmem:[#allocation2 + $0x10] sm:$0xff]
  %2296 = vmatprep.subr.mxu0 0.0
  %v2297 = vand.u32 %v1004, 4294901760
  %2298 = vmatpush1.msra.mxu0 %v2297
  %2299 = vmatprep.subr.mxu0 0.0
  %v2300 = vand.u32 %v1005, 4294901760
  %2301 = vmatpush1.msra.mxu0 %v2300
  %2302 = vmatprep.subr.mxu0 0.0
  %v2303 = vand.u32 %v1006, 4294901760
  %2304 = vmatpush1.msra.mxu0 %v2303
  %2305 = vmatprep.subr.mxu0 0.0
  %v2306 = vand.u32 %v1007, 4294901760
  %2307 = vmatpush1.msra.mxu0 %v2306
  %2308 = vmatprep.subr.mxu0 0.0
  %v2309 = vand.u32 %v1008, 4294901760
  %2310 = vmatpush1.msra.mxu0 %v2309
  %2311 = vmatprep.subr.mxu0 0.0
  %v2312 = vand.u32 %v1009, 4294901760
  %2313 = vmatpush1.msra.mxu0 %v2312
  %2314 = vmatprep.subr.mxu0 0.0
  %v2315 = vand.u32 %v1010, 4294901760
  %2316 = vmatpush1.msra.mxu0 %v2315
  %2317 = vmatprep.subr.mxu0 0.0
  %v2318 = vand.u32 %v1011, 4294901760
  %2319 = vmatpush1.msra.mxu0 %v2318
  %2320 = vmatprep.subr.mxu0 0.0
  %v2321 = vand.u32 %v1012, 4294901760
  %2322 = vmatpush1.msra.mxu0 %v2321
  %2323 = vmatprep.subr.mxu0 0.0
  %v2324 = vand.u32 %v1013, 4294901760
  %2325 = vmatpush1.msra.mxu0 %v2324
  %2326 = vmatprep.subr.mxu0 0.0
  %v2327 = vand.u32 %v1014, 4294901760
  %2328 = vmatpush1.msra.mxu0 %v2327
  %2329 = vmatprep.subr.mxu0 0.0
  %v2330 = vand.u32 %v1015, 4294901760
  %2331 = vmatpush1.msra.mxu0 %v2330
  %2332 = vmatprep.subr.mxu0 0.0
  %v2333 = vand.u32 %v1016, 4294901760
  %2334 = vmatpush1.msra.mxu0 %v2333
  %2335 = vmatprep.subr.mxu0 0.0
  %v2336 = vand.u32 %v1017, 4294901760
  %2337 = vmatpush1.msra.mxu0 %v2336
  %2338 = vmatprep.subr.mxu0 0.0
  %v2339 = vand.u32 %v1018, 4294901760
  %2340 = vmatpush1.msra.mxu0 %v2339
  %2341 = vmatprep.subr.mxu0 0.0
  %v2342 = vand.u32 %v1019, 4294901760
  %2343 = vmatpush1.msra.mxu0 %v2342
  %2344 = vmatprep.subr.mxu0 0.0
  %2345 = vmatpush1.msra.mxu0 0.0
  %2346 = vmatprep.subr.mxu0 0.0
  %2347 = vmatpush1.msra.mxu0 0.0
  %2348 = vmatprep.subr.mxu0 0.0
  %2349 = vmatpush1.msra.mxu0 0.0
  %2350 = vmatprep.subr.mxu0 0.0
  %2351 = vmatpush1.msra.mxu0 0.0
  %2352 = vmatprep.subr.mxu0 0.0
  %2353 = vmatpush1.msra.mxu0 0.0
  %2354 = vmatprep.subr.mxu0 0.0
  %2355 = vmatpush1.msra.mxu0 0.0
  %2356 = vmatprep.subr.mxu0 0.0
  %2357 = vmatpush1.msra.mxu0 0.0
  %2358 = vmatprep.subr.mxu0 0.0
  %2359 = vmatpush1.msra.mxu0 0.0
  %2360 = vmatprep.subr.mxu0 0.0
  %2361 = vmatpush1.msra.mxu0 0.0
  %2362 = vmatprep.subr.mxu0 0.0
  %2363 = vmatpush1.msra.mxu0 0.0
  %2364 = vmatprep.subr.mxu0 0.0
  %2365 = vmatpush1.msra.mxu0 0.0
  %2366 = vmatprep.subr.mxu0 0.0
  %2367 = vmatpush1.msra.mxu0 0.0
  %2368 = vmatprep.subr.mxu0 0.0
  %2369 = vmatpush1.msra.mxu0 0.0
  %2370 = vmatprep.subr.mxu0 0.0
  %2371 = vmatpush1.msra.mxu0 0.0
  %2372 = vmatprep.subr.mxu0 0.0
  %2373 = vmatpush1.msra.mxu0 0.0
  %2374 = vmatprep.subr.mxu0 0.0
  %2375 = vmatpush1.msra.mxu0 0.0
  %2376 = vmatprep.mubr.f32.mxu0 0.0
  %v2377 = vand.u32 %v2294, 4294901760
  %v2378 = vsub.f32 %v2294, %v2377
  %v2379 = vand.u32 %v2378, 4294901760
  %v2380 = vsub.f32 %v2378, %v2379
  %v2381 = vand.u32 %v2380, 4294901760
  %2382 = vmatmul.mubr.f32.gmra.mrb[0].mxu0 %v2381
  %v2383 = vpop.f32.mrb[0].mxu0
  %v2384 = vadd.f32 0.0, %v2383
  %v2385 = vpop.f32.mrb[0].mxu0
  %2386 = vdwg.mxu0
  %2387 = vmatprep.subr.mxu0 0.0
  %v2388 = vand.u32 %v1004, 4294901760
  %v2389 = vsub.f32 %v1004, %v2388
  %v2390 = vand.u32 %v2389, 4294901760
  %v2391 = vsub.f32 %v2389, %v2390
  %v2392 = vand.u32 %v2391, 4294901760
  %2393 = vmatpush1.msra.mxu0 %v2392
  %2394 = vmatprep.subr.mxu0 0.0
  %v2395 = vand.u32 %v1005, 4294901760
  %v2396 = vsub.f32 %v1005, %v2395
  %v2397 = vand.u32 %v2396, 4294901760
  %v2398 = vsub.f32 %v2396, %v2397
  %v2399 = vand.u32 %v2398, 4294901760
  %2400 = vmatpush1.msra.mxu0 %v2399
  %2401 = vmatprep.subr.mxu0 0.0
  %v2402 = vand.u32 %v1006, 4294901760
  %v2403 = vsub.f32 %v1006, %v2402
  %v2404 = vand.u32 %v2403, 4294901760
  %v2405 = vsub.f32 %v2403, %v2404
  %v2406 = vand.u32 %v2405, 4294901760
  %2407 = vmatpush1.msra.mxu0 %v2406
  %2408 = vmatprep.subr.mxu0 0.0
  %v2409 = vand.u32 %v1007, 4294901760
  %v2410 = vsub.f32 %v1007, %v2409
  %v2411 = vand.u32 %v2410, 4294901760
  %v2412 = vsub.f32 %v2410, %v2411
  %v2413 = vand.u32 %v2412, 4294901760
  %2414 = vmatpush1.msra.mxu0 %v2413
  %2415 = vmatprep.subr.mxu0 0.0
  %v2416 = vand.u32 %v1008, 4294901760
  %v2417 = vsub.f32 %v1008, %v2416
  %v2418 = vand.u32 %v2417, 4294901760
  %v2419 = vsub.f32 %v2417, %v2418
  %v2420 = vand.u32 %v2419, 4294901760
  %2421 = vmatpush1.msra.mxu0 %v2420
  %2422 = vmatprep.subr.mxu0 0.0
  %v2423 = vand.u32 %v1009, 4294901760
  %v2424 = vsub.f32 %v1009, %v2423
  %v2425 = vand.u32 %v2424, 4294901760
  %v2426 = vsub.f32 %v2424, %v2425
  %v2427 = vand.u32 %v2426, 4294901760
  %2428 = vmatpush1.msra.mxu0 %v2427
  %2429 = vmatprep.subr.mxu0 0.0
  %v2430 = vand.u32 %v1010, 4294901760
  %v2431 = vsub.f32 %v1010, %v2430
  %v2432 = vand.u32 %v2431, 4294901760
  %v2433 = vsub.f32 %v2431, %v2432
  %v2434 = vand.u32 %v2433, 4294901760
  %2435 = vmatpush1.msra.mxu0 %v2434
  %2436 = vmatprep.subr.mxu0 0.0
  %v2437 = vand.u32 %v1011, 4294901760
  %v2438 = vsub.f32 %v1011, %v2437
  %v2439 = vand.u32 %v2438, 4294901760
  %v2440 = vsub.f32 %v2438, %v2439
  %v2441 = vand.u32 %v2440, 4294901760
  %2442 = vmatpush1.msra.mxu0 %v2441
  %2443 = vmatprep.subr.mxu0 0.0
  %v2444 = vand.u32 %v1012, 4294901760
  %v2445 = vsub.f32 %v1012, %v2444
  %v2446 = vand.u32 %v2445, 4294901760
  %v2447 = vsub.f32 %v2445, %v2446
  %v2448 = vand.u32 %v2447, 4294901760
  %2449 = vmatpush1.msra.mxu0 %v2448
  %2450 = vmatprep.subr.mxu0 0.0
  %v2451 = vand.u32 %v1013, 4294901760
  %v2452 = vsub.f32 %v1013, %v2451
  %v2453 = vand.u32 %v2452, 4294901760
  %v2454 = vsub.f32 %v2452, %v2453
  %v2455 = vand.u32 %v2454, 4294901760
  %2456 = vmatpush1.msra.mxu0 %v2455
  %2457 = vmatprep.subr.mxu0 0.0
  %v2458 = vand.u32 %v1014, 4294901760
  %v2459 = vsub.f32 %v1014, %v2458
  %v2460 = vand.u32 %v2459, 4294901760
  %v2461 = vsub.f32 %v2459, %v2460
  %v2462 = vand.u32 %v2461, 4294901760
  %2463 = vmatpush1.msra.mxu0 %v2462
  %2464 = vmatprep.subr.mxu0 0.0
  %v2465 = vand.u32 %v1015, 4294901760
  %v2466 = vsub.f32 %v1015, %v2465
  %v2467 = vand.u32 %v2466, 4294901760
  %v2468 = vsub.f32 %v2466, %v2467
  %v2469 = vand.u32 %v2468, 4294901760
  %2470 = vmatpush1.msra.mxu0 %v2469
  %2471 = vmatprep.subr.mxu0 0.0
  %v2472 = vand.u32 %v1016, 4294901760
  %v2473 = vsub.f32 %v1016, %v2472
  %v2474 = vand.u32 %v2473, 4294901760
  %v2475 = vsub.f32 %v2473, %v2474
  %v2476 = vand.u32 %v2475, 4294901760
  %2477 = vmatpush1.msra.mxu0 %v2476
  %2478 = vmatprep.subr.mxu0 0.0
  %v2479 = vand.u32 %v1017, 4294901760
  %v2480 = vsub.f32 %v1017, %v2479
  %v2481 = vand.u32 %v2480, 4294901760
  %v2482 = vsub.f32 %v2480, %v2481
  %v2483 = vand.u32 %v2482, 4294901760
  %2484 = vmatpush1.msra.mxu0 %v2483
  %2485 = vmatprep.subr.mxu0 0.0
  %v2486 = vand.u32 %v1018, 4294901760
  %v2487 = vsub.f32 %v1018, %v2486
  %v2488 = vand.u32 %v2487, 4294901760
  %v2489 = vsub.f32 %v2487, %v2488
  %v2490 = vand.u32 %v2489, 4294901760
  %2491 = vmatpush1.msra.mxu0 %v2490
  %2492 = vmatprep.subr.mxu0 0.0
  %v2493 = vand.u32 %v1019, 4294901760
  %v2494 = vsub.f32 %v1019, %v2493
  %v2495 = vand.u32 %v2494, 4294901760
  %v2496 = vsub.f32 %v2494, %v2495
  %v2497 = vand.u32 %v2496, 4294901760
  %2498 = vmatpush1.msra.mxu0 %v2497
  %2499 = vmatprep.subr.mxu0 0.0
  %2500 = vmatpush1.msra.mxu0 0.0
  %2501 = vmatprep.subr.mxu0 0.0
  %2502 = vmatpush1.msra.mxu0 0.0
  %2503 = vmatprep.subr.mxu0 0.0
  %2504 = vmatpush1.msra.mxu0 0.0
  %2505 = vmatprep.subr.mxu0 0.0
  %2506 = vmatpush1.msra.mxu0 0.0
  %2507 = vmatprep.subr.mxu0 0.0
  %2508 = vmatpush1.msra.mxu0 0.0
  %2509 = vmatprep.subr.mxu0 0.0
  %2510 = vmatpush1.msra.mxu0 0.0
  %2511 = vmatprep.subr.mxu0 0.0
  %2512 = vmatpush1.msra.mxu0 0.0
  %2513 = vmatprep.subr.mxu0 0.0
  %2514 = vmatpush1.msra.mxu0 0.0
  %2515 = vmatprep.subr.mxu0 0.0
  %2516 = vmatpush1.msra.mxu0 0.0
  %2517 = vmatprep.subr.mxu0 0.0
  %2518 = vmatpush1.msra.mxu0 0.0
  %2519 = vmatprep.subr.mxu0 0.0
  %2520 = vmatpush1.msra.mxu0 0.0
  %2521 = vmatprep.subr.mxu0 0.0
  %2522 = vmatpush1.msra.mxu0 0.0
  %2523 = vmatprep.subr.mxu0 0.0
  %2524 = vmatpush1.msra.mxu0 0.0
  %2525 = vmatprep.subr.mxu0 0.0
  %2526 = vmatpush1.msra.mxu0 0.0
  %2527 = vmatprep.subr.mxu0 0.0
  %2528 = vmatpush1.msra.mxu0 0.0
  %2529 = vmatprep.subr.mxu0 0.0
  %2530 = vmatpush1.msra.mxu0 0.0
  %2531 = vmatprep.mubr.f32.mxu0 0.0
  %v2532 = vand.u32 %v2294, 4294901760
  %2533 = vmatmul.mubr.f32.gmra.mrb[0].mxu0 %v2532
  %v2534 = vpop.f32.mrb[0].mxu0
  %v2535 = vadd.f32 %v2384, %v2534
  %v2536 = vpop.f32.mrb[0].mxu0
  %2537 = vdwg.mxu0
  %2538 = vmatprep.subr.mxu0 0.0
  %v2539 = vand.u32 %v1004, 4294901760
  %v2540 = vsub.f32 %v1004, %v2539
  %2541 = vmatpush1.msra.mxu0 %v2540
  %2542 = vmatprep.subr.mxu0 0.0
  %v2543 = vand.u32 %v1005, 4294901760
  %v2544 = vsub.f32 %v1005, %v2543
  %2545 = vmatpush1.msra.mxu0 %v2544
  %2546 = vmatprep.subr.mxu0 0.0
  %v2547 = vand.u32 %v1006, 4294901760
  %v2548 = vsub.f32 %v1006, %v2547
  %2549 = vmatpush1.msra.mxu0 %v2548
  %2550 = vmatprep.subr.mxu0 0.0
  %v2551 = vand.u32 %v1007, 4294901760
  %v2552 = vsub.f32 %v1007, %v2551
  %2553 = vmatpush1.msra.mxu0 %v2552
  %2554 = vmatprep.subr.mxu0 0.0
  %v2555 = vand.u32 %v1008, 4294901760
  %v2556 = vsub.f32 %v1008, %v2555
  %2557 = vmatpush1.msra.mxu0 %v2556
  %2558 = vmatprep.subr.mxu0 0.0
  %v2559 = vand.u32 %v1009, 4294901760
  %v2560 = vsub.f32 %v1009, %v2559
  %2561 = vmatpush1.msra.mxu0 %v2560
  %2562 = vmatprep.subr.mxu0 0.0
  %v2563 = vand.u32 %v1010, 4294901760
  %v2564 = vsub.f32 %v1010, %v2563
  %2565 = vmatpush1.msra.mxu0 %v2564
  %2566 = vmatprep.subr.mxu0 0.0
  %v2567 = vand.u32 %v1011, 4294901760
  %v2568 = vsub.f32 %v1011, %v2567
  %2569 = vmatpush1.msra.mxu0 %v2568
  %2570 = vmatprep.subr.mxu0 0.0
  %v2571 = vand.u32 %v1012, 4294901760
  %v2572 = vsub.f32 %v1012, %v2571
  %2573 = vmatpush1.msra.mxu0 %v2572
  %2574 = vmatprep.subr.mxu0 0.0
  %v2575 = vand.u32 %v1013, 4294901760
  %v2576 = vsub.f32 %v1013, %v2575
  %2577 = vmatpush1.msra.mxu0 %v2576
  %2578 = vmatprep.subr.mxu0 0.0
  %v2579 = vand.u32 %v1014, 4294901760
  %v2580 = vsub.f32 %v1014, %v2579
  %2581 = vmatpush1.msra.mxu0 %v2580
  %2582 = vmatprep.subr.mxu0 0.0
  %v2583 = vand.u32 %v1015, 4294901760
  %v2584 = vsub.f32 %v1015, %v2583
  %2585 = vmatpush1.msra.mxu0 %v2584
  %2586 = vmatprep.subr.mxu0 0.0
  %v2587 = vand.u32 %v1016, 4294901760
  %v2588 = vsub.f32 %v1016, %v2587
  %2589 = vmatpush1.msra.mxu0 %v2588
  %2590 = vmatprep.subr.mxu0 0.0
  %v2591 = vand.u32 %v1017, 4294901760
  %v2592 = vsub.f32 %v1017, %v2591
  %2593 = vmatpush1.msra.mxu0 %v2592
  %2594 = vmatprep.subr.mxu0 0.0
  %v2595 = vand.u32 %v1018, 4294901760
  %v2596 = vsub.f32 %v1018, %v2595
  %2597 = vmatpush1.msra.mxu0 %v2596
  %2598 = vmatprep.subr.mxu0 0.0
  %v2599 = vand.u32 %v1019, 4294901760
  %v2600 = vsub.f32 %v1019, %v2599
  %2601 = vmatpush1.msra.mxu0 %v2600
  %2602 = vmatprep.subr.mxu0 0.0
  %2603 = vmatpush1.msra.mxu0 0.0
  %2604 = vmatprep.subr.mxu0 0.0
  %2605 = vmatpush1.msra.mxu0 0.0
  %2606 = vmatprep.subr.mxu0 0.0
  %2607 = vmatpush1.msra.mxu0 0.0
  %2608 = vmatprep.subr.mxu0 0.0
  %2609 = vmatpush1.msra.mxu0 0.0
  %2610 = vmatprep.subr.mxu0 0.0
  %2611 = vmatpush1.msra.mxu0 0.0
  %2612 = vmatprep.subr.mxu0 0.0
  %2613 = vmatpush1.msra.mxu0 0.0
  %2614 = vmatprep.subr.mxu0 0.0
  %2615 = vmatpush1.msra.mxu0 0.0
  %2616 = vmatprep.subr.mxu0 0.0
  %2617 = vmatpush1.msra.mxu0 0.0
  %2618 = vmatprep.subr.mxu0 0.0
  %2619 = vmatpush1.msra.mxu0 0.0
  %2620 = vmatprep.subr.mxu0 0.0
  %2621 = vmatpush1.msra.mxu0 0.0
  %2622 = vmatprep.subr.mxu0 0.0
  %2623 = vmatpush1.msra.mxu0 0.0
  %2624 = vmatprep.subr.mxu0 0.0
  %2625 = vmatpush1.msra.mxu0 0.0
  %2626 = vmatprep.subr.mxu0 0.0
  %2627 = vmatpush1.msra.mxu0 0.0
  %2628 = vmatprep.subr.mxu0 0.0
  %2629 = vmatpush1.msra.mxu0 0.0
  %2630 = vmatprep.subr.mxu0 0.0
  %2631 = vmatpush1.msra.mxu0 0.0
  %2632 = vmatprep.subr.mxu0 0.0
  %2633 = vmatpush1.msra.mxu0 0.0
  %2634 = vmatprep.mubr.f32.mxu0 0.0
  %v2635 = vand.u32 %v2294, 4294901760
  %v2636 = vsub.f32 %v2294, %v2635
  %2637 = vmatmul.mubr.f32.gmra.mrb[0].mxu0 %v2636
  %v2638 = vpop.f32.mrb[0].mxu0
  %v2639 = vadd.f32 %v2535, %v2638
  %v2640 = vpop.f32.mrb[0].mxu0
  %2641 = vdwg.mxu0
  %2642 = vmatprep.subr.mxu0 0.0
  %v2643 = vand.u32 %v1004, 4294901760
  %2644 = vmatpush1.msra.mxu0 %v2643
  %2645 = vmatprep.subr.mxu0 0.0
  %v2646 = vand.u32 %v1005, 4294901760
  %2647 = vmatpush1.msra.mxu0 %v2646
  %2648 = vmatprep.subr.mxu0 0.0
  %v2649 = vand.u32 %v1006, 4294901760
  %2650 = vmatpush1.msra.mxu0 %v2649
  %2651 = vmatprep.subr.mxu0 0.0
  %v2652 = vand.u32 %v1007, 4294901760
  %2653 = vmatpush1.msra.mxu0 %v2652
  %2654 = vmatprep.subr.mxu0 0.0
  %v2655 = vand.u32 %v1008, 4294901760
  %2656 = vmatpush1.msra.mxu0 %v2655
  %2657 = vmatprep.subr.mxu0 0.0
  %v2658 = vand.u32 %v1009, 4294901760
  %2659 = vmatpush1.msra.mxu0 %v2658
  %2660 = vmatprep.subr.mxu0 0.0
  %v2661 = vand.u32 %v1010, 4294901760
  %2662 = vmatpush1.msra.mxu0 %v2661
  %2663 = vmatprep.subr.mxu0 0.0
  %v2664 = vand.u32 %v1011, 4294901760
  %2665 = vmatpush1.msra.mxu0 %v2664
  %2666 = vmatprep.subr.mxu0 0.0
  %v2667 = vand.u32 %v1012, 4294901760
  %2668 = vmatpush1.msra.mxu0 %v2667
  %2669 = vmatprep.subr.mxu0 0.0
  %v2670 = vand.u32 %v1013, 4294901760
  %2671 = vmatpush1.msra.mxu0 %v2670
  %2672 = vmatprep.subr.mxu0 0.0
  %v2673 = vand.u32 %v1014, 4294901760
  %2674 = vmatpush1.msra.mxu0 %v2673
  %2675 = vmatprep.subr.mxu0 0.0
  %v2676 = vand.u32 %v1015, 4294901760
  %2677 = vmatpush1.msra.mxu0 %v2676
  %2678 = vmatprep.subr.mxu0 0.0
  %v2679 = vand.u32 %v1016, 4294901760
  %2680 = vmatpush1.msra.mxu0 %v2679
  %2681 = vmatprep.subr.mxu0 0.0
  %v2682 = vand.u32 %v1017, 4294901760
  %2683 = vmatpush1.msra.mxu0 %v2682
  %2684 = vmatprep.subr.mxu0 0.0
  %v2685 = vand.u32 %v1018, 4294901760
  %2686 = vmatpush1.msra.mxu0 %v2685
  %2687 = vmatprep.subr.mxu0 0.0
  %v2688 = vand.u32 %v1019, 4294901760
  %2689 = vmatpush1.msra.mxu0 %v2688
  %2690 = vmatprep.subr.mxu0 0.0
  %2691 = vmatpush1.msra.mxu0 0.0
  %2692 = vmatprep.subr.mxu0 0.0
  %2693 = vmatpush1.msra.mxu0 0.0
  %2694 = vmatprep.subr.mxu0 0.0
  %2695 = vmatpush1.msra.mxu0 0.0
  %2696 = vmatprep.subr.mxu0 0.0
  %2697 = vmatpush1.msra.mxu0 0.0
  %2698 = vmatprep.subr.mxu0 0.0
  %2699 = vmatpush1.msra.mxu0 0.0
  %2700 = vmatprep.subr.mxu0 0.0
  %2701 = vmatpush1.msra.mxu0 0.0
  %2702 = vmatprep.subr.mxu0 0.0
  %2703 = vmatpush1.msra.mxu0 0.0
  %2704 = vmatprep.subr.mxu0 0.0
  %2705 = vmatpush1.msra.mxu0 0.0
  %2706 = vmatprep.subr.mxu0 0.0
  %2707 = vmatpush1.msra.mxu0 0.0
  %2708 = vmatprep.subr.mxu0 0.0
  %2709 = vmatpush1.msra.mxu0 0.0
  %2710 = vmatprep.subr.mxu0 0.0
  %2711 = vmatpush1.msra.mxu0 0.0
  %2712 = vmatprep.subr.mxu0 0.0
  %2713 = vmatpush1.msra.mxu0 0.0
  %2714 = vmatprep.subr.mxu0 0.0
  %2715 = vmatpush1.msra.mxu0 0.0
  %2716 = vmatprep.subr.mxu0 0.0
  %2717 = vmatpush1.msra.mxu0 0.0
  %2718 = vmatprep.subr.mxu0 0.0
  %2719 = vmatpush1.msra.mxu0 0.0
  %2720 = vmatprep.subr.mxu0 0.0
  %2721 = vmatpush1.msra.mxu0 0.0
  %2722 = vmatprep.mubr.f32.mxu0 0.0
  %v2723 = vand.u32 %v2294, 4294901760
  %v2724 = vsub.f32 %v2294, %v2723
  %v2725 = vand.u32 %v2724, 4294901760
  %2726 = vmatmul.mubr.f32.gmra.mrb[0].mxu0 %v2725
  %v2727 = vpop.f32.mrb[0].mxu0
  %v2728 = vadd.f32 %v2639, %v2727
  %v2729 = vpop.f32.mrb[0].mxu0
  %2730 = vdwg.mxu0
  %2731 = vmatprep.subr.mxu0 0.0
  %v2732 = vand.u32 %v1004, 4294901760
  %v2733 = vsub.f32 %v1004, %v2732
  %v2734 = vand.u32 %v2733, 4294901760
  %2735 = vmatpush1.msra.mxu0 %v2734
  %2736 = vmatprep.subr.mxu0 0.0
  %v2737 = vand.u32 %v1005, 4294901760
  %v2738 = vsub.f32 %v1005, %v2737
  %v2739 = vand.u32 %v2738, 4294901760
  %2740 = vmatpush1.msra.mxu0 %v2739
  %2741 = vmatprep.subr.mxu0 0.0
  %v2742 = vand.u32 %v1006, 4294901760
  %v2743 = vsub.f32 %v1006, %v2742
  %v2744 = vand.u32 %v2743, 4294901760
  %2745 = vmatpush1.msra.mxu0 %v2744
  %2746 = vmatprep.subr.mxu0 0.0
  %v2747 = vand.u32 %v1007, 4294901760
  %v2748 = vsub.f32 %v1007, %v2747
  %v2749 = vand.u32 %v2748, 4294901760
  %2750 = vmatpush1.msra.mxu0 %v2749
  %2751 = vmatprep.subr.mxu0 0.0
  %v2752 = vand.u32 %v1008, 4294901760
  %v2753 = vsub.f32 %v1008, %v2752
  %v2754 = vand.u32 %v2753, 4294901760
  %2755 = vmatpush1.msra.mxu0 %v2754
  %2756 = vmatprep.subr.mxu0 0.0
  %v2757 = vand.u32 %v1009, 4294901760
  %v2758 = vsub.f32 %v1009, %v2757
  %v2759 = vand.u32 %v2758, 4294901760
  %2760 = vmatpush1.msra.mxu0 %v2759
  %2761 = vmatprep.subr.mxu0 0.0
  %v2762 = vand.u32 %v1010, 4294901760
  %v2763 = vsub.f32 %v1010, %v2762
  %v2764 = vand.u32 %v2763, 4294901760
  %2765 = vmatpush1.msra.mxu0 %v2764
  %2766 = vmatprep.subr.mxu0 0.0
  %v2767 = vand.u32 %v1011, 4294901760
  %v2768 = vsub.f32 %v1011, %v2767
  %v2769 = vand.u32 %v2768, 4294901760
  %2770 = vmatpush1.msra.mxu0 %v2769
  %2771 = vmatprep.subr.mxu0 0.0
  %v2772 = vand.u32 %v1012, 4294901760
  %v2773 = vsub.f32 %v1012, %v2772
  %v2774 = vand.u32 %v2773, 4294901760
  %2775 = vmatpush1.msra.mxu0 %v2774
  %2776 = vmatprep.subr.mxu0 0.0
  %v2777 = vand.u32 %v1013, 4294901760
  %v2778 = vsub.f32 %v1013, %v2777
  %v2779 = vand.u32 %v2778, 4294901760
  %2780 = vmatpush1.msra.mxu0 %v2779
  %2781 = vmatprep.subr.mxu0 0.0
  %v2782 = vand.u32 %v1014, 4294901760
  %v2783 = vsub.f32 %v1014, %v2782
  %v2784 = vand.u32 %v2783, 4294901760
  %2785 = vmatpush1.msra.mxu0 %v2784
  %2786 = vmatprep.subr.mxu0 0.0
  %v2787 = vand.u32 %v1015, 4294901760
  %v2788 = vsub.f32 %v1015, %v2787
  %v2789 = vand.u32 %v2788, 4294901760
  %2790 = vmatpush1.msra.mxu0 %v2789
  %2791 = vmatprep.subr.mxu0 0.0
  %v2792 = vand.u32 %v1016, 4294901760
  %v2793 = vsub.f32 %v1016, %v2792
  %v2794 = vand.u32 %v2793, 4294901760
  %2795 = vmatpush1.msra.mxu0 %v2794
  %2796 = vmatprep.subr.mxu0 0.0
  %v2797 = vand.u32 %v1017, 4294901760
  %v2798 = vsub.f32 %v1017, %v2797
  %v2799 = vand.u32 %v2798, 4294901760
  %2800 = vmatpush1.msra.mxu0 %v2799
  %2801 = vmatprep.subr.mxu0 0.0
  %v2802 = vand.u32 %v1018, 4294901760
  %v2803 = vsub.f32 %v1018, %v2802
  %v2804 = vand.u32 %v2803, 4294901760
  %2805 = vmatpush1.msra.mxu0 %v2804
  %2806 = vmatprep.subr.mxu0 0.0
  %v2807 = vand.u32 %v1019, 4294901760
  %v2808 = vsub.f32 %v1019, %v2807
  %v2809 = vand.u32 %v2808, 4294901760
  %2810 = vmatpush1.msra.mxu0 %v2809
  %2811 = vmatprep.subr.mxu0 0.0
  %2812 = vmatpush1.msra.mxu0 0.0
  %2813 = vmatprep.subr.mxu0 0.0
  %2814 = vmatpush1.msra.mxu0 0.0
  %2815 = vmatprep.subr.mxu0 0.0
  %2816 = vmatpush1.msra.mxu0 0.0
  %2817 = vmatprep.subr.mxu0 0.0
  %2818 = vmatpush1.msra.mxu0 0.0
  %2819 = vmatprep.subr.mxu0 0.0
  %2820 = vmatpush1.msra.mxu0 0.0
  %2821 = vmatprep.subr.mxu0 0.0
  %2822 = vmatpush1.msra.mxu0 0.0
  %2823 = vmatprep.subr.mxu0 0.0
  %2824 = vmatpush1.msra.mxu0 0.0
  %2825 = vmatprep.subr.mxu0 0.0
  %2826 = vmatpush1.msra.mxu0 0.0
  %2827 = vmatprep.subr.mxu0 0.0
  %2828 = vmatpush1.msra.mxu0 0.0
  %2829 = vmatprep.subr.mxu0 0.0
  %2830 = vmatpush1.msra.mxu0 0.0
  %2831 = vmatprep.subr.mxu0 0.0
  %2832 = vmatpush1.msra.mxu0 0.0
  %2833 = vmatprep.subr.mxu0 0.0
  %2834 = vmatpush1.msra.mxu0 0.0
  %2835 = vmatprep.subr.mxu0 0.0
  %2836 = vmatpush1.msra.mxu0 0.0
  %2837 = vmatprep.subr.mxu0 0.0
  %2838 = vmatpush1.msra.mxu0 0.0
  %2839 = vmatprep.subr.mxu0 0.0
  %2840 = vmatpush1.msra.mxu0 0.0
  %2841 = vmatprep.subr.mxu0 0.0
  %2842 = vmatpush1.msra.mxu0 0.0
  %2843 = vmatprep.mubr.f32.mxu0 0.0
  %v2844 = vand.u32 %v2294, 4294901760
  %2845 = vmatmul.mubr.f32.gmra.mrb[0].mxu0 %v2844
  %v2846 = vpop.f32.mrb[0].mxu0
  %v2847 = vadd.f32 %v2728, %v2846
  %v2848 = vpop.f32.mrb[0].mxu0
  %2849 = vdwg.mxu0
  %2850 = vmatprep.subr.mxu0 0.0
  %v2851 = vand.u32 %v1004, 4294901760
  %2852 = vmatpush1.msra.mxu0 %v2851
  %2853 = vmatprep.subr.mxu0 0.0
  %v2854 = vand.u32 %v1005, 4294901760
  %2855 = vmatpush1.msra.mxu0 %v2854
  %2856 = vmatprep.subr.mxu0 0.0
  %v2857 = vand.u32 %v1006, 4294901760
  %2858 = vmatpush1.msra.mxu0 %v2857
  %2859 = vmatprep.subr.mxu0 0.0
  %v2860 = vand.u32 %v1007, 4294901760
  %2861 = vmatpush1.msra.mxu0 %v2860
  %2862 = vmatprep.subr.mxu0 0.0
  %v2863 = vand.u32 %v1008, 4294901760
  %2864 = vmatpush1.msra.mxu0 %v2863
  %2865 = vmatprep.subr.mxu0 0.0
  %v2866 = vand.u32 %v1009, 4294901760
  %2867 = vmatpush1.msra.mxu0 %v2866
  %2868 = vmatprep.subr.mxu0 0.0
  %v2869 = vand.u32 %v1010, 4294901760
  %2870 = vmatpush1.msra.mxu0 %v2869
  %2871 = vmatprep.subr.mxu0 0.0
  %v2872 = vand.u32 %v1011, 4294901760
  %2873 = vmatpush1.msra.mxu0 %v2872
  %2874 = vmatprep.subr.mxu0 0.0
  %v2875 = vand.u32 %v1012, 4294901760
  %2876 = vmatpush1.msra.mxu0 %v2875
  %2877 = vmatprep.subr.mxu0 0.0
  %v2878 = vand.u32 %v1013, 4294901760
  %2879 = vmatpush1.msra.mxu0 %v2878
  %2880 = vmatprep.subr.mxu0 0.0
  %v2881 = vand.u32 %v1014, 4294901760
  %2882 = vmatpush1.msra.mxu0 %v2881
  %2883 = vmatprep.subr.mxu0 0.0
  %v2884 = vand.u32 %v1015, 4294901760
  %2885 = vmatpush1.msra.mxu0 %v2884
  %2886 = vmatprep.subr.mxu0 0.0
  %v2887 = vand.u32 %v1016, 4294901760
  %2888 = vmatpush1.msra.mxu0 %v2887
  %2889 = vmatprep.subr.mxu0 0.0
  %v2890 = vand.u32 %v1017, 4294901760
  %2891 = vmatpush1.msra.mxu0 %v2890
  %2892 = vmatprep.subr.mxu0 0.0
  %v2893 = vand.u32 %v1018, 4294901760
  %2894 = vmatpush1.msra.mxu0 %v2893
  %2895 = vmatprep.subr.mxu0 0.0
  %v2896 = vand.u32 %v1019, 4294901760
  %2897 = vmatpush1.msra.mxu0 %v2896
  %2898 = vmatprep.subr.mxu0 0.0
  %2899 = vmatpush1.msra.mxu0 0.0
  %2900 = vmatprep.subr.mxu0 0.0
  %2901 = vmatpush1.msra.mxu0 0.0
  %2902 = vmatprep.subr.mxu0 0.0
  %2903 = vmatpush1.msra.mxu0 0.0
  %2904 = vmatprep.subr.mxu0 0.0
  %2905 = vmatpush1.msra.mxu0 0.0
  %2906 = vmatprep.subr.mxu0 0.0
  %2907 = vmatpush1.msra.mxu0 0.0
  %2908 = vmatprep.subr.mxu0 0.0
  %2909 = vmatpush1.msra.mxu0 0.0
  %2910 = vmatprep.subr.mxu0 0.0
  %2911 = vmatpush1.msra.mxu0 0.0
  %2912 = vmatprep.subr.mxu0 0.0
  %2913 = vmatpush1.msra.mxu0 0.0
  %2914 = vmatprep.subr.mxu0 0.0
  %2915 = vmatpush1.msra.mxu0 0.0
  %2916 = vmatprep.subr.mxu0 0.0
  %2917 = vmatpush1.msra.mxu0 0.0
  %2918 = vmatprep.subr.mxu0 0.0
  %2919 = vmatpush1.msra.mxu0 0.0
  %2920 = vmatprep.subr.mxu0 0.0
  %2921 = vmatpush1.msra.mxu0 0.0
  %2922 = vmatprep.subr.mxu0 0.0
  %2923 = vmatpush1.msra.mxu0 0.0
  %2924 = vmatprep.subr.mxu0 0.0
  %2925 = vmatpush1.msra.mxu0 0.0
  %2926 = vmatprep.subr.mxu0 0.0
  %2927 = vmatpush1.msra.mxu0 0.0
  %2928 = vmatprep.subr.mxu0 0.0
  %2929 = vmatpush1.msra.mxu0 0.0
  %2930 = vmatprep.mubr.f32.mxu0 0.0
  %v2931 = vand.u32 %v2294, 4294901760
  %2932 = vmatmul.mubr.f32.gmra.mrb[0].mxu0 %v2931
  %v2933 = vpop.f32.mrb[0].mxu0
  %v2934 = vadd.f32 %v2847, %v2933
  %v2935 = vpop.f32.mrb[0].mxu0
  %2936 = vdwg.mxu0
  %v2937 = vadd.f32 %v2295, %v2934
  %v2938 = vtanh.pop %v2937
  %v2939 = vld [vmem:[#allocation2 + $0x18] sm:$0xff]
  %2940 = vmatprep.subr.mxu0 0.0
  %v2941 = vand.u32 %v1004, 4294901760
  %2942 = vmatpush1.msra.mxu0 %v2941
  %2943 = vmatprep.subr.mxu0 0.0
  %v2944 = vand.u32 %v1005, 4294901760
  %2945 = vmatpush1.msra.mxu0 %v2944
  %2946 = vmatprep.subr.mxu0 0.0
  %v2947 = vand.u32 %v1006, 4294901760
  %2948 = vmatpush1.msra.mxu0 %v2947
  %2949 = vmatprep.subr.mxu0 0.0
  %v2950 = vand.u32 %v1007, 4294901760
  %2951 = vmatpush1.msra.mxu0 %v2950
  %2952 = vmatprep.subr.mxu0 0.0
  %v2953 = vand.u32 %v1008, 4294901760
  %2954 = vmatpush1.msra.mxu0 %v2953
  %2955 = vmatprep.subr.mxu0 0.0
  %v2956 = vand.u32 %v1009, 4294901760
  %2957 = vmatpush1.msra.mxu0 %v2956
  %2958 = vmatprep.subr.mxu0 0.0
  %v2959 = vand.u32 %v1010, 4294901760
  %2960 = vmatpush1.msra.mxu0 %v2959
  %2961 = vmatprep.subr.mxu0 0.0
  %v2962 = vand.u32 %v1011, 4294901760
  %2963 = vmatpush1.msra.mxu0 %v2962
  %2964 = vmatprep.subr.mxu0 0.0
  %v2965 = vand.u32 %v1012, 4294901760
  %2966 = vmatpush1.msra.mxu0 %v2965
  %2967 = vmatprep.subr.mxu0 0.0
  %v2968 = vand.u32 %v1013, 4294901760
  %2969 = vmatpush1.msra.mxu0 %v2968
  %2970 = vmatprep.subr.mxu0 0.0
  %v2971 = vand.u32 %v1014, 4294901760
  %2972 = vmatpush1.msra.mxu0 %v2971
  %2973 = vmatprep.subr.mxu0 0.0
  %v2974 = vand.u32 %v1015, 4294901760
  %2975 = vmatpush1.msra.mxu0 %v2974
  %2976 = vmatprep.subr.mxu0 0.0
  %v2977 = vand.u32 %v1016, 4294901760
  %2978 = vmatpush1.msra.mxu0 %v2977
  %2979 = vmatprep.subr.mxu0 0.0
  %v2980 = vand.u32 %v1017, 4294901760
  %2981 = vmatpush1.msra.mxu0 %v2980
  %2982 = vmatprep.subr.mxu0 0.0
  %v2983 = vand.u32 %v1018, 4294901760
  %2984 = vmatpush1.msra.mxu0 %v2983
  %2985 = vmatprep.subr.mxu0 0.0
  %v2986 = vand.u32 %v1019, 4294901760
  %2987 = vmatpush1.msra.mxu0 %v2986
  %2988 = vmatprep.subr.mxu0 0.0
  %2989 = vmatpush1.msra.mxu0 0.0
  %2990 = vmatprep.subr.mxu0 0.0
  %2991 = vmatpush1.msra.mxu0 0.0
  %2992 = vmatprep.subr.mxu0 0.0
  %2993 = vmatpush1.msra.mxu0 0.0
  %2994 = vmatprep.subr.mxu0 0.0
  %2995 = vmatpush1.msra.mxu0 0.0
  %2996 = vmatprep.subr.mxu0 0.0
  %2997 = vmatpush1.msra.mxu0 0.0
  %2998 = vmatprep.subr.mxu0 0.0
  %2999 = vmatpush1.msra.mxu0 0.0
  %3000 = vmatprep.subr.mxu0 0.0
  %3001 = vmatpush1.msra.mxu0 0.0
  %3002 = vmatprep.subr.mxu0 0.0
  %3003 = vmatpush1.msra.mxu0 0.0
  %3004 = vmatprep.subr.mxu0 0.0
  %3005 = vmatpush1.msra.mxu0 0.0
  %3006 = vmatprep.subr.mxu0 0.0
  %3007 = vmatpush1.msra.mxu0 0.0
  %3008 = vmatprep.subr.mxu0 0.0
  %3009 = vmatpush1.msra.mxu0 0.0
  %3010 = vmatprep.subr.mxu0 0.0
  %3011 = vmatpush1.msra.mxu0 0.0
  %3012 = vmatprep.subr.mxu0 0.0
  %3013 = vmatpush1.msra.mxu0 0.0
  %3014 = vmatprep.subr.mxu0 0.0
  %3015 = vmatpush1.msra.mxu0 0.0
  %3016 = vmatprep.subr.mxu0 0.0
  %3017 = vmatpush1.msra.mxu0 0.0
  %3018 = vmatprep.subr.mxu0 0.0
  %3019 = vmatpush1.msra.mxu0 0.0
  %3020 = vmatprep.mubr.f32.mxu0 0.0
  %v3021 = vand.u32 %v2938, 4294901760
  %v3022 = vsub.f32 %v2938, %v3021
  %v3023 = vand.u32 %v3022, 4294901760
  %v3024 = vsub.f32 %v3022, %v3023
  %v3025 = vand.u32 %v3024, 4294901760
  %3026 = vmatmul.mubr.f32.gmra.mrb[0].mxu0 %v3025
  %v3027 = vpop.f32.mrb[0].mxu0
  %v3028 = vadd.f32 0.0, %v3027
  %v3029 = vpop.f32.mrb[0].mxu0
  %3030 = vdwg.mxu0
  %3031 = vmatprep.subr.mxu0 0.0
  %v3032 = vand.u32 %v1004, 4294901760
  %v3033 = vsub.f32 %v1004, %v3032
  %v3034 = vand.u32 %v3033, 4294901760
  %v3035 = vsub.f32 %v3033, %v3034
  %v3036 = vand.u32 %v3035, 4294901760
  %3037 = vmatpush1.msra.mxu0 %v3036
  %3038 = vmatprep.subr.mxu0 0.0
  %v3039 = vand.u32 %v1005, 4294901760
  %v3040 = vsub.f32 %v1005, %v3039
  %v3041 = vand.u32 %v3040, 4294901760
  %v3042 = vsub.f32 %v3040, %v3041
  %v3043 = vand.u32 %v3042, 4294901760
  %3044 = vmatpush1.msra.mxu0 %v3043
  %3045 = vmatprep.subr.mxu0 0.0
  %v3046 = vand.u32 %v1006, 4294901760
  %v3047 = vsub.f32 %v1006, %v3046
  %v3048 = vand.u32 %v3047, 4294901760
  %v3049 = vsub.f32 %v3047, %v3048
  %v3050 = vand.u32 %v3049, 4294901760
  %3051 = vmatpush1.msra.mxu0 %v3050
  %3052 = vmatprep.subr.mxu0 0.0
  %v3053 = vand.u32 %v1007, 4294901760
  %v3054 = vsub.f32 %v1007, %v3053
  %v3055 = vand.u32 %v3054, 4294901760
  %v3056 = vsub.f32 %v3054, %v3055
  %v3057 = vand.u32 %v3056, 4294901760
  %3058 = vmatpush1.msra.mxu0 %v3057
  %3059 = vmatprep.subr.mxu0 0.0
  %v3060 = vand.u32 %v1008, 4294901760
  %v3061 = vsub.f32 %v1008, %v3060
  %v3062 = vand.u32 %v3061, 4294901760
  %v3063 = vsub.f32 %v3061, %v3062
  %v3064 = vand.u32 %v3063, 4294901760
  %3065 = vmatpush1.msra.mxu0 %v3064
  %3066 = vmatprep.subr.mxu0 0.0
  %v3067 = vand.u32 %v1009, 4294901760
  %v3068 = vsub.f32 %v1009, %v3067
  %v3069 = vand.u32 %v3068, 4294901760
  %v3070 = vsub.f32 %v3068, %v3069
  %v3071 = vand.u32 %v3070, 4294901760
  %3072 = vmatpush1.msra.mxu0 %v3071
  %3073 = vmatprep.subr.mxu0 0.0
  %v3074 = vand.u32 %v1010, 4294901760
  %v3075 = vsub.f32 %v1010, %v3074
  %v3076 = vand.u32 %v3075, 4294901760
  %v3077 = vsub.f32 %v3075, %v3076
  %v3078 = vand.u32 %v3077, 4294901760
  %3079 = vmatpush1.msra.mxu0 %v3078
  %3080 = vmatprep.subr.mxu0 0.0
  %v3081 = vand.u32 %v1011, 4294901760
  %v3082 = vsub.f32 %v1011, %v3081
  %v3083 = vand.u32 %v3082, 4294901760
  %v3084 = vsub.f32 %v3082, %v3083
  %v3085 = vand.u32 %v3084, 4294901760
  %3086 = vmatpush1.msra.mxu0 %v3085
  %3087 = vmatprep.subr.mxu0 0.0
  %v3088 = vand.u32 %v1012, 4294901760
  %v3089 = vsub.f32 %v1012, %v3088
  %v3090 = vand.u32 %v3089, 4294901760
  %v3091 = vsub.f32 %v3089, %v3090
  %v3092 = vand.u32 %v3091, 4294901760
  %3093 = vmatpush1.msra.mxu0 %v3092
  %3094 = vmatprep.subr.mxu0 0.0
  %v3095 = vand.u32 %v1013, 4294901760
  %v3096 = vsub.f32 %v1013, %v3095
  %v3097 = vand.u32 %v3096, 4294901760
  %v3098 = vsub.f32 %v3096, %v3097
  %v3099 = vand.u32 %v3098, 4294901760
  %3100 = vmatpush1.msra.mxu0 %v3099
  %3101 = vmatprep.subr.mxu0 0.0
  %v3102 = vand.u32 %v1014, 4294901760
  %v3103 = vsub.f32 %v1014, %v3102
  %v3104 = vand.u32 %v3103, 4294901760
  %v3105 = vsub.f32 %v3103, %v3104
  %v3106 = vand.u32 %v3105, 4294901760
  %3107 = vmatpush1.msra.mxu0 %v3106
  %3108 = vmatprep.subr.mxu0 0.0
  %v3109 = vand.u32 %v1015, 4294901760
  %v3110 = vsub.f32 %v1015, %v3109
  %v3111 = vand.u32 %v3110, 4294901760
  %v3112 = vsub.f32 %v3110, %v3111
  %v3113 = vand.u32 %v3112, 4294901760
  %3114 = vmatpush1.msra.mxu0 %v3113
  %3115 = vmatprep.subr.mxu0 0.0
  %v3116 = vand.u32 %v1016, 4294901760
  %v3117 = vsub.f32 %v1016, %v3116
  %v3118 = vand.u32 %v3117, 4294901760
  %v3119 = vsub.f32 %v3117, %v3118
  %v3120 = vand.u32 %v3119, 4294901760
  %3121 = vmatpush1.msra.mxu0 %v3120
  %3122 = vmatprep.subr.mxu0 0.0
  %v3123 = vand.u32 %v1017, 4294901760
  %v3124 = vsub.f32 %v1017, %v3123
  %v3125 = vand.u32 %v3124, 4294901760
  %v3126 = vsub.f32 %v3124, %v3125
  %v3127 = vand.u32 %v3126, 4294901760
  %3128 = vmatpush1.msra.mxu0 %v3127
  %3129 = vmatprep.subr.mxu0 0.0
  %v3130 = vand.u32 %v1018, 4294901760
  %v3131 = vsub.f32 %v1018, %v3130
  %v3132 = vand.u32 %v3131, 4294901760
  %v3133 = vsub.f32 %v3131, %v3132
  %v3134 = vand.u32 %v3133, 4294901760
  %3135 = vmatpush1.msra.mxu0 %v3134
  %3136 = vmatprep.subr.mxu0 0.0
  %v3137 = vand.u32 %v1019, 4294901760
  %v3138 = vsub.f32 %v1019, %v3137
  %v3139 = vand.u32 %v3138, 4294901760
  %v3140 = vsub.f32 %v3138, %v3139
  %v3141 = vand.u32 %v3140, 4294901760
  %3142 = vmatpush1.msra.mxu0 %v3141
  %3143 = vmatprep.subr.mxu0 0.0
  %3144 = vmatpush1.msra.mxu0 0.0
  %3145 = vmatprep.subr.mxu0 0.0
  %3146 = vmatpush1.msra.mxu0 0.0
  %3147 = vmatprep.subr.mxu0 0.0
  %3148 = vmatpush1.msra.mxu0 0.0
  %3149 = vmatprep.subr.mxu0 0.0
  %3150 = vmatpush1.msra.mxu0 0.0
  %3151 = vmatprep.subr.mxu0 0.0
  %3152 = vmatpush1.msra.mxu0 0.0
  %3153 = vmatprep.subr.mxu0 0.0
  %3154 = vmatpush1.msra.mxu0 0.0
  %3155 = vmatprep.subr.mxu0 0.0
  %3156 = vmatpush1.msra.mxu0 0.0
  %3157 = vmatprep.subr.mxu0 0.0
  %3158 = vmatpush1.msra.mxu0 0.0
  %3159 = vmatprep.subr.mxu0 0.0
  %3160 = vmatpush1.msra.mxu0 0.0
  %3161 = vmatprep.subr.mxu0 0.0
  %3162 = vmatpush1.msra.mxu0 0.0
  %3163 = vmatprep.subr.mxu0 0.0
  %3164 = vmatpush1.msra.mxu0 0.0
  %3165 = vmatprep.subr.mxu0 0.0
  %3166 = vmatpush1.msra.mxu0 0.0
  %3167 = vmatprep.subr.mxu0 0.0
  %3168 = vmatpush1.msra.mxu0 0.0
  %3169 = vmatprep.subr.mxu0 0.0
  %3170 = vmatpush1.msra.mxu0 0.0
  %3171 = vmatprep.subr.mxu0 0.0
  %3172 = vmatpush1.msra.mxu0 0.0
  %3173 = vmatprep.subr.mxu0 0.0
  %3174 = vmatpush1.msra.mxu0 0.0
  %3175 = vmatprep.mubr.f32.mxu0 0.0
  %v3176 = vand.u32 %v2938, 4294901760
  %3177 = vmatmul.mubr.f32.gmra.mrb[0].mxu0 %v3176
  %v3178 = vpop.f32.mrb[0].mxu0
  %v3179 = vadd.f32 %v3028, %v3178
  %v3180 = vpop.f32.mrb[0].mxu0
  %3181 = vdwg.mxu0
  %3182 = vmatprep.subr.mxu0 0.0
  %v3183 = vand.u32 %v1004, 4294901760
  %v3184 = vsub.f32 %v1004, %v3183
  %3185 = vmatpush1.msra.mxu0 %v3184
  %3186 = vmatprep.subr.mxu0 0.0
  %v3187 = vand.u32 %v1005, 4294901760
  %v3188 = vsub.f32 %v1005, %v3187
  %3189 = vmatpush1.msra.mxu0 %v3188
  %3190 = vmatprep.subr.mxu0 0.0
  %v3191 = vand.u32 %v1006, 4294901760
  %v3192 = vsub.f32 %v1006, %v3191
  %3193 = vmatpush1.msra.mxu0 %v3192
  %3194 = vmatprep.subr.mxu0 0.0
  %v3195 = vand.u32 %v1007, 4294901760
  %v3196 = vsub.f32 %v1007, %v3195
  %3197 = vmatpush1.msra.mxu0 %v3196
  %3198 = vmatprep.subr.mxu0 0.0
  %v3199 = vand.u32 %v1008, 4294901760
  %v3200 = vsub.f32 %v1008, %v3199
  %3201 = vmatpush1.msra.mxu0 %v3200
  %3202 = vmatprep.subr.mxu0 0.0
  %v3203 = vand.u32 %v1009, 4294901760
  %v3204 = vsub.f32 %v1009, %v3203
  %3205 = vmatpush1.msra.mxu0 %v3204
  %3206 = vmatprep.subr.mxu0 0.0
  %v3207 = vand.u32 %v1010, 4294901760
  %v3208 = vsub.f32 %v1010, %v3207
  %3209 = vmatpush1.msra.mxu0 %v3208
  %3210 = vmatprep.subr.mxu0 0.0
  %v3211 = vand.u32 %v1011, 4294901760
  %v3212 = vsub.f32 %v1011, %v3211
  %3213 = vmatpush1.msra.mxu0 %v3212
  %3214 = vmatprep.subr.mxu0 0.0
  %v3215 = vand.u32 %v1012, 4294901760
  %v3216 = vsub.f32 %v1012, %v3215
  %3217 = vmatpush1.msra.mxu0 %v3216
  %3218 = vmatprep.subr.mxu0 0.0
  %v3219 = vand.u32 %v1013, 4294901760
  %v3220 = vsub.f32 %v1013, %v3219
  %3221 = vmatpush1.msra.mxu0 %v3220
  %3222 = vmatprep.subr.mxu0 0.0
  %v3223 = vand.u32 %v1014, 4294901760
  %v3224 = vsub.f32 %v1014, %v3223
  %3225 = vmatpush1.msra.mxu0 %v3224
  %3226 = vmatprep.subr.mxu0 0.0
  %v3227 = vand.u32 %v1015, 4294901760
  %v3228 = vsub.f32 %v1015, %v3227
  %3229 = vmatpush1.msra.mxu0 %v3228
  %3230 = vmatprep.subr.mxu0 0.0
  %v3231 = vand.u32 %v1016, 4294901760
  %v3232 = vsub.f32 %v1016, %v3231
  %3233 = vmatpush1.msra.mxu0 %v3232
  %3234 = vmatprep.subr.mxu0 0.0
  %v3235 = vand.u32 %v1017, 4294901760
  %v3236 = vsub.f32 %v1017, %v3235
  %3237 = vmatpush1.msra.mxu0 %v3236
  %3238 = vmatprep.subr.mxu0 0.0
  %v3239 = vand.u32 %v1018, 4294901760
  %v3240 = vsub.f32 %v1018, %v3239
  %3241 = vmatpush1.msra.mxu0 %v3240
  %3242 = vmatprep.subr.mxu0 0.0
  %v3243 = vand.u32 %v1019, 4294901760
  %v3244 = vsub.f32 %v1019, %v3243
  %3245 = vmatpush1.msra.mxu0 %v3244
  %3246 = vmatprep.subr.mxu0 0.0
  %3247 = vmatpush1.msra.mxu0 0.0
  %3248 = vmatprep.subr.mxu0 0.0
  %3249 = vmatpush1.msra.mxu0 0.0
  %3250 = vmatprep.subr.mxu0 0.0
  %3251 = vmatpush1.msra.mxu0 0.0
  %3252 = vmatprep.subr.mxu0 0.0
  %3253 = vmatpush1.msra.mxu0 0.0
  %3254 = vmatprep.subr.mxu0 0.0
  %3255 = vmatpush1.msra.mxu0 0.0
  %3256 = vmatprep.subr.mxu0 0.0
  %3257 = vmatpush1.msra.mxu0 0.0
  %3258 = vmatprep.subr.mxu0 0.0
  %3259 = vmatpush1.msra.mxu0 0.0
  %3260 = vmatprep.subr.mxu0 0.0
  %3261 = vmatpush1.msra.mxu0 0.0
  %3262 = vmatprep.subr.mxu0 0.0
  %3263 = vmatpush1.msra.mxu0 0.0
  %3264 = vmatprep.subr.mxu0 0.0
  %3265 = vmatpush1.msra.mxu0 0.0
  %3266 = vmatprep.subr.mxu0 0.0
  %3267 = vmatpush1.msra.mxu0 0.0
  %3268 = vmatprep.subr.mxu0 0.0
  %3269 = vmatpush1.msra.mxu0 0.0
  %3270 = vmatprep.subr.mxu0 0.0
  %3271 = vmatpush1.msra.mxu0 0.0
  %3272 = vmatprep.subr.mxu0 0.0
  %3273 = vmatpush1.msra.mxu0 0.0
  %3274 = vmatprep.subr.mxu0 0.0
  %3275 = vmatpush1.msra.mxu0 0.0
  %3276 = vmatprep.subr.mxu0 0.0
  %3277 = vmatpush1.msra.mxu0 0.0
  %3278 = vmatprep.mubr.f32.mxu0 0.0
  %v3279 = vand.u32 %v2938, 4294901760
  %v3280 = vsub.f32 %v2938, %v3279
  %3281 = vmatmul.mubr.f32.gmra.mrb[0].mxu0 %v3280
  %v3282 = vpop.f32.mrb[0].mxu0
  %v3283 = vadd.f32 %v3179, %v3282
  %v3284 = vpop.f32.mrb[0].mxu0
  %3285 = vdwg.mxu0
  %3286 = vmatprep.subr.mxu0 0.0
  %v3287 = vand.u32 %v1004, 4294901760
  %3288 = vmatpush1.msra.mxu0 %v3287
  %3289 = vmatprep.subr.mxu0 0.0
  %v3290 = vand.u32 %v1005, 4294901760
  %3291 = vmatpush1.msra.mxu0 %v3290
  %3292 = vmatprep.subr.mxu0 0.0
  %v3293 = vand.u32 %v1006, 4294901760
  %3294 = vmatpush1.msra.mxu0 %v3293
  %3295 = vmatprep.subr.mxu0 0.0
  %v3296 = vand.u32 %v1007, 4294901760
  %3297 = vmatpush1.msra.mxu0 %v3296
  %3298 = vmatprep.subr.mxu0 0.0
  %v3299 = vand.u32 %v1008, 4294901760
  %3300 = vmatpush1.msra.mxu0 %v3299
  %3301 = vmatprep.subr.mxu0 0.0
  %v3302 = vand.u32 %v1009, 4294901760
  %3303 = vmatpush1.msra.mxu0 %v3302
  %3304 = vmatprep.subr.mxu0 0.0
  %v3305 = vand.u32 %v1010, 4294901760
  %3306 = vmatpush1.msra.mxu0 %v3305
  %3307 = vmatprep.subr.mxu0 0.0
  %v3308 = vand.u32 %v1011, 4294901760
  %3309 = vmatpush1.msra.mxu0 %v3308
  %3310 = vmatprep.subr.mxu0 0.0
  %v3311 = vand.u32 %v1012, 4294901760
  %3312 = vmatpush1.msra.mxu0 %v3311
  %3313 = vmatprep.subr.mxu0 0.0
  %v3314 = vand.u32 %v1013, 4294901760
  %3315 = vmatpush1.msra.mxu0 %v3314
  %3316 = vmatprep.subr.mxu0 0.0
  %v3317 = vand.u32 %v1014, 4294901760
  %3318 = vmatpush1.msra.mxu0 %v3317
  %3319 = vmatprep.subr.mxu0 0.0
  %v3320 = vand.u32 %v1015, 4294901760
  %3321 = vmatpush1.msra.mxu0 %v3320
  %3322 = vmatprep.subr.mxu0 0.0
  %v3323 = vand.u32 %v1016, 4294901760
  %3324 = vmatpush1.msra.mxu0 %v3323
  %3325 = vmatprep.subr.mxu0 0.0
  %v3326 = vand.u32 %v1017, 4294901760
  %3327 = vmatpush1.msra.mxu0 %v3326
  %3328 = vmatprep.subr.mxu0 0.0
  %v3329 = vand.u32 %v1018, 4294901760
  %3330 = vmatpush1.msra.mxu0 %v3329
  %3331 = vmatprep.subr.mxu0 0.0
  %v3332 = vand.u32 %v1019, 4294901760
  %3333 = vmatpush1.msra.mxu0 %v3332
  %3334 = vmatprep.subr.mxu0 0.0
  %3335 = vmatpush1.msra.mxu0 0.0
  %3336 = vmatprep.subr.mxu0 0.0
  %3337 = vmatpush1.msra.mxu0 0.0
  %3338 = vmatprep.subr.mxu0 0.0
  %3339 = vmatpush1.msra.mxu0 0.0
  %3340 = vmatprep.subr.mxu0 0.0
  %3341 = vmatpush1.msra.mxu0 0.0
  %3342 = vmatprep.subr.mxu0 0.0
  %3343 = vmatpush1.msra.mxu0 0.0
  %3344 = vmatprep.subr.mxu0 0.0
  %3345 = vmatpush1.msra.mxu0 0.0
  %3346 = vmatprep.subr.mxu0 0.0
  %3347 = vmatpush1.msra.mxu0 0.0
  %3348 = vmatprep.subr.mxu0 0.0
  %3349 = vmatpush1.msra.mxu0 0.0
  %3350 = vmatprep.subr.mxu0 0.0
  %3351 = vmatpush1.msra.mxu0 0.0
  %3352 = vmatprep.subr.mxu0 0.0
  %3353 = vmatpush1.msra.mxu0 0.0
  %3354 = vmatprep.subr.mxu0 0.0
  %3355 = vmatpush1.msra.mxu0 0.0
  %3356 = vmatprep.subr.mxu0 0.0
  %3357 = vmatpush1.msra.mxu0 0.0
  %3358 = vmatprep.subr.mxu0 0.0
  %3359 = vmatpush1.msra.mxu0 0.0
  %3360 = vmatprep.subr.mxu0 0.0
  %3361 = vmatpush1.msra.mxu0 0.0
  %3362 = vmatprep.subr.mxu0 0.0
  %3363 = vmatpush1.msra.mxu0 0.0
  %3364 = vmatprep.subr.mxu0 0.0
  %3365 = vmatpush1.msra.mxu0 0.0
  %3366 = vmatprep.mubr.f32.mxu0 0.0
  %v3367 = vand.u32 %v2938, 4294901760
  %v3368 = vsub.f32 %v2938, %v3367
  %v3369 = vand.u32 %v3368, 4294901760
  %3370 = vmatmul.mubr.f32.gmra.mrb[0].mxu0 %v3369
  %v3371 = vpop.f32.mrb[0].mxu0
  %v3372 = vadd.f32 %v3283, %v3371
  %v3373 = vpop.f32.mrb[0].mxu0
  %3374 = vdwg.mxu0
  %3375 = vmatprep.subr.mxu0 0.0
  %v3376 = vand.u32 %v1004, 4294901760
  %v3377 = vsub.f32 %v1004, %v3376
  %v3378 = vand.u32 %v3377, 4294901760
  %3379 = vmatpush1.msra.mxu0 %v3378
  %3380 = vmatprep.subr.mxu0 0.0
  %v3381 = vand.u32 %v1005, 4294901760
  %v3382 = vsub.f32 %v1005, %v3381
  %v3383 = vand.u32 %v3382, 4294901760
  %3384 = vmatpush1.msra.mxu0 %v3383
  %3385 = vmatprep.subr.mxu0 0.0
  %v3386 = vand.u32 %v1006, 4294901760
  %v3387 = vsub.f32 %v1006, %v3386
  %v3388 = vand.u32 %v3387, 4294901760
  %3389 = vmatpush1.msra.mxu0 %v3388
  %3390 = vmatprep.subr.mxu0 0.0
  %v3391 = vand.u32 %v1007, 4294901760
  %v3392 = vsub.f32 %v1007, %v3391
  %v3393 = vand.u32 %v3392, 4294901760
  %3394 = vmatpush1.msra.mxu0 %v3393
  %3395 = vmatprep.subr.mxu0 0.0
  %v3396 = vand.u32 %v1008, 4294901760
  %v3397 = vsub.f32 %v1008, %v3396
  %v3398 = vand.u32 %v3397, 4294901760
  %3399 = vmatpush1.msra.mxu0 %v3398
  %3400 = vmatprep.subr.mxu0 0.0
  %v3401 = vand.u32 %v1009, 4294901760
  %v3402 = vsub.f32 %v1009, %v3401
  %v3403 = vand.u32 %v3402, 4294901760
  %3404 = vmatpush1.msra.mxu0 %v3403
  %3405 = vmatprep.subr.mxu0 0.0
  %v3406 = vand.u32 %v1010, 4294901760
  %v3407 = vsub.f32 %v1010, %v3406
  %v3408 = vand.u32 %v3407, 4294901760
  %3409 = vmatpush1.msra.mxu0 %v3408
  %3410 = vmatprep.subr.mxu0 0.0
  %v3411 = vand.u32 %v1011, 4294901760
  %v3412 = vsub.f32 %v1011, %v3411
  %v3413 = vand.u32 %v3412, 4294901760
  %3414 = vmatpush1.msra.mxu0 %v3413
  %3415 = vmatprep.subr.mxu0 0.0
  %v3416 = vand.u32 %v1012, 4294901760
  %v3417 = vsub.f32 %v1012, %v3416
  %v3418 = vand.u32 %v3417, 4294901760
  %3419 = vmatpush1.msra.mxu0 %v3418
  %3420 = vmatprep.subr.mxu0 0.0
  %v3421 = vand.u32 %v1013, 4294901760
  %v3422 = vsub.f32 %v1013, %v3421
  %v3423 = vand.u32 %v3422, 4294901760
  %3424 = vmatpush1.msra.mxu0 %v3423
  %3425 = vmatprep.subr.mxu0 0.0
  %v3426 = vand.u32 %v1014, 4294901760
  %v3427 = vsub.f32 %v1014, %v3426
  %v3428 = vand.u32 %v3427, 4294901760
  %3429 = vmatpush1.msra.mxu0 %v3428
  %3430 = vmatprep.subr.mxu0 0.0
  %v3431 = vand.u32 %v1015, 4294901760
  %v3432 = vsub.f32 %v1015, %v3431
  %v3433 = vand.u32 %v3432, 4294901760
  %3434 = vmatpush1.msra.mxu0 %v3433
  %3435 = vmatprep.subr.mxu0 0.0
  %v3436 = vand.u32 %v1016, 4294901760
  %v3437 = vsub.f32 %v1016, %v3436
  %v3438 = vand.u32 %v3437, 4294901760
  %3439 = vmatpush1.msra.mxu0 %v3438
  %3440 = vmatprep.subr.mxu0 0.0
  %v3441 = vand.u32 %v1017, 4294901760
  %v3442 = vsub.f32 %v1017, %v3441
  %v3443 = vand.u32 %v3442, 4294901760
  %3444 = vmatpush1.msra.mxu0 %v3443
  %3445 = vmatprep.subr.mxu0 0.0
  %v3446 = vand.u32 %v1018, 4294901760
  %v3447 = vsub.f32 %v1018, %v3446
  %v3448 = vand.u32 %v3447, 4294901760
  %3449 = vmatpush1.msra.mxu0 %v3448
  %3450 = vmatprep.subr.mxu0 0.0
  %v3451 = vand.u32 %v1019, 4294901760
  %v3452 = vsub.f32 %v1019, %v3451
  %v3453 = vand.u32 %v3452, 4294901760
  %3454 = vmatpush1.msra.mxu0 %v3453
  %3455 = vmatprep.subr.mxu0 0.0
  %3456 = vmatpush1.msra.mxu0 0.0
  %3457 = vmatprep.subr.mxu0 0.0
  %3458 = vmatpush1.msra.mxu0 0.0
  %3459 = vmatprep.subr.mxu0 0.0
  %3460 = vmatpush1.msra.mxu0 0.0
  %3461 = vmatprep.subr.mxu0 0.0
  %3462 = vmatpush1.msra.mxu0 0.0
  %3463 = vmatprep.subr.mxu0 0.0
  %3464 = vmatpush1.msra.mxu0 0.0
  %3465 = vmatprep.subr.mxu0 0.0
  %3466 = vmatpush1.msra.mxu0 0.0
  %3467 = vmatprep.subr.mxu0 0.0
  %3468 = vmatpush1.msra.mxu0 0.0
  %3469 = vmatprep.subr.mxu0 0.0
  %3470 = vmatpush1.msra.mxu0 0.0
  %3471 = vmatprep.subr.mxu0 0.0
  %3472 = vmatpush1.msra.mxu0 0.0
  %3473 = vmatprep.subr.mxu0 0.0
  %3474 = vmatpush1.msra.mxu0 0.0
  %3475 = vmatprep.subr.mxu0 0.0
  %3476 = vmatpush1.msra.mxu0 0.0
  %3477 = vmatprep.subr.mxu0 0.0
  %3478 = vmatpush1.msra.mxu0 0.0
  %3479 = vmatprep.subr.mxu0 0.0
  %3480 = vmatpush1.msra.mxu0 0.0
  %3481 = vmatprep.subr.mxu0 0.0
  %3482 = vmatpush1.msra.mxu0 0.0
  %3483 = vmatprep.subr.mxu0 0.0
  %3484 = vmatpush1.msra.mxu0 0.0
  %3485 = vmatprep.subr.mxu0 0.0
  %3486 = vmatpush1.msra.mxu0 0.0
  %3487 = vmatprep.mubr.f32.mxu0 0.0
  %v3488 = vand.u32 %v2938, 4294901760
  %3489 = vmatmul.mubr.f32.gmra.mrb[0].mxu0 %v3488
  %v3490 = vpop.f32.mrb[0].mxu0
  %v3491 = vadd.f32 %v3372, %v3490
  %v3492 = vpop.f32.mrb[0].mxu0
  %3493 = vdwg.mxu0
  %3494 = vmatprep.subr.mxu0 0.0
  %v3495 = vand.u32 %v1004, 4294901760
  %3496 = vmatpush1.msra.mxu0 %v3495
  %3497 = vmatprep.subr.mxu0 0.0
  %v3498 = vand.u32 %v1005, 4294901760
  %3499 = vmatpush1.msra.mxu0 %v3498
  %3500 = vmatprep.subr.mxu0 0.0
  %v3501 = vand.u32 %v1006, 4294901760
  %3502 = vmatpush1.msra.mxu0 %v3501
  %3503 = vmatprep.subr.mxu0 0.0
  %v3504 = vand.u32 %v1007, 4294901760
  %3505 = vmatpush1.msra.mxu0 %v3504
  %3506 = vmatprep.subr.mxu0 0.0
  %v3507 = vand.u32 %v1008, 4294901760
  %3508 = vmatpush1.msra.mxu0 %v3507
  %3509 = vmatprep.subr.mxu0 0.0
  %v3510 = vand.u32 %v1009, 4294901760
  %3511 = vmatpush1.msra.mxu0 %v3510
  %3512 = vmatprep.subr.mxu0 0.0
  %v3513 = vand.u32 %v1010, 4294901760
  %3514 = vmatpush1.msra.mxu0 %v3513
  %3515 = vmatprep.subr.mxu0 0.0
  %v3516 = vand.u32 %v1011, 4294901760
  %3517 = vmatpush1.msra.mxu0 %v3516
  %3518 = vmatprep.subr.mxu0 0.0
  %v3519 = vand.u32 %v1012, 4294901760
  %3520 = vmatpush1.msra.mxu0 %v3519
  %3521 = vmatprep.subr.mxu0 0.0
  %v3522 = vand.u32 %v1013, 4294901760
  %3523 = vmatpush1.msra.mxu0 %v3522
  %3524 = vmatprep.subr.mxu0 0.0
  %v3525 = vand.u32 %v1014, 4294901760
  %3526 = vmatpush1.msra.mxu0 %v3525
  %3527 = vmatprep.subr.mxu0 0.0
  %v3528 = vand.u32 %v1015, 4294901760
  %3529 = vmatpush1.msra.mxu0 %v3528
  %3530 = vmatprep.subr.mxu0 0.0
  %v3531 = vand.u32 %v1016, 4294901760
  %3532 = vmatpush1.msra.mxu0 %v3531
  %3533 = vmatprep.subr.mxu0 0.0
  %v3534 = vand.u32 %v1017, 4294901760
  %3535 = vmatpush1.msra.mxu0 %v3534
  %3536 = vmatprep.subr.mxu0 0.0
  %v3537 = vand.u32 %v1018, 4294901760
  %3538 = vmatpush1.msra.mxu0 %v3537
  %3539 = vmatprep.subr.mxu0 0.0
  %v3540 = vand.u32 %v1019, 4294901760
  %3541 = vmatpush1.msra.mxu0 %v3540
  %3542 = vmatprep.subr.mxu0 0.0
  %3543 = vmatpush1.msra.mxu0 0.0
  %3544 = vmatprep.subr.mxu0 0.0
  %3545 = vmatpush1.msra.mxu0 0.0
  %3546 = vmatprep.subr.mxu0 0.0
  %3547 = vmatpush1.msra.mxu0 0.0
  %3548 = vmatprep.subr.mxu0 0.0
  %3549 = vmatpush1.msra.mxu0 0.0
  %3550 = vmatprep.subr.mxu0 0.0
  %3551 = vmatpush1.msra.mxu0 0.0
  %3552 = vmatprep.subr.mxu0 0.0
  %3553 = vmatpush1.msra.mxu0 0.0
  %3554 = vmatprep.subr.mxu0 0.0
  %3555 = vmatpush1.msra.mxu0 0.0
  %3556 = vmatprep.subr.mxu0 0.0
  %3557 = vmatpush1.msra.mxu0 0.0
  %3558 = vmatprep.subr.mxu0 0.0
  %3559 = vmatpush1.msra.mxu0 0.0
  %3560 = vmatprep.subr.mxu0 0.0
  %3561 = vmatpush1.msra.mxu0 0.0
  %3562 = vmatprep.subr.mxu0 0.0
  %3563 = vmatpush1.msra.mxu0 0.0
  %3564 = vmatprep.subr.mxu0 0.0
  %3565 = vmatpush1.msra.mxu0 0.0
  %3566 = vmatprep.subr.mxu0 0.0
  %3567 = vmatpush1.msra.mxu0 0.0
  %3568 = vmatprep.subr.mxu0 0.0
  %3569 = vmatpush1.msra.mxu0 0.0
  %3570 = vmatprep.subr.mxu0 0.0
  %3571 = vmatpush1.msra.mxu0 0.0
  %3572 = vmatprep.subr.mxu0 0.0
  %3573 = vmatpush1.msra.mxu0 0.0
  %3574 = vmatprep.mubr.f32.mxu0 0.0
  %v3575 = vand.u32 %v2938, 4294901760
  %3576 = vmatmul.mubr.f32.gmra.mrb[0].mxu0 %v3575
  %v3577 = vpop.f32.mrb[0].mxu0
  %v3578 = vadd.f32 %v3491, %v3577
  %v3579 = vpop.f32.mrb[0].mxu0
  %3580 = vdwg.mxu0
  %v3581 = vadd.f32 %v2939, %v3578
  %v3582 = vtanh.pop %v3581
  %v3583 = vld [vmem:[#allocation2 + $0x20] sm:$0xff]
  %3584 = vmatprep.subr.mxu0 0.0
  %v3585 = vand.u32 %v1004, 4294901760
  %3586 = vmatpush1.msra.mxu0 %v3585
  %3587 = vmatprep.subr.mxu0 0.0
  %v3588 = vand.u32 %v1005, 4294901760
  %3589 = vmatpush1.msra.mxu0 %v3588
  %3590 = vmatprep.subr.mxu0 0.0
  %v3591 = vand.u32 %v1006, 4294901760
  %3592 = vmatpush1.msra.mxu0 %v3591
  %3593 = vmatprep.subr.mxu0 0.0
  %v3594 = vand.u32 %v1007, 4294901760
  %3595 = vmatpush1.msra.mxu0 %v3594
  %3596 = vmatprep.subr.mxu0 0.0
  %v3597 = vand.u32 %v1008, 4294901760
  %3598 = vmatpush1.msra.mxu0 %v3597
  %3599 = vmatprep.subr.mxu0 0.0
  %v3600 = vand.u32 %v1009, 4294901760
  %3601 = vmatpush1.msra.mxu0 %v3600
  %3602 = vmatprep.subr.mxu0 0.0
  %v3603 = vand.u32 %v1010, 4294901760
  %3604 = vmatpush1.msra.mxu0 %v3603
  %3605 = vmatprep.subr.mxu0 0.0
  %v3606 = vand.u32 %v1011, 4294901760
  %3607 = vmatpush1.msra.mxu0 %v3606
  %3608 = vmatprep.subr.mxu0 0.0
  %v3609 = vand.u32 %v1012, 4294901760
  %3610 = vmatpush1.msra.mxu0 %v3609
  %3611 = vmatprep.subr.mxu0 0.0
  %v3612 = vand.u32 %v1013, 4294901760
  %3613 = vmatpush1.msra.mxu0 %v3612
  %3614 = vmatprep.subr.mxu0 0.0
  %v3615 = vand.u32 %v1014, 4294901760
  %3616 = vmatpush1.msra.mxu0 %v3615
  %3617 = vmatprep.subr.mxu0 0.0
  %v3618 = vand.u32 %v1015, 4294901760
  %3619 = vmatpush1.msra.mxu0 %v3618
  %3620 = vmatprep.subr.mxu0 0.0
  %v3621 = vand.u32 %v1016, 4294901760
  %3622 = vmatpush1.msra.mxu0 %v3621
  %3623 = vmatprep.subr.mxu0 0.0
  %v3624 = vand.u32 %v1017, 4294901760
  %3625 = vmatpush1.msra.mxu0 %v3624
  %3626 = vmatprep.subr.mxu0 0.0
  %v3627 = vand.u32 %v1018, 4294901760
  %3628 = vmatpush1.msra.mxu0 %v3627
  %3629 = vmatprep.subr.mxu0 0.0
  %v3630 = vand.u32 %v1019, 4294901760
  %3631 = vmatpush1.msra.mxu0 %v3630
  %3632 = vmatprep.subr.mxu0 0.0
  %3633 = vmatpush1.msra.mxu0 0.0
  %3634 = vmatprep.subr.mxu0 0.0
  %3635 = vmatpush1.msra.mxu0 0.0
  %3636 = vmatprep.subr.mxu0 0.0
  %3637 = vmatpush1.msra.mxu0 0.0
  %3638 = vmatprep.subr.mxu0 0.0
  %3639 = vmatpush1.msra.mxu0 0.0
  %3640 = vmatprep.subr.mxu0 0.0
  %3641 = vmatpush1.msra.mxu0 0.0
  %3642 = vmatprep.subr.mxu0 0.0
  %3643 = vmatpush1.msra.mxu0 0.0
  %3644 = vmatprep.subr.mxu0 0.0
  %3645 = vmatpush1.msra.mxu0 0.0
  %3646 = vmatprep.subr.mxu0 0.0
  %3647 = vmatpush1.msra.mxu0 0.0
  %3648 = vmatprep.subr.mxu0 0.0
  %3649 = vmatpush1.msra.mxu0 0.0
  %3650 = vmatprep.subr.mxu0 0.0
  %3651 = vmatpush1.msra.mxu0 0.0
  %3652 = vmatprep.subr.mxu0 0.0
  %3653 = vmatpush1.msra.mxu0 0.0
  %3654 = vmatprep.subr.mxu0 0.0
  %3655 = vmatpush1.msra.mxu0 0.0
  %3656 = vmatprep.subr.mxu0 0.0
  %3657 = vmatpush1.msra.mxu0 0.0
  %3658 = vmatprep.subr.mxu0 0.0
  %3659 = vmatpush1.msra.mxu0 0.0
  %3660 = vmatprep.subr.mxu0 0.0
  %3661 = vmatpush1.msra.mxu0 0.0
  %3662 = vmatprep.subr.mxu0 0.0
  %3663 = vmatpush1.msra.mxu0 0.0
  %3664 = vmatprep.mubr.f32.mxu0 0.0
  %v3665 = vand.u32 %v3582, 4294901760
  %v3666 = vsub.f32 %v3582, %v3665
  %v3667 = vand.u32 %v3666, 4294901760
  %v3668 = vsub.f32 %v3666, %v3667
  %v3669 = vand.u32 %v3668, 4294901760
  %3670 = vmatmul.mubr.f32.gmra.mrb[0].mxu0 %v3669
  %v3671 = vpop.f32.mrb[0].mxu0
  %v3672 = vadd.f32 0.0, %v3671
  %v3673 = vpop.f32.mrb[0].mxu0
  %3674 = vdwg.mxu0
  %3675 = vmatprep.subr.mxu0 0.0
  %v3676 = vand.u32 %v1004, 4294901760
  %v3677 = vsub.f32 %v1004, %v3676
  %v3678 = vand.u32 %v3677, 4294901760
  %v3679 = vsub.f32 %v3677, %v3678
  %v3680 = vand.u32 %v3679, 4294901760
  %3681 = vmatpush1.msra.mxu0 %v3680
  %3682 = vmatprep.subr.mxu0 0.0
  %v3683 = vand.u32 %v1005, 4294901760
  %v3684 = vsub.f32 %v1005, %v3683
  %v3685 = vand.u32 %v3684, 4294901760
  %v3686 = vsub.f32 %v3684, %v3685
  %v3687 = vand.u32 %v3686, 4294901760
  %3688 = vmatpush1.msra.mxu0 %v3687
  %3689 = vmatprep.subr.mxu0 0.0
  %v3690 = vand.u32 %v1006, 4294901760
  %v3691 = vsub.f32 %v1006, %v3690
  %v3692 = vand.u32 %v3691, 4294901760
  %v3693 = vsub.f32 %v3691, %v3692
  %v3694 = vand.u32 %v3693, 4294901760
  %3695 = vmatpush1.msra.mxu0 %v3694
  %3696 = vmatprep.subr.mxu0 0.0
  %v3697 = vand.u32 %v1007, 4294901760
  %v3698 = vsub.f32 %v1007, %v3697
  %v3699 = vand.u32 %v3698, 4294901760
  %v3700 = vsub.f32 %v3698, %v3699
  %v3701 = vand.u32 %v3700, 4294901760
  %3702 = vmatpush1.msra.mxu0 %v3701
  %3703 = vmatprep.subr.mxu0 0.0
  %v3704 = vand.u32 %v1008, 4294901760
  %v3705 = vsub.f32 %v1008, %v3704
  %v3706 = vand.u32 %v3705, 4294901760
  %v3707 = vsub.f32 %v3705, %v3706
  %v3708 = vand.u32 %v3707, 4294901760
  %3709 = vmatpush1.msra.mxu0 %v3708
  %3710 = vmatprep.subr.mxu0 0.0
  %v3711 = vand.u32 %v1009, 4294901760
  %v3712 = vsub.f32 %v1009, %v3711
  %v3713 = vand.u32 %v3712, 4294901760
  %v3714 = vsub.f32 %v3712, %v3713
  %v3715 = vand.u32 %v3714, 4294901760
  %3716 = vmatpush1.msra.mxu0 %v3715
  %3717 = vmatprep.subr.mxu0 0.0
  %v3718 = vand.u32 %v1010, 4294901760
  %v3719 = vsub.f32 %v1010, %v3718
  %v3720 = vand.u32 %v3719, 4294901760
  %v3721 = vsub.f32 %v3719, %v3720
  %v3722 = vand.u32 %v3721, 4294901760
  %3723 = vmatpush1.msra.mxu0 %v3722
  %3724 = vmatprep.subr.mxu0 0.0
  %v3725 = vand.u32 %v1011, 4294901760
  %v3726 = vsub.f32 %v1011, %v3725
  %v3727 = vand.u32 %v3726, 4294901760
  %v3728 = vsub.f32 %v3726, %v3727
  %v3729 = vand.u32 %v3728, 4294901760
  %3730 = vmatpush1.msra.mxu0 %v3729
  %3731 = vmatprep.subr.mxu0 0.0
  %v3732 = vand.u32 %v1012, 4294901760
  %v3733 = vsub.f32 %v1012, %v3732
  %v3734 = vand.u32 %v3733, 4294901760
  %v3735 = vsub.f32 %v3733, %v3734
  %v3736 = vand.u32 %v3735, 4294901760
  %3737 = vmatpush1.msra.mxu0 %v3736
  %3738 = vmatprep.subr.mxu0 0.0
  %v3739 = vand.u32 %v1013, 4294901760
  %v3740 = vsub.f32 %v1013, %v3739
  %v3741 = vand.u32 %v3740, 4294901760
  %v3742 = vsub.f32 %v3740, %v3741
  %v3743 = vand.u32 %v3742, 4294901760
  %3744 = vmatpush1.msra.mxu0 %v3743
  %3745 = vmatprep.subr.mxu0 0.0
  %v3746 = vand.u32 %v1014, 4294901760
  %v3747 = vsub.f32 %v1014, %v3746
  %v3748 = vand.u32 %v3747, 4294901760
  %v3749 = vsub.f32 %v3747, %v3748
  %v3750 = vand.u32 %v3749, 4294901760
  %3751 = vmatpush1.msra.mxu0 %v3750
  %3752 = vmatprep.subr.mxu0 0.0
  %v3753 = vand.u32 %v1015, 4294901760
  %v3754 = vsub.f32 %v1015, %v3753
  %v3755 = vand.u32 %v3754, 4294901760
  %v3756 = vsub.f32 %v3754, %v3755
  %v3757 = vand.u32 %v3756, 4294901760
  %3758 = vmatpush1.msra.mxu0 %v3757
  %3759 = vmatprep.subr.mxu0 0.0
  %v3760 = vand.u32 %v1016, 4294901760
  %v3761 = vsub.f32 %v1016, %v3760
  %v3762 = vand.u32 %v3761, 4294901760
  %v3763 = vsub.f32 %v3761, %v3762
  %v3764 = vand.u32 %v3763, 4294901760
  %3765 = vmatpush1.msra.mxu0 %v3764
  %3766 = vmatprep.subr.mxu0 0.0
  %v3767 = vand.u32 %v1017, 4294901760
  %v3768 = vsub.f32 %v1017, %v3767
  %v3769 = vand.u32 %v3768, 4294901760
  %v3770 = vsub.f32 %v3768, %v3769
  %v3771 = vand.u32 %v3770, 4294901760
  %3772 = vmatpush1.msra.mxu0 %v3771
  %3773 = vmatprep.subr.mxu0 0.0
  %v3774 = vand.u32 %v1018, 4294901760
  %v3775 = vsub.f32 %v1018, %v3774
  %v3776 = vand.u32 %v3775, 4294901760
  %v3777 = vsub.f32 %v3775, %v3776
  %v3778 = vand.u32 %v3777, 4294901760
  %3779 = vmatpush1.msra.mxu0 %v3778
  %3780 = vmatprep.subr.mxu0 0.0
  %v3781 = vand.u32 %v1019, 4294901760
  %v3782 = vsub.f32 %v1019, %v3781
  %v3783 = vand.u32 %v3782, 4294901760
  %v3784 = vsub.f32 %v3782, %v3783
  %v3785 = vand.u32 %v3784, 4294901760
  %3786 = vmatpush1.msra.mxu0 %v3785
  %3787 = vmatprep.subr.mxu0 0.0
  %3788 = vmatpush1.msra.mxu0 0.0
  %3789 = vmatprep.subr.mxu0 0.0
  %3790 = vmatpush1.msra.mxu0 0.0
  %3791 = vmatprep.subr.mxu0 0.0
  %3792 = vmatpush1.msra.mxu0 0.0
  %3793 = vmatprep.subr.mxu0 0.0
  %3794 = vmatpush1.msra.mxu0 0.0
  %3795 = vmatprep.subr.mxu0 0.0
  %3796 = vmatpush1.msra.mxu0 0.0
  %3797 = vmatprep.subr.mxu0 0.0
  %3798 = vmatpush1.msra.mxu0 0.0
  %3799 = vmatprep.subr.mxu0 0.0
  %3800 = vmatpush1.msra.mxu0 0.0
  %3801 = vmatprep.subr.mxu0 0.0
  %3802 = vmatpush1.msra.mxu0 0.0
  %3803 = vmatprep.subr.mxu0 0.0
  %3804 = vmatpush1.msra.mxu0 0.0
  %3805 = vmatprep.subr.mxu0 0.0
  %3806 = vmatpush1.msra.mxu0 0.0
  %3807 = vmatprep.subr.mxu0 0.0
  %3808 = vmatpush1.msra.mxu0 0.0
  %3809 = vmatprep.subr.mxu0 0.0
  %3810 = vmatpush1.msra.mxu0 0.0
  %3811 = vmatprep.subr.mxu0 0.0
  %3812 = vmatpush1.msra.mxu0 0.0
  %3813 = vmatprep.subr.mxu0 0.0
  %3814 = vmatpush1.msra.mxu0 0.0
  %3815 = vmatprep.subr.mxu0 0.0
  %3816 = vmatpush1.msra.mxu0 0.0
  %3817 = vmatprep.subr.mxu0 0.0
  %3818 = vmatpush1.msra.mxu0 0.0
  %3819 = vmatprep.mubr.f32.mxu0 0.0
  %v3820 = vand.u32 %v3582, 4294901760
  %3821 = vmatmul.mubr.f32.gmra.mrb[0].mxu0 %v3820
  %v3822 = vpop.f32.mrb[0].mxu0
  %v3823 = vadd.f32 %v3672, %v3822
  %v3824 = vpop.f32.mrb[0].mxu0
  %3825 = vdwg.mxu0
  %3826 = vmatprep.subr.mxu0 0.0
  %v3827 = vand.u32 %v1004, 4294901760
  %v3828 = vsub.f32 %v1004, %v3827
  %3829 = vmatpush1.msra.mxu0 %v3828
  %3830 = vmatprep.subr.mxu0 0.0
  %v3831 = vand.u32 %v1005, 4294901760
  %v3832 = vsub.f32 %v1005, %v3831
  %3833 = vmatpush1.msra.mxu0 %v3832
  %3834 = vmatprep.subr.mxu0 0.0
  %v3835 = vand.u32 %v1006, 4294901760
  %v3836 = vsub.f32 %v1006, %v3835
  %3837 = vmatpush1.msra.mxu0 %v3836
  %3838 = vmatprep.subr.mxu0 0.0
  %v3839 = vand.u32 %v1007, 4294901760
  %v3840 = vsub.f32 %v1007, %v3839
  %3841 = vmatpush1.msra.mxu0 %v3840
  %3842 = vmatprep.subr.mxu0 0.0
  %v3843 = vand.u32 %v1008, 4294901760
  %v3844 = vsub.f32 %v1008, %v3843
  %3845 = vmatpush1.msra.mxu0 %v3844
  %3846 = vmatprep.subr.mxu0 0.0
  %v3847 = vand.u32 %v1009, 4294901760
  %v3848 = vsub.f32 %v1009, %v3847
  %3849 = vmatpush1.msra.mxu0 %v3848
  %3850 = vmatprep.subr.mxu0 0.0
  %v3851 = vand.u32 %v1010, 4294901760
  %v3852 = vsub.f32 %v1010, %v3851
  %3853 = vmatpush1.msra.mxu0 %v3852
  %3854 = vmatprep.subr.mxu0 0.0
  %v3855 = vand.u32 %v1011, 4294901760
  %v3856 = vsub.f32 %v1011, %v3855
  %3857 = vmatpush1.msra.mxu0 %v3856
  %3858 = vmatprep.subr.mxu0 0.0
  %v3859 = vand.u32 %v1012, 4294901760
  %v3860 = vsub.f32 %v1012, %v3859
  %3861 = vmatpush1.msra.mxu0 %v3860
  %3862 = vmatprep.subr.mxu0 0.0
  %v3863 = vand.u32 %v1013, 4294901760
  %v3864 = vsub.f32 %v1013, %v3863
  %3865 = vmatpush1.msra.mxu0 %v3864
  %3866 = vmatprep.subr.mxu0 0.0
  %v3867 = vand.u32 %v1014, 4294901760
  %v3868 = vsub.f32 %v1014, %v3867
  %3869 = vmatpush1.msra.mxu0 %v3868
  %3870 = vmatprep.subr.mxu0 0.0
  %v3871 = vand.u32 %v1015, 4294901760
  %v3872 = vsub.f32 %v1015, %v3871
  %3873 = vmatpush1.msra.mxu0 %v3872
  %3874 = vmatprep.subr.mxu0 0.0
  %v3875 = vand.u32 %v1016, 4294901760
  %v3876 = vsub.f32 %v1016, %v3875
  %3877 = vmatpush1.msra.mxu0 %v3876
  %3878 = vmatprep.subr.mxu0 0.0
  %v3879 = vand.u32 %v1017, 4294901760
  %v3880 = vsub.f32 %v1017, %v3879
  %3881 = vmatpush1.msra.mxu0 %v3880
  %3882 = vmatprep.subr.mxu0 0.0
  %v3883 = vand.u32 %v1018, 4294901760
  %v3884 = vsub.f32 %v1018, %v3883
  %3885 = vmatpush1.msra.mxu0 %v3884
  %3886 = vmatprep.subr.mxu0 0.0
  %v3887 = vand.u32 %v1019, 4294901760
  %v3888 = vsub.f32 %v1019, %v3887
  %3889 = vmatpush1.msra.mxu0 %v3888
  %3890 = vmatprep.subr.mxu0 0.0
  %3891 = vmatpush1.msra.mxu0 0.0
  %3892 = vmatprep.subr.mxu0 0.0
  %3893 = vmatpush1.msra.mxu0 0.0
  %3894 = vmatprep.subr.mxu0 0.0
  %3895 = vmatpush1.msra.mxu0 0.0
  %3896 = vmatprep.subr.mxu0 0.0
  %3897 = vmatpush1.msra.mxu0 0.0
  %3898 = vmatprep.subr.mxu0 0.0
  %3899 = vmatpush1.msra.mxu0 0.0
  %3900 = vmatprep.subr.mxu0 0.0
  %3901 = vmatpush1.msra.mxu0 0.0
  %3902 = vmatprep.subr.mxu0 0.0
  %3903 = vmatpush1.msra.mxu0 0.0
  %3904 = vmatprep.subr.mxu0 0.0
  %3905 = vmatpush1.msra.mxu0 0.0
  %3906 = vmatprep.subr.mxu0 0.0
  %3907 = vmatpush1.msra.mxu0 0.0
  %3908 = vmatprep.subr.mxu0 0.0
  %3909 = vmatpush1.msra.mxu0 0.0
  %3910 = vmatprep.subr.mxu0 0.0
  %3911 = vmatpush1.msra.mxu0 0.0
  %3912 = vmatprep.subr.mxu0 0.0
  %3913 = vmatpush1.msra.mxu0 0.0
  %3914 = vmatprep.subr.mxu0 0.0
  %3915 = vmatpush1.msra.mxu0 0.0
  %3916 = vmatprep.subr.mxu0 0.0
  %3917 = vmatpush1.msra.mxu0 0.0
  %3918 = vmatprep.subr.mxu0 0.0
  %3919 = vmatpush1.msra.mxu0 0.0
  %3920 = vmatprep.subr.mxu0 0.0
  %3921 = vmatpush1.msra.mxu0 0.0
  %3922 = vmatprep.mubr.f32.mxu0 0.0
  %v3923 = vand.u32 %v3582, 4294901760
  %v3924 = vsub.f32 %v3582, %v3923
  %3925 = vmatmul.mubr.f32.gmra.mrb[0].mxu0 %v3924
  %v3926 = vpop.f32.mrb[0].mxu0
  %v3927 = vadd.f32 %v3823, %v3926
  %v3928 = vpop.f32.mrb[0].mxu0
  %3929 = vdwg.mxu0
  %3930 = vmatprep.subr.mxu0 0.0
  %v3931 = vand.u32 %v1004, 4294901760
  %3932 = vmatpush1.msra.mxu0 %v3931
  %3933 = vmatprep.subr.mxu0 0.0
  %v3934 = vand.u32 %v1005, 4294901760
  %3935 = vmatpush1.msra.mxu0 %v3934
  %3936 = vmatprep.subr.mxu0 0.0
  %v3937 = vand.u32 %v1006, 4294901760
  %3938 = vmatpush1.msra.mxu0 %v3937
  %3939 = vmatprep.subr.mxu0 0.0
  %v3940 = vand.u32 %v1007, 4294901760
  %3941 = vmatpush1.msra.mxu0 %v3940
  %3942 = vmatprep.subr.mxu0 0.0
  %v3943 = vand.u32 %v1008, 4294901760
  %3944 = vmatpush1.msra.mxu0 %v3943
  %3945 = vmatprep.subr.mxu0 0.0
  %v3946 = vand.u32 %v1009, 4294901760
  %3947 = vmatpush1.msra.mxu0 %v3946
  %3948 = vmatprep.subr.mxu0 0.0
  %v3949 = vand.u32 %v1010, 4294901760
  %3950 = vmatpush1.msra.mxu0 %v3949
  %3951 = vmatprep.subr.mxu0 0.0
  %v3952 = vand.u32 %v1011, 4294901760
  %3953 = vmatpush1.msra.mxu0 %v3952
  %3954 = vmatprep.subr.mxu0 0.0
  %v3955 = vand.u32 %v1012, 4294901760
  %3956 = vmatpush1.msra.mxu0 %v3955
  %3957 = vmatprep.subr.mxu0 0.0
  %v3958 = vand.u32 %v1013, 4294901760
  %3959 = vmatpush1.msra.mxu0 %v3958
  %3960 = vmatprep.subr.mxu0 0.0
  %v3961 = vand.u32 %v1014, 4294901760
  %3962 = vmatpush1.msra.mxu0 %v3961
  %3963 = vmatprep.subr.mxu0 0.0
  %v3964 = vand.u32 %v1015, 4294901760
  %3965 = vmatpush1.msra.mxu0 %v3964
  %3966 = vmatprep.subr.mxu0 0.0
  %v3967 = vand.u32 %v1016, 4294901760
  %3968 = vmatpush1.msra.mxu0 %v3967
  %3969 = vmatprep.subr.mxu0 0.0
  %v3970 = vand.u32 %v1017, 4294901760
  %3971 = vmatpush1.msra.mxu0 %v3970
  %3972 = vmatprep.subr.mxu0 0.0
  %v3973 = vand.u32 %v1018, 4294901760
  %3974 = vmatpush1.msra.mxu0 %v3973
  %3975 = vmatprep.subr.mxu0 0.0
  %v3976 = vand.u32 %v1019, 4294901760
  %3977 = vmatpush1.msra.mxu0 %v3976
  %3978 = vmatprep.subr.mxu0 0.0
  %3979 = vmatpush1.msra.mxu0 0.0
  %3980 = vmatprep.subr.mxu0 0.0
  %3981 = vmatpush1.msra.mxu0 0.0
  %3982 = vmatprep.subr.mxu0 0.0
  %3983 = vmatpush1.msra.mxu0 0.0
  %3984 = vmatprep.subr.mxu0 0.0
  %3985 = vmatpush1.msra.mxu0 0.0
  %3986 = vmatprep.subr.mxu0 0.0
  %3987 = vmatpush1.msra.mxu0 0.0
  %3988 = vmatprep.subr.mxu0 0.0
  %3989 = vmatpush1.msra.mxu0 0.0
  %3990 = vmatprep.subr.mxu0 0.0
  %3991 = vmatpush1.msra.mxu0 0.0
  %3992 = vmatprep.subr.mxu0 0.0
  %3993 = vmatpush1.msra.mxu0 0.0
  %3994 = vmatprep.subr.mxu0 0.0
  %3995 = vmatpush1.msra.mxu0 0.0
  %3996 = vmatprep.subr.mxu0 0.0
  %3997 = vmatpush1.msra.mxu0 0.0
  %3998 = vmatprep.subr.mxu0 0.0
  %3999 = vmatpush1.msra.mxu0 0.0
  %4000 = vmatprep.subr.mxu0 0.0
  %4001 = vmatpush1.msra.mxu0 0.0
  %4002 = vmatprep.subr.mxu0 0.0
  %4003 = vmatpush1.msra.mxu0 0.0
  %4004 = vmatprep.subr.mxu0 0.0
  %4005 = vmatpush1.msra.mxu0 0.0
  %4006 = vmatprep.subr.mxu0 0.0
  %4007 = vmatpush1.msra.mxu0 0.0
  %4008 = vmatprep.subr.mxu0 0.0
  %4009 = vmatpush1.msra.mxu0 0.0
  %4010 = vmatprep.mubr.f32.mxu0 0.0
  %v4011 = vand.u32 %v3582, 4294901760
  %v4012 = vsub.f32 %v3582, %v4011
  %v4013 = vand.u32 %v4012, 4294901760
  %4014 = vmatmul.mubr.f32.gmra.mrb[0].mxu0 %v4013
  %v4015 = vpop.f32.mrb[0].mxu0
  %v4016 = vadd.f32 %v3927, %v4015
  %v4017 = vpop.f32.mrb[0].mxu0
  %4018 = vdwg.mxu0
  %4019 = vmatprep.subr.mxu0 0.0
  %v4020 = vand.u32 %v1004, 4294901760
  %v4021 = vsub.f32 %v1004, %v4020
  %v4022 = vand.u32 %v4021, 4294901760
  %4023 = vmatpush1.msra.mxu0 %v4022
  %4024 = vmatprep.subr.mxu0 0.0
  %v4025 = vand.u32 %v1005, 4294901760
  %v4026 = vsub.f32 %v1005, %v4025
  %v4027 = vand.u32 %v4026, 4294901760
  %4028 = vmatpush1.msra.mxu0 %v4027
  %4029 = vmatprep.subr.mxu0 0.0
  %v4030 = vand.u32 %v1006, 4294901760
  %v4031 = vsub.f32 %v1006, %v4030
  %v4032 = vand.u32 %v4031, 4294901760
  %4033 = vmatpush1.msra.mxu0 %v4032
  %4034 = vmatprep.subr.mxu0 0.0
  %v4035 = vand.u32 %v1007, 4294901760
  %v4036 = vsub.f32 %v1007, %v4035
  %v4037 = vand.u32 %v4036, 4294901760
  %4038 = vmatpush1.msra.mxu0 %v4037
  %4039 = vmatprep.subr.mxu0 0.0
  %v4040 = vand.u32 %v1008, 4294901760
  %v4041 = vsub.f32 %v1008, %v4040
  %v4042 = vand.u32 %v4041, 4294901760
  %4043 = vmatpush1.msra.mxu0 %v4042
  %4044 = vmatprep.subr.mxu0 0.0
  %v4045 = vand.u32 %v1009, 4294901760
  %v4046 = vsub.f32 %v1009, %v4045
  %v4047 = vand.u32 %v4046, 4294901760
  %4048 = vmatpush1.msra.mxu0 %v4047
  %4049 = vmatprep.subr.mxu0 0.0
  %v4050 = vand.u32 %v1010, 4294901760
  %v4051 = vsub.f32 %v1010, %v4050
  %v4052 = vand.u32 %v4051, 4294901760
  %4053 = vmatpush1.msra.mxu0 %v4052
  %4054 = vmatprep.subr.mxu0 0.0
  %v4055 = vand.u32 %v1011, 4294901760
  %v4056 = vsub.f32 %v1011, %v4055
  %v4057 = vand.u32 %v4056, 4294901760
  %4058 = vmatpush1.msra.mxu0 %v4057
  %4059 = vmatprep.subr.mxu0 0.0
  %v4060 = vand.u32 %v1012, 4294901760
  %v4061 = vsub.f32 %v1012, %v4060
  %v4062 = vand.u32 %v4061, 4294901760
  %4063 = vmatpush1.msra.mxu0 %v4062
  %4064 = vmatprep.subr.mxu0 0.0
  %v4065 = vand.u32 %v1013, 4294901760
  %v4066 = vsub.f32 %v1013, %v4065
  %v4067 = vand.u32 %v4066, 4294901760
  %4068 = vmatpush1.msra.mxu0 %v4067
  %4069 = vmatprep.subr.mxu0 0.0
  %v4070 = vand.u32 %v1014, 4294901760
  %v4071 = vsub.f32 %v1014, %v4070
  %v4072 = vand.u32 %v4071, 4294901760
  %4073 = vmatpush1.msra.mxu0 %v4072
  %4074 = vmatprep.subr.mxu0 0.0
  %v4075 = vand.u32 %v1015, 4294901760
  %v4076 = vsub.f32 %v1015, %v4075
  %v4077 = vand.u32 %v4076, 4294901760
  %4078 = vmatpush1.msra.mxu0 %v4077
  %4079 = vmatprep.subr.mxu0 0.0
  %v4080 = vand.u32 %v1016, 4294901760
  %v4081 = vsub.f32 %v1016, %v4080
  %v4082 = vand.u32 %v4081, 4294901760
  %4083 = vmatpush1.msra.mxu0 %v4082
  %4084 = vmatprep.subr.mxu0 0.0
  %v4085 = vand.u32 %v1017, 4294901760
  %v4086 = vsub.f32 %v1017, %v4085
  %v4087 = vand.u32 %v4086, 4294901760
  %4088 = vmatpush1.msra.mxu0 %v4087
  %4089 = vmatprep.subr.mxu0 0.0
  %v4090 = vand.u32 %v1018, 4294901760
  %v4091 = vsub.f32 %v1018, %v4090
  %v4092 = vand.u32 %v4091, 4294901760
  %4093 = vmatpush1.msra.mxu0 %v4092
  %4094 = vmatprep.subr.mxu0 0.0
  %v4095 = vand.u32 %v1019, 4294901760
  %v4096 = vsub.f32 %v1019, %v4095
  %v4097 = vand.u32 %v4096, 4294901760
  %4098 = vmatpush1.msra.mxu0 %v4097
  %4099 = vmatprep.subr.mxu0 0.0
  %4100 = vmatpush1.msra.mxu0 0.0
  %4101 = vmatprep.subr.mxu0 0.0
  %4102 = vmatpush1.msra.mxu0 0.0
  %4103 = vmatprep.subr.mxu0 0.0
  %4104 = vmatpush1.msra.mxu0 0.0
  %4105 = vmatprep.subr.mxu0 0.0
  %4106 = vmatpush1.msra.mxu0 0.0
  %4107 = vmatprep.subr.mxu0 0.0
  %4108 = vmatpush1.msra.mxu0 0.0
  %4109 = vmatprep.subr.mxu0 0.0
  %4110 = vmatpush1.msra.mxu0 0.0
  %4111 = vmatprep.subr.mxu0 0.0
  %4112 = vmatpush1.msra.mxu0 0.0
  %4113 = vmatprep.subr.mxu0 0.0
  %4114 = vmatpush1.msra.mxu0 0.0
  %4115 = vmatprep.subr.mxu0 0.0
  %4116 = vmatpush1.msra.mxu0 0.0
  %4117 = vmatprep.subr.mxu0 0.0
  %4118 = vmatpush1.msra.mxu0 0.0
  %4119 = vmatprep.subr.mxu0 0.0
  %4120 = vmatpush1.msra.mxu0 0.0
  %4121 = vmatprep.subr.mxu0 0.0
  %4122 = vmatpush1.msra.mxu0 0.0
  %4123 = vmatprep.subr.mxu0 0.0
  %4124 = vmatpush1.msra.mxu0 0.0
  %4125 = vmatprep.subr.mxu0 0.0
  %4126 = vmatpush1.msra.mxu0 0.0
  %4127 = vmatprep.subr.mxu0 0.0
  %4128 = vmatpush1.msra.mxu0 0.0
  %4129 = vmatprep.subr.mxu0 0.0
  %4130 = vmatpush1.msra.mxu0 0.0
  %4131 = vmatprep.mubr.f32.mxu0 0.0
  %v4132 = vand.u32 %v3582, 4294901760
  %4133 = vmatmul.mubr.f32.gmra.mrb[0].mxu0 %v4132
  %v4134 = vpop.f32.mrb[0].mxu0
  %v4135 = vadd.f32 %v4016, %v4134
  %v4136 = vpop.f32.mrb[0].mxu0
  %4137 = vdwg.mxu0
  %4138 = vmatprep.subr.mxu0 0.0
  %v4139 = vand.u32 %v1004, 4294901760
  %4140 = vmatpush1.msra.mxu0 %v4139
  %4141 = vmatprep.subr.mxu0 0.0
  %v4142 = vand.u32 %v1005, 4294901760
  %4143 = vmatpush1.msra.mxu0 %v4142
  %4144 = vmatprep.subr.mxu0 0.0
  %v4145 = vand.u32 %v1006, 4294901760
  %4146 = vmatpush1.msra.mxu0 %v4145
  %4147 = vmatprep.subr.mxu0 0.0
  %v4148 = vand.u32 %v1007, 4294901760
  %4149 = vmatpush1.msra.mxu0 %v4148
  %4150 = vmatprep.subr.mxu0 0.0
  %v4151 = vand.u32 %v1008, 4294901760
  %4152 = vmatpush1.msra.mxu0 %v4151
  %4153 = vmatprep.subr.mxu0 0.0
  %v4154 = vand.u32 %v1009, 4294901760
  %4155 = vmatpush1.msra.mxu0 %v4154
  %4156 = vmatprep.subr.mxu0 0.0
  %v4157 = vand.u32 %v1010, 4294901760
  %4158 = vmatpush1.msra.mxu0 %v4157
  %4159 = vmatprep.subr.mxu0 0.0
  %v4160 = vand.u32 %v1011, 4294901760
  %4161 = vmatpush1.msra.mxu0 %v4160
  %4162 = vmatprep.subr.mxu0 0.0
  %v4163 = vand.u32 %v1012, 4294901760
  %4164 = vmatpush1.msra.mxu0 %v4163
  %4165 = vmatprep.subr.mxu0 0.0
  %v4166 = vand.u32 %v1013, 4294901760
  %4167 = vmatpush1.msra.mxu0 %v4166
  %4168 = vmatprep.subr.mxu0 0.0
  %v4169 = vand.u32 %v1014, 4294901760
  %4170 = vmatpush1.msra.mxu0 %v4169
  %4171 = vmatprep.subr.mxu0 0.0
  %v4172 = vand.u32 %v1015, 4294901760
  %4173 = vmatpush1.msra.mxu0 %v4172
  %4174 = vmatprep.subr.mxu0 0.0
  %v4175 = vand.u32 %v1016, 4294901760
  %4176 = vmatpush1.msra.mxu0 %v4175
  %4177 = vmatprep.subr.mxu0 0.0
  %v4178 = vand.u32 %v1017, 4294901760
  %4179 = vmatpush1.msra.mxu0 %v4178
  %4180 = vmatprep.subr.mxu0 0.0
  %v4181 = vand.u32 %v1018, 4294901760
  %4182 = vmatpush1.msra.mxu0 %v4181
  %4183 = vmatprep.subr.mxu0 0.0
  %v4184 = vand.u32 %v1019, 4294901760
  %4185 = vmatpush1.msra.mxu0 %v4184
  %4186 = vmatprep.subr.mxu0 0.0
  %4187 = vmatpush1.msra.mxu0 0.0
  %4188 = vmatprep.subr.mxu0 0.0
  %4189 = vmatpush1.msra.mxu0 0.0
  %4190 = vmatprep.subr.mxu0 0.0
  %4191 = vmatpush1.msra.mxu0 0.0
  %4192 = vmatprep.subr.mxu0 0.0
  %4193 = vmatpush1.msra.mxu0 0.0
  %4194 = vmatprep.subr.mxu0 0.0
  %4195 = vmatpush1.msra.mxu0 0.0
  %4196 = vmatprep.subr.mxu0 0.0
  %4197 = vmatpush1.msra.mxu0 0.0
  %4198 = vmatprep.subr.mxu0 0.0
  %4199 = vmatpush1.msra.mxu0 0.0
  %4200 = vmatprep.subr.mxu0 0.0
  %4201 = vmatpush1.msra.mxu0 0.0
  %4202 = vmatprep.subr.mxu0 0.0
  %4203 = vmatpush1.msra.mxu0 0.0
  %4204 = vmatprep.subr.mxu0 0.0
  %4205 = vmatpush1.msra.mxu0 0.0
  %4206 = vmatprep.subr.mxu0 0.0
  %4207 = vmatpush1.msra.mxu0 0.0
  %4208 = vmatprep.subr.mxu0 0.0
  %4209 = vmatpush1.msra.mxu0 0.0
  %4210 = vmatprep.subr.mxu0 0.0
  %4211 = vmatpush1.msra.mxu0 0.0
  %4212 = vmatprep.subr.mxu0 0.0
  %4213 = vmatpush1.msra.mxu0 0.0
  %4214 = vmatprep.subr.mxu0 0.0
  %4215 = vmatpush1.msra.mxu0 0.0
  %4216 = vmatprep.subr.mxu0 0.0
  %4217 = vmatpush1.msra.mxu0 0.0
  %4218 = vmatprep.mubr.f32.mxu0 0.0
  %v4219 = vand.u32 %v3582, 4294901760
  %4220 = vmatmul.mubr.f32.gmra.mrb[0].mxu0 %v4219
  %v4221 = vpop.f32.mrb[0].mxu0
  %v4222 = vadd.f32 %v4135, %v4221
  %v4223 = vpop.f32.mrb[0].mxu0
  %4224 = vdwg.mxu0
  %v4225 = vadd.f32 %v3583, %v4222
  %v4226 = vtanh.pop %v4225
  %v4227 = vld [vmem:[#allocation2 + $0x28] sm:$0xff]
  %4228 = vmatprep.subr.mxu0 0.0
  %v4229 = vand.u32 %v1004, 4294901760
  %4230 = vmatpush1.msra.mxu0 %v4229
  %4231 = vmatprep.subr.mxu0 0.0
  %v4232 = vand.u32 %v1005, 4294901760
  %4233 = vmatpush1.msra.mxu0 %v4232
  %4234 = vmatprep.subr.mxu0 0.0
  %v4235 = vand.u32 %v1006, 4294901760
  %4236 = vmatpush1.msra.mxu0 %v4235
  %4237 = vmatprep.subr.mxu0 0.0
  %v4238 = vand.u32 %v1007, 4294901760
  %4239 = vmatpush1.msra.mxu0 %v4238
  %4240 = vmatprep.subr.mxu0 0.0
  %v4241 = vand.u32 %v1008, 4294901760
  %4242 = vmatpush1.msra.mxu0 %v4241
  %4243 = vmatprep.subr.mxu0 0.0
  %v4244 = vand.u32 %v1009, 4294901760
  %4245 = vmatpush1.msra.mxu0 %v4244
  %4246 = vmatprep.subr.mxu0 0.0
  %v4247 = vand.u32 %v1010, 4294901760
  %4248 = vmatpush1.msra.mxu0 %v4247
  %4249 = vmatprep.subr.mxu0 0.0
  %v4250 = vand.u32 %v1011, 4294901760
  %4251 = vmatpush1.msra.mxu0 %v4250
  %4252 = vmatprep.subr.mxu0 0.0
  %v4253 = vand.u32 %v1012, 4294901760
  %4254 = vmatpush1.msra.mxu0 %v4253
  %4255 = vmatprep.subr.mxu0 0.0
  %v4256 = vand.u32 %v1013, 4294901760
  %4257 = vmatpush1.msra.mxu0 %v4256
  %4258 = vmatprep.subr.mxu0 0.0
  %v4259 = vand.u32 %v1014, 4294901760
  %4260 = vmatpush1.msra.mxu0 %v4259
  %4261 = vmatprep.subr.mxu0 0.0
  %v4262 = vand.u32 %v1015, 4294901760
  %4263 = vmatpush1.msra.mxu0 %v4262
  %4264 = vmatprep.subr.mxu0 0.0
  %v4265 = vand.u32 %v1016, 4294901760
  %4266 = vmatpush1.msra.mxu0 %v4265
  %4267 = vmatprep.subr.mxu0 0.0
  %v4268 = vand.u32 %v1017, 4294901760
  %4269 = vmatpush1.msra.mxu0 %v4268
  %4270 = vmatprep.subr.mxu0 0.0
  %v4271 = vand.u32 %v1018, 4294901760
  %4272 = vmatpush1.msra.mxu0 %v4271
  %4273 = vmatprep.subr.mxu0 0.0
  %v4274 = vand.u32 %v1019, 4294901760
  %4275 = vmatpush1.msra.mxu0 %v4274
  %4276 = vmatprep.subr.mxu0 0.0
  %4277 = vmatpush1.msra.mxu0 0.0
  %4278 = vmatprep.subr.mxu0 0.0
  %4279 = vmatpush1.msra.mxu0 0.0
  %4280 = vmatprep.subr.mxu0 0.0
  %4281 = vmatpush1.msra.mxu0 0.0
  %4282 = vmatprep.subr.mxu0 0.0
  %4283 = vmatpush1.msra.mxu0 0.0
  %4284 = vmatprep.subr.mxu0 0.0
  %4285 = vmatpush1.msra.mxu0 0.0
  %4286 = vmatprep.subr.mxu0 0.0
  %4287 = vmatpush1.msra.mxu0 0.0
  %4288 = vmatprep.subr.mxu0 0.0
  %4289 = vmatpush1.msra.mxu0 0.0
  %4290 = vmatprep.subr.mxu0 0.0
  %4291 = vmatpush1.msra.mxu0 0.0
  %4292 = vmatprep.subr.mxu0 0.0
  %4293 = vmatpush1.msra.mxu0 0.0
  %4294 = vmatprep.subr.mxu0 0.0
  %4295 = vmatpush1.msra.mxu0 0.0
  %4296 = vmatprep.subr.mxu0 0.0
  %4297 = vmatpush1.msra.mxu0 0.0
  %4298 = vmatprep.subr.mxu0 0.0
  %4299 = vmatpush1.msra.mxu0 0.0
  %4300 = vmatprep.subr.mxu0 0.0
  %4301 = vmatpush1.msra.mxu0 0.0
  %4302 = vmatprep.subr.mxu0 0.0
  %4303 = vmatpush1.msra.mxu0 0.0
  %4304 = vmatprep.subr.mxu0 0.0
  %4305 = vmatpush1.msra.mxu0 0.0
  %4306 = vmatprep.subr.mxu0 0.0
  %4307 = vmatpush1.msra.mxu0 0.0
  %4308 = vmatprep.mubr.f32.mxu0 0.0
  %v4309 = vand.u32 %v4226, 4294901760
  %v4310 = vsub.f32 %v4226, %v4309
  %v4311 = vand.u32 %v4310, 4294901760
  %v4312 = vsub.f32 %v4310, %v4311
  %v4313 = vand.u32 %v4312, 4294901760
  %4314 = vmatmul.mubr.f32.gmra.mrb[0].mxu0 %v4313
  %v4315 = vpop.f32.mrb[0].mxu0
  %v4316 = vadd.f32 0.0, %v4315
  %v4317 = vpop.f32.mrb[0].mxu0
  %4318 = vdwg.mxu0
  %4319 = vmatprep.subr.mxu0 0.0
  %v4320 = vand.u32 %v1004, 4294901760
  %v4321 = vsub.f32 %v1004, %v4320
  %v4322 = vand.u32 %v4321, 4294901760
  %v4323 = vsub.f32 %v4321, %v4322
  %v4324 = vand.u32 %v4323, 4294901760
  %4325 = vmatpush1.msra.mxu0 %v4324
  %4326 = vmatprep.subr.mxu0 0.0
  %v4327 = vand.u32 %v1005, 4294901760
  %v4328 = vsub.f32 %v1005, %v4327
  %v4329 = vand.u32 %v4328, 4294901760
  %v4330 = vsub.f32 %v4328, %v4329
  %v4331 = vand.u32 %v4330, 4294901760
  %4332 = vmatpush1.msra.mxu0 %v4331
  %4333 = vmatprep.subr.mxu0 0.0
  %v4334 = vand.u32 %v1006, 4294901760
  %v4335 = vsub.f32 %v1006, %v4334
  %v4336 = vand.u32 %v4335, 4294901760
  %v4337 = vsub.f32 %v4335, %v4336
  %v4338 = vand.u32 %v4337, 4294901760
  %4339 = vmatpush1.msra.mxu0 %v4338
  %4340 = vmatprep.subr.mxu0 0.0
  %v4341 = vand.u32 %v1007, 4294901760
  %v4342 = vsub.f32 %v1007, %v4341
  %v4343 = vand.u32 %v4342, 4294901760
  %v4344 = vsub.f32 %v4342, %v4343
  %v4345 = vand.u32 %v4344, 4294901760
  %4346 = vmatpush1.msra.mxu0 %v4345
  %4347 = vmatprep.subr.mxu0 0.0
  %v4348 = vand.u32 %v1008, 4294901760
  %v4349 = vsub.f32 %v1008, %v4348
  %v4350 = vand.u32 %v4349, 4294901760
  %v4351 = vsub.f32 %v4349, %v4350
  %v4352 = vand.u32 %v4351, 4294901760
  %4353 = vmatpush1.msra.mxu0 %v4352
  %4354 = vmatprep.subr.mxu0 0.0
  %v4355 = vand.u32 %v1009, 4294901760
  %v4356 = vsub.f32 %v1009, %v4355
  %v4357 = vand.u32 %v4356, 4294901760
  %v4358 = vsub.f32 %v4356, %v4357
  %v4359 = vand.u32 %v4358, 4294901760
  %4360 = vmatpush1.msra.mxu0 %v4359
  %4361 = vmatprep.subr.mxu0 0.0
  %v4362 = vand.u32 %v1010, 4294901760
  %v4363 = vsub.f32 %v1010, %v4362
  %v4364 = vand.u32 %v4363, 4294901760
  %v4365 = vsub.f32 %v4363, %v4364
  %v4366 = vand.u32 %v4365, 4294901760
  %4367 = vmatpush1.msra.mxu0 %v4366
  %4368 = vmatprep.subr.mxu0 0.0
  %v4369 = vand.u32 %v1011, 4294901760
  %v4370 = vsub.f32 %v1011, %v4369
  %v4371 = vand.u32 %v4370, 4294901760
  %v4372 = vsub.f32 %v4370, %v4371
  %v4373 = vand.u32 %v4372, 4294901760
  %4374 = vmatpush1.msra.mxu0 %v4373
  %4375 = vmatprep.subr.mxu0 0.0
  %v4376 = vand.u32 %v1012, 4294901760
  %v4377 = vsub.f32 %v1012, %v4376
  %v4378 = vand.u32 %v4377, 4294901760
  %v4379 = vsub.f32 %v4377, %v4378
  %v4380 = vand.u32 %v4379, 4294901760
  %4381 = vmatpush1.msra.mxu0 %v4380
  %4382 = vmatprep.subr.mxu0 0.0
  %v4383 = vand.u32 %v1013, 4294901760
  %v4384 = vsub.f32 %v1013, %v4383
  %v4385 = vand.u32 %v4384, 4294901760
  %v4386 = vsub.f32 %v4384, %v4385
  %v4387 = vand.u32 %v4386, 4294901760
  %4388 = vmatpush1.msra.mxu0 %v4387
  %4389 = vmatprep.subr.mxu0 0.0
  %v4390 = vand.u32 %v1014, 4294901760
  %v4391 = vsub.f32 %v1014, %v4390
  %v4392 = vand.u32 %v4391, 4294901760
  %v4393 = vsub.f32 %v4391, %v4392
  %v4394 = vand.u32 %v4393, 4294901760
  %4395 = vmatpush1.msra.mxu0 %v4394
  %4396 = vmatprep.subr.mxu0 0.0
  %v4397 = vand.u32 %v1015, 4294901760
  %v4398 = vsub.f32 %v1015, %v4397
  %v4399 = vand.u32 %v4398, 4294901760
  %v4400 = vsub.f32 %v4398, %v4399
  %v4401 = vand.u32 %v4400, 4294901760
  %4402 = vmatpush1.msra.mxu0 %v4401
  %4403 = vmatprep.subr.mxu0 0.0
  %v4404 = vand.u32 %v1016, 4294901760
  %v4405 = vsub.f32 %v1016, %v4404
  %v4406 = vand.u32 %v4405, 4294901760
  %v4407 = vsub.f32 %v4405, %v4406
  %v4408 = vand.u32 %v4407, 4294901760
  %4409 = vmatpush1.msra.mxu0 %v4408
  %4410 = vmatprep.subr.mxu0 0.0
  %v4411 = vand.u32 %v1017, 4294901760
  %v4412 = vsub.f32 %v1017, %v4411
  %v4413 = vand.u32 %v4412, 4294901760
  %v4414 = vsub.f32 %v4412, %v4413
  %v4415 = vand.u32 %v4414, 4294901760
  %4416 = vmatpush1.msra.mxu0 %v4415
  %4417 = vmatprep.subr.mxu0 0.0
  %v4418 = vand.u32 %v1018, 4294901760
  %v4419 = vsub.f32 %v1018, %v4418
  %v4420 = vand.u32 %v4419, 4294901760
  %v4421 = vsub.f32 %v4419, %v4420
  %v4422 = vand.u32 %v4421, 4294901760
  %4423 = vmatpush1.msra.mxu0 %v4422
  %4424 = vmatprep.subr.mxu0 0.0
  %v4425 = vand.u32 %v1019, 4294901760
  %v4426 = vsub.f32 %v1019, %v4425
  %v4427 = vand.u32 %v4426, 4294901760
  %v4428 = vsub.f32 %v4426, %v4427
  %v4429 = vand.u32 %v4428, 4294901760
  %4430 = vmatpush1.msra.mxu0 %v4429
  %4431 = vmatprep.subr.mxu0 0.0
  %4432 = vmatpush1.msra.mxu0 0.0
  %4433 = vmatprep.subr.mxu0 0.0
  %4434 = vmatpush1.msra.mxu0 0.0
  %4435 = vmatprep.subr.mxu0 0.0
  %4436 = vmatpush1.msra.mxu0 0.0
  %4437 = vmatprep.subr.mxu0 0.0
  %4438 = vmatpush1.msra.mxu0 0.0
  %4439 = vmatprep.subr.mxu0 0.0
  %4440 = vmatpush1.msra.mxu0 0.0
  %4441 = vmatprep.subr.mxu0 0.0
  %4442 = vmatpush1.msra.mxu0 0.0
  %4443 = vmatprep.subr.mxu0 0.0
  %4444 = vmatpush1.msra.mxu0 0.0
  %4445 = vmatprep.subr.mxu0 0.0
  %4446 = vmatpush1.msra.mxu0 0.0
  %4447 = vmatprep.subr.mxu0 0.0
  %4448 = vmatpush1.msra.mxu0 0.0
  %4449 = vmatprep.subr.mxu0 0.0
  %4450 = vmatpush1.msra.mxu0 0.0
  %4451 = vmatprep.subr.mxu0 0.0
  %4452 = vmatpush1.msra.mxu0 0.0
  %4453 = vmatprep.subr.mxu0 0.0
  %4454 = vmatpush1.msra.mxu0 0.0
  %4455 = vmatprep.subr.mxu0 0.0
  %4456 = vmatpush1.msra.mxu0 0.0
  %4457 = vmatprep.subr.mxu0 0.0
  %4458 = vmatpush1.msra.mxu0 0.0
  %4459 = vmatprep.subr.mxu0 0.0
  %4460 = vmatpush1.msra.mxu0 0.0
  %4461 = vmatprep.subr.mxu0 0.0
  %4462 = vmatpush1.msra.mxu0 0.0
  %4463 = vmatprep.mubr.f32.mxu0 0.0
  %v4464 = vand.u32 %v4226, 4294901760
  %4465 = vmatmul.mubr.f32.gmra.mrb[0].mxu0 %v4464
  %v4466 = vpop.f32.mrb[0].mxu0
  %v4467 = vadd.f32 %v4316, %v4466
  %v4468 = vpop.f32.mrb[0].mxu0
  %4469 = vdwg.mxu0
  %4470 = vmatprep.subr.mxu0 0.0
  %v4471 = vand.u32 %v1004, 4294901760
  %v4472 = vsub.f32 %v1004, %v4471
  %4473 = vmatpush1.msra.mxu0 %v4472
  %4474 = vmatprep.subr.mxu0 0.0
  %v4475 = vand.u32 %v1005, 4294901760
  %v4476 = vsub.f32 %v1005, %v4475
  %4477 = vmatpush1.msra.mxu0 %v4476
  %4478 = vmatprep.subr.mxu0 0.0
  %v4479 = vand.u32 %v1006, 4294901760
  %v4480 = vsub.f32 %v1006, %v4479
  %4481 = vmatpush1.msra.mxu0 %v4480
  %4482 = vmatprep.subr.mxu0 0.0
  %v4483 = vand.u32 %v1007, 4294901760
  %v4484 = vsub.f32 %v1007, %v4483
  %4485 = vmatpush1.msra.mxu0 %v4484
  %4486 = vmatprep.subr.mxu0 0.0
  %v4487 = vand.u32 %v1008, 4294901760
  %v4488 = vsub.f32 %v1008, %v4487
  %4489 = vmatpush1.msra.mxu0 %v4488
  %4490 = vmatprep.subr.mxu0 0.0
  %v4491 = vand.u32 %v1009, 4294901760
  %v4492 = vsub.f32 %v1009, %v4491
  %4493 = vmatpush1.msra.mxu0 %v4492
  %4494 = vmatprep.subr.mxu0 0.0
  %v4495 = vand.u32 %v1010, 4294901760
  %v4496 = vsub.f32 %v1010, %v4495
  %4497 = vmatpush1.msra.mxu0 %v4496
  %4498 = vmatprep.subr.mxu0 0.0
  %v4499 = vand.u32 %v1011, 4294901760
  %v4500 = vsub.f32 %v1011, %v4499
  %4501 = vmatpush1.msra.mxu0 %v4500
  %4502 = vmatprep.subr.mxu0 0.0
  %v4503 = vand.u32 %v1012, 4294901760
  %v4504 = vsub.f32 %v1012, %v4503
  %4505 = vmatpush1.msra.mxu0 %v4504
  %4506 = vmatprep.subr.mxu0 0.0
  %v4507 = vand.u32 %v1013, 4294901760
  %v4508 = vsub.f32 %v1013, %v4507
  %4509 = vmatpush1.msra.mxu0 %v4508
  %4510 = vmatprep.subr.mxu0 0.0
  %v4511 = vand.u32 %v1014, 4294901760
  %v4512 = vsub.f32 %v1014, %v4511
  %4513 = vmatpush1.msra.mxu0 %v4512
  %4514 = vmatprep.subr.mxu0 0.0
  %v4515 = vand.u32 %v1015, 4294901760
  %v4516 = vsub.f32 %v1015, %v4515
  %4517 = vmatpush1.msra.mxu0 %v4516
  %4518 = vmatprep.subr.mxu0 0.0
  %v4519 = vand.u32 %v1016, 4294901760
  %v4520 = vsub.f32 %v1016, %v4519
  %4521 = vmatpush1.msra.mxu0 %v4520
  %4522 = vmatprep.subr.mxu0 0.0
  %v4523 = vand.u32 %v1017, 4294901760
  %v4524 = vsub.f32 %v1017, %v4523
  %4525 = vmatpush1.msra.mxu0 %v4524
  %4526 = vmatprep.subr.mxu0 0.0
  %v4527 = vand.u32 %v1018, 4294901760
  %v4528 = vsub.f32 %v1018, %v4527
  %4529 = vmatpush1.msra.mxu0 %v4528
  %4530 = vmatprep.subr.mxu0 0.0
  %v4531 = vand.u32 %v1019, 4294901760
  %v4532 = vsub.f32 %v1019, %v4531
  %4533 = vmatpush1.msra.mxu0 %v4532
  %4534 = vmatprep.subr.mxu0 0.0
  %4535 = vmatpush1.msra.mxu0 0.0
  %4536 = vmatprep.subr.mxu0 0.0
  %4537 = vmatpush1.msra.mxu0 0.0
  %4538 = vmatprep.subr.mxu0 0.0
  %4539 = vmatpush1.msra.mxu0 0.0
  %4540 = vmatprep.subr.mxu0 0.0
  %4541 = vmatpush1.msra.mxu0 0.0
  %4542 = vmatprep.subr.mxu0 0.0
  %4543 = vmatpush1.msra.mxu0 0.0
  %4544 = vmatprep.subr.mxu0 0.0
  %4545 = vmatpush1.msra.mxu0 0.0
  %4546 = vmatprep.subr.mxu0 0.0
  %4547 = vmatpush1.msra.mxu0 0.0
  %4548 = vmatprep.subr.mxu0 0.0
  %4549 = vmatpush1.msra.mxu0 0.0
  %4550 = vmatprep.subr.mxu0 0.0
  %4551 = vmatpush1.msra.mxu0 0.0
  %4552 = vmatprep.subr.mxu0 0.0
  %4553 = vmatpush1.msra.mxu0 0.0
  %4554 = vmatprep.subr.mxu0 0.0
  %4555 = vmatpush1.msra.mxu0 0.0
  %4556 = vmatprep.subr.mxu0 0.0
  %4557 = vmatpush1.msra.mxu0 0.0
  %4558 = vmatprep.subr.mxu0 0.0
  %4559 = vmatpush1.msra.mxu0 0.0
  %4560 = vmatprep.subr.mxu0 0.0
  %4561 = vmatpush1.msra.mxu0 0.0
  %4562 = vmatprep.subr.mxu0 0.0
  %4563 = vmatpush1.msra.mxu0 0.0
  %4564 = vmatprep.subr.mxu0 0.0
  %4565 = vmatpush1.msra.mxu0 0.0
  %4566 = vmatprep.mubr.f32.mxu0 0.0
  %v4567 = vand.u32 %v4226, 4294901760
  %v4568 = vsub.f32 %v4226, %v4567
  %4569 = vmatmul.mubr.f32.gmra.mrb[0].mxu0 %v4568
  %v4570 = vpop.f32.mrb[0].mxu0
  %v4571 = vadd.f32 %v4467, %v4570
  %v4572 = vpop.f32.mrb[0].mxu0
  %4573 = vdwg.mxu0
  %4574 = vmatprep.subr.mxu0 0.0
  %v4575 = vand.u32 %v1004, 4294901760
  %4576 = vmatpush1.msra.mxu0 %v4575
  %4577 = vmatprep.subr.mxu0 0.0
  %v4578 = vand.u32 %v1005, 4294901760
  %4579 = vmatpush1.msra.mxu0 %v4578
  %4580 = vmatprep.subr.mxu0 0.0
  %v4581 = vand.u32 %v1006, 4294901760
  %4582 = vmatpush1.msra.mxu0 %v4581
  %4583 = vmatprep.subr.mxu0 0.0
  %v4584 = vand.u32 %v1007, 4294901760
  %4585 = vmatpush1.msra.mxu0 %v4584
  %4586 = vmatprep.subr.mxu0 0.0
  %v4587 = vand.u32 %v1008, 4294901760
  %4588 = vmatpush1.msra.mxu0 %v4587
  %4589 = vmatprep.subr.mxu0 0.0
  %v4590 = vand.u32 %v1009, 4294901760
  %4591 = vmatpush1.msra.mxu0 %v4590
  %4592 = vmatprep.subr.mxu0 0.0
  %v4593 = vand.u32 %v1010, 4294901760
  %4594 = vmatpush1.msra.mxu0 %v4593
  %4595 = vmatprep.subr.mxu0 0.0
  %v4596 = vand.u32 %v1011, 4294901760
  %4597 = vmatpush1.msra.mxu0 %v4596
  %4598 = vmatprep.subr.mxu0 0.0
  %v4599 = vand.u32 %v1012, 4294901760
  %4600 = vmatpush1.msra.mxu0 %v4599
  %4601 = vmatprep.subr.mxu0 0.0
  %v4602 = vand.u32 %v1013, 4294901760
  %4603 = vmatpush1.msra.mxu0 %v4602
  %4604 = vmatprep.subr.mxu0 0.0
  %v4605 = vand.u32 %v1014, 4294901760
  %4606 = vmatpush1.msra.mxu0 %v4605
  %4607 = vmatprep.subr.mxu0 0.0
  %v4608 = vand.u32 %v1015, 4294901760
  %4609 = vmatpush1.msra.mxu0 %v4608
  %4610 = vmatprep.subr.mxu0 0.0
  %v4611 = vand.u32 %v1016, 4294901760
  %4612 = vmatpush1.msra.mxu0 %v4611
  %4613 = vmatprep.subr.mxu0 0.0
  %v4614 = vand.u32 %v1017, 4294901760
  %4615 = vmatpush1.msra.mxu0 %v4614
  %4616 = vmatprep.subr.mxu0 0.0
  %v4617 = vand.u32 %v1018, 4294901760
  %4618 = vmatpush1.msra.mxu0 %v4617
  %4619 = vmatprep.subr.mxu0 0.0
  %v4620 = vand.u32 %v1019, 4294901760
  %4621 = vmatpush1.msra.mxu0 %v4620
  %4622 = vmatprep.subr.mxu0 0.0
  %4623 = vmatpush1.msra.mxu0 0.0
  %4624 = vmatprep.subr.mxu0 0.0
  %4625 = vmatpush1.msra.mxu0 0.0
  %4626 = vmatprep.subr.mxu0 0.0
  %4627 = vmatpush1.msra.mxu0 0.0
  %4628 = vmatprep.subr.mxu0 0.0
  %4629 = vmatpush1.msra.mxu0 0.0
  %4630 = vmatprep.subr.mxu0 0.0
  %4631 = vmatpush1.msra.mxu0 0.0
  %4632 = vmatprep.subr.mxu0 0.0
  %4633 = vmatpush1.msra.mxu0 0.0
  %4634 = vmatprep.subr.mxu0 0.0
  %4635 = vmatpush1.msra.mxu0 0.0
  %4636 = vmatprep.subr.mxu0 0.0
  %4637 = vmatpush1.msra.mxu0 0.0
  %4638 = vmatprep.subr.mxu0 0.0
  %4639 = vmatpush1.msra.mxu0 0.0
  %4640 = vmatprep.subr.mxu0 0.0
  %4641 = vmatpush1.msra.mxu0 0.0
  %4642 = vmatprep.subr.mxu0 0.0
  %4643 = vmatpush1.msra.mxu0 0.0
  %4644 = vmatprep.subr.mxu0 0.0
  %4645 = vmatpush1.msra.mxu0 0.0
  %4646 = vmatprep.subr.mxu0 0.0
  %4647 = vmatpush1.msra.mxu0 0.0
  %4648 = vmatprep.subr.mxu0 0.0
  %4649 = vmatpush1.msra.mxu0 0.0
  %4650 = vmatprep.subr.mxu0 0.0
  %4651 = vmatpush1.msra.mxu0 0.0
  %4652 = vmatprep.subr.mxu0 0.0
  %4653 = vmatpush1.msra.mxu0 0.0
  %4654 = vmatprep.mubr.f32.mxu0 0.0
  %v4655 = vand.u32 %v4226, 4294901760
  %v4656 = vsub.f32 %v4226, %v4655
  %v4657 = vand.u32 %v4656, 4294901760
  %4658 = vmatmul.mubr.f32.gmra.mrb[0].mxu0 %v4657
  %v4659 = vpop.f32.mrb[0].mxu0
  %v4660 = vadd.f32 %v4571, %v4659
  %v4661 = vpop.f32.mrb[0].mxu0
  %4662 = vdwg.mxu0
  %4663 = vmatprep.subr.mxu0 0.0
  %v4664 = vand.u32 %v1004, 4294901760
  %v4665 = vsub.f32 %v1004, %v4664
  %v4666 = vand.u32 %v4665, 4294901760
  %4667 = vmatpush1.msra.mxu0 %v4666
  %4668 = vmatprep.subr.mxu0 0.0
  %v4669 = vand.u32 %v1005, 4294901760
  %v4670 = vsub.f32 %v1005, %v4669
  %v4671 = vand.u32 %v4670, 4294901760
  %4672 = vmatpush1.msra.mxu0 %v4671
  %4673 = vmatprep.subr.mxu0 0.0
  %v4674 = vand.u32 %v1006, 4294901760
  %v4675 = vsub.f32 %v1006, %v4674
  %v4676 = vand.u32 %v4675, 4294901760
  %4677 = vmatpush1.msra.mxu0 %v4676
  %4678 = vmatprep.subr.mxu0 0.0
  %v4679 = vand.u32 %v1007, 4294901760
  %v4680 = vsub.f32 %v1007, %v4679
  %v4681 = vand.u32 %v4680, 4294901760
  %4682 = vmatpush1.msra.mxu0 %v4681
  %4683 = vmatprep.subr.mxu0 0.0
  %v4684 = vand.u32 %v1008, 4294901760
  %v4685 = vsub.f32 %v1008, %v4684
  %v4686 = vand.u32 %v4685, 4294901760
  %4687 = vmatpush1.msra.mxu0 %v4686
  %4688 = vmatprep.subr.mxu0 0.0
  %v4689 = vand.u32 %v1009, 4294901760
  %v4690 = vsub.f32 %v1009, %v4689
  %v4691 = vand.u32 %v4690, 4294901760
  %4692 = vmatpush1.msra.mxu0 %v4691
  %4693 = vmatprep.subr.mxu0 0.0
  %v4694 = vand.u32 %v1010, 4294901760
  %v4695 = vsub.f32 %v1010, %v4694
  %v4696 = vand.u32 %v4695, 4294901760
  %4697 = vmatpush1.msra.mxu0 %v4696
  %4698 = vmatprep.subr.mxu0 0.0
  %v4699 = vand.u32 %v1011, 4294901760
  %v4700 = vsub.f32 %v1011, %v4699
  %v4701 = vand.u32 %v4700, 4294901760
  %4702 = vmatpush1.msra.mxu0 %v4701
  %4703 = vmatprep.subr.mxu0 0.0
  %v4704 = vand.u32 %v1012, 4294901760
  %v4705 = vsub.f32 %v1012, %v4704
  %v4706 = vand.u32 %v4705, 4294901760
  %4707 = vmatpush1.msra.mxu0 %v4706
  %4708 = vmatprep.subr.mxu0 0.0
  %v4709 = vand.u32 %v1013, 4294901760
  %v4710 = vsub.f32 %v1013, %v4709
  %v4711 = vand.u32 %v4710, 4294901760
  %4712 = vmatpush1.msra.mxu0 %v4711
  %4713 = vmatprep.subr.mxu0 0.0
  %v4714 = vand.u32 %v1014, 4294901760
  %v4715 = vsub.f32 %v1014, %v4714
  %v4716 = vand.u32 %v4715, 4294901760
  %4717 = vmatpush1.msra.mxu0 %v4716
  %4718 = vmatprep.subr.mxu0 0.0
  %v4719 = vand.u32 %v1015, 4294901760
  %v4720 = vsub.f32 %v1015, %v4719
  %v4721 = vand.u32 %v4720, 4294901760
  %4722 = vmatpush1.msra.mxu0 %v4721
  %4723 = vmatprep.subr.mxu0 0.0
  %v4724 = vand.u32 %v1016, 4294901760
  %v4725 = vsub.f32 %v1016, %v4724
  %v4726 = vand.u32 %v4725, 4294901760
  %4727 = vmatpush1.msra.mxu0 %v4726
  %4728 = vmatprep.subr.mxu0 0.0
  %v4729 = vand.u32 %v1017, 4294901760
  %v4730 = vsub.f32 %v1017, %v4729
  %v4731 = vand.u32 %v4730, 4294901760
  %4732 = vmatpush1.msra.mxu0 %v4731
  %4733 = vmatprep.subr.mxu0 0.0
  %v4734 = vand.u32 %v1018, 4294901760
  %v4735 = vsub.f32 %v1018, %v4734
  %v4736 = vand.u32 %v4735, 4294901760
  %4737 = vmatpush1.msra.mxu0 %v4736
  %4738 = vmatprep.subr.mxu0 0.0
  %v4739 = vand.u32 %v1019, 4294901760
  %v4740 = vsub.f32 %v1019, %v4739
  %v4741 = vand.u32 %v4740, 4294901760
  %4742 = vmatpush1.msra.mxu0 %v4741
  %4743 = vmatprep.subr.mxu0 0.0
  %4744 = vmatpush1.msra.mxu0 0.0
  %4745 = vmatprep.subr.mxu0 0.0
  %4746 = vmatpush1.msra.mxu0 0.0
  %4747 = vmatprep.subr.mxu0 0.0
  %4748 = vmatpush1.msra.mxu0 0.0
  %4749 = vmatprep.subr.mxu0 0.0
  %4750 = vmatpush1.msra.mxu0 0.0
  %4751 = vmatprep.subr.mxu0 0.0
  %4752 = vmatpush1.msra.mxu0 0.0
  %4753 = vmatprep.subr.mxu0 0.0
  %4754 = vmatpush1.msra.mxu0 0.0
  %4755 = vmatprep.subr.mxu0 0.0
  %4756 = vmatpush1.msra.mxu0 0.0
  %4757 = vmatprep.subr.mxu0 0.0
  %4758 = vmatpush1.msra.mxu0 0.0
  %4759 = vmatprep.subr.mxu0 0.0
  %4760 = vmatpush1.msra.mxu0 0.0
  %4761 = vmatprep.subr.mxu0 0.0
  %4762 = vmatpush1.msra.mxu0 0.0
  %4763 = vmatprep.subr.mxu0 0.0
  %4764 = vmatpush1.msra.mxu0 0.0
  %4765 = vmatprep.subr.mxu0 0.0
  %4766 = vmatpush1.msra.mxu0 0.0
  %4767 = vmatprep.subr.mxu0 0.0
  %4768 = vmatpush1.msra.mxu0 0.0
  %4769 = vmatprep.subr.mxu0 0.0
  %4770 = vmatpush1.msra.mxu0 0.0
  %4771 = vmatprep.subr.mxu0 0.0
  %4772 = vmatpush1.msra.mxu0 0.0
  %4773 = vmatprep.subr.mxu0 0.0
  %4774 = vmatpush1.msra.mxu0 0.0
  %4775 = vmatprep.mubr.f32.mxu0 0.0
  %v4776 = vand.u32 %v4226, 4294901760
  %4777 = vmatmul.mubr.f32.gmra.mrb[0].mxu0 %v4776
  %v4778 = vpop.f32.mrb[0].mxu0
  %v4779 = vadd.f32 %v4660, %v4778
  %v4780 = vpop.f32.mrb[0].mxu0
  %4781 = vdwg.mxu0
  %4782 = vmatprep.subr.mxu0 0.0
  %v4783 = vand.u32 %v1004, 4294901760
  %4784 = vmatpush1.msra.mxu0 %v4783
  %4785 = vmatprep.subr.mxu0 0.0
  %v4786 = vand.u32 %v1005, 4294901760
  %4787 = vmatpush1.msra.mxu0 %v4786
  %4788 = vmatprep.subr.mxu0 0.0
  %v4789 = vand.u32 %v1006, 4294901760
  %4790 = vmatpush1.msra.mxu0 %v4789
  %4791 = vmatprep.subr.mxu0 0.0
  %v4792 = vand.u32 %v1007, 4294901760
  %4793 = vmatpush1.msra.mxu0 %v4792
  %4794 = vmatprep.subr.mxu0 0.0
  %v4795 = vand.u32 %v1008, 4294901760
  %4796 = vmatpush1.msra.mxu0 %v4795
  %4797 = vmatprep.subr.mxu0 0.0
  %v4798 = vand.u32 %v1009, 4294901760
  %4799 = vmatpush1.msra.mxu0 %v4798
  %4800 = vmatprep.subr.mxu0 0.0
  %v4801 = vand.u32 %v1010, 4294901760
  %4802 = vmatpush1.msra.mxu0 %v4801
  %4803 = vmatprep.subr.mxu0 0.0
  %v4804 = vand.u32 %v1011, 4294901760
  %4805 = vmatpush1.msra.mxu0 %v4804
  %4806 = vmatprep.subr.mxu0 0.0
  %v4807 = vand.u32 %v1012, 4294901760
  %4808 = vmatpush1.msra.mxu0 %v4807
  %4809 = vmatprep.subr.mxu0 0.0
  %v4810 = vand.u32 %v1013, 4294901760
  %4811 = vmatpush1.msra.mxu0 %v4810
  %4812 = vmatprep.subr.mxu0 0.0
  %v4813 = vand.u32 %v1014, 4294901760
  %4814 = vmatpush1.msra.mxu0 %v4813
  %4815 = vmatprep.subr.mxu0 0.0
  %v4816 = vand.u32 %v1015, 4294901760
  %4817 = vmatpush1.msra.mxu0 %v4816
  %4818 = vmatprep.subr.mxu0 0.0
  %v4819 = vand.u32 %v1016, 4294901760
  %4820 = vmatpush1.msra.mxu0 %v4819
  %4821 = vmatprep.subr.mxu0 0.0
  %v4822 = vand.u32 %v1017, 4294901760
  %4823 = vmatpush1.msra.mxu0 %v4822
  %4824 = vmatprep.subr.mxu0 0.0
  %v4825 = vand.u32 %v1018, 4294901760
  %4826 = vmatpush1.msra.mxu0 %v4825
  %4827 = vmatprep.subr.mxu0 0.0
  %v4828 = vand.u32 %v1019, 4294901760
  %4829 = vmatpush1.msra.mxu0 %v4828
  %4830 = vmatprep.subr.mxu0 0.0
  %4831 = vmatpush1.msra.mxu0 0.0
  %4832 = vmatprep.subr.mxu0 0.0
  %4833 = vmatpush1.msra.mxu0 0.0
  %4834 = vmatprep.subr.mxu0 0.0
  %4835 = vmatpush1.msra.mxu0 0.0
  %4836 = vmatprep.subr.mxu0 0.0
  %4837 = vmatpush1.msra.mxu0 0.0
  %4838 = vmatprep.subr.mxu0 0.0
  %4839 = vmatpush1.msra.mxu0 0.0
  %4840 = vmatprep.subr.mxu0 0.0
  %4841 = vmatpush1.msra.mxu0 0.0
  %4842 = vmatprep.subr.mxu0 0.0
  %4843 = vmatpush1.msra.mxu0 0.0
  %4844 = vmatprep.subr.mxu0 0.0
  %4845 = vmatpush1.msra.mxu0 0.0
  %4846 = vmatprep.subr.mxu0 0.0
  %4847 = vmatpush1.msra.mxu0 0.0
  %4848 = vmatprep.subr.mxu0 0.0
  %4849 = vmatpush1.msra.mxu0 0.0
  %4850 = vmatprep.subr.mxu0 0.0
  %4851 = vmatpush1.msra.mxu0 0.0
  %4852 = vmatprep.subr.mxu0 0.0
  %4853 = vmatpush1.msra.mxu0 0.0
  %4854 = vmatprep.subr.mxu0 0.0
  %4855 = vmatpush1.msra.mxu0 0.0
  %4856 = vmatprep.subr.mxu0 0.0
  %4857 = vmatpush1.msra.mxu0 0.0
  %4858 = vmatprep.subr.mxu0 0.0
  %4859 = vmatpush1.msra.mxu0 0.0
  %4860 = vmatprep.subr.mxu0 0.0
  %4861 = vmatpush1.msra.mxu0 0.0
  %4862 = vmatprep.mubr.f32.mxu0 0.0
  %v4863 = vand.u32 %v4226, 4294901760
  %4864 = vmatmul.mubr.f32.gmra.mrb[0].mxu0 %v4863
  %v4865 = vpop.f32.mrb[0].mxu0
  %v4866 = vadd.f32 %v4779, %v4865
  %v4867 = vpop.f32.mrb[0].mxu0
  %4868 = vdwg.mxu0
  %v4869 = vadd.f32 %v4227, %v4866
  %v4870 = vtanh.pop %v4869
  %v4871 = vld [vmem:[#allocation2 + $0x30] sm:$0xff]
  %4872 = vmatprep.subr.mxu0 0.0
  %v4873 = vand.u32 %v1004, 4294901760
  %4874 = vmatpush1.msra.mxu0 %v4873
  %4875 = vmatprep.subr.mxu0 0.0
  %v4876 = vand.u32 %v1005, 4294901760
  %4877 = vmatpush1.msra.mxu0 %v4876
  %4878 = vmatprep.subr.mxu0 0.0
  %v4879 = vand.u32 %v1006, 4294901760
  %4880 = vmatpush1.msra.mxu0 %v4879
  %4881 = vmatprep.subr.mxu0 0.0
  %v4882 = vand.u32 %v1007, 4294901760
  %4883 = vmatpush1.msra.mxu0 %v4882
  %4884 = vmatprep.subr.mxu0 0.0
  %v4885 = vand.u32 %v1008, 4294901760
  %4886 = vmatpush1.msra.mxu0 %v4885
  %4887 = vmatprep.subr.mxu0 0.0
  %v4888 = vand.u32 %v1009, 4294901760
  %4889 = vmatpush1.msra.mxu0 %v4888
  %4890 = vmatprep.subr.mxu0 0.0
  %v4891 = vand.u32 %v1010, 4294901760
  %4892 = vmatpush1.msra.mxu0 %v4891
  %4893 = vmatprep.subr.mxu0 0.0
  %v4894 = vand.u32 %v1011, 4294901760
  %4895 = vmatpush1.msra.mxu0 %v4894
  %4896 = vmatprep.subr.mxu0 0.0
  %v4897 = vand.u32 %v1012, 4294901760
  %4898 = vmatpush1.msra.mxu0 %v4897
  %4899 = vmatprep.subr.mxu0 0.0
  %v4900 = vand.u32 %v1013, 4294901760
  %4901 = vmatpush1.msra.mxu0 %v4900
  %4902 = vmatprep.subr.mxu0 0.0
  %v4903 = vand.u32 %v1014, 4294901760
  %4904 = vmatpush1.msra.mxu0 %v4903
  %4905 = vmatprep.subr.mxu0 0.0
  %v4906 = vand.u32 %v1015, 4294901760
  %4907 = vmatpush1.msra.mxu0 %v4906
  %4908 = vmatprep.subr.mxu0 0.0
  %v4909 = vand.u32 %v1016, 4294901760
  %4910 = vmatpush1.msra.mxu0 %v4909
  %4911 = vmatprep.subr.mxu0 0.0
  %v4912 = vand.u32 %v1017, 4294901760
  %4913 = vmatpush1.msra.mxu0 %v4912
  %4914 = vmatprep.subr.mxu0 0.0
  %v4915 = vand.u32 %v1018, 4294901760
  %4916 = vmatpush1.msra.mxu0 %v4915
  %4917 = vmatprep.subr.mxu0 0.0
  %v4918 = vand.u32 %v1019, 4294901760
  %4919 = vmatpush1.msra.mxu0 %v4918
  %4920 = vmatprep.subr.mxu0 0.0
  %4921 = vmatpush1.msra.mxu0 0.0
  %4922 = vmatprep.subr.mxu0 0.0
  %4923 = vmatpush1.msra.mxu0 0.0
  %4924 = vmatprep.subr.mxu0 0.0
  %4925 = vmatpush1.msra.mxu0 0.0
  %4926 = vmatprep.subr.mxu0 0.0
  %4927 = vmatpush1.msra.mxu0 0.0
  %4928 = vmatprep.subr.mxu0 0.0
  %4929 = vmatpush1.msra.mxu0 0.0
  %4930 = vmatprep.subr.mxu0 0.0
  %4931 = vmatpush1.msra.mxu0 0.0
  %4932 = vmatprep.subr.mxu0 0.0
  %4933 = vmatpush1.msra.mxu0 0.0
  %4934 = vmatprep.subr.mxu0 0.0
  %4935 = vmatpush1.msra.mxu0 0.0
  %4936 = vmatprep.subr.mxu0 0.0
  %4937 = vmatpush1.msra.mxu0 0.0
  %4938 = vmatprep.subr.mxu0 0.0
  %4939 = vmatpush1.msra.mxu0 0.0
  %4940 = vmatprep.subr.mxu0 0.0
  %4941 = vmatpush1.msra.mxu0 0.0
  %4942 = vmatprep.subr.mxu0 0.0
  %4943 = vmatpush1.msra.mxu0 0.0
  %4944 = vmatprep.subr.mxu0 0.0
  %4945 = vmatpush1.msra.mxu0 0.0
  %4946 = vmatprep.subr.mxu0 0.0
  %4947 = vmatpush1.msra.mxu0 0.0
  %4948 = vmatprep.subr.mxu0 0.0
  %4949 = vmatpush1.msra.mxu0 0.0
  %4950 = vmatprep.subr.mxu0 0.0
  %4951 = vmatpush1.msra.mxu0 0.0
  %4952 = vmatprep.mubr.f32.mxu0 0.0
  %v4953 = vand.u32 %v4870, 4294901760
  %v4954 = vsub.f32 %v4870, %v4953
  %v4955 = vand.u32 %v4954, 4294901760
  %v4956 = vsub.f32 %v4954, %v4955
  %v4957 = vand.u32 %v4956, 4294901760
  %4958 = vmatmul.mubr.f32.gmra.mrb[0].mxu0 %v4957
  %v4959 = vpop.f32.mrb[0].mxu0
  %v4960 = vadd.f32 0.0, %v4959
  %v4961 = vpop.f32.mrb[0].mxu0
  %4962 = vdwg.mxu0
  %4963 = vmatprep.subr.mxu0 0.0
  %v4964 = vand.u32 %v1004, 4294901760
  %v4965 = vsub.f32 %v1004, %v4964
  %v4966 = vand.u32 %v4965, 4294901760
  %v4967 = vsub.f32 %v4965, %v4966
  %v4968 = vand.u32 %v4967, 4294901760
  %4969 = vmatpush1.msra.mxu0 %v4968
  %4970 = vmatprep.subr.mxu0 0.0
  %v4971 = vand.u32 %v1005, 4294901760
  %v4972 = vsub.f32 %v1005, %v4971
  %v4973 = vand.u32 %v4972, 4294901760
  %v4974 = vsub.f32 %v4972, %v4973
  %v4975 = vand.u32 %v4974, 4294901760
  %4976 = vmatpush1.msra.mxu0 %v4975
  %4977 = vmatprep.subr.mxu0 0.0
  %v4978 = vand.u32 %v1006, 4294901760
  %v4979 = vsub.f32 %v1006, %v4978
  %v4980 = vand.u32 %v4979, 4294901760
  %v4981 = vsub.f32 %v4979, %v4980
  %v4982 = vand.u32 %v4981, 4294901760
  %4983 = vmatpush1.msra.mxu0 %v4982
  %4984 = vmatprep.subr.mxu0 0.0
  %v4985 = vand.u32 %v1007, 4294901760
  %v4986 = vsub.f32 %v1007, %v4985
  %v4987 = vand.u32 %v4986, 4294901760
  %v4988 = vsub.f32 %v4986, %v4987
  %v4989 = vand.u32 %v4988, 4294901760
  %4990 = vmatpush1.msra.mxu0 %v4989
  %4991 = vmatprep.subr.mxu0 0.0
  %v4992 = vand.u32 %v1008, 4294901760
  %v4993 = vsub.f32 %v1008, %v4992
  %v4994 = vand.u32 %v4993, 4294901760
  %v4995 = vsub.f32 %v4993, %v4994
  %v4996 = vand.u32 %v4995, 4294901760
  %4997 = vmatpush1.msra.mxu0 %v4996
  %4998 = vmatprep.subr.mxu0 0.0
  %v4999 = vand.u32 %v1009, 4294901760
  %v5000 = vsub.f32 %v1009, %v4999
  %v5001 = vand.u32 %v5000, 4294901760
  %v5002 = vsub.f32 %v5000, %v5001
  %v5003 = vand.u32 %v5002, 4294901760
  %5004 = vmatpush1.msra.mxu0 %v5003
  %5005 = vmatprep.subr.mxu0 0.0
  %v5006 = vand.u32 %v1010, 4294901760
  %v5007 = vsub.f32 %v1010, %v5006
  %v5008 = vand.u32 %v5007, 4294901760
  %v5009 = vsub.f32 %v5007, %v5008
  %v5010 = vand.u32 %v5009, 4294901760
  %5011 = vmatpush1.msra.mxu0 %v5010
  %5012 = vmatprep.subr.mxu0 0.0
  %v5013 = vand.u32 %v1011, 4294901760
  %v5014 = vsub.f32 %v1011, %v5013
  %v5015 = vand.u32 %v5014, 4294901760
  %v5016 = vsub.f32 %v5014, %v5015
  %v5017 = vand.u32 %v5016, 4294901760
  %5018 = vmatpush1.msra.mxu0 %v5017
  %5019 = vmatprep.subr.mxu0 0.0
  %v5020 = vand.u32 %v1012, 4294901760
  %v5021 = vsub.f32 %v1012, %v5020
  %v5022 = vand.u32 %v5021, 4294901760
  %v5023 = vsub.f32 %v5021, %v5022
  %v5024 = vand.u32 %v5023, 4294901760
  %5025 = vmatpush1.msra.mxu0 %v5024
  %5026 = vmatprep.subr.mxu0 0.0
  %v5027 = vand.u32 %v1013, 4294901760
  %v5028 = vsub.f32 %v1013, %v5027
  %v5029 = vand.u32 %v5028, 4294901760
  %v5030 = vsub.f32 %v5028, %v5029
  %v5031 = vand.u32 %v5030, 4294901760
  %5032 = vmatpush1.msra.mxu0 %v5031
  %5033 = vmatprep.subr.mxu0 0.0
  %v5034 = vand.u32 %v1014, 4294901760
  %v5035 = vsub.f32 %v1014, %v5034
  %v5036 = vand.u32 %v5035, 4294901760
  %v5037 = vsub.f32 %v5035, %v5036
  %v5038 = vand.u32 %v5037, 4294901760
  %5039 = vmatpush1.msra.mxu0 %v5038
  %5040 = vmatprep.subr.mxu0 0.0
  %v5041 = vand.u32 %v1015, 4294901760
  %v5042 = vsub.f32 %v1015, %v5041
  %v5043 = vand.u32 %v5042, 4294901760
  %v5044 = vsub.f32 %v5042, %v5043
  %v5045 = vand.u32 %v5044, 4294901760
  %5046 = vmatpush1.msra.mxu0 %v5045
  %5047 = vmatprep.subr.mxu0 0.0
  %v5048 = vand.u32 %v1016, 4294901760
  %v5049 = vsub.f32 %v1016, %v5048
  %v5050 = vand.u32 %v5049, 4294901760
  %v5051 = vsub.f32 %v5049, %v5050
  %v5052 = vand.u32 %v5051, 4294901760
  %5053 = vmatpush1.msra.mxu0 %v5052
  %5054 = vmatprep.subr.mxu0 0.0
  %v5055 = vand.u32 %v1017, 4294901760
  %v5056 = vsub.f32 %v1017, %v5055
  %v5057 = vand.u32 %v5056, 4294901760
  %v5058 = vsub.f32 %v5056, %v5057
  %v5059 = vand.u32 %v5058, 4294901760
  %5060 = vmatpush1.msra.mxu0 %v5059
  %5061 = vmatprep.subr.mxu0 0.0
  %v5062 = vand.u32 %v1018, 4294901760
  %v5063 = vsub.f32 %v1018, %v5062
  %v5064 = vand.u32 %v5063, 4294901760
  %v5065 = vsub.f32 %v5063, %v5064
  %v5066 = vand.u32 %v5065, 4294901760
  %5067 = vmatpush1.msra.mxu0 %v5066
  %5068 = vmatprep.subr.mxu0 0.0
  %v5069 = vand.u32 %v1019, 4294901760
  %v5070 = vsub.f32 %v1019, %v5069
  %v5071 = vand.u32 %v5070, 4294901760
  %v5072 = vsub.f32 %v5070, %v5071
  %v5073 = vand.u32 %v5072, 4294901760
  %5074 = vmatpush1.msra.mxu0 %v5073
  %5075 = vmatprep.subr.mxu0 0.0
  %5076 = vmatpush1.msra.mxu0 0.0
  %5077 = vmatprep.subr.mxu0 0.0
  %5078 = vmatpush1.msra.mxu0 0.0
  %5079 = vmatprep.subr.mxu0 0.0
  %5080 = vmatpush1.msra.mxu0 0.0
  %5081 = vmatprep.subr.mxu0 0.0
  %5082 = vmatpush1.msra.mxu0 0.0
  %5083 = vmatprep.subr.mxu0 0.0
  %5084 = vmatpush1.msra.mxu0 0.0
  %5085 = vmatprep.subr.mxu0 0.0
  %5086 = vmatpush1.msra.mxu0 0.0
  %5087 = vmatprep.subr.mxu0 0.0
  %5088 = vmatpush1.msra.mxu0 0.0
  %5089 = vmatprep.subr.mxu0 0.0
  %5090 = vmatpush1.msra.mxu0 0.0
  %5091 = vmatprep.subr.mxu0 0.0
  %5092 = vmatpush1.msra.mxu0 0.0
  %5093 = vmatprep.subr.mxu0 0.0
  %5094 = vmatpush1.msra.mxu0 0.0
  %5095 = vmatprep.subr.mxu0 0.0
  %5096 = vmatpush1.msra.mxu0 0.0
  %5097 = vmatprep.subr.mxu0 0.0
  %5098 = vmatpush1.msra.mxu0 0.0
  %5099 = vmatprep.subr.mxu0 0.0
  %5100 = vmatpush1.msra.mxu0 0.0
  %5101 = vmatprep.subr.mxu0 0.0
  %5102 = vmatpush1.msra.mxu0 0.0
  %5103 = vmatprep.subr.mxu0 0.0
  %5104 = vmatpush1.msra.mxu0 0.0
  %5105 = vmatprep.subr.mxu0 0.0
  %5106 = vmatpush1.msra.mxu0 0.0
  %5107 = vmatprep.mubr.f32.mxu0 0.0
  %v5108 = vand.u32 %v4870, 4294901760
  %5109 = vmatmul.mubr.f32.gmra.mrb[0].mxu0 %v5108
  %v5110 = vpop.f32.mrb[0].mxu0
  %v5111 = vadd.f32 %v4960, %v5110
  %v5112 = vpop.f32.mrb[0].mxu0
  %5113 = vdwg.mxu0
  %5114 = vmatprep.subr.mxu0 0.0
  %v5115 = vand.u32 %v1004, 4294901760
  %v5116 = vsub.f32 %v1004, %v5115
  %5117 = vmatpush1.msra.mxu0 %v5116
  %5118 = vmatprep.subr.mxu0 0.0
  %v5119 = vand.u32 %v1005, 4294901760
  %v5120 = vsub.f32 %v1005, %v5119
  %5121 = vmatpush1.msra.mxu0 %v5120
  %5122 = vmatprep.subr.mxu0 0.0
  %v5123 = vand.u32 %v1006, 4294901760
  %v5124 = vsub.f32 %v1006, %v5123
  %5125 = vmatpush1.msra.mxu0 %v5124
  %5126 = vmatprep.subr.mxu0 0.0
  %v5127 = vand.u32 %v1007, 4294901760
  %v5128 = vsub.f32 %v1007, %v5127
  %5129 = vmatpush1.msra.mxu0 %v5128
  %5130 = vmatprep.subr.mxu0 0.0
  %v5131 = vand.u32 %v1008, 4294901760
  %v5132 = vsub.f32 %v1008, %v5131
  %5133 = vmatpush1.msra.mxu0 %v5132
  %5134 = vmatprep.subr.mxu0 0.0
  %v5135 = vand.u32 %v1009, 4294901760
  %v5136 = vsub.f32 %v1009, %v5135
  %5137 = vmatpush1.msra.mxu0 %v5136
  %5138 = vmatprep.subr.mxu0 0.0
  %v5139 = vand.u32 %v1010, 4294901760
  %v5140 = vsub.f32 %v1010, %v5139
  %5141 = vmatpush1.msra.mxu0 %v5140
  %5142 = vmatprep.subr.mxu0 0.0
  %v5143 = vand.u32 %v1011, 4294901760
  %v5144 = vsub.f32 %v1011, %v5143
  %5145 = vmatpush1.msra.mxu0 %v5144
  %5146 = vmatprep.subr.mxu0 0.0
  %v5147 = vand.u32 %v1012, 4294901760
  %v5148 = vsub.f32 %v1012, %v5147
  %5149 = vmatpush1.msra.mxu0 %v5148
  %5150 = vmatprep.subr.mxu0 0.0
  %v5151 = vand.u32 %v1013, 4294901760
  %v5152 = vsub.f32 %v1013, %v5151
  %5153 = vmatpush1.msra.mxu0 %v5152
  %5154 = vmatprep.subr.mxu0 0.0
  %v5155 = vand.u32 %v1014, 4294901760
  %v5156 = vsub.f32 %v1014, %v5155
  %5157 = vmatpush1.msra.mxu0 %v5156
  %5158 = vmatprep.subr.mxu0 0.0
  %v5159 = vand.u32 %v1015, 4294901760
  %v5160 = vsub.f32 %v1015, %v5159
  %5161 = vmatpush1.msra.mxu0 %v5160
  %5162 = vmatprep.subr.mxu0 0.0
  %v5163 = vand.u32 %v1016, 4294901760
  %v5164 = vsub.f32 %v1016, %v5163
  %5165 = vmatpush1.msra.mxu0 %v5164
  %5166 = vmatprep.subr.mxu0 0.0
  %v5167 = vand.u32 %v1017, 4294901760
  %v5168 = vsub.f32 %v1017, %v5167
  %5169 = vmatpush1.msra.mxu0 %v5168
  %5170 = vmatprep.subr.mxu0 0.0
  %v5171 = vand.u32 %v1018, 4294901760
  %v5172 = vsub.f32 %v1018, %v5171
  %5173 = vmatpush1.msra.mxu0 %v5172
  %5174 = vmatprep.subr.mxu0 0.0
  %v5175 = vand.u32 %v1019, 4294901760
  %v5176 = vsub.f32 %v1019, %v5175
  %5177 = vmatpush1.msra.mxu0 %v5176
  %5178 = vmatprep.subr.mxu0 0.0
  %5179 = vmatpush1.msra.mxu0 0.0
  %5180 = vmatprep.subr.mxu0 0.0
  %5181 = vmatpush1.msra.mxu0 0.0
  %5182 = vmatprep.subr.mxu0 0.0
  %5183 = vmatpush1.msra.mxu0 0.0
  %5184 = vmatprep.subr.mxu0 0.0
  %5185 = vmatpush1.msra.mxu0 0.0
  %5186 = vmatprep.subr.mxu0 0.0
  %5187 = vmatpush1.msra.mxu0 0.0
  %5188 = vmatprep.subr.mxu0 0.0
  %5189 = vmatpush1.msra.mxu0 0.0
  %5190 = vmatprep.subr.mxu0 0.0
  %5191 = vmatpush1.msra.mxu0 0.0
  %5192 = vmatprep.subr.mxu0 0.0
  %5193 = vmatpush1.msra.mxu0 0.0
  %5194 = vmatprep.subr.mxu0 0.0
  %5195 = vmatpush1.msra.mxu0 0.0
  %5196 = vmatprep.subr.mxu0 0.0
  %5197 = vmatpush1.msra.mxu0 0.0
  %5198 = vmatprep.subr.mxu0 0.0
  %5199 = vmatpush1.msra.mxu0 0.0
  %5200 = vmatprep.subr.mxu0 0.0
  %5201 = vmatpush1.msra.mxu0 0.0
  %5202 = vmatprep.subr.mxu0 0.0
  %5203 = vmatpush1.msra.mxu0 0.0
  %5204 = vmatprep.subr.mxu0 0.0
  %5205 = vmatpush1.msra.mxu0 0.0
  %5206 = vmatprep.subr.mxu0 0.0
  %5207 = vmatpush1.msra.mxu0 0.0
  %5208 = vmatprep.subr.mxu0 0.0
  %5209 = vmatpush1.msra.mxu0 0.0
  %5210 = vmatprep.mubr.f32.mxu0 0.0
  %v5211 = vand.u32 %v4870, 4294901760
  %v5212 = vsub.f32 %v4870, %v5211
  %5213 = vmatmul.mubr.f32.gmra.mrb[0].mxu0 %v5212
  %v5214 = vpop.f32.mrb[0].mxu0
  %v5215 = vadd.f32 %v5111, %v5214
  %v5216 = vpop.f32.mrb[0].mxu0
  %5217 = vdwg.mxu0
  %5218 = vmatprep.subr.mxu0 0.0
  %v5219 = vand.u32 %v1004, 4294901760
  %5220 = vmatpush1.msra.mxu0 %v5219
  %5221 = vmatprep.subr.mxu0 0.0
  %v5222 = vand.u32 %v1005, 4294901760
  %5223 = vmatpush1.msra.mxu0 %v5222
  %5224 = vmatprep.subr.mxu0 0.0
  %v5225 = vand.u32 %v1006, 4294901760
  %5226 = vmatpush1.msra.mxu0 %v5225
  %5227 = vmatprep.subr.mxu0 0.0
  %v5228 = vand.u32 %v1007, 4294901760
  %5229 = vmatpush1.msra.mxu0 %v5228
  %5230 = vmatprep.subr.mxu0 0.0
  %v5231 = vand.u32 %v1008, 4294901760
  %5232 = vmatpush1.msra.mxu0 %v5231
  %5233 = vmatprep.subr.mxu0 0.0
  %v5234 = vand.u32 %v1009, 4294901760
  %5235 = vmatpush1.msra.mxu0 %v5234
  %5236 = vmatprep.subr.mxu0 0.0
  %v5237 = vand.u32 %v1010, 4294901760
  %5238 = vmatpush1.msra.mxu0 %v5237
  %5239 = vmatprep.subr.mxu0 0.0
  %v5240 = vand.u32 %v1011, 4294901760
  %5241 = vmatpush1.msra.mxu0 %v5240
  %5242 = vmatprep.subr.mxu0 0.0
  %v5243 = vand.u32 %v1012, 4294901760
  %5244 = vmatpush1.msra.mxu0 %v5243
  %5245 = vmatprep.subr.mxu0 0.0
  %v5246 = vand.u32 %v1013, 4294901760
  %5247 = vmatpush1.msra.mxu0 %v5246
  %5248 = vmatprep.subr.mxu0 0.0
  %v5249 = vand.u32 %v1014, 4294901760
  %5250 = vmatpush1.msra.mxu0 %v5249
  %5251 = vmatprep.subr.mxu0 0.0
  %v5252 = vand.u32 %v1015, 4294901760
  %5253 = vmatpush1.msra.mxu0 %v5252
  %5254 = vmatprep.subr.mxu0 0.0
  %v5255 = vand.u32 %v1016, 4294901760
  %5256 = vmatpush1.msra.mxu0 %v5255
  %5257 = vmatprep.subr.mxu0 0.0
  %v5258 = vand.u32 %v1017, 4294901760
  %5259 = vmatpush1.msra.mxu0 %v5258
  %5260 = vmatprep.subr.mxu0 0.0
  %v5261 = vand.u32 %v1018, 4294901760
  %5262 = vmatpush1.msra.mxu0 %v5261
  %5263 = vmatprep.subr.mxu0 0.0
  %v5264 = vand.u32 %v1019, 4294901760
  %5265 = vmatpush1.msra.mxu0 %v5264
  %5266 = vmatprep.subr.mxu0 0.0
  %5267 = vmatpush1.msra.mxu0 0.0
  %5268 = vmatprep.subr.mxu0 0.0
  %5269 = vmatpush1.msra.mxu0 0.0
  %5270 = vmatprep.subr.mxu0 0.0
  %5271 = vmatpush1.msra.mxu0 0.0
  %5272 = vmatprep.subr.mxu0 0.0
  %5273 = vmatpush1.msra.mxu0 0.0
  %5274 = vmatprep.subr.mxu0 0.0
  %5275 = vmatpush1.msra.mxu0 0.0
  %5276 = vmatprep.subr.mxu0 0.0
  %5277 = vmatpush1.msra.mxu0 0.0
  %5278 = vmatprep.subr.mxu0 0.0
  %5279 = vmatpush1.msra.mxu0 0.0
  %5280 = vmatprep.subr.mxu0 0.0
  %5281 = vmatpush1.msra.mxu0 0.0
  %5282 = vmatprep.subr.mxu0 0.0
  %5283 = vmatpush1.msra.mxu0 0.0
  %5284 = vmatprep.subr.mxu0 0.0
  %5285 = vmatpush1.msra.mxu0 0.0
  %5286 = vmatprep.subr.mxu0 0.0
  %5287 = vmatpush1.msra.mxu0 0.0
  %5288 = vmatprep.subr.mxu0 0.0
  %5289 = vmatpush1.msra.mxu0 0.0
  %5290 = vmatprep.subr.mxu0 0.0
  %5291 = vmatpush1.msra.mxu0 0.0
  %5292 = vmatprep.subr.mxu0 0.0
  %5293 = vmatpush1.msra.mxu0 0.0
  %5294 = vmatprep.subr.mxu0 0.0
  %5295 = vmatpush1.msra.mxu0 0.0
  %5296 = vmatprep.subr.mxu0 0.0
  %5297 = vmatpush1.msra.mxu0 0.0
  %5298 = vmatprep.mubr.f32.mxu0 0.0
  %v5299 = vand.u32 %v4870, 4294901760
  %v5300 = vsub.f32 %v4870, %v5299
  %v5301 = vand.u32 %v5300, 4294901760
  %5302 = vmatmul.mubr.f32.gmra.mrb[0].mxu0 %v5301
  %v5303 = vpop.f32.mrb[0].mxu0
  %v5304 = vadd.f32 %v5215, %v5303
  %v5305 = vpop.f32.mrb[0].mxu0
  %5306 = vdwg.mxu0
  %5307 = vmatprep.subr.mxu0 0.0
  %v5308 = vand.u32 %v1004, 4294901760
  %v5309 = vsub.f32 %v1004, %v5308
  %v5310 = vand.u32 %v5309, 4294901760
  %5311 = vmatpush1.msra.mxu0 %v5310
  %5312 = vmatprep.subr.mxu0 0.0
  %v5313 = vand.u32 %v1005, 4294901760
  %v5314 = vsub.f32 %v1005, %v5313
  %v5315 = vand.u32 %v5314, 4294901760
  %5316 = vmatpush1.msra.mxu0 %v5315
  %5317 = vmatprep.subr.mxu0 0.0
  %v5318 = vand.u32 %v1006, 4294901760
  %v5319 = vsub.f32 %v1006, %v5318
  %v5320 = vand.u32 %v5319, 4294901760
  %5321 = vmatpush1.msra.mxu0 %v5320
  %5322 = vmatprep.subr.mxu0 0.0
  %v5323 = vand.u32 %v1007, 4294901760
  %v5324 = vsub.f32 %v1007, %v5323
  %v5325 = vand.u32 %v5324, 4294901760
  %5326 = vmatpush1.msra.mxu0 %v5325
  %5327 = vmatprep.subr.mxu0 0.0
  %v5328 = vand.u32 %v1008, 4294901760
  %v5329 = vsub.f32 %v1008, %v5328
  %v5330 = vand.u32 %v5329, 4294901760
  %5331 = vmatpush1.msra.mxu0 %v5330
  %5332 = vmatprep.subr.mxu0 0.0
  %v5333 = vand.u32 %v1009, 4294901760
  %v5334 = vsub.f32 %v1009, %v5333
  %v5335 = vand.u32 %v5334, 4294901760
  %5336 = vmatpush1.msra.mxu0 %v5335
  %5337 = vmatprep.subr.mxu0 0.0
  %v5338 = vand.u32 %v1010, 4294901760
  %v5339 = vsub.f32 %v1010, %v5338
  %v5340 = vand.u32 %v5339, 4294901760
  %5341 = vmatpush1.msra.mxu0 %v5340
  %5342 = vmatprep.subr.mxu0 0.0
  %v5343 = vand.u32 %v1011, 4294901760
  %v5344 = vsub.f32 %v1011, %v5343
  %v5345 = vand.u32 %v5344, 4294901760
  %5346 = vmatpush1.msra.mxu0 %v5345
  %5347 = vmatprep.subr.mxu0 0.0
  %v5348 = vand.u32 %v1012, 4294901760
  %v5349 = vsub.f32 %v1012, %v5348
  %v5350 = vand.u32 %v5349, 4294901760
  %5351 = vmatpush1.msra.mxu0 %v5350
  %5352 = vmatprep.subr.mxu0 0.0
  %v5353 = vand.u32 %v1013, 4294901760
  %v5354 = vsub.f32 %v1013, %v5353
  %v5355 = vand.u32 %v5354, 4294901760
  %5356 = vmatpush1.msra.mxu0 %v5355
  %5357 = vmatprep.subr.mxu0 0.0
  %v5358 = vand.u32 %v1014, 4294901760
  %v5359 = vsub.f32 %v1014, %v5358
  %v5360 = vand.u32 %v5359, 4294901760
  %5361 = vmatpush1.msra.mxu0 %v5360
  %5362 = vmatprep.subr.mxu0 0.0
  %v5363 = vand.u32 %v1015, 4294901760
  %v5364 = vsub.f32 %v1015, %v5363
  %v5365 = vand.u32 %v5364, 4294901760
  %5366 = vmatpush1.msra.mxu0 %v5365
  %5367 = vmatprep.subr.mxu0 0.0
  %v5368 = vand.u32 %v1016, 4294901760
  %v5369 = vsub.f32 %v1016, %v5368
  %v5370 = vand.u32 %v5369, 4294901760
  %5371 = vmatpush1.msra.mxu0 %v5370
  %5372 = vmatprep.subr.mxu0 0.0
  %v5373 = vand.u32 %v1017, 4294901760
  %v5374 = vsub.f32 %v1017, %v5373
  %v5375 = vand.u32 %v5374, 4294901760
  %5376 = vmatpush1.msra.mxu0 %v5375
  %5377 = vmatprep.subr.mxu0 0.0
  %v5378 = vand.u32 %v1018, 4294901760
  %v5379 = vsub.f32 %v1018, %v5378
  %v5380 = vand.u32 %v5379, 4294901760
  %5381 = vmatpush1.msra.mxu0 %v5380
  %5382 = vmatprep.subr.mxu0 0.0
  %v5383 = vand.u32 %v1019, 4294901760
  %v5384 = vsub.f32 %v1019, %v5383
  %v5385 = vand.u32 %v5384, 4294901760
  %5386 = vmatpush1.msra.mxu0 %v5385
  %5387 = vmatprep.subr.mxu0 0.0
  %5388 = vmatpush1.msra.mxu0 0.0
  %5389 = vmatprep.subr.mxu0 0.0
  %5390 = vmatpush1.msra.mxu0 0.0
  %5391 = vmatprep.subr.mxu0 0.0
  %5392 = vmatpush1.msra.mxu0 0.0
  %5393 = vmatprep.subr.mxu0 0.0
  %5394 = vmatpush1.msra.mxu0 0.0
  %5395 = vmatprep.subr.mxu0 0.0
  %5396 = vmatpush1.msra.mxu0 0.0
  %5397 = vmatprep.subr.mxu0 0.0
  %5398 = vmatpush1.msra.mxu0 0.0
  %5399 = vmatprep.subr.mxu0 0.0
  %5400 = vmatpush1.msra.mxu0 0.0
  %5401 = vmatprep.subr.mxu0 0.0
  %5402 = vmatpush1.msra.mxu0 0.0
  %5403 = vmatprep.subr.mxu0 0.0
  %5404 = vmatpush1.msra.mxu0 0.0
  %5405 = vmatprep.subr.mxu0 0.0
  %5406 = vmatpush1.msra.mxu0 0.0
  %5407 = vmatprep.subr.mxu0 0.0
  %5408 = vmatpush1.msra.mxu0 0.0
  %5409 = vmatprep.subr.mxu0 0.0
  %5410 = vmatpush1.msra.mxu0 0.0
  %5411 = vmatprep.subr.mxu0 0.0
  %5412 = vmatpush1.msra.mxu0 0.0
  %5413 = vmatprep.subr.mxu0 0.0
  %5414 = vmatpush1.msra.mxu0 0.0
  %5415 = vmatprep.subr.mxu0 0.0
  %5416 = vmatpush1.msra.mxu0 0.0
  %5417 = vmatprep.subr.mxu0 0.0
  %5418 = vmatpush1.msra.mxu0 0.0
  %5419 = vmatprep.mubr.f32.mxu0 0.0
  %v5420 = vand.u32 %v4870, 4294901760
  %5421 = vmatmul.mubr.f32.gmra.mrb[0].mxu0 %v5420
  %v5422 = vpop.f32.mrb[0].mxu0
  %v5423 = vadd.f32 %v5304, %v5422
  %v5424 = vpop.f32.mrb[0].mxu0
  %5425 = vdwg.mxu0
  %5426 = vmatprep.subr.mxu0 0.0
  %v5427 = vand.u32 %v1004, 4294901760
  %5428 = vmatpush1.msra.mxu0 %v5427
  %5429 = vmatprep.subr.mxu0 0.0
  %v5430 = vand.u32 %v1005, 4294901760
  %5431 = vmatpush1.msra.mxu0 %v5430
  %5432 = vmatprep.subr.mxu0 0.0
  %v5433 = vand.u32 %v1006, 4294901760
  %5434 = vmatpush1.msra.mxu0 %v5433
  %5435 = vmatprep.subr.mxu0 0.0
  %v5436 = vand.u32 %v1007, 4294901760
  %5437 = vmatpush1.msra.mxu0 %v5436
  %5438 = vmatprep.subr.mxu0 0.0
  %v5439 = vand.u32 %v1008, 4294901760
  %5440 = vmatpush1.msra.mxu0 %v5439
  %5441 = vmatprep.subr.mxu0 0.0
  %v5442 = vand.u32 %v1009, 4294901760
  %5443 = vmatpush1.msra.mxu0 %v5442
  %5444 = vmatprep.subr.mxu0 0.0
  %v5445 = vand.u32 %v1010, 4294901760
  %5446 = vmatpush1.msra.mxu0 %v5445
  %5447 = vmatprep.subr.mxu0 0.0
  %v5448 = vand.u32 %v1011, 4294901760
  %5449 = vmatpush1.msra.mxu0 %v5448
  %5450 = vmatprep.subr.mxu0 0.0
  %v5451 = vand.u32 %v1012, 4294901760
  %5452 = vmatpush1.msra.mxu0 %v5451
  %5453 = vmatprep.subr.mxu0 0.0
  %v5454 = vand.u32 %v1013, 4294901760
  %5455 = vmatpush1.msra.mxu0 %v5454
  %5456 = vmatprep.subr.mxu0 0.0
  %v5457 = vand.u32 %v1014, 4294901760
  %5458 = vmatpush1.msra.mxu0 %v5457
  %5459 = vmatprep.subr.mxu0 0.0
  %v5460 = vand.u32 %v1015, 4294901760
  %5461 = vmatpush1.msra.mxu0 %v5460
  %5462 = vmatprep.subr.mxu0 0.0
  %v5463 = vand.u32 %v1016, 4294901760
  %5464 = vmatpush1.msra.mxu0 %v5463
  %5465 = vmatprep.subr.mxu0 0.0
  %v5466 = vand.u32 %v1017, 4294901760
  %5467 = vmatpush1.msra.mxu0 %v5466
  %5468 = vmatprep.subr.mxu0 0.0
  %v5469 = vand.u32 %v1018, 4294901760
  %5470 = vmatpush1.msra.mxu0 %v5469
  %5471 = vmatprep.subr.mxu0 0.0
  %v5472 = vand.u32 %v1019, 4294901760
  %5473 = vmatpush1.msra.mxu0 %v5472
  %5474 = vmatprep.subr.mxu0 0.0
  %5475 = vmatpush1.msra.mxu0 0.0
  %5476 = vmatprep.subr.mxu0 0.0
  %5477 = vmatpush1.msra.mxu0 0.0
  %5478 = vmatprep.subr.mxu0 0.0
  %5479 = vmatpush1.msra.mxu0 0.0
  %5480 = vmatprep.subr.mxu0 0.0
  %5481 = vmatpush1.msra.mxu0 0.0
  %5482 = vmatprep.subr.mxu0 0.0
  %5483 = vmatpush1.msra.mxu0 0.0
  %5484 = vmatprep.subr.mxu0 0.0
  %5485 = vmatpush1.msra.mxu0 0.0
  %5486 = vmatprep.subr.mxu0 0.0
  %5487 = vmatpush1.msra.mxu0 0.0
  %5488 = vmatprep.subr.mxu0 0.0
  %5489 = vmatpush1.msra.mxu0 0.0
  %5490 = vmatprep.subr.mxu0 0.0
  %5491 = vmatpush1.msra.mxu0 0.0
  %5492 = vmatprep.subr.mxu0 0.0
  %5493 = vmatpush1.msra.mxu0 0.0
  %5494 = vmatprep.subr.mxu0 0.0
  %5495 = vmatpush1.msra.mxu0 0.0
  %5496 = vmatprep.subr.mxu0 0.0
  %5497 = vmatpush1.msra.mxu0 0.0
  %5498 = vmatprep.subr.mxu0 0.0
  %5499 = vmatpush1.msra.mxu0 0.0
  %5500 = vmatprep.subr.mxu0 0.0
  %5501 = vmatpush1.msra.mxu0 0.0
  %5502 = vmatprep.subr.mxu0 0.0
  %5503 = vmatpush1.msra.mxu0 0.0
  %5504 = vmatprep.subr.mxu0 0.0
  %5505 = vmatpush1.msra.mxu0 0.0
  %5506 = vmatprep.mubr.f32.mxu0 0.0
  %v5507 = vand.u32 %v4870, 4294901760
  %5508 = vmatmul.mubr.f32.gmra.mrb[0].mxu0 %v5507
  %v5509 = vpop.f32.mrb[0].mxu0
  %v5510 = vadd.f32 %v5423, %v5509
  %v5511 = vpop.f32.mrb[0].mxu0
  %5512 = vdwg.mxu0
  %v5513 = vadd.f32 %v4871, %v5510
  %v5514 = vtanh.pop %v5513
  %v5515 = vld [vmem:[#allocation2 + $0x38] sm:$0xff]
  %5516 = vmatprep.subr.mxu0 0.0
  %v5517 = vand.u32 %v1004, 4294901760
  %5518 = vmatpush1.msra.mxu0 %v5517
  %5519 = vmatprep.subr.mxu0 0.0
  %v5520 = vand.u32 %v1005, 4294901760
  %5521 = vmatpush1.msra.mxu0 %v5520
  %5522 = vmatprep.subr.mxu0 0.0
  %v5523 = vand.u32 %v1006, 4294901760
  %5524 = vmatpush1.msra.mxu0 %v5523
  %5525 = vmatprep.subr.mxu0 0.0
  %v5526 = vand.u32 %v1007, 4294901760
  %5527 = vmatpush1.msra.mxu0 %v5526
  %5528 = vmatprep.subr.mxu0 0.0
  %v5529 = vand.u32 %v1008, 4294901760
  %5530 = vmatpush1.msra.mxu0 %v5529
  %5531 = vmatprep.subr.mxu0 0.0
  %v5532 = vand.u32 %v1009, 4294901760
  %5533 = vmatpush1.msra.mxu0 %v5532
  %5534 = vmatprep.subr.mxu0 0.0
  %v5535 = vand.u32 %v1010, 4294901760
  %5536 = vmatpush1.msra.mxu0 %v5535
  %5537 = vmatprep.subr.mxu0 0.0
  %v5538 = vand.u32 %v1011, 4294901760
  %5539 = vmatpush1.msra.mxu0 %v5538
  %5540 = vmatprep.subr.mxu0 0.0
  %v5541 = vand.u32 %v1012, 4294901760
  %5542 = vmatpush1.msra.mxu0 %v5541
  %5543 = vmatprep.subr.mxu0 0.0
  %v5544 = vand.u32 %v1013, 4294901760
  %5545 = vmatpush1.msra.mxu0 %v5544
  %5546 = vmatprep.subr.mxu0 0.0
  %v5547 = vand.u32 %v1014, 4294901760
  %5548 = vmatpush1.msra.mxu0 %v5547
  %5549 = vmatprep.subr.mxu0 0.0
  %v5550 = vand.u32 %v1015, 4294901760
  %5551 = vmatpush1.msra.mxu0 %v5550
  %5552 = vmatprep.subr.mxu0 0.0
  %v5553 = vand.u32 %v1016, 4294901760
  %5554 = vmatpush1.msra.mxu0 %v5553
  %5555 = vmatprep.subr.mxu0 0.0
  %v5556 = vand.u32 %v1017, 4294901760
  %5557 = vmatpush1.msra.mxu0 %v5556
  %5558 = vmatprep.subr.mxu0 0.0
  %v5559 = vand.u32 %v1018, 4294901760
  %5560 = vmatpush1.msra.mxu0 %v5559
  %5561 = vmatprep.subr.mxu0 0.0
  %v5562 = vand.u32 %v1019, 4294901760
  %5563 = vmatpush1.msra.mxu0 %v5562
  %5564 = vmatprep.subr.mxu0 0.0
  %5565 = vmatpush1.msra.mxu0 0.0
  %5566 = vmatprep.subr.mxu0 0.0
  %5567 = vmatpush1.msra.mxu0 0.0
  %5568 = vmatprep.subr.mxu0 0.0
  %5569 = vmatpush1.msra.mxu0 0.0
  %5570 = vmatprep.subr.mxu0 0.0
  %5571 = vmatpush1.msra.mxu0 0.0
  %5572 = vmatprep.subr.mxu0 0.0
  %5573 = vmatpush1.msra.mxu0 0.0
  %5574 = vmatprep.subr.mxu0 0.0
  %5575 = vmatpush1.msra.mxu0 0.0
  %5576 = vmatprep.subr.mxu0 0.0
  %5577 = vmatpush1.msra.mxu0 0.0
  %5578 = vmatprep.subr.mxu0 0.0
  %5579 = vmatpush1.msra.mxu0 0.0
  %5580 = vmatprep.subr.mxu0 0.0
  %5581 = vmatpush1.msra.mxu0 0.0
  %5582 = vmatprep.subr.mxu0 0.0
  %5583 = vmatpush1.msra.mxu0 0.0
  %5584 = vmatprep.subr.mxu0 0.0
  %5585 = vmatpush1.msra.mxu0 0.0
  %5586 = vmatprep.subr.mxu0 0.0
  %5587 = vmatpush1.msra.mxu0 0.0
  %5588 = vmatprep.subr.mxu0 0.0
  %5589 = vmatpush1.msra.mxu0 0.0
  %5590 = vmatprep.subr.mxu0 0.0
  %5591 = vmatpush1.msra.mxu0 0.0
  %5592 = vmatprep.subr.mxu0 0.0
  %5593 = vmatpush1.msra.mxu0 0.0
  %5594 = vmatprep.subr.mxu0 0.0
  %5595 = vmatpush1.msra.mxu0 0.0
  %5596 = vmatprep.mubr.f32.mxu0 0.0
  %v5597 = vand.u32 %v5514, 4294901760
  %v5598 = vsub.f32 %v5514, %v5597
  %v5599 = vand.u32 %v5598, 4294901760
  %v5600 = vsub.f32 %v5598, %v5599
  %v5601 = vand.u32 %v5600, 4294901760
  %5602 = vmatmul.mubr.f32.gmra.mrb[0].mxu0 %v5601
  %v5603 = vpop.f32.mrb[0].mxu0
  %v5604 = vadd.f32 0.0, %v5603
  %v5605 = vpop.f32.mrb[0].mxu0
  %5606 = vdwg.mxu0
  %5607 = vmatprep.subr.mxu0 0.0
  %v5608 = vand.u32 %v1004, 4294901760
  %v5609 = vsub.f32 %v1004, %v5608
  %v5610 = vand.u32 %v5609, 4294901760
  %v5611 = vsub.f32 %v5609, %v5610
  %v5612 = vand.u32 %v5611, 4294901760
  %5613 = vmatpush1.msra.mxu0 %v5612
  %5614 = vmatprep.subr.mxu0 0.0
  %v5615 = vand.u32 %v1005, 4294901760
  %v5616 = vsub.f32 %v1005, %v5615
  %v5617 = vand.u32 %v5616, 4294901760
  %v5618 = vsub.f32 %v5616, %v5617
  %v5619 = vand.u32 %v5618, 4294901760
  %5620 = vmatpush1.msra.mxu0 %v5619
  %5621 = vmatprep.subr.mxu0 0.0
  %v5622 = vand.u32 %v1006, 4294901760
  %v5623 = vsub.f32 %v1006, %v5622
  %v5624 = vand.u32 %v5623, 4294901760
  %v5625 = vsub.f32 %v5623, %v5624
  %v5626 = vand.u32 %v5625, 4294901760
  %5627 = vmatpush1.msra.mxu0 %v5626
  %5628 = vmatprep.subr.mxu0 0.0
  %v5629 = vand.u32 %v1007, 4294901760
  %v5630 = vsub.f32 %v1007, %v5629
  %v5631 = vand.u32 %v5630, 4294901760
  %v5632 = vsub.f32 %v5630, %v5631
  %v5633 = vand.u32 %v5632, 4294901760
  %5634 = vmatpush1.msra.mxu0 %v5633
  %5635 = vmatprep.subr.mxu0 0.0
  %v5636 = vand.u32 %v1008, 4294901760
  %v5637 = vsub.f32 %v1008, %v5636
  %v5638 = vand.u32 %v5637, 4294901760
  %v5639 = vsub.f32 %v5637, %v5638
  %v5640 = vand.u32 %v5639, 4294901760
  %5641 = vmatpush1.msra.mxu0 %v5640
  %5642 = vmatprep.subr.mxu0 0.0
  %v5643 = vand.u32 %v1009, 4294901760
  %v5644 = vsub.f32 %v1009, %v5643
  %v5645 = vand.u32 %v5644, 4294901760
  %v5646 = vsub.f32 %v5644, %v5645
  %v5647 = vand.u32 %v5646, 4294901760
  %5648 = vmatpush1.msra.mxu0 %v5647
  %5649 = vmatprep.subr.mxu0 0.0
  %v5650 = vand.u32 %v1010, 4294901760
  %v5651 = vsub.f32 %v1010, %v5650
  %v5652 = vand.u32 %v5651, 4294901760
  %v5653 = vsub.f32 %v5651, %v5652
  %v5654 = vand.u32 %v5653, 4294901760
  %5655 = vmatpush1.msra.mxu0 %v5654
  %5656 = vmatprep.subr.mxu0 0.0
  %v5657 = vand.u32 %v1011, 4294901760
  %v5658 = vsub.f32 %v1011, %v5657
  %v5659 = vand.u32 %v5658, 4294901760
  %v5660 = vsub.f32 %v5658, %v5659
  %v5661 = vand.u32 %v5660, 4294901760
  %5662 = vmatpush1.msra.mxu0 %v5661
  %5663 = vmatprep.subr.mxu0 0.0
  %v5664 = vand.u32 %v1012, 4294901760
  %v5665 = vsub.f32 %v1012, %v5664
  %v5666 = vand.u32 %v5665, 4294901760
  %v5667 = vsub.f32 %v5665, %v5666
  %v5668 = vand.u32 %v5667, 4294901760
  %5669 = vmatpush1.msra.mxu0 %v5668
  %5670 = vmatprep.subr.mxu0 0.0
  %v5671 = vand.u32 %v1013, 4294901760
  %v5672 = vsub.f32 %v1013, %v5671
  %v5673 = vand.u32 %v5672, 4294901760
  %v5674 = vsub.f32 %v5672, %v5673
  %v5675 = vand.u32 %v5674, 4294901760
  %5676 = vmatpush1.msra.mxu0 %v5675
  %5677 = vmatprep.subr.mxu0 0.0
  %v5678 = vand.u32 %v1014, 4294901760
  %v5679 = vsub.f32 %v1014, %v5678
  %v5680 = vand.u32 %v5679, 4294901760
  %v5681 = vsub.f32 %v5679, %v5680
  %v5682 = vand.u32 %v5681, 4294901760
  %5683 = vmatpush1.msra.mxu0 %v5682
  %5684 = vmatprep.subr.mxu0 0.0
  %v5685 = vand.u32 %v1015, 4294901760
  %v5686 = vsub.f32 %v1015, %v5685
  %v5687 = vand.u32 %v5686, 4294901760
  %v5688 = vsub.f32 %v5686, %v5687
  %v5689 = vand.u32 %v5688, 4294901760
  %5690 = vmatpush1.msra.mxu0 %v5689
  %5691 = vmatprep.subr.mxu0 0.0
  %v5692 = vand.u32 %v1016, 4294901760
  %v5693 = vsub.f32 %v1016, %v5692
  %v5694 = vand.u32 %v5693, 4294901760
  %v5695 = vsub.f32 %v5693, %v5694
  %v5696 = vand.u32 %v5695, 4294901760
  %5697 = vmatpush1.msra.mxu0 %v5696
  %5698 = vmatprep.subr.mxu0 0.0
  %v5699 = vand.u32 %v1017, 4294901760
  %v5700 = vsub.f32 %v1017, %v5699
  %v5701 = vand.u32 %v5700, 4294901760
  %v5702 = vsub.f32 %v5700, %v5701
  %v5703 = vand.u32 %v5702, 4294901760
  %5704 = vmatpush1.msra.mxu0 %v5703
  %5705 = vmatprep.subr.mxu0 0.0
  %v5706 = vand.u32 %v1018, 4294901760
  %v5707 = vsub.f32 %v1018, %v5706
  %v5708 = vand.u32 %v5707, 4294901760
  %v5709 = vsub.f32 %v5707, %v5708
  %v5710 = vand.u32 %v5709, 4294901760
  %5711 = vmatpush1.msra.mxu0 %v5710
  %5712 = vmatprep.subr.mxu0 0.0
  %v5713 = vand.u32 %v1019, 4294901760
  %v5714 = vsub.f32 %v1019, %v5713
  %v5715 = vand.u32 %v5714, 4294901760
  %v5716 = vsub.f32 %v5714, %v5715
  %v5717 = vand.u32 %v5716, 4294901760
  %5718 = vmatpush1.msra.mxu0 %v5717
  %5719 = vmatprep.subr.mxu0 0.0
  %5720 = vmatpush1.msra.mxu0 0.0
  %5721 = vmatprep.subr.mxu0 0.0
  %5722 = vmatpush1.msra.mxu0 0.0
  %5723 = vmatprep.subr.mxu0 0.0
  %5724 = vmatpush1.msra.mxu0 0.0
  %5725 = vmatprep.subr.mxu0 0.0
  %5726 = vmatpush1.msra.mxu0 0.0
  %5727 = vmatprep.subr.mxu0 0.0
  %5728 = vmatpush1.msra.mxu0 0.0
  %5729 = vmatprep.subr.mxu0 0.0
  %5730 = vmatpush1.msra.mxu0 0.0
  %5731 = vmatprep.subr.mxu0 0.0
  %5732 = vmatpush1.msra.mxu0 0.0
  %5733 = vmatprep.subr.mxu0 0.0
  %5734 = vmatpush1.msra.mxu0 0.0
  %5735 = vmatprep.subr.mxu0 0.0
  %5736 = vmatpush1.msra.mxu0 0.0
  %5737 = vmatprep.subr.mxu0 0.0
  %5738 = vmatpush1.msra.mxu0 0.0
  %5739 = vmatprep.subr.mxu0 0.0
  %5740 = vmatpush1.msra.mxu0 0.0
  %5741 = vmatprep.subr.mxu0 0.0
  %5742 = vmatpush1.msra.mxu0 0.0
  %5743 = vmatprep.subr.mxu0 0.0
  %5744 = vmatpush1.msra.mxu0 0.0
  %5745 = vmatprep.subr.mxu0 0.0
  %5746 = vmatpush1.msra.mxu0 0.0
  %5747 = vmatprep.subr.mxu0 0.0
  %5748 = vmatpush1.msra.mxu0 0.0
  %5749 = vmatprep.subr.mxu0 0.0
  %5750 = vmatpush1.msra.mxu0 0.0
  %5751 = vmatprep.mubr.f32.mxu0 0.0
  %v5752 = vand.u32 %v5514, 4294901760
  %5753 = vmatmul.mubr.f32.gmra.mrb[0].mxu0 %v5752
  %v5754 = vpop.f32.mrb[0].mxu0
  %v5755 = vadd.f32 %v5604, %v5754
  %v5756 = vpop.f32.mrb[0].mxu0
  %5757 = vdwg.mxu0
  %5758 = vmatprep.subr.mxu0 0.0
  %v5759 = vand.u32 %v1004, 4294901760
  %v5760 = vsub.f32 %v1004, %v5759
  %5761 = vmatpush1.msra.mxu0 %v5760
  %5762 = vmatprep.subr.mxu0 0.0
  %v5763 = vand.u32 %v1005, 4294901760
  %v5764 = vsub.f32 %v1005, %v5763
  %5765 = vmatpush1.msra.mxu0 %v5764
  %5766 = vmatprep.subr.mxu0 0.0
  %v5767 = vand.u32 %v1006, 4294901760
  %v5768 = vsub.f32 %v1006, %v5767
  %5769 = vmatpush1.msra.mxu0 %v5768
  %5770 = vmatprep.subr.mxu0 0.0
  %v5771 = vand.u32 %v1007, 4294901760
  %v5772 = vsub.f32 %v1007, %v5771
  %5773 = vmatpush1.msra.mxu0 %v5772
  %5774 = vmatprep.subr.mxu0 0.0
  %v5775 = vand.u32 %v1008, 4294901760
  %v5776 = vsub.f32 %v1008, %v5775
  %5777 = vmatpush1.msra.mxu0 %v5776
  %5778 = vmatprep.subr.mxu0 0.0
  %v5779 = vand.u32 %v1009, 4294901760
  %v5780 = vsub.f32 %v1009, %v5779
  %5781 = vmatpush1.msra.mxu0 %v5780
  %5782 = vmatprep.subr.mxu0 0.0
  %v5783 = vand.u32 %v1010, 4294901760
  %v5784 = vsub.f32 %v1010, %v5783
  %5785 = vmatpush1.msra.mxu0 %v5784
  %5786 = vmatprep.subr.mxu0 0.0
  %v5787 = vand.u32 %v1011, 4294901760
  %v5788 = vsub.f32 %v1011, %v5787
  %5789 = vmatpush1.msra.mxu0 %v5788
  %5790 = vmatprep.subr.mxu0 0.0
  %v5791 = vand.u32 %v1012, 4294901760
  %v5792 = vsub.f32 %v1012, %v5791
  %5793 = vmatpush1.msra.mxu0 %v5792
  %5794 = vmatprep.subr.mxu0 0.0
  %v5795 = vand.u32 %v1013, 4294901760
  %v5796 = vsub.f32 %v1013, %v5795
  %5797 = vmatpush1.msra.mxu0 %v5796
  %5798 = vmatprep.subr.mxu0 0.0
  %v5799 = vand.u32 %v1014, 4294901760
  %v5800 = vsub.f32 %v1014, %v5799
  %5801 = vmatpush1.msra.mxu0 %v5800
  %5802 = vmatprep.subr.mxu0 0.0
  %v5803 = vand.u32 %v1015, 4294901760
  %v5804 = vsub.f32 %v1015, %v5803
  %5805 = vmatpush1.msra.mxu0 %v5804
  %5806 = vmatprep.subr.mxu0 0.0
  %v5807 = vand.u32 %v1016, 4294901760
  %v5808 = vsub.f32 %v1016, %v5807
  %5809 = vmatpush1.msra.mxu0 %v5808
  %5810 = vmatprep.subr.mxu0 0.0
  %v5811 = vand.u32 %v1017, 4294901760
  %v5812 = vsub.f32 %v1017, %v5811
  %5813 = vmatpush1.msra.mxu0 %v5812
  %5814 = vmatprep.subr.mxu0 0.0
  %v5815 = vand.u32 %v1018, 4294901760
  %v5816 = vsub.f32 %v1018, %v5815
  %5817 = vmatpush1.msra.mxu0 %v5816
  %5818 = vmatprep.subr.mxu0 0.0
  %v5819 = vand.u32 %v1019, 4294901760
  %v5820 = vsub.f32 %v1019, %v5819
  %5821 = vmatpush1.msra.mxu0 %v5820
  %5822 = vmatprep.subr.mxu0 0.0
  %5823 = vmatpush1.msra.mxu0 0.0
  %5824 = vmatprep.subr.mxu0 0.0
  %5825 = vmatpush1.msra.mxu0 0.0
  %5826 = vmatprep.subr.mxu0 0.0
  %5827 = vmatpush1.msra.mxu0 0.0
  %5828 = vmatprep.subr.mxu0 0.0
  %5829 = vmatpush1.msra.mxu0 0.0
  %5830 = vmatprep.subr.mxu0 0.0
  %5831 = vmatpush1.msra.mxu0 0.0
  %5832 = vmatprep.subr.mxu0 0.0
  %5833 = vmatpush1.msra.mxu0 0.0
  %5834 = vmatprep.subr.mxu0 0.0
  %5835 = vmatpush1.msra.mxu0 0.0
  %5836 = vmatprep.subr.mxu0 0.0
  %5837 = vmatpush1.msra.mxu0 0.0
  %5838 = vmatprep.subr.mxu0 0.0
  %5839 = vmatpush1.msra.mxu0 0.0
  %5840 = vmatprep.subr.mxu0 0.0
  %5841 = vmatpush1.msra.mxu0 0.0
  %5842 = vmatprep.subr.mxu0 0.0
  %5843 = vmatpush1.msra.mxu0 0.0
  %5844 = vmatprep.subr.mxu0 0.0
  %5845 = vmatpush1.msra.mxu0 0.0
  %5846 = vmatprep.subr.mxu0 0.0
  %5847 = vmatpush1.msra.mxu0 0.0
  %5848 = vmatprep.subr.mxu0 0.0
  %5849 = vmatpush1.msra.mxu0 0.0
  %5850 = vmatprep.subr.mxu0 0.0
  %5851 = vmatpush1.msra.mxu0 0.0
  %5852 = vmatprep.subr.mxu0 0.0
  %5853 = vmatpush1.msra.mxu0 0.0
  %5854 = vmatprep.mubr.f32.mxu0 0.0
  %v5855 = vand.u32 %v5514, 4294901760
  %v5856 = vsub.f32 %v5514, %v5855
  %5857 = vmatmul.mubr.f32.gmra.mrb[0].mxu0 %v5856
  %v5858 = vpop.f32.mrb[0].mxu0
  %v5859 = vadd.f32 %v5755, %v5858
  %v5860 = vpop.f32.mrb[0].mxu0
  %5861 = vdwg.mxu0
  %5862 = vmatprep.subr.mxu0 0.0
  %v5863 = vand.u32 %v1004, 4294901760
  %5864 = vmatpush1.msra.mxu0 %v5863
  %5865 = vmatprep.subr.mxu0 0.0
  %v5866 = vand.u32 %v1005, 4294901760
  %5867 = vmatpush1.msra.mxu0 %v5866
  %5868 = vmatprep.subr.mxu0 0.0
  %v5869 = vand.u32 %v1006, 4294901760
  %5870 = vmatpush1.msra.mxu0 %v5869
  %5871 = vmatprep.subr.mxu0 0.0
  %v5872 = vand.u32 %v1007, 4294901760
  %5873 = vmatpush1.msra.mxu0 %v5872
  %5874 = vmatprep.subr.mxu0 0.0
  %v5875 = vand.u32 %v1008, 4294901760
  %5876 = vmatpush1.msra.mxu0 %v5875
  %5877 = vmatprep.subr.mxu0 0.0
  %v5878 = vand.u32 %v1009, 4294901760
  %5879 = vmatpush1.msra.mxu0 %v5878
  %5880 = vmatprep.subr.mxu0 0.0
  %v5881 = vand.u32 %v1010, 4294901760
  %5882 = vmatpush1.msra.mxu0 %v5881
  %5883 = vmatprep.subr.mxu0 0.0
  %v5884 = vand.u32 %v1011, 4294901760
  %5885 = vmatpush1.msra.mxu0 %v5884
  %5886 = vmatprep.subr.mxu0 0.0
  %v5887 = vand.u32 %v1012, 4294901760
  %5888 = vmatpush1.msra.mxu0 %v5887
  %5889 = vmatprep.subr.mxu0 0.0
  %v5890 = vand.u32 %v1013, 4294901760
  %5891 = vmatpush1.msra.mxu0 %v5890
  %5892 = vmatprep.subr.mxu0 0.0
  %v5893 = vand.u32 %v1014, 4294901760
  %5894 = vmatpush1.msra.mxu0 %v5893
  %5895 = vmatprep.subr.mxu0 0.0
  %v5896 = vand.u32 %v1015, 4294901760
  %5897 = vmatpush1.msra.mxu0 %v5896
  %5898 = vmatprep.subr.mxu0 0.0
  %v5899 = vand.u32 %v1016, 4294901760
  %5900 = vmatpush1.msra.mxu0 %v5899
  %5901 = vmatprep.subr.mxu0 0.0
  %v5902 = vand.u32 %v1017, 4294901760
  %5903 = vmatpush1.msra.mxu0 %v5902
  %5904 = vmatprep.subr.mxu0 0.0
  %v5905 = vand.u32 %v1018, 4294901760
  %5906 = vmatpush1.msra.mxu0 %v5905
  %5907 = vmatprep.subr.mxu0 0.0
  %v5908 = vand.u32 %v1019, 4294901760
  %5909 = vmatpush1.msra.mxu0 %v5908
  %5910 = vmatprep.subr.mxu0 0.0
  %5911 = vmatpush1.msra.mxu0 0.0
  %5912 = vmatprep.subr.mxu0 0.0
  %5913 = vmatpush1.msra.mxu0 0.0
  %5914 = vmatprep.subr.mxu0 0.0
  %5915 = vmatpush1.msra.mxu0 0.0
  %5916 = vmatprep.subr.mxu0 0.0
  %5917 = vmatpush1.msra.mxu0 0.0
  %5918 = vmatprep.subr.mxu0 0.0
  %5919 = vmatpush1.msra.mxu0 0.0
  %5920 = vmatprep.subr.mxu0 0.0
  %5921 = vmatpush1.msra.mxu0 0.0
  %5922 = vmatprep.subr.mxu0 0.0
  %5923 = vmatpush1.msra.mxu0 0.0
  %5924 = vmatprep.subr.mxu0 0.0
  %5925 = vmatpush1.msra.mxu0 0.0
  %5926 = vmatprep.subr.mxu0 0.0
  %5927 = vmatpush1.msra.mxu0 0.0
  %5928 = vmatprep.subr.mxu0 0.0
  %5929 = vmatpush1.msra.mxu0 0.0
  %5930 = vmatprep.subr.mxu0 0.0
  %5931 = vmatpush1.msra.mxu0 0.0
  %5932 = vmatprep.subr.mxu0 0.0
  %5933 = vmatpush1.msra.mxu0 0.0
  %5934 = vmatprep.subr.mxu0 0.0
  %5935 = vmatpush1.msra.mxu0 0.0
  %5936 = vmatprep.subr.mxu0 0.0
  %5937 = vmatpush1.msra.mxu0 0.0
  %5938 = vmatprep.subr.mxu0 0.0
  %5939 = vmatpush1.msra.mxu0 0.0
  %5940 = vmatprep.subr.mxu0 0.0
  %5941 = vmatpush1.msra.mxu0 0.0
  %5942 = vmatprep.mubr.f32.mxu0 0.0
  %v5943 = vand.u32 %v5514, 4294901760
  %v5944 = vsub.f32 %v5514, %v5943
  %v5945 = vand.u32 %v5944, 4294901760
  %5946 = vmatmul.mubr.f32.gmra.mrb[0].mxu0 %v5945
  %v5947 = vpop.f32.mrb[0].mxu0
  %v5948 = vadd.f32 %v5859, %v5947
  %v5949 = vpop.f32.mrb[0].mxu0
  %5950 = vdwg.mxu0
  %5951 = vmatprep.subr.mxu0 0.0
  %v5952 = vand.u32 %v1004, 4294901760
  %v5953 = vsub.f32 %v1004, %v5952
  %v5954 = vand.u32 %v5953, 4294901760
  %5955 = vmatpush1.msra.mxu0 %v5954
  %5956 = vmatprep.subr.mxu0 0.0
  %v5957 = vand.u32 %v1005, 4294901760
  %v5958 = vsub.f32 %v1005, %v5957
  %v5959 = vand.u32 %v5958, 4294901760
  %5960 = vmatpush1.msra.mxu0 %v5959
  %5961 = vmatprep.subr.mxu0 0.0
  %v5962 = vand.u32 %v1006, 4294901760
  %v5963 = vsub.f32 %v1006, %v5962
  %v5964 = vand.u32 %v5963, 4294901760
  %5965 = vmatpush1.msra.mxu0 %v5964
  %5966 = vmatprep.subr.mxu0 0.0
  %v5967 = vand.u32 %v1007, 4294901760
  %v5968 = vsub.f32 %v1007, %v5967
  %v5969 = vand.u32 %v5968, 4294901760
  %5970 = vmatpush1.msra.mxu0 %v5969
  %5971 = vmatprep.subr.mxu0 0.0
  %v5972 = vand.u32 %v1008, 4294901760
  %v5973 = vsub.f32 %v1008, %v5972
  %v5974 = vand.u32 %v5973, 4294901760
  %5975 = vmatpush1.msra.mxu0 %v5974
  %5976 = vmatprep.subr.mxu0 0.0
  %v5977 = vand.u32 %v1009, 4294901760
  %v5978 = vsub.f32 %v1009, %v5977
  %v5979 = vand.u32 %v5978, 4294901760
  %5980 = vmatpush1.msra.mxu0 %v5979
  %5981 = vmatprep.subr.mxu0 0.0
  %v5982 = vand.u32 %v1010, 4294901760
  %v5983 = vsub.f32 %v1010, %v5982
  %v5984 = vand.u32 %v5983, 4294901760
  %5985 = vmatpush1.msra.mxu0 %v5984
  %5986 = vmatprep.subr.mxu0 0.0
  %v5987 = vand.u32 %v1011, 4294901760
  %v5988 = vsub.f32 %v1011, %v5987
  %v5989 = vand.u32 %v5988, 4294901760
  %5990 = vmatpush1.msra.mxu0 %v5989
  %5991 = vmatprep.subr.mxu0 0.0
  %v5992 = vand.u32 %v1012, 4294901760
  %v5993 = vsub.f32 %v1012, %v5992
  %v5994 = vand.u32 %v5993, 4294901760
  %5995 = vmatpush1.msra.mxu0 %v5994
  %5996 = vmatprep.subr.mxu0 0.0
  %v5997 = vand.u32 %v1013, 4294901760
  %v5998 = vsub.f32 %v1013, %v5997
  %v5999 = vand.u32 %v5998, 4294901760
  %6000 = vmatpush1.msra.mxu0 %v5999
  %6001 = vmatprep.subr.mxu0 0.0
  %v6002 = vand.u32 %v1014, 4294901760
  %v6003 = vsub.f32 %v1014, %v6002
  %v6004 = vand.u32 %v6003, 4294901760
  %6005 = vmatpush1.msra.mxu0 %v6004
  %6006 = vmatprep.subr.mxu0 0.0
  %v6007 = vand.u32 %v1015, 4294901760
  %v6008 = vsub.f32 %v1015, %v6007
  %v6009 = vand.u32 %v6008, 4294901760
  %6010 = vmatpush1.msra.mxu0 %v6009
  %6011 = vmatprep.subr.mxu0 0.0
  %v6012 = vand.u32 %v1016, 4294901760
  %v6013 = vsub.f32 %v1016, %v6012
  %v6014 = vand.u32 %v6013, 4294901760
  %6015 = vmatpush1.msra.mxu0 %v6014
  %6016 = vmatprep.subr.mxu0 0.0
  %v6017 = vand.u32 %v1017, 4294901760
  %v6018 = vsub.f32 %v1017, %v6017
  %v6019 = vand.u32 %v6018, 4294901760
  %6020 = vmatpush1.msra.mxu0 %v6019
  %6021 = vmatprep.subr.mxu0 0.0
  %v6022 = vand.u32 %v1018, 4294901760
  %v6023 = vsub.f32 %v1018, %v6022
  %v6024 = vand.u32 %v6023, 4294901760
  %6025 = vmatpush1.msra.mxu0 %v6024
  %6026 = vmatprep.subr.mxu0 0.0
  %v6027 = vand.u32 %v1019, 4294901760
  %v6028 = vsub.f32 %v1019, %v6027
  %v6029 = vand.u32 %v6028, 4294901760
  %6030 = vmatpush1.msra.mxu0 %v6029
  %6031 = vmatprep.subr.mxu0 0.0
  %6032 = vmatpush1.msra.mxu0 0.0
  %6033 = vmatprep.subr.mxu0 0.0
  %6034 = vmatpush1.msra.mxu0 0.0
  %6035 = vmatprep.subr.mxu0 0.0
  %6036 = vmatpush1.msra.mxu0 0.0
  %6037 = vmatprep.subr.mxu0 0.0
  %6038 = vmatpush1.msra.mxu0 0.0
  %6039 = vmatprep.subr.mxu0 0.0
  %6040 = vmatpush1.msra.mxu0 0.0
  %6041 = vmatprep.subr.mxu0 0.0
  %6042 = vmatpush1.msra.mxu0 0.0
  %6043 = vmatprep.subr.mxu0 0.0
  %6044 = vmatpush1.msra.mxu0 0.0
  %6045 = vmatprep.subr.mxu0 0.0
  %6046 = vmatpush1.msra.mxu0 0.0
  %6047 = vmatprep.subr.mxu0 0.0
  %6048 = vmatpush1.msra.mxu0 0.0
  %6049 = vmatprep.subr.mxu0 0.0
  %6050 = vmatpush1.msra.mxu0 0.0
  %6051 = vmatprep.subr.mxu0 0.0
  %6052 = vmatpush1.msra.mxu0 0.0
  %6053 = vmatprep.subr.mxu0 0.0
  %6054 = vmatpush1.msra.mxu0 0.0
  %6055 = vmatprep.subr.mxu0 0.0
  %6056 = vmatpush1.msra.mxu0 0.0
  %6057 = vmatprep.subr.mxu0 0.0
  %6058 = vmatpush1.msra.mxu0 0.0
  %6059 = vmatprep.subr.mxu0 0.0
  %6060 = vmatpush1.msra.mxu0 0.0
  %6061 = vmatprep.subr.mxu0 0.0
  %6062 = vmatpush1.msra.mxu0 0.0
  %6063 = vmatprep.mubr.f32.mxu0 0.0
  %v6064 = vand.u32 %v5514, 4294901760
  %6065 = vmatmul.mubr.f32.gmra.mrb[0].mxu0 %v6064
  %v6066 = vpop.f32.mrb[0].mxu0
  %v6067 = vadd.f32 %v5948, %v6066
  %v6068 = vpop.f32.mrb[0].mxu0
  %6069 = vdwg.mxu0
  %6070 = vmatprep.subr.mxu0 0.0
  %v6071 = vand.u32 %v1004, 4294901760
  %6072 = vmatpush1.msra.mxu0 %v6071
  %6073 = vmatprep.subr.mxu0 0.0
  %v6074 = vand.u32 %v1005, 4294901760
  %6075 = vmatpush1.msra.mxu0 %v6074
  %6076 = vmatprep.subr.mxu0 0.0
  %v6077 = vand.u32 %v1006, 4294901760
  %6078 = vmatpush1.msra.mxu0 %v6077
  %6079 = vmatprep.subr.mxu0 0.0
  %v6080 = vand.u32 %v1007, 4294901760
  %6081 = vmatpush1.msra.mxu0 %v6080
  %6082 = vmatprep.subr.mxu0 0.0
  %v6083 = vand.u32 %v1008, 4294901760
  %6084 = vmatpush1.msra.mxu0 %v6083
  %6085 = vmatprep.subr.mxu0 0.0
  %v6086 = vand.u32 %v1009, 4294901760
  %6087 = vmatpush1.msra.mxu0 %v6086
  %6088 = vmatprep.subr.mxu0 0.0
  %v6089 = vand.u32 %v1010, 4294901760
  %6090 = vmatpush1.msra.mxu0 %v6089
  %6091 = vmatprep.subr.mxu0 0.0
  %v6092 = vand.u32 %v1011, 4294901760
  %6093 = vmatpush1.msra.mxu0 %v6092
  %6094 = vmatprep.subr.mxu0 0.0
  %v6095 = vand.u32 %v1012, 4294901760
  %6096 = vmatpush1.msra.mxu0 %v6095
  %6097 = vmatprep.subr.mxu0 0.0
  %v6098 = vand.u32 %v1013, 4294901760
  %6099 = vmatpush1.msra.mxu0 %v6098
  %6100 = vmatprep.subr.mxu0 0.0
  %v6101 = vand.u32 %v1014, 4294901760
  %6102 = vmatpush1.msra.mxu0 %v6101
  %6103 = vmatprep.subr.mxu0 0.0
  %v6104 = vand.u32 %v1015, 4294901760
  %6105 = vmatpush1.msra.mxu0 %v6104
  %6106 = vmatprep.subr.mxu0 0.0
  %v6107 = vand.u32 %v1016, 4294901760
  %6108 = vmatpush1.msra.mxu0 %v6107
  %6109 = vmatprep.subr.mxu0 0.0
  %v6110 = vand.u32 %v1017, 4294901760
  %6111 = vmatpush1.msra.mxu0 %v6110
  %6112 = vmatprep.subr.mxu0 0.0
  %v6113 = vand.u32 %v1018, 4294901760
  %6114 = vmatpush1.msra.mxu0 %v6113
  %6115 = vmatprep.subr.mxu0 0.0
  %v6116 = vand.u32 %v1019, 4294901760
  %6117 = vmatpush1.msra.mxu0 %v6116
  %6118 = vmatprep.subr.mxu0 0.0
  %6119 = vmatpush1.msra.mxu0 0.0
  %6120 = vmatprep.subr.mxu0 0.0
  %6121 = vmatpush1.msra.mxu0 0.0
  %6122 = vmatprep.subr.mxu0 0.0
  %6123 = vmatpush1.msra.mxu0 0.0
  %6124 = vmatprep.subr.mxu0 0.0
  %6125 = vmatpush1.msra.mxu0 0.0
  %6126 = vmatprep.subr.mxu0 0.0
  %6127 = vmatpush1.msra.mxu0 0.0
  %6128 = vmatprep.subr.mxu0 0.0
  %6129 = vmatpush1.msra.mxu0 0.0
  %6130 = vmatprep.subr.mxu0 0.0
  %6131 = vmatpush1.msra.mxu0 0.0
  %6132 = vmatprep.subr.mxu0 0.0
  %6133 = vmatpush1.msra.mxu0 0.0
  %6134 = vmatprep.subr.mxu0 0.0
  %6135 = vmatpush1.msra.mxu0 0.0
  %6136 = vmatprep.subr.mxu0 0.0
  %6137 = vmatpush1.msra.mxu0 0.0
  %6138 = vmatprep.subr.mxu0 0.0
  %6139 = vmatpush1.msra.mxu0 0.0
  %6140 = vmatprep.subr.mxu0 0.0
  %6141 = vmatpush1.msra.mxu0 0.0
  %6142 = vmatprep.subr.mxu0 0.0
  %6143 = vmatpush1.msra.mxu0 0.0
  %6144 = vmatprep.subr.mxu0 0.0
  %6145 = vmatpush1.msra.mxu0 0.0
  %6146 = vmatprep.subr.mxu0 0.0
  %6147 = vmatpush1.msra.mxu0 0.0
  %6148 = vmatprep.subr.mxu0 0.0
  %6149 = vmatpush1.msra.mxu0 0.0
  %6150 = vmatprep.mubr.f32.mxu0 0.0
  %v6151 = vand.u32 %v5514, 4294901760
  %6152 = vmatmul.mubr.f32.gmra.mrb[0].mxu0 %v6151
  %v6153 = vpop.f32.mrb[0].mxu0
  %v6154 = vadd.f32 %v6067, %v6153
  %v6155 = vpop.f32.mrb[0].mxu0
  %6156 = vdwg.mxu0
  %v6157 = vadd.f32 %v5515, %v6154
  %v6158 = vtanh.pop %v6157
  %v6159 = vld [vmem:[%s3] sm:$0xff]
  %v6160 = vld [vmem:[%s3 + $0x8] sm:$0xff]
  %v6161 = vld [vmem:[%s3 + $0x10] sm:$0xff]
  %v6162 = vld [vmem:[%s3 + $0x18] sm:$0xff]
  %v6163 = vld [vmem:[%s3 + $0x20] sm:$0xff]
  %v6164 = vld [vmem:[%s3 + $0x28] sm:$0xff]
  %v6165 = vld [vmem:[%s3 + $0x30] sm:$0xff]
  %v6166 = vld [vmem:[%s3 + $0x38] sm:$0xff]
  %v6167 = vld [vmem:[%s3 + $0x40] sm:$0xff]
  %v6168 = vld [vmem:[%s3 + $0x48] sm:$0xff]
  %v6169 = vld [vmem:[%s3 + $0x50] sm:$0xff]
  %v6170 = vld [vmem:[%s3 + $0x58] sm:$0xff]
  %v6171 = vld [vmem:[%s3 + $0x60] sm:$0xff]
  %v6172 = vld [vmem:[%s3 + $0x68] sm:$0xff]
  %v6173 = vld [vmem:[%s3 + $0x70] sm:$0xff]
  %v6174 = vld [vmem:[%s3 + $0x78] sm:$0xff]
  %v6175 = vld [vmem:[%s5] sm:$0x1]
  %v6177 = vlaneseq
  %v6178 = vshrl.u32 %v6177, 7
  %v6179 = vsub.s32 0, %v6178
  %v6180 = vrot.slane %v6175, %v6179
  %6182 = vmatprep.subr.mxu0 0.0
  %v6183 = vand.u32 %v6159, 4294901760
  %6184 = vmatpush1.msra.mxu0 %v6183
  %6185 = vmatprep.subr.mxu0 0.0
  %v6186 = vand.u32 %v6160, 4294901760
  %6187 = vmatpush1.msra.mxu0 %v6186
  %6188 = vmatprep.subr.mxu0 0.0
  %v6189 = vand.u32 %v6161, 4294901760
  %6190 = vmatpush1.msra.mxu0 %v6189
  %6191 = vmatprep.subr.mxu0 0.0
  %v6192 = vand.u32 %v6162, 4294901760
  %6193 = vmatpush1.msra.mxu0 %v6192
  %6194 = vmatprep.subr.mxu0 0.0
  %v6195 = vand.u32 %v6163, 4294901760
  %6196 = vmatpush1.msra.mxu0 %v6195
  %6197 = vmatprep.subr.mxu0 0.0
  %v6198 = vand.u32 %v6164, 4294901760
  %6199 = vmatpush1.msra.mxu0 %v6198
  %6200 = vmatprep.subr.mxu0 0.0
  %v6201 = vand.u32 %v6165, 4294901760
  %6202 = vmatpush1.msra.mxu0 %v6201
  %6203 = vmatprep.subr.mxu0 0.0
  %v6204 = vand.u32 %v6166, 4294901760
  %6205 = vmatpush1.msra.mxu0 %v6204
  %6206 = vmatprep.subr.mxu0 0.0
  %v6207 = vand.u32 %v6167, 4294901760
  %6208 = vmatpush1.msra.mxu0 %v6207
  %6209 = vmatprep.subr.mxu0 0.0
  %v6210 = vand.u32 %v6168, 4294901760
  %6211 = vmatpush1.msra.mxu0 %v6210
  %6212 = vmatprep.subr.mxu0 0.0
  %v6213 = vand.u32 %v6169, 4294901760
  %6214 = vmatpush1.msra.mxu0 %v6213
  %6215 = vmatprep.subr.mxu0 0.0
  %v6216 = vand.u32 %v6170, 4294901760
  %6217 = vmatpush1.msra.mxu0 %v6216
  %6218 = vmatprep.subr.mxu0 0.0
  %v6219 = vand.u32 %v6171, 4294901760
  %6220 = vmatpush1.msra.mxu0 %v6219
  %6221 = vmatprep.subr.mxu0 0.0
  %v6222 = vand.u32 %v6172, 4294901760
  %6223 = vmatpush1.msra.mxu0 %v6222
  %6224 = vmatprep.subr.mxu0 0.0
  %v6225 = vand.u32 %v6173, 4294901760
  %6226 = vmatpush1.msra.mxu0 %v6225
  %6227 = vmatprep.subr.mxu0 0.0
  %v6228 = vand.u32 %v6174, 4294901760
  %6229 = vmatpush1.msra.mxu0 %v6228
  %6230 = vmatprep.subr.mxu0 0.0
  %6231 = vmatpush1.msra.mxu0 0.0
  %6232 = vmatprep.subr.mxu0 0.0
  %6233 = vmatpush1.msra.mxu0 0.0
  %6234 = vmatprep.subr.mxu0 0.0
  %6235 = vmatpush1.msra.mxu0 0.0
  %6236 = vmatprep.subr.mxu0 0.0
  %6237 = vmatpush1.msra.mxu0 0.0
  %6238 = vmatprep.subr.mxu0 0.0
  %6239 = vmatpush1.msra.mxu0 0.0
  %6240 = vmatprep.subr.mxu0 0.0
  %6241 = vmatpush1.msra.mxu0 0.0
  %6242 = vmatprep.subr.mxu0 0.0
  %6243 = vmatpush1.msra.mxu0 0.0
  %6244 = vmatprep.subr.mxu0 0.0
  %6245 = vmatpush1.msra.mxu0 0.0
  %6246 = vmatprep.subr.mxu0 0.0
  %6247 = vmatpush1.msra.mxu0 0.0
  %6248 = vmatprep.subr.mxu0 0.0
  %6249 = vmatpush1.msra.mxu0 0.0
  %6250 = vmatprep.subr.mxu0 0.0
  %6251 = vmatpush1.msra.mxu0 0.0
  %6252 = vmatprep.subr.mxu0 0.0
  %6253 = vmatpush1.msra.mxu0 0.0
  %6254 = vmatprep.subr.mxu0 0.0
  %6255 = vmatpush1.msra.mxu0 0.0
  %6256 = vmatprep.subr.mxu0 0.0
  %6257 = vmatpush1.msra.mxu0 0.0
  %6258 = vmatprep.subr.mxu0 0.0
  %6259 = vmatpush1.msra.mxu0 0.0
  %6260 = vmatprep.subr.mxu0 0.0
  %6261 = vmatpush1.msra.mxu0 0.0
  %6262 = vmatprep.mubr.f32.mxu0 0.0
  %v6263 = vand.u32 %v6158, 4294901760
  %v6264 = vsub.f32 %v6158, %v6263
  %v6265 = vand.u32 %v6264, 4294901760
  %v6266 = vsub.f32 %v6264, %v6265
  %v6267 = vand.u32 %v6266, 4294901760
  %6268 = vmatmul.mubr.f32.gmra.mrb[0].mxu0 %v6267
  %v6269 = vpop.f32.mrb[0].mxu0
  %v6270 = vadd.f32 %v6180, %v6269
  %v6271 = vpop.f32.mrb[0].mxu0
  %6272 = vdwg.mxu0
  %6273 = vmatprep.subr.mxu0 0.0
  %v6274 = vand.u32 %v6159, 4294901760
  %v6275 = vsub.f32 %v6159, %v6274
  %v6276 = vand.u32 %v6275, 4294901760
  %v6277 = vsub.f32 %v6275, %v6276
  %v6278 = vand.u32 %v6277, 4294901760
  %6279 = vmatpush1.msra.mxu0 %v6278
  %6280 = vmatprep.subr.mxu0 0.0
  %v6281 = vand.u32 %v6160, 4294901760
  %v6282 = vsub.f32 %v6160, %v6281
  %v6283 = vand.u32 %v6282, 4294901760
  %v6284 = vsub.f32 %v6282, %v6283
  %v6285 = vand.u32 %v6284, 4294901760
  %6286 = vmatpush1.msra.mxu0 %v6285
  %6287 = vmatprep.subr.mxu0 0.0
  %v6288 = vand.u32 %v6161, 4294901760
  %v6289 = vsub.f32 %v6161, %v6288
  %v6290 = vand.u32 %v6289, 4294901760
  %v6291 = vsub.f32 %v6289, %v6290
  %v6292 = vand.u32 %v6291, 4294901760
  %6293 = vmatpush1.msra.mxu0 %v6292
  %6294 = vmatprep.subr.mxu0 0.0
  %v6295 = vand.u32 %v6162, 4294901760
  %v6296 = vsub.f32 %v6162, %v6295
  %v6297 = vand.u32 %v6296, 4294901760
  %v6298 = vsub.f32 %v6296, %v6297
  %v6299 = vand.u32 %v6298, 4294901760
  %6300 = vmatpush1.msra.mxu0 %v6299
  %6301 = vmatprep.subr.mxu0 0.0
  %v6302 = vand.u32 %v6163, 4294901760
  %v6303 = vsub.f32 %v6163, %v6302
  %v6304 = vand.u32 %v6303, 4294901760
  %v6305 = vsub.f32 %v6303, %v6304
  %v6306 = vand.u32 %v6305, 4294901760
  %6307 = vmatpush1.msra.mxu0 %v6306
  %6308 = vmatprep.subr.mxu0 0.0
  %v6309 = vand.u32 %v6164, 4294901760
  %v6310 = vsub.f32 %v6164, %v6309
  %v6311 = vand.u32 %v6310, 4294901760
  %v6312 = vsub.f32 %v6310, %v6311
  %v6313 = vand.u32 %v6312, 4294901760
  %6314 = vmatpush1.msra.mxu0 %v6313
  %6315 = vmatprep.subr.mxu0 0.0
  %v6316 = vand.u32 %v6165, 4294901760
  %v6317 = vsub.f32 %v6165, %v6316
  %v6318 = vand.u32 %v6317, 4294901760
  %v6319 = vsub.f32 %v6317, %v6318
  %v6320 = vand.u32 %v6319, 4294901760
  %6321 = vmatpush1.msra.mxu0 %v6320
  %6322 = vmatprep.subr.mxu0 0.0
  %v6323 = vand.u32 %v6166, 4294901760
  %v6324 = vsub.f32 %v6166, %v6323
  %v6325 = vand.u32 %v6324, 4294901760
  %v6326 = vsub.f32 %v6324, %v6325
  %v6327 = vand.u32 %v6326, 4294901760
  %6328 = vmatpush1.msra.mxu0 %v6327
  %6329 = vmatprep.subr.mxu0 0.0
  %v6330 = vand.u32 %v6167, 4294901760
  %v6331 = vsub.f32 %v6167, %v6330
  %v6332 = vand.u32 %v6331, 4294901760
  %v6333 = vsub.f32 %v6331, %v6332
  %v6334 = vand.u32 %v6333, 4294901760
  %6335 = vmatpush1.msra.mxu0 %v6334
  %6336 = vmatprep.subr.mxu0 0.0
  %v6337 = vand.u32 %v6168, 4294901760
  %v6338 = vsub.f32 %v6168, %v6337
  %v6339 = vand.u32 %v6338, 4294901760
  %v6340 = vsub.f32 %v6338, %v6339
  %v6341 = vand.u32 %v6340, 4294901760
  %6342 = vmatpush1.msra.mxu0 %v6341
  %6343 = vmatprep.subr.mxu0 0.0
  %v6344 = vand.u32 %v6169, 4294901760
  %v6345 = vsub.f32 %v6169, %v6344
  %v6346 = vand.u32 %v6345, 4294901760
  %v6347 = vsub.f32 %v6345, %v6346
  %v6348 = vand.u32 %v6347, 4294901760
  %6349 = vmatpush1.msra.mxu0 %v6348
  %6350 = vmatprep.subr.mxu0 0.0
  %v6351 = vand.u32 %v6170, 4294901760
  %v6352 = vsub.f32 %v6170, %v6351
  %v6353 = vand.u32 %v6352, 4294901760
  %v6354 = vsub.f32 %v6352, %v6353
  %v6355 = vand.u32 %v6354, 4294901760
  %6356 = vmatpush1.msra.mxu0 %v6355
  %6357 = vmatprep.subr.mxu0 0.0
  %v6358 = vand.u32 %v6171, 4294901760
  %v6359 = vsub.f32 %v6171, %v6358
  %v6360 = vand.u32 %v6359, 4294901760
  %v6361 = vsub.f32 %v6359, %v6360
  %v6362 = vand.u32 %v6361, 4294901760
  %6363 = vmatpush1.msra.mxu0 %v6362
  %6364 = vmatprep.subr.mxu0 0.0
  %v6365 = vand.u32 %v6172, 4294901760
  %v6366 = vsub.f32 %v6172, %v6365
  %v6367 = vand.u32 %v6366, 4294901760
  %v6368 = vsub.f32 %v6366, %v6367
  %v6369 = vand.u32 %v6368, 4294901760
  %6370 = vmatpush1.msra.mxu0 %v6369
  %6371 = vmatprep.subr.mxu0 0.0
  %v6372 = vand.u32 %v6173, 4294901760
  %v6373 = vsub.f32 %v6173, %v6372
  %v6374 = vand.u32 %v6373, 4294901760
  %v6375 = vsub.f32 %v6373, %v6374
  %v6376 = vand.u32 %v6375, 4294901760
  %6377 = vmatpush1.msra.mxu0 %v6376
  %6378 = vmatprep.subr.mxu0 0.0
  %v6379 = vand.u32 %v6174, 4294901760
  %v6380 = vsub.f32 %v6174, %v6379
  %v6381 = vand.u32 %v6380, 4294901760
  %v6382 = vsub.f32 %v6380, %v6381
  %v6383 = vand.u32 %v6382, 4294901760
  %6384 = vmatpush1.msra.mxu0 %v6383
  %6385 = vmatprep.subr.mxu0 0.0
  %6386 = vmatpush1.msra.mxu0 0.0
  %6387 = vmatprep.subr.mxu0 0.0
  %6388 = vmatpush1.msra.mxu0 0.0
  %6389 = vmatprep.subr.mxu0 0.0
  %6390 = vmatpush1.msra.mxu0 0.0
  %6391 = vmatprep.subr.mxu0 0.0
  %6392 = vmatpush1.msra.mxu0 0.0
  %6393 = vmatprep.subr.mxu0 0.0
  %6394 = vmatpush1.msra.mxu0 0.0
  %6395 = vmatprep.subr.mxu0 0.0
  %6396 = vmatpush1.msra.mxu0 0.0
  %6397 = vmatprep.subr.mxu0 0.0
  %6398 = vmatpush1.msra.mxu0 0.0
  %6399 = vmatprep.subr.mxu0 0.0
  %6400 = vmatpush1.msra.mxu0 0.0
  %6401 = vmatprep.subr.mxu0 0.0
  %6402 = vmatpush1.msra.mxu0 0.0
  %6403 = vmatprep.subr.mxu0 0.0
  %6404 = vmatpush1.msra.mxu0 0.0
  %6405 = vmatprep.subr.mxu0 0.0
  %6406 = vmatpush1.msra.mxu0 0.0
  %6407 = vmatprep.subr.mxu0 0.0
  %6408 = vmatpush1.msra.mxu0 0.0
  %6409 = vmatprep.subr.mxu0 0.0
  %6410 = vmatpush1.msra.mxu0 0.0
  %6411 = vmatprep.subr.mxu0 0.0
  %6412 = vmatpush1.msra.mxu0 0.0
  %6413 = vmatprep.subr.mxu0 0.0
  %6414 = vmatpush1.msra.mxu0 0.0
  %6415 = vmatprep.subr.mxu0 0.0
  %6416 = vmatpush1.msra.mxu0 0.0
  %6417 = vmatprep.mubr.f32.mxu0 0.0
  %v6418 = vand.u32 %v6158, 4294901760
  %6419 = vmatmul.mubr.f32.gmra.mrb[0].mxu0 %v6418
  %v6420 = vpop.f32.mrb[0].mxu0
  %v6421 = vadd.f32 %v6270, %v6420
  %v6422 = vpop.f32.mrb[0].mxu0
  %6423 = vdwg.mxu0
  %6424 = vmatprep.subr.mxu0 0.0
  %v6425 = vand.u32 %v6159, 4294901760
  %v6426 = vsub.f32 %v6159, %v6425
  %6427 = vmatpush1.msra.mxu0 %v6426
  %6428 = vmatprep.subr.mxu0 0.0
  %v6429 = vand.u32 %v6160, 4294901760
  %v6430 = vsub.f32 %v6160, %v6429
  %6431 = vmatpush1.msra.mxu0 %v6430
  %6432 = vmatprep.subr.mxu0 0.0
  %v6433 = vand.u32 %v6161, 4294901760
  %v6434 = vsub.f32 %v6161, %v6433
  %6435 = vmatpush1.msra.mxu0 %v6434
  %6436 = vmatprep.subr.mxu0 0.0
  %v6437 = vand.u32 %v6162, 4294901760
  %v6438 = vsub.f32 %v6162, %v6437
  %6439 = vmatpush1.msra.mxu0 %v6438
  %6440 = vmatprep.subr.mxu0 0.0
  %v6441 = vand.u32 %v6163, 4294901760
  %v6442 = vsub.f32 %v6163, %v6441
  %6443 = vmatpush1.msra.mxu0 %v6442
  %6444 = vmatprep.subr.mxu0 0.0
  %v6445 = vand.u32 %v6164, 4294901760
  %v6446 = vsub.f32 %v6164, %v6445
  %6447 = vmatpush1.msra.mxu0 %v6446
  %6448 = vmatprep.subr.mxu0 0.0
  %v6449 = vand.u32 %v6165, 4294901760
  %v6450 = vsub.f32 %v6165, %v6449
  %6451 = vmatpush1.msra.mxu0 %v6450
  %6452 = vmatprep.subr.mxu0 0.0
  %v6453 = vand.u32 %v6166, 4294901760
  %v6454 = vsub.f32 %v6166, %v6453
  %6455 = vmatpush1.msra.mxu0 %v6454
  %6456 = vmatprep.subr.mxu0 0.0
  %v6457 = vand.u32 %v6167, 4294901760
  %v6458 = vsub.f32 %v6167, %v6457
  %6459 = vmatpush1.msra.mxu0 %v6458
  %6460 = vmatprep.subr.mxu0 0.0
  %v6461 = vand.u32 %v6168, 4294901760
  %v6462 = vsub.f32 %v6168, %v6461
  %6463 = vmatpush1.msra.mxu0 %v6462
  %6464 = vmatprep.subr.mxu0 0.0
  %v6465 = vand.u32 %v6169, 4294901760
  %v6466 = vsub.f32 %v6169, %v6465
  %6467 = vmatpush1.msra.mxu0 %v6466
  %6468 = vmatprep.subr.mxu0 0.0
  %v6469 = vand.u32 %v6170, 4294901760
  %v6470 = vsub.f32 %v6170, %v6469
  %6471 = vmatpush1.msra.mxu0 %v6470
  %6472 = vmatprep.subr.mxu0 0.0
  %v6473 = vand.u32 %v6171, 4294901760
  %v6474 = vsub.f32 %v6171, %v6473
  %6475 = vmatpush1.msra.mxu0 %v6474
  %6476 = vmatprep.subr.mxu0 0.0
  %v6477 = vand.u32 %v6172, 4294901760
  %v6478 = vsub.f32 %v6172, %v6477
  %6479 = vmatpush1.msra.mxu0 %v6478
  %6480 = vmatprep.subr.mxu0 0.0
  %v6481 = vand.u32 %v6173, 4294901760
  %v6482 = vsub.f32 %v6173, %v6481
  %6483 = vmatpush1.msra.mxu0 %v6482
  %6484 = vmatprep.subr.mxu0 0.0
  %v6485 = vand.u32 %v6174, 4294901760
  %v6486 = vsub.f32 %v6174, %v6485
  %6487 = vmatpush1.msra.mxu0 %v6486
  %6488 = vmatprep.subr.mxu0 0.0
  %6489 = vmatpush1.msra.mxu0 0.0
  %6490 = vmatprep.subr.mxu0 0.0
  %6491 = vmatpush1.msra.mxu0 0.0
  %6492 = vmatprep.subr.mxu0 0.0
  %6493 = vmatpush1.msra.mxu0 0.0
  %6494 = vmatprep.subr.mxu0 0.0
  %6495 = vmatpush1.msra.mxu0 0.0
  %6496 = vmatprep.subr.mxu0 0.0
  %6497 = vmatpush1.msra.mxu0 0.0
  %6498 = vmatprep.subr.mxu0 0.0
  %6499 = vmatpush1.msra.mxu0 0.0
  %6500 = vmatprep.subr.mxu0 0.0
  %6501 = vmatpush1.msra.mxu0 0.0
  %6502 = vmatprep.subr.mxu0 0.0
  %6503 = vmatpush1.msra.mxu0 0.0
  %6504 = vmatprep.subr.mxu0 0.0
  %6505 = vmatpush1.msra.mxu0 0.0
  %6506 = vmatprep.subr.mxu0 0.0
  %6507 = vmatpush1.msra.mxu0 0.0
  %6508 = vmatprep.subr.mxu0 0.0
  %6509 = vmatpush1.msra.mxu0 0.0
  %6510 = vmatprep.subr.mxu0 0.0
  %6511 = vmatpush1.msra.mxu0 0.0
  %6512 = vmatprep.subr.mxu0 0.0
  %6513 = vmatpush1.msra.mxu0 0.0
  %6514 = vmatprep.subr.mxu0 0.0
  %6515 = vmatpush1.msra.mxu0 0.0
  %6516 = vmatprep.subr.mxu0 0.0
  %6517 = vmatpush1.msra.mxu0 0.0
  %6518 = vmatprep.subr.mxu0 0.0
  %6519 = vmatpush1.msra.mxu0 0.0
  %6520 = vmatprep.mubr.f32.mxu0 0.0
  %v6521 = vand.u32 %v6158, 4294901760
  %v6522 = vsub.f32 %v6158, %v6521
  %6523 = vmatmul.mubr.f32.gmra.mrb[0].mxu0 %v6522
  %v6524 = vpop.f32.mrb[0].mxu0
  %v6525 = vadd.f32 %v6421, %v6524
  %v6526 = vpop.f32.mrb[0].mxu0
  %6527 = vdwg.mxu0
  %6528 = vmatprep.subr.mxu0 0.0
  %v6529 = vand.u32 %v6159, 4294901760
  %6530 = vmatpush1.msra.mxu0 %v6529
  %6531 = vmatprep.subr.mxu0 0.0
  %v6532 = vand.u32 %v6160, 4294901760
  %6533 = vmatpush1.msra.mxu0 %v6532
  %6534 = vmatprep.subr.mxu0 0.0
  %v6535 = vand.u32 %v6161, 4294901760
  %6536 = vmatpush1.msra.mxu0 %v6535
  %6537 = vmatprep.subr.mxu0 0.0
  %v6538 = vand.u32 %v6162, 4294901760
  %6539 = vmatpush1.msra.mxu0 %v6538
  %6540 = vmatprep.subr.mxu0 0.0
  %v6541 = vand.u32 %v6163, 4294901760
  %6542 = vmatpush1.msra.mxu0 %v6541
  %6543 = vmatprep.subr.mxu0 0.0
  %v6544 = vand.u32 %v6164, 4294901760
  %6545 = vmatpush1.msra.mxu0 %v6544
  %6546 = vmatprep.subr.mxu0 0.0
  %v6547 = vand.u32 %v6165, 4294901760
  %6548 = vmatpush1.msra.mxu0 %v6547
  %6549 = vmatprep.subr.mxu0 0.0
  %v6550 = vand.u32 %v6166, 4294901760
  %6551 = vmatpush1.msra.mxu0 %v6550
  %6552 = vmatprep.subr.mxu0 0.0
  %v6553 = vand.u32 %v6167, 4294901760
  %6554 = vmatpush1.msra.mxu0 %v6553
  %6555 = vmatprep.subr.mxu0 0.0
  %v6556 = vand.u32 %v6168, 4294901760
  %6557 = vmatpush1.msra.mxu0 %v6556
  %6558 = vmatprep.subr.mxu0 0.0
  %v6559 = vand.u32 %v6169, 4294901760
  %6560 = vmatpush1.msra.mxu0 %v6559
  %6561 = vmatprep.subr.mxu0 0.0
  %v6562 = vand.u32 %v6170, 4294901760
  %6563 = vmatpush1.msra.mxu0 %v6562
  %6564 = vmatprep.subr.mxu0 0.0
  %v6565 = vand.u32 %v6171, 4294901760
  %6566 = vmatpush1.msra.mxu0 %v6565
  %6567 = vmatprep.subr.mxu0 0.0
  %v6568 = vand.u32 %v6172, 4294901760
  %6569 = vmatpush1.msra.mxu0 %v6568
  %6570 = vmatprep.subr.mxu0 0.0
  %v6571 = vand.u32 %v6173, 4294901760
  %6572 = vmatpush1.msra.mxu0 %v6571
  %6573 = vmatprep.subr.mxu0 0.0
  %v6574 = vand.u32 %v6174, 4294901760
  %6575 = vmatpush1.msra.mxu0 %v6574
  %6576 = vmatprep.subr.mxu0 0.0
  %6577 = vmatpush1.msra.mxu0 0.0
  %6578 = vmatprep.subr.mxu0 0.0
  %6579 = vmatpush1.msra.mxu0 0.0
  %6580 = vmatprep.subr.mxu0 0.0
  %6581 = vmatpush1.msra.mxu0 0.0
  %6582 = vmatprep.subr.mxu0 0.0
  %6583 = vmatpush1.msra.mxu0 0.0
  %6584 = vmatprep.subr.mxu0 0.0
  %6585 = vmatpush1.msra.mxu0 0.0
  %6586 = vmatprep.subr.mxu0 0.0
  %6587 = vmatpush1.msra.mxu0 0.0
  %6588 = vmatprep.subr.mxu0 0.0
  %6589 = vmatpush1.msra.mxu0 0.0
  %6590 = vmatprep.subr.mxu0 0.0
  %6591 = vmatpush1.msra.mxu0 0.0
  %6592 = vmatprep.subr.mxu0 0.0
  %6593 = vmatpush1.msra.mxu0 0.0
  %6594 = vmatprep.subr.mxu0 0.0
  %6595 = vmatpush1.msra.mxu0 0.0
  %6596 = vmatprep.subr.mxu0 0.0
  %6597 = vmatpush1.msra.mxu0 0.0
  %6598 = vmatprep.subr.mxu0 0.0
  %6599 = vmatpush1.msra.mxu0 0.0
  %6600 = vmatprep.subr.mxu0 0.0
  %6601 = vmatpush1.msra.mxu0 0.0
  %6602 = vmatprep.subr.mxu0 0.0
  %6603 = vmatpush1.msra.mxu0 0.0
  %6604 = vmatprep.subr.mxu0 0.0
  %6605 = vmatpush1.msra.mxu0 0.0
  %6606 = vmatprep.subr.mxu0 0.0
  %6607 = vmatpush1.msra.mxu0 0.0
  %6608 = vmatprep.mubr.f32.mxu0 0.0
  %v6609 = vand.u32 %v6158, 4294901760
  %v6610 = vsub.f32 %v6158, %v6609
  %v6611 = vand.u32 %v6610, 4294901760
  %6612 = vmatmul.mubr.f32.gmra.mrb[0].mxu0 %v6611
  %v6613 = vpop.f32.mrb[0].mxu0
  %v6614 = vadd.f32 %v6525, %v6613
  %v6615 = vpop.f32.mrb[0].mxu0
  %6616 = vdwg.mxu0
  %6617 = vmatprep.subr.mxu0 0.0
  %v6618 = vand.u32 %v6159, 4294901760
  %v6619 = vsub.f32 %v6159, %v6618
  %v6620 = vand.u32 %v6619, 4294901760
  %6621 = vmatpush1.msra.mxu0 %v6620
  %6622 = vmatprep.subr.mxu0 0.0
  %v6623 = vand.u32 %v6160, 4294901760
  %v6624 = vsub.f32 %v6160, %v6623
  %v6625 = vand.u32 %v6624, 4294901760
  %6626 = vmatpush1.msra.mxu0 %v6625
  %6627 = vmatprep.subr.mxu0 0.0
  %v6628 = vand.u32 %v6161, 4294901760
  %v6629 = vsub.f32 %v6161, %v6628
  %v6630 = vand.u32 %v6629, 4294901760
  %6631 = vmatpush1.msra.mxu0 %v6630
  %6632 = vmatprep.subr.mxu0 0.0
  %v6633 = vand.u32 %v6162, 4294901760
  %v6634 = vsub.f32 %v6162, %v6633
  %v6635 = vand.u32 %v6634, 4294901760
  %6636 = vmatpush1.msra.mxu0 %v6635
  %6637 = vmatprep.subr.mxu0 0.0
  %v6638 = vand.u32 %v6163, 4294901760
  %v6639 = vsub.f32 %v6163, %v6638
  %v6640 = vand.u32 %v6639, 4294901760
  %6641 = vmatpush1.msra.mxu0 %v6640
  %6642 = vmatprep.subr.mxu0 0.0
  %v6643 = vand.u32 %v6164, 4294901760
  %v6644 = vsub.f32 %v6164, %v6643
  %v6645 = vand.u32 %v6644, 4294901760
  %6646 = vmatpush1.msra.mxu0 %v6645
  %6647 = vmatprep.subr.mxu0 0.0
  %v6648 = vand.u32 %v6165, 4294901760
  %v6649 = vsub.f32 %v6165, %v6648
  %v6650 = vand.u32 %v6649, 4294901760
  %6651 = vmatpush1.msra.mxu0 %v6650
  %6652 = vmatprep.subr.mxu0 0.0
  %v6653 = vand.u32 %v6166, 4294901760
  %v6654 = vsub.f32 %v6166, %v6653
  %v6655 = vand.u32 %v6654, 4294901760
  %6656 = vmatpush1.msra.mxu0 %v6655
  %6657 = vmatprep.subr.mxu0 0.0
  %v6658 = vand.u32 %v6167, 4294901760
  %v6659 = vsub.f32 %v6167, %v6658
  %v6660 = vand.u32 %v6659, 4294901760
  %6661 = vmatpush1.msra.mxu0 %v6660
  %6662 = vmatprep.subr.mxu0 0.0
  %v6663 = vand.u32 %v6168, 4294901760
  %v6664 = vsub.f32 %v6168, %v6663
  %v6665 = vand.u32 %v6664, 4294901760
  %6666 = vmatpush1.msra.mxu0 %v6665
  %6667 = vmatprep.subr.mxu0 0.0
  %v6668 = vand.u32 %v6169, 4294901760
  %v6669 = vsub.f32 %v6169, %v6668
  %v6670 = vand.u32 %v6669, 4294901760
  %6671 = vmatpush1.msra.mxu0 %v6670
  %6672 = vmatprep.subr.mxu0 0.0
  %v6673 = vand.u32 %v6170, 4294901760
  %v6674 = vsub.f32 %v6170, %v6673
  %v6675 = vand.u32 %v6674, 4294901760
  %6676 = vmatpush1.msra.mxu0 %v6675
  %6677 = vmatprep.subr.mxu0 0.0
  %v6678 = vand.u32 %v6171, 4294901760
  %v6679 = vsub.f32 %v6171, %v6678
  %v6680 = vand.u32 %v6679, 4294901760
  %6681 = vmatpush1.msra.mxu0 %v6680
  %6682 = vmatprep.subr.mxu0 0.0
  %v6683 = vand.u32 %v6172, 4294901760
  %v6684 = vsub.f32 %v6172, %v6683
  %v6685 = vand.u32 %v6684, 4294901760
  %6686 = vmatpush1.msra.mxu0 %v6685
  %6687 = vmatprep.subr.mxu0 0.0
  %v6688 = vand.u32 %v6173, 4294901760
  %v6689 = vsub.f32 %v6173, %v6688
  %v6690 = vand.u32 %v6689, 4294901760
  %6691 = vmatpush1.msra.mxu0 %v6690
  %6692 = vmatprep.subr.mxu0 0.0
  %v6693 = vand.u32 %v6174, 4294901760
  %v6694 = vsub.f32 %v6174, %v6693
  %v6695 = vand.u32 %v6694, 4294901760
  %6696 = vmatpush1.msra.mxu0 %v6695
  %6697 = vmatprep.subr.mxu0 0.0
  %6698 = vmatpush1.msra.mxu0 0.0
  %6699 = vmatprep.subr.mxu0 0.0
  %6700 = vmatpush1.msra.mxu0 0.0
  %6701 = vmatprep.subr.mxu0 0.0
  %6702 = vmatpush1.msra.mxu0 0.0
  %6703 = vmatprep.subr.mxu0 0.0
  %6704 = vmatpush1.msra.mxu0 0.0
  %6705 = vmatprep.subr.mxu0 0.0
  %6706 = vmatpush1.msra.mxu0 0.0
  %6707 = vmatprep.subr.mxu0 0.0
  %6708 = vmatpush1.msra.mxu0 0.0
  %6709 = vmatprep.subr.mxu0 0.0
  %6710 = vmatpush1.msra.mxu0 0.0
  %6711 = vmatprep.subr.mxu0 0.0
  %6712 = vmatpush1.msra.mxu0 0.0
  %6713 = vmatprep.subr.mxu0 0.0
  %6714 = vmatpush1.msra.mxu0 0.0
  %6715 = vmatprep.subr.mxu0 0.0
  %6716 = vmatpush1.msra.mxu0 0.0
  %6717 = vmatprep.subr.mxu0 0.0
  %6718 = vmatpush1.msra.mxu0 0.0
  %6719 = vmatprep.subr.mxu0 0.0
  %6720 = vmatpush1.msra.mxu0 0.0
  %6721 = vmatprep.subr.mxu0 0.0
  %6722 = vmatpush1.msra.mxu0 0.0
  %6723 = vmatprep.subr.mxu0 0.0
  %6724 = vmatpush1.msra.mxu0 0.0
  %6725 = vmatprep.subr.mxu0 0.0
  %6726 = vmatpush1.msra.mxu0 0.0
  %6727 = vmatprep.subr.mxu0 0.0
  %6728 = vmatpush1.msra.mxu0 0.0
  %6729 = vmatprep.mubr.f32.mxu0 0.0
  %v6730 = vand.u32 %v6158, 4294901760
  %6731 = vmatmul.mubr.f32.gmra.mrb[0].mxu0 %v6730
  %v6732 = vpop.f32.mrb[0].mxu0
  %v6733 = vadd.f32 %v6614, %v6732
  %v6734 = vpop.f32.mrb[0].mxu0
  %6735 = vdwg.mxu0
  %6736 = vmatprep.subr.mxu0 0.0
  %v6737 = vand.u32 %v6159, 4294901760
  %6738 = vmatpush1.msra.mxu0 %v6737
  %6739 = vmatprep.subr.mxu0 0.0
  %v6740 = vand.u32 %v6160, 4294901760
  %6741 = vmatpush1.msra.mxu0 %v6740
  %6742 = vmatprep.subr.mxu0 0.0
  %v6743 = vand.u32 %v6161, 4294901760
  %6744 = vmatpush1.msra.mxu0 %v6743
  %6745 = vmatprep.subr.mxu0 0.0
  %v6746 = vand.u32 %v6162, 4294901760
  %6747 = vmatpush1.msra.mxu0 %v6746
  %6748 = vmatprep.subr.mxu0 0.0
  %v6749 = vand.u32 %v6163, 4294901760
  %6750 = vmatpush1.msra.mxu0 %v6749
  %6751 = vmatprep.subr.mxu0 0.0
  %v6752 = vand.u32 %v6164, 4294901760
  %6753 = vmatpush1.msra.mxu0 %v6752
  %6754 = vmatprep.subr.mxu0 0.0
  %v6755 = vand.u32 %v6165, 4294901760
  %6756 = vmatpush1.msra.mxu0 %v6755
  %6757 = vmatprep.subr.mxu0 0.0
  %v6758 = vand.u32 %v6166, 4294901760
  %6759 = vmatpush1.msra.mxu0 %v6758
  %6760 = vmatprep.subr.mxu0 0.0
  %v6761 = vand.u32 %v6167, 4294901760
  %6762 = vmatpush1.msra.mxu0 %v6761
  %6763 = vmatprep.subr.mxu0 0.0
  %v6764 = vand.u32 %v6168, 4294901760
  %6765 = vmatpush1.msra.mxu0 %v6764
  %6766 = vmatprep.subr.mxu0 0.0
  %v6767 = vand.u32 %v6169, 4294901760
  %6768 = vmatpush1.msra.mxu0 %v6767
  %6769 = vmatprep.subr.mxu0 0.0
  %v6770 = vand.u32 %v6170, 4294901760
  %6771 = vmatpush1.msra.mxu0 %v6770
  %6772 = vmatprep.subr.mxu0 0.0
  %v6773 = vand.u32 %v6171, 4294901760
  %6774 = vmatpush1.msra.mxu0 %v6773
  %6775 = vmatprep.subr.mxu0 0.0
  %v6776 = vand.u32 %v6172, 4294901760
  %6777 = vmatpush1.msra.mxu0 %v6776
  %6778 = vmatprep.subr.mxu0 0.0
  %v6779 = vand.u32 %v6173, 4294901760
  %6780 = vmatpush1.msra.mxu0 %v6779
  %6781 = vmatprep.subr.mxu0 0.0
  %v6782 = vand.u32 %v6174, 4294901760
  %6783 = vmatpush1.msra.mxu0 %v6782
  %6784 = vmatprep.subr.mxu0 0.0
  %6785 = vmatpush1.msra.mxu0 0.0
  %6786 = vmatprep.subr.mxu0 0.0
  %6787 = vmatpush1.msra.mxu0 0.0
  %6788 = vmatprep.subr.mxu0 0.0
  %6789 = vmatpush1.msra.mxu0 0.0
  %6790 = vmatprep.subr.mxu0 0.0
  %6791 = vmatpush1.msra.mxu0 0.0
  %6792 = vmatprep.subr.mxu0 0.0
  %6793 = vmatpush1.msra.mxu0 0.0
  %6794 = vmatprep.subr.mxu0 0.0
  %6795 = vmatpush1.msra.mxu0 0.0
  %6796 = vmatprep.subr.mxu0 0.0
  %6797 = vmatpush1.msra.mxu0 0.0
  %6798 = vmatprep.subr.mxu0 0.0
  %6799 = vmatpush1.msra.mxu0 0.0
  %6800 = vmatprep.subr.mxu0 0.0
  %6801 = vmatpush1.msra.mxu0 0.0
  %6802 = vmatprep.subr.mxu0 0.0
  %6803 = vmatpush1.msra.mxu0 0.0
  %6804 = vmatprep.subr.mxu0 0.0
  %6805 = vmatpush1.msra.mxu0 0.0
  %6806 = vmatprep.subr.mxu0 0.0
  %6807 = vmatpush1.msra.mxu0 0.0
  %6808 = vmatprep.subr.mxu0 0.0
  %6809 = vmatpush1.msra.mxu0 0.0
  %6810 = vmatprep.subr.mxu0 0.0
  %6811 = vmatpush1.msra.mxu0 0.0
  %6812 = vmatprep.subr.mxu0 0.0
  %6813 = vmatpush1.msra.mxu0 0.0
  %6814 = vmatprep.subr.mxu0 0.0
  %6815 = vmatpush1.msra.mxu0 0.0
  %6816 = vmatprep.mubr.f32.mxu0 0.0
  %v6817 = vand.u32 %v6158, 4294901760
  %6818 = vmatmul.mubr.f32.gmra.mrb[0].mxu0 %v6817
  %v6819 = vpop.f32.mrb[0].mxu0
  %v6820 = vadd.f32 %v6733, %v6819
  %v6821 = vpop.f32.mrb[0].mxu0
  %6822 = vdwg.mxu0
  %6823 = vst [vmem:[%s6] sm:$0xff] %v6820
  // Predicated region
  $region26: #{rnn_forward.1} parent=0 // pred_check
    _
  $region27: #{rnn_forward.1} parent=0 // pred_check_branch
    %6825 = sbr.rel (0) target = $region29
  $region28: #{rnn_forward.1} parent=0 // pred_region
    _
  $region29: #{rnn_forward.1} parent=0 // pred_fallthru
    _
  // Predicated region
  $region30: #{rnn_forward.1} parent=0 // pred_check
    _
  $region31: #{rnn_forward.1} parent=0 // pred_check_branch
    %6827 = sbr.rel (0) target = $region33
  $region32: #{rnn_forward.1} parent=0 // pred_region
    _
  $region33: #{rnn_forward.1} parent=0 // pred_fallthru
    _

</llo_original>
